<compile_context>
chip_gen: v7x
topology: tpu7x:2x2x1
jax: 0.10.0
libtpu: 0.0.40
codegen_flags: <defaults>
</compile_context>

<pallas_src>
import jax
import jax.numpy as jnp
from jax.experimental import pallas as pl
from jax.experimental.pallas import tpu as pltpu

BN_EPS = 1e-5


def basic_block_kernel(x_ref, w1_ref, b1_ref, w2_ref, b2_ref, o_ref, pad_ref):
    # x_ref  : (Bt, H, W, C)      input tile, compute dtype
    # w1_ref : (9, C, P)          conv1 weights (BN1 folded), index [kh*3+kw, c, p]
    # b1_ref : (1, P)             folded BN1 bias, f32
    # w2_ref : (9, P, P)          conv2 weights (BN2 folded)
    # b2_ref : (1, P)             folded BN2 bias, f32
    # o_ref  : (Bt, H, W, P)      output tile (out dtype)
    # pad_ref: (Bt, H+2, W+2, C)  persistent VMEM scratch, compute dtype
    Bt, H, W, C = x_ref.shape
    P = w1_ref.shape[2]
    M = Bt * H * W
    cdt = x_ref.dtype

    # Zero the 1-pixel halo each grid step (O((H+W)*C) stores); the interior
    # is always fully overwritten below, so there is no cross-step staleness.
    zrow = jnp.zeros((Bt, 1, W + 2, C), cdt)
    zcol = jnp.zeros((Bt, H, 1, C), cdt)
    pad_ref[:, 0:1, :, :] = zrow
    pad_ref[:, H + 1:H + 2, :, :] = zrow
    pad_ref[:, 1:H + 1, 0:1, :] = zcol
    pad_ref[:, 1:H + 1, W + 1:W + 2, :] = zcol

    def conv3x3(w_ref, b_ref):
        # 9 MXU matmuls over shifted windows of the padded scratch.
        # Accumulator starts from tap (0,0) dot + broadcast bias (no zeros fill,
        # no standalone bias add).
        acc = None
        for kh in range(3):                               # statically unrolled
            for kw in range(3):
                win = pad_ref[:, kh:kh + H, kw:kw + W, :]  # (Bt, H, W, K)
                patch = win.reshape(M, win.shape[-1])      # (M, K)
                d = jnp.dot(patch, w_ref[kh * 3 + kw],
                            preferred_element_type=jnp.float32)
                acc = (d + b_ref[...]) if acc is None else acc + d
        return acc                                         # (M, P) f32

    # conv1 + (folded) bn1 + relu — result written back into the scratch
    # interior so conv2 reads the same padded buffer (border stays zero).
    pad_ref[:, 1:H + 1, 1:W + 1, :] = x_ref[...]
    h1 = conv3x3(w1_ref, b1_ref)
    pad_ref[:, 1:H + 1, 1:W + 1, :] = (
        jnp.maximum(h1, 0.0).astype(cdt).reshape(Bt, H, W, P))

    # conv2 + (folded) bn2 + identity shortcut + relu.
    h2 = conv3x3(w2_ref, b2_ref)
    out = h2 + x_ref[...].reshape(M, C).astype(jnp.float32)   # C == P shortcut
    o_ref[...] = jnp.maximum(out, 0.0).reshape(Bt, H, W, P).astype(o_ref.dtype)


def _fold_bn(w, bn):
    """Fold eval-mode BatchNorm into conv weight + bias. w: (P, Cin, 3, 3)."""
    g, b, m, v = bn
    s = (g * jax.lax.rsqrt(v + BN_EPS)).astype(jnp.float32)
    wf = w.astype(jnp.float32) * s[:, None, None, None]
    bias = (b - m * s).astype(jnp.float32)
    return wf, bias


def basic_block_forward_nhwc(x_nhwc, w1, bn1, w2, bn2, *,
                             compute_dtype=jnp.float32, out_dtype=None,
                             batch_block=1):
    """NHWC entry point (use this to chain blocks without NCHW transposes).

    x_nhwc: (N, H, W, C).  Returns (N, H, W, P) in `out_dtype`.
    compute_dtype: MXU operand dtype (accumulation is always f32).  bf16 is a
    direct win on v5e/v6e/v7x (native bf16 MXU, half the HBM/VMEM traffic);
    expect ~1e-2 agreement with the f32 reference instead of ~1e-5.
    out_dtype: defaults to compute_dtype (halves HBM writeback vs f32).
    batch_block: images per grid step (amortizes per-step pipeline overhead).
    """
    N, H, W, C = x_nhwc.shape
    P = w1.shape[0]
    assert C == P, "stride=1 / downsample=None requires inplanes == planes"
    assert N % batch_block == 0, "batch_block must divide N"
    out_dtype = compute_dtype if out_dtype is None else out_dtype
    Bt = batch_block

    # ---- fold eval-mode BatchNorm into conv weights + bias (one-time) ----
    w1f, b1v = _fold_bn(w1, bn1)
    w2f, b2v = _fold_bn(w2, bn2)
    # Kernel weight layout: (kh*3+kw, cin, p)
    w1_k = jnp.transpose(w1f, (2, 3, 1, 0)).reshape(9, C, P).astype(compute_dtype)
    w2_k = jnp.transpose(w2f, (2, 3, 1, 0)).reshape(9, P, P).astype(compute_dtype)
    b1 = b1v.reshape(1, P)
    b2 = b2v.reshape(1, P)

    x = x_nhwc.astype(compute_dtype)

    # ---- VMEM audit: per-step footprint (double-buffered I/O + scratch) ----
    cb = jnp.dtype(compute_dtype).itemsize
    ob = jnp.dtype(out_dtype).itemsize
    est = (2 * Bt * H * W * C * cb            # input double buffer
           + 2 * Bt * H * W * P * ob          # output double buffer
           + Bt * (H + 2) * (W + 2) * C * cb  # padded scratch
           + 2 * (9 * C * P + 9 * P * P) * cb + 4 * P * 4   # weights + biases
           + 2 * Bt * H * W * P * 4)          # live f32 accumulator / temporaries
    vmem_limit = int(min(96 * 2 ** 20, max(32 * 2 ** 20, 2 * est)))

    return pl.pallas_call(
        basic_block_kernel,
        out_shape=jax.ShapeDtypeStruct((N, H, W, P), out_dtype),
        grid_spec=pltpu.PrefetchScalarGridSpec(
            num_scalar_prefetch=0,
            grid=(N // Bt,),
            in_specs=[
                pl.BlockSpec((Bt, H, W, C), lambda n: (n, 0, 0, 0)),
                pl.BlockSpec((9, C, P), lambda n: (0, 0, 0)),
                pl.BlockSpec((1, P), lambda n: (0, 0)),
                pl.BlockSpec((9, P, P), lambda n: (0, 0, 0)),
                pl.BlockSpec((1, P), lambda n: (0, 0)),
            ],
            out_specs=pl.BlockSpec((Bt, H, W, P), lambda n: (n, 0, 0, 0)),
            scratch_shapes=[pltpu.VMEM((Bt, H + 2, W + 2, C), compute_dtype)],
        ),
        compiler_params=pltpu.CompilerParams(
            dimension_semantics=("parallel",),
            vmem_limit_bytes=vmem_limit,
        ),
    )(x, w1_k, b1, w2_k, b2)


def basic_block_forward(x_nchw, w1, bn1, w2, bn2, *,
                        compute_dtype=jnp.float32, out_dtype=None,
                        batch_block=1):
    """NCHW shim matching the PyTorch interface.  Prefer the NHWC entry point
    when chaining blocks to avoid a full HBM round trip per transpose."""
    x_nhwc = jnp.transpose(x_nchw, (0, 2, 3, 1))
    out_nhwc = basic_block_forward_nhwc(
        x_nhwc, w1, bn1, w2, bn2,
        compute_dtype=compute_dtype, out_dtype=out_dtype,
        batch_block=batch_block)
    return jnp.transpose(out_nhwc, (0, 3, 1, 2))


def basic_block_reference(x_nchw, w1, bn1, w2, bn2):
    """Pure-JAX reference (matches PyTorch BasicBlock in eval mode)."""
    def conv3x3(x, w):
        return jax.lax.conv_general_dilated(
            x, w, window_strides=(1, 1), padding=((1, 1), (1, 1)),
            dimension_numbers=("NCHW", "OIHW", "NCHW"))

    def bn(x, params):
        g, b, m, v = params
        s = g / jnp.sqrt(v + BN_EPS)
        return (x - m[None, :, None, None]) * s[None, :, None, None] \
            + b[None, :, None, None]

    out = jnp.maximum(bn(conv3x3(x_nchw, w1), bn1), 0.0)
    out = bn(conv3x3(out, w2), bn2)
    return jnp.maximum(out + x_nchw, 0.0)


if __name__ == "__main__":
    N, C, H, W = 2, 8, 16, 16     # inplanes = planes = 8, stride = 1
    P = C

    keys = jax.random.split(jax.random.PRNGKey(0), 12)
    x = jax.random.normal(keys[0], (N, C, H, W), jnp.float32)
    w1 = jax.random.normal(keys[1], (P, C, 3, 3), jnp.float32) * 0.1
    w2 = jax.random.normal(keys[2], (P, P, 3, 3), jnp.float32) * 0.1
    bn1 = (jax.random.uniform(keys[3], (P,), minval=0.5, maxval=1.5),  # gamma
           jax.random.normal(keys[4], (P,)) * 0.1,                     # beta
           jax.random.normal(keys[5], (P,)) * 0.1,                     # running_mean
           jax.random.uniform(keys[6], (P,), minval=0.5, maxval=1.5))  # running_var
    bn2 = (jax.random.uniform(keys[7], (P,), minval=0.5, maxval=1.5),
           jax.random.normal(keys[8], (P,)) * 0.1,
           jax.random.normal(keys[9], (P,)) * 0.1,
           jax.random.uniform(keys[10], (P,), minval=0.5, maxval=1.5))

    # f32 compute + f32 output for a tight tolerance check (multi-step grid
    # exercises the per-step scratch halo re-zeroing). Pass
    # compute_dtype=jnp.bfloat16 for production shapes on v5e/v6e/v7x.
    out = jax.block_until_ready(basic_block_forward(x, w1, bn1, w2, bn2))
    ref = jax.block_until_ready(basic_block_reference(x, w1, bn1, w2, bn2))

    assert out.shape == (N, P, H, W), out.shape
    assert jnp.allclose(out, ref, atol=1e-4, rtol=1e-4), \
        float(jnp.max(jnp.abs(out - ref)))
    print("KERNEL_OK")
</pallas_src>

<mosaic_0001>
module attributes {stable_mosaic.version = 11 : i64} {
  func.func @basic_block_kernel(%arg0: i32, %arg1: memref<1x16x16x8xf32, #tpu.memory_space<vmem>>, %arg2: memref<9x8x8xf32, #tpu.memory_space<vmem>>, %arg3: memref<1x8xf32, #tpu.memory_space<vmem>>, %arg4: memref<9x8x8xf32, #tpu.memory_space<vmem>>, %arg5: memref<1x8xf32, #tpu.memory_space<vmem>>, %arg6: memref<1x16x16x8xf32, #tpu.memory_space<vmem>>, %arg7: memref<1x18x18x8xf32, #tpu.memory_space<vmem>>) attributes {dimension_semantics = [#tpu.dimension_semantics<parallel>], iteration_bounds = array<i64: 2>, scalar_prefetch = 0 : i64, scratch_operands = 1 : i64, tpu.core_type = #tpu.core_type<tc>, window_params = [{transform_indices = @transform_0, window_bounds = array<i64: 1, 16, 16, 8>}, {pipeline_mode = #tpu.pipeline_mode<synchronous>, transform_indices = @transform_1, window_bounds = array<i64: 9, 8, 8>}, {pipeline_mode = #tpu.pipeline_mode<synchronous>, transform_indices = @transform_2, window_bounds = array<i64: 1, 8>}, {pipeline_mode = #tpu.pipeline_mode<synchronous>, transform_indices = @transform_3, window_bounds = array<i64: 9, 8, 8>}, {pipeline_mode = #tpu.pipeline_mode<synchronous>, transform_indices = @transform_4, window_bounds = array<i64: 1, 8>}, {transform_indices = @transform_5, window_bounds = array<i64: 1, 16, 16, 8>}]} {
    %cst = arith.constant 0.000000e+00 : f32
    %0 = vector.broadcast %cst : f32 to vector<1x1x18x8xf32>
    %cst_0 = arith.constant 0.000000e+00 : f32
    %1 = vector.broadcast %cst_0 : f32 to vector<1x16x1x8xf32>
    %c0 = arith.constant 0 : index
    %c0_1 = arith.constant 0 : index
    %c0_2 = arith.constant 0 : index
    %c0_3 = arith.constant 0 : index
    %2 = vector.load %arg7[%c0, %c0_1, %c0_2, %c0_3] : memref<1x18x18x8xf32, #tpu.memory_space<vmem>>, vector<1x1x18x8xf32>
    tpu.vector_store %arg7[%c0, %c0_1, %c0_2, %c0_3], %0 {strides = array<i32>} : memref<1x18x18x8xf32, #tpu.memory_space<vmem>>, vector<1x1x18x8xf32>,
    %c0_4 = arith.constant 0 : index
    %c17 = arith.constant 17 : index
    %c0_5 = arith.constant 0 : index
    %c0_6 = arith.constant 0 : index
    %3 = vector.load %arg7[%c0_4, %c17, %c0_5, %c0_6] : memref<1x18x18x8xf32, #tpu.memory_space<vmem>>, vector<1x1x18x8xf32>
    tpu.vector_store %arg7[%c0_4, %c17, %c0_5, %c0_6], %0 {strides = array<i32>} : memref<1x18x18x8xf32, #tpu.memory_space<vmem>>, vector<1x1x18x8xf32>,
    %c0_7 = arith.constant 0 : index
    %c1 = arith.constant 1 : index
    %c0_8 = arith.constant 0 : index
    %c0_9 = arith.constant 0 : index
    %4 = vector.load %arg7[%c0_7, %c1, %c0_8, %c0_9] : memref<1x18x18x8xf32, #tpu.memory_space<vmem>>, vector<1x16x1x8xf32>
    tpu.vector_store %arg7[%c0_7, %c1, %c0_8, %c0_9], %1 {strides = array<i32>} : memref<1x18x18x8xf32, #tpu.memory_space<vmem>>, vector<1x16x1x8xf32>,
    %c0_10 = arith.constant 0 : index
    %c1_11 = arith.constant 1 : index
    %c17_12 = arith.constant 17 : index
    %c0_13 = arith.constant 0 : index
    %5 = vector.load %arg7[%c0_10, %c1_11, %c17_12, %c0_13] : memref<1x18x18x8xf32, #tpu.memory_space<vmem>>, vector<1x16x1x8xf32>
    tpu.vector_store %arg7[%c0_10, %c1_11, %c17_12, %c0_13], %1 {strides = array<i32>} : memref<1x18x18x8xf32, #tpu.memory_space<vmem>>, vector<1x16x1x8xf32>,
    %c0_14 = arith.constant 0 : index
    %c0_15 = arith.constant 0 : index
    %c0_16 = arith.constant 0 : index
    %c0_17 = arith.constant 0 : index
    %6 = vector.load %arg1[%c0_14, %c0_15, %c0_16, %c0_17] : memref<1x16x16x8xf32, #tpu.memory_space<vmem>>, vector<1x16x16x8xf32>
    %c0_18 = arith.constant 0 : index
    %c1_19 = arith.constant 1 : index
    %c1_20 = arith.constant 1 : index
    %c0_21 = arith.constant 0 : index
    %7 = vector.load %arg7[%c0_18, %c1_19, %c1_20, %c0_21] : memref<1x18x18x8xf32, #tpu.memory_space<vmem>>, vector<1x16x16x8xf32>
    tpu.vector_store %arg7[%c0_18, %c1_19, %c1_20, %c0_21], %6 {strides = array<i32>} : memref<1x18x18x8xf32, #tpu.memory_space<vmem>>, vector<1x16x16x8xf32>,
    %c0_22 = arith.constant 0 : index
    %c0_23 = arith.constant 0 : index
    %c0_24 = arith.constant 0 : index
    %c0_25 = arith.constant 0 : index
    %8 = vector.load %arg7[%c0_22, %c0_23, %c0_24, %c0_25] : memref<1x18x18x8xf32, #tpu.memory_space<vmem>>, vector<1x16x16x8xf32>
    %9 = vector.shape_cast %8 : vector<1x16x16x8xf32> to vector<256x8xf32>
    %c0_26 = arith.constant 0 : index
    %c0_27 = arith.constant 0 : index
    %c0_28 = arith.constant 0 : index
    %10 = vector.load %arg2[%c0_26, %c0_27, %c0_28] : memref<9x8x8xf32, #tpu.memory_space<vmem>>, vector<1x8x8xf32>
    %11 = vector.shape_cast %10 : vector<1x8x8xf32> to vector<8x8xf32>
    %cst_29 = arith.constant dense<0.000000e+00> : vector<256x8xf32>
    %12 = tpu.matmul %9, %11, %cst_29 {dimension_numbers = #tpu.dot_dimension_numbers<[1], [0], [0], [1], [0, 0, 1, 1], [], []>} : vector<256x8xf32>, vector<8x8xf32>, vector<256x8xf32> -> vector<256x8xf32>
    %c0_30 = arith.constant 0 : index
    %c0_31 = arith.constant 0 : index
    %13 = vector.load %arg3[%c0_30, %c0_31] : memref<1x8xf32, #tpu.memory_space<vmem>>, vector<1x8xf32>
    %14 = vector.broadcast %13 : vector<1x8xf32> to vector<256x8xf32>
    %15 = arith.addf %12, %14 : vector<256x8xf32>
    %c0_32 = arith.constant 0 : index
    %c0_33 = arith.constant 0 : index
    %c1_34 = arith.constant 1 : index
    %c0_35 = arith.constant 0 : index
    %16 = vector.load %arg7[%c0_32, %c0_33, %c1_34, %c0_35] : memref<1x18x18x8xf32, #tpu.memory_space<vmem>>, vector<1x16x16x8xf32>
    %17 = vector.shape_cast %16 : vector<1x16x16x8xf32> to vector<256x8xf32>
    %c1_36 = arith.constant 1 : index
    %c0_37 = arith.constant 0 : index
    %c0_38 = arith.constant 0 : index
    %18 = vector.load %arg2[%c1_36, %c0_37, %c0_38] : memref<9x8x8xf32, #tpu.memory_space<vmem>>, vector<1x8x8xf32>
    %19 = vector.shape_cast %18 : vector<1x8x8xf32> to vector<8x8xf32>
    %cst_39 = arith.constant dense<0.000000e+00> : vector<256x8xf32>
    %20 = tpu.matmul %17, %19, %cst_39 {dimension_numbers = #tpu.dot_dimension_numbers<[1], [0], [0], [1], [0, 0, 1, 1], [], []>} : vector<256x8xf32>, vector<8x8xf32>, vector<256x8xf32> -> vector<256x8xf32>
    %21 = arith.addf %15, %20 : vector<256x8xf32>
    %c0_40 = arith.constant 0 : index
    %c0_41 = arith.constant 0 : index
    %c2 = arith.constant 2 : index
    %c0_42 = arith.constant 0 : index
    %22 = vector.load %arg7[%c0_40, %c0_41, %c2, %c0_42] : memref<1x18x18x8xf32, #tpu.memory_space<vmem>>, vector<1x16x16x8xf32>
    %23 = vector.shape_cast %22 : vector<1x16x16x8xf32> to vector<256x8xf32>
    %c2_43 = arith.constant 2 : index
    %c0_44 = arith.constant 0 : index
    %c0_45 = arith.constant 0 : index
    %24 = vector.load %arg2[%c2_43, %c0_44, %c0_45] : memref<9x8x8xf32, #tpu.memory_space<vmem>>, vector<1x8x8xf32>
    %25 = vector.shape_cast %24 : vector<1x8x8xf32> to vector<8x8xf32>
    %cst_46 = arith.constant dense<0.000000e+00> : vector<256x8xf32>
    %26 = tpu.matmul %23, %25, %cst_46 {dimension_numbers = #tpu.dot_dimension_numbers<[1], [0], [0], [1], [0, 0, 1, 1], [], []>} : vector<256x8xf32>, vector<8x8xf32>, vector<256x8xf32> -> vector<256x8xf32>
    %27 = arith.addf %21, %26 : vector<256x8xf32>
    %c0_47 = arith.constant 0 : index
    %c1_48 = arith.constant 1 : index
    %c0_49 = arith.constant 0 : index
    %c0_50 = arith.constant 0 : index
    %28 = vector.load %arg7[%c0_47, %c1_48, %c0_49, %c0_50] : memref<1x18x18x8xf32, #tpu.memory_space<vmem>>, vector<1x16x16x8xf32>
    %29 = vector.shape_cast %28 : vector<1x16x16x8xf32> to vector<256x8xf32>
    %c3 = arith.constant 3 : index
    %c0_51 = arith.constant 0 : index
    %c0_52 = arith.constant 0 : index
    %30 = vector.load %arg2[%c3, %c0_51, %c0_52] : memref<9x8x8xf32, #tpu.memory_space<vmem>>, vector<1x8x8xf32>
    %31 = vector.shape_cast %30 : vector<1x8x8xf32> to vector<8x8xf32>
    %cst_53 = arith.constant dense<0.000000e+00> : vector<256x8xf32>
    %32 = tpu.matmul %29, %31, %cst_53 {dimension_numbers = #tpu.dot_dimension_numbers<[1], [0], [0], [1], [0, 0, 1, 1], [], []>} : vector<256x8xf32>, vector<8x8xf32>, vector<256x8xf32> -> vector<256x8xf32>
    %33 = arith.addf %27, %32 : vector<256x8xf32>
    %c0_54 = arith.constant 0 : index
    %c1_55 = arith.constant 1 : index
    %c1_56 = arith.constant 1 : index
    %c0_57 = arith.constant 0 : index
    %34 = vector.load %arg7[%c0_54, %c1_55, %c1_56, %c0_57] : memref<1x18x18x8xf32, #tpu.memory_space<vmem>>, vector<1x16x16x8xf32>
    %35 = vector.shape_cast %34 : vector<1x16x16x8xf32> to vector<256x8xf32>
    %c4 = arith.constant 4 : index
    %c0_58 = arith.constant 0 : index
    %c0_59 = arith.constant 0 : index
    %36 = vector.load %arg2[%c4, %c0_58, %c0_59] : memref<9x8x8xf32, #tpu.memory_space<vmem>>, vector<1x8x8xf32>
    %37 = vector.shape_cast %36 : vector<1x8x8xf32> to vector<8x8xf32>
    %cst_60 = arith.constant dense<0.000000e+00> : vector<256x8xf32>
    %38 = tpu.matmul %35, %37, %cst_60 {dimension_numbers = #tpu.dot_dimension_numbers<[1], [0], [0], [1], [0, 0, 1, 1], [], []>} : vector<256x8xf32>, vector<8x8xf32>, vector<256x8xf32> -> vector<256x8xf32>
    %39 = arith.addf %33, %38 : vector<256x8xf32>
    %c0_61 = arith.constant 0 : index
    %c1_62 = arith.constant 1 : index
    %c2_63 = arith.constant 2 : index
    %c0_64 = arith.constant 0 : index
    %40 = vector.load %arg7[%c0_61, %c1_62, %c2_63, %c0_64] : memref<1x18x18x8xf32, #tpu.memory_space<vmem>>, vector<1x16x16x8xf32>
    %41 = vector.shape_cast %40 : vector<1x16x16x8xf32> to vector<256x8xf32>
    %c5 = arith.constant 5 : index
    %c0_65 = arith.constant 0 : index
    %c0_66 = arith.constant 0 : index
    %42 = vector.load %arg2[%c5, %c0_65, %c0_66] : memref<9x8x8xf32, #tpu.memory_space<vmem>>, vector<1x8x8xf32>
    %43 = vector.shape_cast %42 : vector<1x8x8xf32> to vector<8x8xf32>
    %cst_67 = arith.constant dense<0.000000e+00> : vector<256x8xf32>
    %44 = tpu.matmul %41, %43, %cst_67 {dimension_numbers = #tpu.dot_dimension_numbers<[1], [0], [0], [1], [0, 0, 1, 1], [], []>} : vector<256x8xf32>, vector<8x8xf32>, vector<256x8xf32> -> vector<256x8xf32>
    %45 = arith.addf %39, %44 : vector<256x8xf32>
    %c0_68 = arith.constant 0 : index
    %c2_69 = arith.constant 2 : index
    %c0_70 = arith.constant 0 : index
    %c0_71 = arith.constant 0 : index
    %46 = vector.load %arg7[%c0_68, %c2_69, %c0_70, %c0_71] : memref<1x18x18x8xf32, #tpu.memory_space<vmem>>, vector<1x16x16x8xf32>
    %47 = vector.shape_cast %46 : vector<1x16x16x8xf32> to vector<256x8xf32>
    %c6 = arith.constant 6 : index
    %c0_72 = arith.constant 0 : index
    %c0_73 = arith.constant 0 : index
    %48 = vector.load %arg2[%c6, %c0_72, %c0_73] : memref<9x8x8xf32, #tpu.memory_space<vmem>>, vector<1x8x8xf32>
    %49 = vector.shape_cast %48 : vector<1x8x8xf32> to vector<8x8xf32>
    %cst_74 = arith.constant dense<0.000000e+00> : vector<256x8xf32>
    %50 = tpu.matmul %47, %49, %cst_74 {dimension_numbers = #tpu.dot_dimension_numbers<[1], [0], [0], [1], [0, 0, 1, 1], [], []>} : vector<256x8xf32>, vector<8x8xf32>, vector<256x8xf32> -> vector<256x8xf32>
    %51 = arith.addf %45, %50 : vector<256x8xf32>
    %c0_75 = arith.constant 0 : index
    %c2_76 = arith.constant 2 : index
    %c1_77 = arith.constant 1 : index
    %c0_78 = arith.constant 0 : index
    %52 = vector.load %arg7[%c0_75, %c2_76, %c1_77, %c0_78] : memref<1x18x18x8xf32, #tpu.memory_space<vmem>>, vector<1x16x16x8xf32>
    %53 = vector.shape_cast %52 : vector<1x16x16x8xf32> to vector<256x8xf32>
    %c7 = arith.constant 7 : index
    %c0_79 = arith.constant 0 : index
    %c0_80 = arith.constant 0 : index
    %54 = vector.load %arg2[%c7, %c0_79, %c0_80] : memref<9x8x8xf32, #tpu.memory_space<vmem>>, vector<1x8x8xf32>
    %55 = vector.shape_cast %54 : vector<1x8x8xf32> to vector<8x8xf32>
    %cst_81 = arith.constant dense<0.000000e+00> : vector<256x8xf32>
    %56 = tpu.matmul %53, %55, %cst_81 {dimension_numbers = #tpu.dot_dimension_numbers<[1], [0], [0], [1], [0, 0, 1, 1], [], []>} : vector<256x8xf32>, vector<8x8xf32>, vector<256x8xf32> -> vector<256x8xf32>
    %57 = arith.addf %51, %56 : vector<256x8xf32>
    %c0_82 = arith.constant 0 : index
    %c2_83 = arith.constant 2 : index
    %c2_84 = arith.constant 2 : index
    %c0_85 = arith.constant 0 : index
    %58 = vector.load %arg7[%c0_82, %c2_83, %c2_84, %c0_85] : memref<1x18x18x8xf32, #tpu.memory_space<vmem>>, vector<1x16x16x8xf32>
    %59 = vector.shape_cast %58 : vector<1x16x16x8xf32> to vector<256x8xf32>
    %c8 = arith.constant 8 : index
    %c0_86 = arith.constant 0 : index
    %c0_87 = arith.constant 0 : index
    %60 = vector.load %arg2[%c8, %c0_86, %c0_87] : memref<9x8x8xf32, #tpu.memory_space<vmem>>, vector<1x8x8xf32>
    %61 = vector.shape_cast %60 : vector<1x8x8xf32> to vector<8x8xf32>
    %cst_88 = arith.constant dense<0.000000e+00> : vector<256x8xf32>
    %62 = tpu.matmul %59, %61, %cst_88 {dimension_numbers = #tpu.dot_dimension_numbers<[1], [0], [0], [1], [0, 0, 1, 1], [], []>} : vector<256x8xf32>, vector<8x8xf32>, vector<256x8xf32> -> vector<256x8xf32>
    %63 = arith.addf %57, %62 : vector<256x8xf32>
    %cst_89 = arith.constant 0.000000e+00 : f32
    %64 = vector.broadcast %cst_89 : f32 to vector<256x8xf32>
    %65 = arith.maximumf %63, %64 : vector<256x8xf32>
    %66 = vector.shape_cast %65 : vector<256x8xf32> to vector<1x16x16x8xf32>
    %c0_90 = arith.constant 0 : index
    %c1_91 = arith.constant 1 : index
    %c1_92 = arith.constant 1 : index
    %c0_93 = arith.constant 0 : index
    %67 = vector.load %arg7[%c0_90, %c1_91, %c1_92, %c0_93] : memref<1x18x18x8xf32, #tpu.memory_space<vmem>>, vector<1x16x16x8xf32>
    tpu.vector_store %arg7[%c0_90, %c1_91, %c1_92, %c0_93], %66 {strides = array<i32>} : memref<1x18x18x8xf32, #tpu.memory_space<vmem>>, vector<1x16x16x8xf32>,
    %c0_94 = arith.constant 0 : index
    %c0_95 = arith.constant 0 : index
    %c0_96 = arith.constant 0 : index
    %c0_97 = arith.constant 0 : index
    %68 = vector.load %arg7[%c0_94, %c0_95, %c0_96, %c0_97] : memref<1x18x18x8xf32, #tpu.memory_space<vmem>>, vector<1x16x16x8xf32>
    %69 = vector.shape_cast %68 : vector<1x16x16x8xf32> to vector<256x8xf32>
    %c0_98 = arith.constant 0 : index
    %c0_99 = arith.constant 0 : index
    %c0_100 = arith.constant 0 : index
    %70 = vector.load %arg4[%c0_98, %c0_99, %c0_100] : memref<9x8x8xf32, #tpu.memory_space<vmem>>, vector<1x8x8xf32>
    %71 = vector.shape_cast %70 : vector<1x8x8xf32> to vector<8x8xf32>
    %cst_101 = arith.constant dense<0.000000e+00> : vector<256x8xf32>
    %72 = tpu.matmul %69, %71, %cst_101 {dimension_numbers = #tpu.dot_dimension_numbers<[1], [0], [0], [1], [0, 0, 1, 1], [], []>} : vector<256x8xf32>, vector<8x8xf32>, vector<256x8xf32> -> vector<256x8xf32>
    %c0_102 = arith.constant 0 : index
    %c0_103 = arith.constant 0 : index
    %73 = vector.load %arg5[%c0_102, %c0_103] : memref<1x8xf32, #tpu.memory_space<vmem>>, vector<1x8xf32>
    %74 = vector.broadcast %73 : vector<1x8xf32> to vector<256x8xf32>
    %75 = arith.addf %72, %74 : vector<256x8xf32>
    %c0_104 = arith.constant 0 : index
    %c0_105 = arith.constant 0 : index
    %c1_106 = arith.constant 1 : index
    %c0_107 = arith.constant 0 : index
    %76 = vector.load %arg7[%c0_104, %c0_105, %c1_106, %c0_107] : memref<1x18x18x8xf32, #tpu.memory_space<vmem>>, vector<1x16x16x8xf32>
    %77 = vector.shape_cast %76 : vector<1x16x16x8xf32> to vector<256x8xf32>
    %c1_108 = arith.constant 1 : index
    %c0_109 = arith.constant 0 : index
    %c0_110 = arith.constant 0 : index
    %78 = vector.load %arg4[%c1_108, %c0_109, %c0_110] : memref<9x8x8xf32, #tpu.memory_space<vmem>>, vector<1x8x8xf32>
    %79 = vector.shape_cast %78 : vector<1x8x8xf32> to vector<8x8xf32>
    %cst_111 = arith.constant dense<0.000000e+00> : vector<256x8xf32>
    %80 = tpu.matmul %77, %79, %cst_111 {dimension_numbers = #tpu.dot_dimension_numbers<[1], [0], [0], [1], [0, 0, 1, 1], [], []>} : vector<256x8xf32>, vector<8x8xf32>, vector<256x8xf32> -> vector<256x8xf32>
    %81 = arith.addf %75, %80 : vector<256x8xf32>
    %c0_112 = arith.constant 0 : index
    %c0_113 = arith.constant 0 : index
    %c2_114 = arith.constant 2 : index
    %c0_115 = arith.constant 0 : index
    %82 = vector.load %arg7[%c0_112, %c0_113, %c2_114, %c0_115] : memref<1x18x18x8xf32, #tpu.memory_space<vmem>>, vector<1x16x16x8xf32>
    %83 = vector.shape_cast %82 : vector<1x16x16x8xf32> to vector<256x8xf32>
    %c2_116 = arith.constant 2 : index
    %c0_117 = arith.constant 0 : index
    %c0_118 = arith.constant 0 : index
    %84 = vector.load %arg4[%c2_116, %c0_117, %c0_118] : memref<9x8x8xf32, #tpu.memory_space<vmem>>, vector<1x8x8xf32>
    %85 = vector.shape_cast %84 : vector<1x8x8xf32> to vector<8x8xf32>
    %cst_119 = arith.constant dense<0.000000e+00> : vector<256x8xf32>
    %86 = tpu.matmul %83, %85, %cst_119 {dimension_numbers = #tpu.dot_dimension_numbers<[1], [0], [0], [1], [0, 0, 1, 1], [], []>} : vector<256x8xf32>, vector<8x8xf32>, vector<256x8xf32> -> vector<256x8xf32>
    %87 = arith.addf %81, %86 : vector<256x8xf32>
    %c0_120 = arith.constant 0 : index
    %c1_121 = arith.constant 1 : index
    %c0_122 = arith.constant 0 : index
    %c0_123 = arith.constant 0 : index
    %88 = vector.load %arg7[%c0_120, %c1_121, %c0_122, %c0_123] : memref<1x18x18x8xf32, #tpu.memory_space<vmem>>, vector<1x16x16x8xf32>
    %89 = vector.shape_cast %88 : vector<1x16x16x8xf32> to vector<256x8xf32>
    %c3_124 = arith.constant 3 : index
    %c0_125 = arith.constant 0 : index
    %c0_126 = arith.constant 0 : index
    %90 = vector.load %arg4[%c3_124, %c0_125, %c0_126] : memref<9x8x8xf32, #tpu.memory_space<vmem>>, vector<1x8x8xf32>
    %91 = vector.shape_cast %90 : vector<1x8x8xf32> to vector<8x8xf32>
    %cst_127 = arith.constant dense<0.000000e+00> : vector<256x8xf32>
    %92 = tpu.matmul %89, %91, %cst_127 {dimension_numbers = #tpu.dot_dimension_numbers<[1], [0], [0], [1], [0, 0, 1, 1], [], []>} : vector<256x8xf32>, vector<8x8xf32>, vector<256x8xf32> -> vector<256x8xf32>
    %93 = arith.addf %87, %92 : vector<256x8xf32>
    %c0_128 = arith.constant 0 : index
    %c1_129 = arith.constant 1 : index
    %c1_130 = arith.constant 1 : index
    %c0_131 = arith.constant 0 : index
    %94 = vector.load %arg7[%c0_128, %c1_129, %c1_130, %c0_131] : memref<1x18x18x8xf32, #tpu.memory_space<vmem>>, vector<1x16x16x8xf32>
    %95 = vector.shape_cast %94 : vector<1x16x16x8xf32> to vector<256x8xf32>
    %c4_132 = arith.constant 4 : index
    %c0_133 = arith.constant 0 : index
    %c0_134 = arith.constant 0 : index
    %96 = vector.load %arg4[%c4_132, %c0_133, %c0_134] : memref<9x8x8xf32, #tpu.memory_space<vmem>>, vector<1x8x8xf32>
    %97 = vector.shape_cast %96 : vector<1x8x8xf32> to vector<8x8xf32>
    %cst_135 = arith.constant dense<0.000000e+00> : vector<256x8xf32>
    %98 = tpu.matmul %95, %97, %cst_135 {dimension_numbers = #tpu.dot_dimension_numbers<[1], [0], [0], [1], [0, 0, 1, 1], [], []>} : vector<256x8xf32>, vector<8x8xf32>, vector<256x8xf32> -> vector<256x8xf32>
    %99 = arith.addf %93, %98 : vector<256x8xf32>
    %c0_136 = arith.constant 0 : index
    %c1_137 = arith.constant 1 : index
    %c2_138 = arith.constant 2 : index
    %c0_139 = arith.constant 0 : index
    %100 = vector.load %arg7[%c0_136, %c1_137, %c2_138, %c0_139] : memref<1x18x18x8xf32, #tpu.memory_space<vmem>>, vector<1x16x16x8xf32>
    %101 = vector.shape_cast %100 : vector<1x16x16x8xf32> to vector<256x8xf32>
    %c5_140 = arith.constant 5 : index
    %c0_141 = arith.constant 0 : index
    %c0_142 = arith.constant 0 : index
    %102 = vector.load %arg4[%c5_140, %c0_141, %c0_142] : memref<9x8x8xf32, #tpu.memory_space<vmem>>, vector<1x8x8xf32>
    %103 = vector.shape_cast %102 : vector<1x8x8xf32> to vector<8x8xf32>
    %cst_143 = arith.constant dense<0.000000e+00> : vector<256x8xf32>
    %104 = tpu.matmul %101, %103, %cst_143 {dimension_numbers = #tpu.dot_dimension_numbers<[1], [0], [0], [1], [0, 0, 1, 1], [], []>} : vector<256x8xf32>, vector<8x8xf32>, vector<256x8xf32> -> vector<256x8xf32>
    %105 = arith.addf %99, %104 : vector<256x8xf32>
    %c0_144 = arith.constant 0 : index
    %c2_145 = arith.constant 2 : index
    %c0_146 = arith.constant 0 : index
    %c0_147 = arith.constant 0 : index
    %106 = vector.load %arg7[%c0_144, %c2_145, %c0_146, %c0_147] : memref<1x18x18x8xf32, #tpu.memory_space<vmem>>, vector<1x16x16x8xf32>
    %107 = vector.shape_cast %106 : vector<1x16x16x8xf32> to vector<256x8xf32>
    %c6_148 = arith.constant 6 : index
    %c0_149 = arith.constant 0 : index
    %c0_150 = arith.constant 0 : index
    %108 = vector.load %arg4[%c6_148, %c0_149, %c0_150] : memref<9x8x8xf32, #tpu.memory_space<vmem>>, vector<1x8x8xf32>
    %109 = vector.shape_cast %108 : vector<1x8x8xf32> to vector<8x8xf32>
    %cst_151 = arith.constant dense<0.000000e+00> : vector<256x8xf32>
    %110 = tpu.matmul %107, %109, %cst_151 {dimension_numbers = #tpu.dot_dimension_numbers<[1], [0], [0], [1], [0, 0, 1, 1], [], []>} : vector<256x8xf32>, vector<8x8xf32>, vector<256x8xf32> -> vector<256x8xf32>
    %111 = arith.addf %105, %110 : vector<256x8xf32>
    %c0_152 = arith.constant 0 : index
    %c2_153 = arith.constant 2 : index
    %c1_154 = arith.constant 1 : index
    %c0_155 = arith.constant 0 : index
    %112 = vector.load %arg7[%c0_152, %c2_153, %c1_154, %c0_155] : memref<1x18x18x8xf32, #tpu.memory_space<vmem>>, vector<1x16x16x8xf32>
    %113 = vector.shape_cast %112 : vector<1x16x16x8xf32> to vector<256x8xf32>
    %c7_156 = arith.constant 7 : index
    %c0_157 = arith.constant 0 : index
    %c0_158 = arith.constant 0 : index
    %114 = vector.load %arg4[%c7_156, %c0_157, %c0_158] : memref<9x8x8xf32, #tpu.memory_space<vmem>>, vector<1x8x8xf32>
    %115 = vector.shape_cast %114 : vector<1x8x8xf32> to vector<8x8xf32>
    %cst_159 = arith.constant dense<0.000000e+00> : vector<256x8xf32>
    %116 = tpu.matmul %113, %115, %cst_159 {dimension_numbers = #tpu.dot_dimension_numbers<[1], [0], [0], [1], [0, 0, 1, 1], [], []>} : vector<256x8xf32>, vector<8x8xf32>, vector<256x8xf32> -> vector<256x8xf32>
    %117 = arith.addf %111, %116 : vector<256x8xf32>
    %c0_160 = arith.constant 0 : index
    %c2_161 = arith.constant 2 : index
    %c2_162 = arith.constant 2 : index
    %c0_163 = arith.constant 0 : index
    %118 = vector.load %arg7[%c0_160, %c2_161, %c2_162, %c0_163] : memref<1x18x18x8xf32, #tpu.memory_space<vmem>>, vector<1x16x16x8xf32>
    %119 = vector.shape_cast %118 : vector<1x16x16x8xf32> to vector<256x8xf32>
    %c8_164 = arith.constant 8 : index
    %c0_165 = arith.constant 0 : index
    %c0_166 = arith.constant 0 : index
    %120 = vector.load %arg4[%c8_164, %c0_165, %c0_166] : memref<9x8x8xf32, #tpu.memory_space<vmem>>, vector<1x8x8xf32>
    %121 = vector.shape_cast %120 : vector<1x8x8xf32> to vector<8x8xf32>
    %cst_167 = arith.constant dense<0.000000e+00> : vector<256x8xf32>
    %122 = tpu.matmul %119, %121, %cst_167 {dimension_numbers = #tpu.dot_dimension_numbers<[1], [0], [0], [1], [0, 0, 1, 1], [], []>} : vector<256x8xf32>, vector<8x8xf32>, vector<256x8xf32> -> vector<256x8xf32>
    %123 = arith.addf %117, %122 : vector<256x8xf32>
    %c0_168 = arith.constant 0 : index
    %c0_169 = arith.constant 0 : index
    %c0_170 = arith.constant 0 : index
    %c0_171 = arith.constant 0 : index
    %124 = vector.load %arg1[%c0_168, %c0_169, %c0_170, %c0_171] : memref<1x16x16x8xf32, #tpu.memory_space<vmem>>, vector<1x16x16x8xf32>
    %125 = vector.shape_cast %124 : vector<1x16x16x8xf32> to vector<256x8xf32>
    %126 = arith.addf %123, %125 : vector<256x8xf32>
    %cst_172 = arith.constant 0.000000e+00 : f32
    %127 = vector.broadcast %cst_172 : f32 to vector<256x8xf32>
    %128 = arith.maximumf %126, %127 : vector<256x8xf32>
    %129 = vector.shape_cast %128 : vector<256x8xf32> to vector<1x16x16x8xf32>
    %c0_173 = arith.constant 0 : index
    %c0_174 = arith.constant 0 : index
    %c0_175 = arith.constant 0 : index
    %c0_176 = arith.constant 0 : index
    %130 = vector.load %arg6[%c0_173, %c0_174, %c0_175, %c0_176] : memref<1x16x16x8xf32, #tpu.memory_space<vmem>>, vector<1x16x16x8xf32>
    tpu.vector_store %arg6[%c0_173, %c0_174, %c0_175, %c0_176], %129 {strides = array<i32>} : memref<1x16x16x8xf32, #tpu.memory_space<vmem>>, vector<1x16x16x8xf32>,
    return
  }
  func.func @transform_0(%arg0: i32) -> (i32, i32, i32, i32) {
    %c0_i32 = arith.constant 0 : i32
    %c0_i32_0 = arith.constant 0 : i32
    %c0_i32_1 = arith.constant 0 : i32
    %c0_i32_2 = arith.constant 0 : i32
    return %arg0, %c0_i32, %c0_i32_0, %c0_i32_1 : i32, i32, i32, i32
  }
  func.func @transform_1(%arg0: i32) -> (i32, i32, i32) {
    %c0_i32 = arith.constant 0 : i32
    %c0_i32_0 = arith.constant 0 : i32
    %c0_i32_1 = arith.constant 0 : i32
    %c0_i32_2 = arith.constant 0 : i32
    return %c0_i32, %c0_i32_0, %c0_i32_1 : i32, i32, i32
  }
  func.func @transform_2(%arg0: i32) -> (i32, i32) {
    %c0_i32 = arith.constant 0 : i32
    %c0_i32_0 = arith.constant 0 : i32
    %c0_i32_1 = arith.constant 0 : i32
    return %c0_i32, %c0_i32_0 : i32, i32
  }
  func.func @transform_3(%arg0: i32) -> (i32, i32, i32) {
    %c0_i32 = arith.constant 0 : i32
    %c0_i32_0 = arith.constant 0 : i32
    %c0_i32_1 = arith.constant 0 : i32
    %c0_i32_2 = arith.constant 0 : i32
    return %c0_i32, %c0_i32_0, %c0_i32_1 : i32, i32, i32
  }
  func.func @transform_4(%arg0: i32) -> (i32, i32) {
    %c0_i32 = arith.constant 0 : i32
    %c0_i32_0 = arith.constant 0 : i32
    %c0_i32_1 = arith.constant 0 : i32
    return %c0_i32, %c0_i32_0 : i32, i32
  }
  func.func @transform_5(%arg0: i32) -> (i32, i32, i32, i32) {
    %c0_i32 = arith.constant 0 : i32
    %c0_i32_0 = arith.constant 0 : i32
    %c0_i32_1 = arith.constant 0 : i32
    %c0_i32_2 = arith.constant 0 : i32
    return %arg0, %c0_i32, %c0_i32_0, %c0_i32_1 : i32, i32, i32, i32
  }
}

</mosaic_0001>

<llo_original>
// kernel: tpu_custom_call.1
$region0: #{tpu_custom_call.1}
  #allocation0 [shape = 'u32[]', space=smem, size = 0x4, offset = 0x4, fixed_abs, tag = 'smem constant byte address 0x4 - core index']
  #allocation1 [shape = 'u32[144,128]{1,0:T(1,128)}', space=vmem, size = 0x12000, scoped, tag = 'internal scratch']
  #allocation2 [shape = 'f32[1,18,18,8]{3,2,1,0:T(8,128)}', space=vmem, size = 0x36000, scoped, tag = 'scratch operand']
  %s0 = inlined_call_operand.vmem [shape: f32[2,16,16,8], index: 0, kind: input, shape index: {}]
  %s1 = inlined_call_operand.vmem [shape: f32[9,8,8], index: 1, kind: input, shape index: {}]
  %s2 = inlined_call_operand.vmem [shape: f32[1,8], index: 2, kind: input, shape index: {}]
  %s3 = inlined_call_operand.vmem [shape: f32[9,8,8], index: 3, kind: input, shape index: {}]
  %s4 = inlined_call_operand.vmem [shape: f32[1,8], index: 4, kind: input, shape index: {}]
  %s5 = inlined_call_operand.vmem [shape: f32[2,16,16,8], index: 5, kind: output, shape index: {}]
  %s6 = sld [smem:[#allocation0]]
  $region53: #{tpu_custom_call.1} parent=0
    _
  %s8 = ssub.s32 1, %s6
  %s9 = scalar_select 0, %s8, %s6
  loop: start=0, step=1, limit=4
  $region2: #{tpu_custom_call.1} parent=0 // loop_pre_header
    _
  $region3: #{tpu_custom_call.1} parent=0 // loop_header
    %s11 = sphi 0, %s15
    %p12 = scmp.ge.s32.totalorder %s11, 4
    %s21 = sphi 0, %s23
    %s24 = sphi 0, %s21
    %s25 = sphi 0, %s24
    %s41 = sphi 0, %s25
    %s45 = sphi 0, %s45
    %s47 = sphi 0, %s45
    %s48 = sphi 0, %s47
    %s62 = sphi 0, %s48
    %s66 = sphi 0, %s66
    %s68 = sphi 0, %s66
    %s69 = sphi 0, %s68
    %s83 = sphi 0, %s69
    %s87 = sphi 0, %s87
    %s89 = sphi 0, %s87
    %s90 = sphi 0, %s89
    %s104 = sphi 0, %s90
    %s108 = sphi 0, %s108
    %s110 = sphi 0, %s108
    %s111 = sphi 0, %s110
    %s125 = sphi 0, %s111
    %s131 = sphi 0, %s133
    %s134 = sphi 0, %s131
    %s135 = sphi 0, %s134
    %s151 = sphi 0, %s135
  $region4: #{tpu_custom_call.1} parent=0 // loop_header_branch
    %14 = sbr.rel (%p12) target = $region8
  $region5: #{tpu_custom_call.1} parent=0 // loop_body
    %s16 = ssub.s32 %s11, 1
    %s17 = ssub.s32 %s11, 2
    %s18 = sadd.s32 %s11, 1
    %s19 = ssub.s32 %s11, %s18
    %p20 = scmp.eq.s32.totalorder %s19, 0
    %s22 = sadd.s32 %s21, 1
    %s23 = scalar_select %p20, %s21, %s22
    %p26 = pneg %p20
    %p27 = scmp.eq.s32.totalorder %s11, 1
    %p28 = por %p26, %p27
    %p29 = scmp.ne.s32.totalorder %s21, %s24
    %p30 = scmp.eq.s32.totalorder %s11, 0
    %p31 = por %p29, %p30
    %p32 = scmp.ne.s32.totalorder %s21, %s24
    %p33 = scmp.eq.s32.totalorder %s16, 1
    %p34 = por %p32, %p33
    %p35 = scmp.ne.s32.totalorder %s24, %s25
    %p36 = scmp.eq.s32.totalorder %s16, 0
    %p37 = por %p35, %p36
    %p38 = scmp.ne.s32.totalorder %s24, %s25
    %p39 = scmp.eq.s32.totalorder %s17, 1
    %p40 = por %p38, %p39
    %p42 = scmp.ne.s32.totalorder %s25, %s41
    %p43 = scmp.eq.s32.totalorder %s17, 0
    %p44 = por %p42, %p43
    %s46 = sadd.s32 %s45, 1
    %p49 = scmp.eq.s32.totalorder %s11, 1
    %p50 = scmp.ne.s32.totalorder %s45, %s47
    %p51 = scmp.eq.s32.totalorder %s11, 0
    %p52 = por %p50, %p51
    %p53 = scmp.ne.s32.totalorder %s45, %s47
    %p54 = scmp.eq.s32.totalorder %s16, 1
    %p55 = por %p53, %p54
    %p56 = scmp.ne.s32.totalorder %s47, %s48
    %p57 = scmp.eq.s32.totalorder %s16, 0
    %p58 = por %p56, %p57
    %p59 = scmp.ne.s32.totalorder %s47, %s48
    %p60 = scmp.eq.s32.totalorder %s17, 1
    %p61 = por %p59, %p60
    %p63 = scmp.ne.s32.totalorder %s48, %s62
    %p64 = scmp.eq.s32.totalorder %s17, 0
    %p65 = por %p63, %p64
    %s67 = sadd.s32 %s66, 1
    %p70 = scmp.eq.s32.totalorder %s11, 1
    %p71 = scmp.ne.s32.totalorder %s66, %s68
    %p72 = scmp.eq.s32.totalorder %s11, 0
    %p73 = por %p71, %p72
    %p74 = scmp.ne.s32.totalorder %s66, %s68
    %p75 = scmp.eq.s32.totalorder %s16, 1
    %p76 = por %p74, %p75
    %p77 = scmp.ne.s32.totalorder %s68, %s69
    %p78 = scmp.eq.s32.totalorder %s16, 0
    %p79 = por %p77, %p78
    %p80 = scmp.ne.s32.totalorder %s68, %s69
    %p81 = scmp.eq.s32.totalorder %s17, 1
    %p82 = por %p80, %p81
    %p84 = scmp.ne.s32.totalorder %s69, %s83
    %p85 = scmp.eq.s32.totalorder %s17, 0
    %p86 = por %p84, %p85
    %s88 = sadd.s32 %s87, 1
    %p91 = scmp.eq.s32.totalorder %s11, 1
    %p92 = scmp.ne.s32.totalorder %s87, %s89
    %p93 = scmp.eq.s32.totalorder %s11, 0
    %p94 = por %p92, %p93
    %p95 = scmp.ne.s32.totalorder %s87, %s89
    %p96 = scmp.eq.s32.totalorder %s16, 1
    %p97 = por %p95, %p96
    %p98 = scmp.ne.s32.totalorder %s89, %s90
    %p99 = scmp.eq.s32.totalorder %s16, 0
    %p100 = por %p98, %p99
    %p101 = scmp.ne.s32.totalorder %s89, %s90
    %p102 = scmp.eq.s32.totalorder %s17, 1
    %p103 = por %p101, %p102
    %p105 = scmp.ne.s32.totalorder %s90, %s104
    %p106 = scmp.eq.s32.totalorder %s17, 0
    %p107 = por %p105, %p106
    %s109 = sadd.s32 %s108, 1
    %p112 = scmp.eq.s32.totalorder %s11, 1
    %p113 = scmp.ne.s32.totalorder %s108, %s110
    %p114 = scmp.eq.s32.totalorder %s11, 0
    %p115 = por %p113, %p114
    %p116 = scmp.ne.s32.totalorder %s108, %s110
    %p117 = scmp.eq.s32.totalorder %s16, 1
    %p118 = por %p116, %p117
    %p119 = scmp.ne.s32.totalorder %s110, %s111
    %p120 = scmp.eq.s32.totalorder %s16, 0
    %p121 = por %p119, %p120
    %p122 = scmp.ne.s32.totalorder %s110, %s111
    %p123 = scmp.eq.s32.totalorder %s17, 1
    %p124 = por %p122, %p123
    %p126 = scmp.ne.s32.totalorder %s111, %s125
    %p127 = scmp.eq.s32.totalorder %s17, 0
    %p128 = por %p126, %p127
    %s129 = ssub.s32 %s11, %s18
    %p130 = scmp.eq.s32.totalorder %s129, 0
    %s132 = sadd.s32 %s131, 1
    %s133 = scalar_select %p130, %s131, %s132
    %p136 = pneg %p130
    %p137 = scmp.eq.s32.totalorder %s11, 1
    %p138 = por %p136, %p137
    %p139 = scmp.ne.s32.totalorder %s131, %s134
    %p140 = scmp.eq.s32.totalorder %s11, 0
    %p141 = por %p139, %p140
    %p142 = scmp.ne.s32.totalorder %s131, %s134
    %p143 = scmp.eq.s32.totalorder %s16, 1
    %p144 = por %p142, %p143
    %p145 = scmp.ne.s32.totalorder %s134, %s135
    %p146 = scmp.eq.s32.totalorder %s16, 0
    %p147 = por %p145, %p146
    %p148 = scmp.ne.s32.totalorder %s134, %s135
    %p149 = scmp.eq.s32.totalorder %s17, 1
    %p150 = por %p148, %p149
    %p152 = scmp.ne.s32.totalorder %s135, %s151
    %p153 = scmp.eq.s32.totalorder %s17, 0
    %p154 = por %p152, %p153
    %p155 = scmp.le.s32.totalorder 1, %s11
    %p156 = scmp.lt.s32.totalorder %s11, 3
    %p157 = pnand %p155, %p156
    %p158 = pneg %p157
    // Predicated region
    $region9: #{tpu_custom_call.1} parent=5 // pred_check
      _
    $region10: #{tpu_custom_call.1} parent=5 // pred_check_branch
      %160 = sbr.rel (%p157) target = $region12
    $region11: #{tpu_custom_call.1} parent=5 // pred_region
      %s161 = ssub.s32 %s11, 1
      // Predicated region
      $region13: #{tpu_custom_call.1} parent=11 // pred_check
        %p162 = pneg %p58
      $region14: #{tpu_custom_call.1} parent=11 // pred_check_branch
        %164 = sbr.rel (%p162) target = $region16
      $region15: #{tpu_custom_call.1} parent=11 // pred_region
        _
      $region16: #{tpu_custom_call.1} parent=11 // pred_fallthru
        _
      // Predicated region
      $region17: #{tpu_custom_call.1} parent=11 // pred_check
        %p165 = pneg %p79
      $region18: #{tpu_custom_call.1} parent=11 // pred_check_branch
        %167 = sbr.rel (%p165) target = $region20
      $region19: #{tpu_custom_call.1} parent=11 // pred_region
        _
      $region20: #{tpu_custom_call.1} parent=11 // pred_fallthru
        _
      // Predicated region
      $region21: #{tpu_custom_call.1} parent=11 // pred_check
        %p168 = pneg %p100
      $region22: #{tpu_custom_call.1} parent=11 // pred_check_branch
        %170 = sbr.rel (%p168) target = $region24
      $region23: #{tpu_custom_call.1} parent=11 // pred_region
        _
      $region24: #{tpu_custom_call.1} parent=11 // pred_fallthru
        _
      // Predicated region
      $region25: #{tpu_custom_call.1} parent=11 // pred_check
        %p171 = pneg %p121
      $region26: #{tpu_custom_call.1} parent=11 // pred_check_branch
        %173 = sbr.rel (%p171) target = $region28
      $region27: #{tpu_custom_call.1} parent=11 // pred_region
        _
      $region28: #{tpu_custom_call.1} parent=11 // pred_fallthru
        _
    $region12: #{tpu_custom_call.1} parent=5 // pred_fallthru
      _
    %p174 = scmp.lt.s32.totalorder %s11, 2
    // Predicated region
    $region29: #{tpu_custom_call.1} parent=5 // pred_check
      %p175 = pneg %p174
    $region30: #{tpu_custom_call.1} parent=5 // pred_check_branch
      %177 = sbr.rel (%p175) target = $region32
    $region31: #{tpu_custom_call.1} parent=5 // pred_region
      // Predicated region
      $region33: #{tpu_custom_call.1} parent=31 // pred_check
        %p178 = pneg %p31
      $region34: #{tpu_custom_call.1} parent=31 // pred_check_branch
        %180 = sbr.rel (%p178) target = $region36
      $region35: #{tpu_custom_call.1} parent=31 // pred_region
        %p181 = scmp.lt.s32.totalorder %s11, 1
        %s182 = scalar_select %p181, %s11, 1
        %s183 = smul.addr %s182, 32
        %s184 = smul.addr %s183, 8
        %s185 = scalar_lea.vmem %s0, %s184
      $region36: #{tpu_custom_call.1} parent=31 // pred_fallthru
        _
    $region32: #{tpu_custom_call.1} parent=5 // pred_fallthru
      _
    %p186 = scmp.le.s32.totalorder 1, %s11
    %p187 = scmp.lt.s32.totalorder %s11, 3
    %p188 = pnand %p186, %p187
    %p189 = pneg %p188
    // Predicated region
    $region37: #{tpu_custom_call.1} parent=5 // pred_check
      _
    $region38: #{tpu_custom_call.1} parent=5 // pred_check_branch
      %191 = sbr.rel (%p188) target = $region40
    $region39: #{tpu_custom_call.1} parent=5 // pred_region
      %s192 = ssub.s32 %s11, 1
      %p193 = scmp.lt.s32.totalorder %s16, 1
      %s194 = scalar_select %p193, %s16, 1
      %s195 = smul.addr %s194, 32
      %s196 = smul.addr %s195, 8
      %s197 = scalar_lea.vmem %s0, %s196
      %p198 = pneg %p37
      %p199 = pneg %p34
      %p200 = pneg %p58
      %p201 = pneg %p55
      %p202 = pneg %p79
      %p203 = pneg %p76
      %p204 = pneg %p100
      %p205 = pneg %p97
      %p206 = pneg %p121
      %p207 = pneg %p118
      %p208 = pneg %p147
      %p209 = pneg %p144
      %p210 = scmp.lt.s32.totalorder %s16, 1
      %s211 = scalar_select %p210, %s16, 1
      %s212 = smul.addr %s211, 32
      %s213 = smul.addr %s212, 8
      %s214 = scalar_lea.vmem %s5, %s213
      %p215 = scmp.lt.s32.totalorder %s16, 1
      %s216 = scalar_select %p215, %s16, 1
      %s217 = smul.addr %s216, 32
      %s218 = smul.addr %s217, 8
      %s219 = scalar_lea.vmem %s0, %s218
      %p220 = scmp.lt.s32.totalorder %s16, 1
      %s221 = scalar_select %p220, %s16, 1
      %s222 = smul.addr %s221, 32
      %s223 = smul.addr %s222, 8
      %s224 = scalar_lea.vmem %s5, %s223
      %vm225 = vcmask 64512
      %226 = vst.msk [vmem:[#allocation2] sm:$0xff] %vm225, 0.0
      %227 = vst.msk [vmem:[#allocation2 + $0x8] sm:$0xff] %vm225, 0.0
      %vm228 = vcmask 58368
      %229 = vst.msk [vmem:[#allocation2 + $0x10] sm:$0x3] %vm228, 0.0
      %s230 = scalar_lea.vmem [#allocation2], 408
      %231 = vst.msk [vmem:[%s230] sm:$0xff] %vm225, 0.0
      %232 = vst.msk [vmem:[%s230 + $0x8] sm:$0xff] %vm225, 0.0
      %233 = vst.msk [vmem:[%s230 + $0x10] sm:$0x3] %vm228, 0.0
      %s234 = scalar_lea.vmem [#allocation2], 24
      %vm235 = vcmask 57344
      %236 = vst.msk [vmem:[%s234] sm:$0x1] %vm235, 0.0
      %237 = vst.msk [vmem:[%s234 + $0x18] sm:$0x1] %vm235, 0.0
      %238 = vst.msk [vmem:[%s234 + $0x30] sm:$0x1] %vm235, 0.0
      %239 = vst.msk [vmem:[%s234 + $0x48] sm:$0x1] %vm235, 0.0
      %240 = vst.msk [vmem:[%s234 + $0x60] sm:$0x1] %vm235, 0.0
      %241 = vst.msk [vmem:[%s234 + $0x78] sm:$0x1] %vm235, 0.0
      %242 = vst.msk [vmem:[%s234 + $0x90] sm:$0x1] %vm235, 0.0
      %243 = vst.msk [vmem:[%s234 + $0xa8] sm:$0x1] %vm235, 0.0
      %244 = vst.msk [vmem:[%s234 + $0xc0] sm:$0x1] %vm235, 0.0
      %245 = vst.msk [vmem:[%s234 + $0xd8] sm:$0x1] %vm235, 0.0
      %246 = vst.msk [vmem:[%s234 + $0xf0] sm:$0x1] %vm235, 0.0
      %247 = vst.msk [vmem:[%s234 + $0x108] sm:$0x1] %vm235, 0.0
      %248 = vst.msk [vmem:[%s234 + $0x120] sm:$0x1] %vm235, 0.0
      %249 = vst.msk [vmem:[%s234 + $0x138] sm:$0x1] %vm235, 0.0
      %250 = vst.msk [vmem:[%s234 + $0x150] sm:$0x1] %vm235, 0.0
      %251 = vst.msk [vmem:[%s234 + $0x168] sm:$0x1] %vm235, 0.0
      %252 = vst.msk [vmem:[%s234 + $0x11] sm:$0x1] %vm235, 0.0
      %253 = vst.msk [vmem:[%s234 + $0x29] sm:$0x1] %vm235, 0.0
      %254 = vst.msk [vmem:[%s234 + $0x41] sm:$0x1] %vm235, 0.0
      %255 = vst.msk [vmem:[%s234 + $0x59] sm:$0x1] %vm235, 0.0
      %256 = vst.msk [vmem:[%s234 + $0x71] sm:$0x1] %vm235, 0.0
      %257 = vst.msk [vmem:[%s234 + $0x89] sm:$0x1] %vm235, 0.0
      %258 = vst.msk [vmem:[%s234 + $0xa1] sm:$0x1] %vm235, 0.0
      %259 = vst.msk [vmem:[%s234 + $0xb9] sm:$0x1] %vm235, 0.0
      %260 = vst.msk [vmem:[%s234 + $0xd1] sm:$0x1] %vm235, 0.0
      %261 = vst.msk [vmem:[%s234 + $0xe9] sm:$0x1] %vm235, 0.0
      %262 = vst.msk [vmem:[%s234 + $0x101] sm:$0x1] %vm235, 0.0
      %263 = vst.msk [vmem:[%s234 + $0x119] sm:$0x1] %vm235, 0.0
      %264 = vst.msk [vmem:[%s234 + $0x131] sm:$0x1] %vm235, 0.0
      %265 = vst.msk [vmem:[%s234 + $0x149] sm:$0x1] %vm235, 0.0
      %266 = vst.msk [vmem:[%s234 + $0x161] sm:$0x1] %vm235, 0.0
      %267 = vst.msk [vmem:[%s234 + $0x179] sm:$0x1] %vm235, 0.0
      %v268 = vld [vmem:[%s219] sm:$0xff]
      %v269 = vld [vmem:[%s219 + $0x8] sm:$0xff]
      %v270 = vld [vmem:[%s219 + $0x10] sm:$0xff]
      %v271 = vld [vmem:[%s219 + $0x18] sm:$0xff]
      %v272 = vld [vmem:[%s219 + $0x20] sm:$0xff]
      %v273 = vld [vmem:[%s219 + $0x28] sm:$0xff]
      %v274 = vld [vmem:[%s219 + $0x30] sm:$0xff]
      %v275 = vld [vmem:[%s219 + $0x38] sm:$0xff]
      %v276 = vld [vmem:[%s219 + $0x40] sm:$0xff]
      %v277 = vld [vmem:[%s219 + $0x48] sm:$0xff]
      %v278 = vld [vmem:[%s219 + $0x50] sm:$0xff]
      %v279 = vld [vmem:[%s219 + $0x58] sm:$0xff]
      %v280 = vld [vmem:[%s219 + $0x60] sm:$0xff]
      %v281 = vld [vmem:[%s219 + $0x68] sm:$0xff]
      %v282 = vld [vmem:[%s219 + $0x70] sm:$0xff]
      %v283 = vld [vmem:[%s219 + $0x78] sm:$0xff]
      %v284 = vld [vmem:[%s219 + $0x80] sm:$0xff]
      %v285 = vld [vmem:[%s219 + $0x88] sm:$0xff]
      %v286 = vld [vmem:[%s219 + $0x90] sm:$0xff]
      %v287 = vld [vmem:[%s219 + $0x98] sm:$0xff]
      %v288 = vld [vmem:[%s219 + $0xa0] sm:$0xff]
      %v289 = vld [vmem:[%s219 + $0xa8] sm:$0xff]
      %v290 = vld [vmem:[%s219 + $0xb0] sm:$0xff]
      %v291 = vld [vmem:[%s219 + $0xb8] sm:$0xff]
      %v292 = vld [vmem:[%s219 + $0xc0] sm:$0xff]
      %v293 = vld [vmem:[%s219 + $0xc8] sm:$0xff]
      %v294 = vld [vmem:[%s219 + $0xd0] sm:$0xff]
      %v295 = vld [vmem:[%s219 + $0xd8] sm:$0xff]
      %v296 = vld [vmem:[%s219 + $0xe0] sm:$0xff]
      %v297 = vld [vmem:[%s219 + $0xe8] sm:$0xff]
      %v298 = vld [vmem:[%s219 + $0xf0] sm:$0xff]
      %v299 = vld [vmem:[%s219 + $0xf8] sm:$0xff]
      %300 = vst.msk [vmem:[%s234 + $0x1] sm:$0xff] %vm225, %v268
      %301 = vst.msk [vmem:[%s234 + $0x9] sm:$0xff] %vm225, %v269
      %302 = vst.msk [vmem:[%s234 + $0x19] sm:$0xff] %vm225, %v270
      %303 = vst.msk [vmem:[%s234 + $0x21] sm:$0xff] %vm225, %v271
      %304 = vst.msk [vmem:[%s234 + $0x31] sm:$0xff] %vm225, %v272
      %305 = vst.msk [vmem:[%s234 + $0x39] sm:$0xff] %vm225, %v273
      %306 = vst.msk [vmem:[%s234 + $0x49] sm:$0xff] %vm225, %v274
      %307 = vst.msk [vmem:[%s234 + $0x51] sm:$0xff] %vm225, %v275
      %308 = vst.msk [vmem:[%s234 + $0x61] sm:$0xff] %vm225, %v276
      %309 = vst.msk [vmem:[%s234 + $0x69] sm:$0xff] %vm225, %v277
      %310 = vst.msk [vmem:[%s234 + $0x79] sm:$0xff] %vm225, %v278
      %311 = vst.msk [vmem:[%s234 + $0x81] sm:$0xff] %vm225, %v279
      %312 = vst.msk [vmem:[%s234 + $0x91] sm:$0xff] %vm225, %v280
      %313 = vst.msk [vmem:[%s234 + $0x99] sm:$0xff] %vm225, %v281
      %314 = vst.msk [vmem:[%s234 + $0xa9] sm:$0xff] %vm225, %v282
      %315 = vst.msk [vmem:[%s234 + $0xb1] sm:$0xff] %vm225, %v283
      %316 = vst.msk [vmem:[%s234 + $0xc1] sm:$0xff] %vm225, %v284
      %317 = vst.msk [vmem:[%s234 + $0xc9] sm:$0xff] %vm225, %v285
      %318 = vst.msk [vmem:[%s234 + $0xd9] sm:$0xff] %vm225, %v286
      %319 = vst.msk [vmem:[%s234 + $0xe1] sm:$0xff] %vm225, %v287
      %320 = vst.msk [vmem:[%s234 + $0xf1] sm:$0xff] %vm225, %v288
      %321 = vst.msk [vmem:[%s234 + $0xf9] sm:$0xff] %vm225, %v289
      %322 = vst.msk [vmem:[%s234 + $0x109] sm:$0xff] %vm225, %v290
      %323 = vst.msk [vmem:[%s234 + $0x111] sm:$0xff] %vm225, %v291
      %324 = vst.msk [vmem:[%s234 + $0x121] sm:$0xff] %vm225, %v292
      %325 = vst.msk [vmem:[%s234 + $0x129] sm:$0xff] %vm225, %v293
      %326 = vst.msk [vmem:[%s234 + $0x139] sm:$0xff] %vm225, %v294
      %327 = vst.msk [vmem:[%s234 + $0x141] sm:$0xff] %vm225, %v295
      %328 = vst.msk [vmem:[%s234 + $0x151] sm:$0xff] %vm225, %v296
      %329 = vst.msk [vmem:[%s234 + $0x159] sm:$0xff] %vm225, %v297
      %330 = vst.msk [vmem:[%s234 + $0x169] sm:$0xff] %vm225, %v298
      %331 = vst.msk [vmem:[%s234 + $0x171] sm:$0xff] %vm225, %v299
      %v332 = vld [vmem:[#allocation2] sm:$0xff]
      %v333 = vld [vmem:[#allocation2 + $0x8] sm:$0xff]
      %v334 = vld [vmem:[#allocation2 + $0x18] sm:$0xff]
      %v335 = vld [vmem:[#allocation2 + $0x20] sm:$0xff]
      %v336 = vld [vmem:[#allocation2 + $0x30] sm:$0xff]
      %v337 = vld [vmem:[#allocation2 + $0x38] sm:$0xff]
      %v338 = vld [vmem:[#allocation2 + $0x48] sm:$0xff]
      %v339 = vld [vmem:[#allocation2 + $0x50] sm:$0xff]
      %v340 = vld [vmem:[#allocation2 + $0x60] sm:$0xff]
      %v341 = vld [vmem:[#allocation2 + $0x68] sm:$0xff]
      %v342 = vld [vmem:[#allocation2 + $0x78] sm:$0xff]
      %v343 = vld [vmem:[#allocation2 + $0x80] sm:$0xff]
      %v344 = vld [vmem:[#allocation2 + $0x90] sm:$0xff]
      %v345 = vld [vmem:[#allocation2 + $0x98] sm:$0xff]
      %v346 = vld [vmem:[#allocation2 + $0xa8] sm:$0xff]
      %v347 = vld [vmem:[#allocation2 + $0xb0] sm:$0xff]
      %v348 = vld [vmem:[#allocation2 + $0xc0] sm:$0xff]
      %v349 = vld [vmem:[#allocation2 + $0xc8] sm:$0xff]
      %v350 = vld [vmem:[#allocation2 + $0xd8] sm:$0xff]
      %v351 = vld [vmem:[#allocation2 + $0xe0] sm:$0xff]
      %v352 = vld [vmem:[#allocation2 + $0xf0] sm:$0xff]
      %v353 = vld [vmem:[#allocation2 + $0xf8] sm:$0xff]
      %v354 = vld [vmem:[#allocation2 + $0x108] sm:$0xff]
      %v355 = vld [vmem:[#allocation2 + $0x110] sm:$0xff]
      %v356 = vld [vmem:[#allocation2 + $0x120] sm:$0xff]
      %v357 = vld [vmem:[#allocation2 + $0x128] sm:$0xff]
      %v358 = vld [vmem:[#allocation2 + $0x138] sm:$0xff]
      %v359 = vld [vmem:[#allocation2 + $0x140] sm:$0xff]
      %v360 = vld [vmem:[#allocation2 + $0x150] sm:$0xff]
      %v361 = vld [vmem:[#allocation2 + $0x158] sm:$0xff]
      %v362 = vld [vmem:[#allocation2 + $0x168] sm:$0xff]
      %v363 = vld [vmem:[#allocation2 + $0x170] sm:$0xff]
      %v364 = vld [vmem:[%s1] sm:$0xff]
      %v365 = vld [vmem:[%s2] sm:$0x1]
      %v367 = vlaneseq
      %v368 = vshrl.u32 %v367, 7
      %v369 = vsub.s32 0, %v368
      %v370 = vrot.slane %v365, %v369
      %v373 = vsel %vm225, %v332, 0
      %v376 = vsel %vm225, %v333, 0
      %v379 = vsel %vm225, %v334, 0
      %v382 = vsel %vm225, %v335, 0
      %v385 = vsel %vm225, %v336, 0
      %v388 = vsel %vm225, %v337, 0
      %v391 = vsel %vm225, %v338, 0
      %v394 = vsel %vm225, %v339, 0
      %v397 = vsel %vm225, %v340, 0
      %v400 = vsel %vm225, %v341, 0
      %v403 = vsel %vm225, %v342, 0
      %v406 = vsel %vm225, %v343, 0
      %v409 = vsel %vm225, %v344, 0
      %v412 = vsel %vm225, %v345, 0
      %v415 = vsel %vm225, %v346, 0
      %v418 = vsel %vm225, %v347, 0
      %v421 = vsel %vm225, %v348, 0
      %v424 = vsel %vm225, %v349, 0
      %v427 = vsel %vm225, %v350, 0
      %v430 = vsel %vm225, %v351, 0
      %v433 = vsel %vm225, %v352, 0
      %v436 = vsel %vm225, %v353, 0
      %v439 = vsel %vm225, %v354, 0
      %v442 = vsel %vm225, %v355, 0
      %v445 = vsel %vm225, %v356, 0
      %v448 = vsel %vm225, %v357, 0
      %v451 = vsel %vm225, %v358, 0
      %v454 = vsel %vm225, %v359, 0
      %v457 = vsel %vm225, %v360, 0
      %v460 = vsel %vm225, %v361, 0
      %v463 = vsel %vm225, %v362, 0
      %v466 = vsel %vm225, %v363, 0
      %468 = vmatprep.subr.mxu0 0.0
      %469 = vmatpush1.msra.mxu0 %v364
      %470 = vmatprep.subr.mxu0 0.0
      %471 = vmatpush1.msra.mxu0 0.0
      %472 = vmatprep.subr.mxu0 0.0
      %473 = vmatpush1.msra.mxu0 0.0
      %474 = vmatprep.subr.mxu0 0.0
      %475 = vmatpush1.msra.mxu0 0.0
      %476 = vmatprep.subr.mxu0 0.0
      %477 = vmatpush1.msra.mxu0 0.0
      %478 = vmatprep.subr.mxu0 0.0
      %479 = vmatpush1.msra.mxu0 0.0
      %480 = vmatprep.subr.mxu0 0.0
      %481 = vmatpush1.msra.mxu0 0.0
      %482 = vmatprep.subr.mxu0 0.0
      %483 = vmatpush1.msra.mxu0 0.0
      %484 = vmatprep.subr.mxu0 0.0
      %485 = vmatpush1.msra.mxu0 0.0
      %486 = vmatprep.subr.mxu0 0.0
      %487 = vmatpush1.msra.mxu0 0.0
      %488 = vmatprep.subr.mxu0 0.0
      %489 = vmatpush1.msra.mxu0 0.0
      %490 = vmatprep.subr.mxu0 0.0
      %491 = vmatpush1.msra.mxu0 0.0
      %492 = vmatprep.subr.mxu0 0.0
      %493 = vmatpush1.msra.mxu0 0.0
      %494 = vmatprep.subr.mxu0 0.0
      %495 = vmatpush1.msra.mxu0 0.0
      %496 = vmatprep.subr.mxu0 0.0
      %497 = vmatpush1.msra.mxu0 0.0
      %498 = vmatprep.subr.mxu0 0.0
      %499 = vmatpush1.msra.mxu0 0.0
      %500 = vmatprep.subr.mxu0 0.0
      %501 = vmatpush1.msra.mxu0 0.0
      %502 = vmatprep.subr.mxu0 0.0
      %503 = vmatpush1.msra.mxu0 0.0
      %504 = vmatprep.subr.mxu0 0.0
      %505 = vmatpush1.msra.mxu0 0.0
      %506 = vmatprep.subr.mxu0 0.0
      %507 = vmatpush1.msra.mxu0 0.0
      %508 = vmatprep.subr.mxu0 0.0
      %509 = vmatpush1.msra.mxu0 0.0
      %510 = vmatprep.subr.mxu0 0.0
      %511 = vmatpush1.msra.mxu0 0.0
      %512 = vmatprep.subr.mxu0 0.0
      %513 = vmatpush1.msra.mxu0 0.0
      %514 = vmatprep.subr.mxu0 0.0
      %515 = vmatpush1.msra.mxu0 0.0
      %516 = vmatprep.subr.mxu0 0.0
      %517 = vmatpush1.msra.mxu0 0.0
      %518 = vmatprep.subr.mxu0 0.0
      %519 = vmatpush1.msra.mxu0 0.0
      %520 = vmatprep.subr.mxu0 0.0
      %521 = vmatpush1.msra.mxu0 0.0
      %522 = vmatprep.subr.mxu0 0.0
      %523 = vmatpush1.msra.mxu0 0.0
      %524 = vmatprep.subr.mxu0 0.0
      %525 = vmatpush1.msra.mxu0 0.0
      %526 = vmatprep.subr.mxu0 0.0
      %527 = vmatpush1.msra.mxu0 0.0
      %528 = vmatprep.subr.mxu0 0.0
      %529 = vmatpush1.msra.mxu0 0.0
      %530 = vmatprep.subr.mxu0 0.0
      %531 = vmatpush1.msra.mxu0 0.0
      %532 = vmatprep.mubr.f32.mxu0 0.0
      %533 = vmatmul.mubr.f32.gmra.mrb[0].mxu0 %v373
      %v534 = vpop.f32.mrb[0].mxu0
      %v535 = vadd.f32 %v370, %v534
      %v536 = vpop.f32.mrb[0].mxu0
      %537 = vmatprep.mubr.f32.mxu0 0.0
      %538 = vmatmul.mubr.f32.gmra.mrb[0].mxu0 %v376
      %v539 = vpop.f32.mrb[0].mxu0
      %v540 = vadd.f32 %v370, %v539
      %v541 = vpop.f32.mrb[0].mxu0
      %542 = vmatprep.mubr.f32.mxu0 0.0
      %543 = vmatmul.mubr.f32.gmra.mrb[0].mxu0 %v379
      %v544 = vpop.f32.mrb[0].mxu0
      %v545 = vadd.f32 %v370, %v544
      %v546 = vpop.f32.mrb[0].mxu0
      %547 = vmatprep.mubr.f32.mxu0 0.0
      %548 = vmatmul.mubr.f32.gmra.mrb[0].mxu0 %v382
      %v549 = vpop.f32.mrb[0].mxu0
      %v550 = vadd.f32 %v370, %v549
      %v551 = vpop.f32.mrb[0].mxu0
      %552 = vmatprep.mubr.f32.mxu0 0.0
      %553 = vmatmul.mubr.f32.gmra.mrb[0].mxu0 %v385
      %v554 = vpop.f32.mrb[0].mxu0
      %v555 = vadd.f32 %v370, %v554
      %v556 = vpop.f32.mrb[0].mxu0
      %557 = vmatprep.mubr.f32.mxu0 0.0
      %558 = vmatmul.mubr.f32.gmra.mrb[0].mxu0 %v388
      %v559 = vpop.f32.mrb[0].mxu0
      %v560 = vadd.f32 %v370, %v559
      %v561 = vpop.f32.mrb[0].mxu0
      %562 = vmatprep.mubr.f32.mxu0 0.0
      %563 = vmatmul.mubr.f32.gmra.mrb[0].mxu0 %v391
      %v564 = vpop.f32.mrb[0].mxu0
      %v565 = vadd.f32 %v370, %v564
      %v566 = vpop.f32.mrb[0].mxu0
      %567 = vmatprep.mubr.f32.mxu0 0.0
      %568 = vmatmul.mubr.f32.gmra.mrb[0].mxu0 %v394
      %v569 = vpop.f32.mrb[0].mxu0
      %v570 = vadd.f32 %v370, %v569
      %v571 = vpop.f32.mrb[0].mxu0
      %572 = vmatprep.mubr.f32.mxu0 0.0
      %573 = vmatmul.mubr.f32.gmra.mrb[0].mxu0 %v397
      %v574 = vpop.f32.mrb[0].mxu0
      %v575 = vadd.f32 %v370, %v574
      %v576 = vpop.f32.mrb[0].mxu0
      %577 = vmatprep.mubr.f32.mxu0 0.0
      %578 = vmatmul.mubr.f32.gmra.mrb[0].mxu0 %v400
      %v579 = vpop.f32.mrb[0].mxu0
      %v580 = vadd.f32 %v370, %v579
      %v581 = vpop.f32.mrb[0].mxu0
      %582 = vmatprep.mubr.f32.mxu0 0.0
      %583 = vmatmul.mubr.f32.gmra.mrb[0].mxu0 %v403
      %v584 = vpop.f32.mrb[0].mxu0
      %v585 = vadd.f32 %v370, %v584
      %v586 = vpop.f32.mrb[0].mxu0
      %587 = vmatprep.mubr.f32.mxu0 0.0
      %588 = vmatmul.mubr.f32.gmra.mrb[0].mxu0 %v406
      %v589 = vpop.f32.mrb[0].mxu0
      %v590 = vadd.f32 %v370, %v589
      %v591 = vpop.f32.mrb[0].mxu0
      %592 = vmatprep.mubr.f32.mxu0 0.0
      %593 = vmatmul.mubr.f32.gmra.mrb[0].mxu0 %v409
      %v594 = vpop.f32.mrb[0].mxu0
      %v595 = vadd.f32 %v370, %v594
      %v596 = vpop.f32.mrb[0].mxu0
      %597 = vmatprep.mubr.f32.mxu0 0.0
      %598 = vmatmul.mubr.f32.gmra.mrb[0].mxu0 %v412
      %v599 = vpop.f32.mrb[0].mxu0
      %v600 = vadd.f32 %v370, %v599
      %v601 = vpop.f32.mrb[0].mxu0
      %602 = vmatprep.mubr.f32.mxu0 0.0
      %603 = vmatmul.mubr.f32.gmra.mrb[0].mxu0 %v415
      %v604 = vpop.f32.mrb[0].mxu0
      %v605 = vadd.f32 %v370, %v604
      %v606 = vpop.f32.mrb[0].mxu0
      %607 = vmatprep.mubr.f32.mxu0 0.0
      %608 = vmatmul.mubr.f32.gmra.mrb[0].mxu0 %v418
      %v609 = vpop.f32.mrb[0].mxu0
      %v610 = vadd.f32 %v370, %v609
      %v611 = vpop.f32.mrb[0].mxu0
      %612 = vmatprep.mubr.f32.mxu0 0.0
      %613 = vmatmul.mubr.f32.gmra.mrb[0].mxu0 %v421
      %v614 = vpop.f32.mrb[0].mxu0
      %v615 = vadd.f32 %v370, %v614
      %v616 = vpop.f32.mrb[0].mxu0
      %617 = vmatprep.mubr.f32.mxu0 0.0
      %618 = vmatmul.mubr.f32.gmra.mrb[0].mxu0 %v424
      %v619 = vpop.f32.mrb[0].mxu0
      %v620 = vadd.f32 %v370, %v619
      %v621 = vpop.f32.mrb[0].mxu0
      %622 = vmatprep.mubr.f32.mxu0 0.0
      %623 = vmatmul.mubr.f32.gmra.mrb[0].mxu0 %v427
      %v624 = vpop.f32.mrb[0].mxu0
      %v625 = vadd.f32 %v370, %v624
      %v626 = vpop.f32.mrb[0].mxu0
      %627 = vmatprep.mubr.f32.mxu0 0.0
      %628 = vmatmul.mubr.f32.gmra.mrb[0].mxu0 %v430
      %v629 = vpop.f32.mrb[0].mxu0
      %v630 = vadd.f32 %v370, %v629
      %v631 = vpop.f32.mrb[0].mxu0
      %632 = vmatprep.mubr.f32.mxu0 0.0
      %633 = vmatmul.mubr.f32.gmra.mrb[0].mxu0 %v433
      %v634 = vpop.f32.mrb[0].mxu0
      %v635 = vadd.f32 %v370, %v634
      %v636 = vpop.f32.mrb[0].mxu0
      %637 = vmatprep.mubr.f32.mxu0 0.0
      %638 = vmatmul.mubr.f32.gmra.mrb[0].mxu0 %v436
      %v639 = vpop.f32.mrb[0].mxu0
      %v640 = vadd.f32 %v370, %v639
      %v641 = vpop.f32.mrb[0].mxu0
      %642 = vmatprep.mubr.f32.mxu0 0.0
      %643 = vmatmul.mubr.f32.gmra.mrb[0].mxu0 %v439
      %v644 = vpop.f32.mrb[0].mxu0
      %v645 = vadd.f32 %v370, %v644
      %v646 = vpop.f32.mrb[0].mxu0
      %647 = vmatprep.mubr.f32.mxu0 0.0
      %648 = vmatmul.mubr.f32.gmra.mrb[0].mxu0 %v442
      %v649 = vpop.f32.mrb[0].mxu0
      %v650 = vadd.f32 %v370, %v649
      %v651 = vpop.f32.mrb[0].mxu0
      %652 = vmatprep.mubr.f32.mxu0 0.0
      %653 = vmatmul.mubr.f32.gmra.mrb[0].mxu0 %v445
      %v654 = vpop.f32.mrb[0].mxu0
      %v655 = vadd.f32 %v370, %v654
      %v656 = vpop.f32.mrb[0].mxu0
      %657 = vmatprep.mubr.f32.mxu0 0.0
      %658 = vmatmul.mubr.f32.gmra.mrb[0].mxu0 %v448
      %v659 = vpop.f32.mrb[0].mxu0
      %v660 = vadd.f32 %v370, %v659
      %v661 = vpop.f32.mrb[0].mxu0
      %662 = vmatprep.mubr.f32.mxu0 0.0
      %663 = vmatmul.mubr.f32.gmra.mrb[0].mxu0 %v451
      %v664 = vpop.f32.mrb[0].mxu0
      %v665 = vadd.f32 %v370, %v664
      %v666 = vpop.f32.mrb[0].mxu0
      %667 = vmatprep.mubr.f32.mxu0 0.0
      %668 = vmatmul.mubr.f32.gmra.mrb[0].mxu0 %v454
      %v669 = vpop.f32.mrb[0].mxu0
      %v670 = vadd.f32 %v370, %v669
      %v671 = vpop.f32.mrb[0].mxu0
      %672 = vmatprep.mubr.f32.mxu0 0.0
      %673 = vmatmul.mubr.f32.gmra.mrb[0].mxu0 %v457
      %v674 = vpop.f32.mrb[0].mxu0
      %v675 = vadd.f32 %v370, %v674
      %v676 = vpop.f32.mrb[0].mxu0
      %677 = vmatprep.mubr.f32.mxu0 0.0
      %678 = vmatmul.mubr.f32.gmra.mrb[0].mxu0 %v460
      %v679 = vpop.f32.mrb[0].mxu0
      %v680 = vadd.f32 %v370, %v679
      %v681 = vpop.f32.mrb[0].mxu0
      %682 = vmatprep.mubr.f32.mxu0 0.0
      %683 = vmatmul.mubr.f32.gmra.mrb[0].mxu0 %v463
      %v684 = vpop.f32.mrb[0].mxu0
      %v685 = vadd.f32 %v370, %v684
      %v686 = vpop.f32.mrb[0].mxu0
      %687 = vmatprep.mubr.f32.mxu0 0.0
      %688 = vmatmul.mubr.f32.gmra.mrb[0].mxu0 %v466
      %v689 = vpop.f32.mrb[0].mxu0
      %v690 = vadd.f32 %v370, %v689
      %v691 = vpop.f32.mrb[0].mxu0
      %692 = vdwg.mxu0
      %v693 = vld [vmem:[#allocation2 + $0x1] sm:$0xff]
      %v694 = vld [vmem:[#allocation2 + $0x9] sm:$0xff]
      %v695 = vld [vmem:[#allocation2 + $0x19] sm:$0xff]
      %v696 = vld [vmem:[#allocation2 + $0x21] sm:$0xff]
      %v697 = vld [vmem:[#allocation2 + $0x31] sm:$0xff]
      %v698 = vld [vmem:[#allocation2 + $0x39] sm:$0xff]
      %v699 = vld [vmem:[#allocation2 + $0x49] sm:$0xff]
      %v700 = vld [vmem:[#allocation2 + $0x51] sm:$0xff]
      %v701 = vld [vmem:[#allocation2 + $0x61] sm:$0xff]
      %v702 = vld [vmem:[#allocation2 + $0x69] sm:$0xff]
      %v703 = vld [vmem:[#allocation2 + $0x79] sm:$0xff]
      %v704 = vld [vmem:[#allocation2 + $0x81] sm:$0xff]
      %v705 = vld [vmem:[#allocation2 + $0x91] sm:$0xff]
      %v706 = vld [vmem:[#allocation2 + $0x99] sm:$0xff]
      %v707 = vld [vmem:[#allocation2 + $0xa9] sm:$0xff]
      %v708 = vld [vmem:[#allocation2 + $0xb1] sm:$0xff]
      %v709 = vld [vmem:[#allocation2 + $0xc1] sm:$0xff]
      %v710 = vld [vmem:[#allocation2 + $0xc9] sm:$0xff]
      %v711 = vld [vmem:[#allocation2 + $0xd9] sm:$0xff]
      %v712 = vld [vmem:[#allocation2 + $0xe1] sm:$0xff]
      %v713 = vld [vmem:[#allocation2 + $0xf1] sm:$0xff]
      %v714 = vld [vmem:[#allocation2 + $0xf9] sm:$0xff]
      %v715 = vld [vmem:[#allocation2 + $0x109] sm:$0xff]
      %v716 = vld [vmem:[#allocation2 + $0x111] sm:$0xff]
      %v717 = vld [vmem:[#allocation2 + $0x121] sm:$0xff]
      %v718 = vld [vmem:[#allocation2 + $0x129] sm:$0xff]
      %v719 = vld [vmem:[#allocation2 + $0x139] sm:$0xff]
      %v720 = vld [vmem:[#allocation2 + $0x141] sm:$0xff]
      %v721 = vld [vmem:[#allocation2 + $0x151] sm:$0xff]
      %v722 = vld [vmem:[#allocation2 + $0x159] sm:$0xff]
      %v723 = vld [vmem:[#allocation2 + $0x169] sm:$0xff]
      %v724 = vld [vmem:[#allocation2 + $0x171] sm:$0xff]
      %s725 = scalar_lea.vmem %s1, 8
      %v726 = vld [vmem:[%s725] sm:$0xff]
      %v728 = vsel %vm225, %v693, 0
      %v731 = vsel %vm225, %v694, 0
      %v734 = vsel %vm225, %v695, 0
      %v737 = vsel %vm225, %v696, 0
      %v740 = vsel %vm225, %v697, 0
      %v743 = vsel %vm225, %v698, 0
      %v746 = vsel %vm225, %v699, 0
      %v749 = vsel %vm225, %v700, 0
      %v752 = vsel %vm225, %v701, 0
      %v755 = vsel %vm225, %v702, 0
      %v758 = vsel %vm225, %v703, 0
      %v761 = vsel %vm225, %v704, 0
      %v764 = vsel %vm225, %v705, 0
      %v767 = vsel %vm225, %v706, 0
      %v770 = vsel %vm225, %v707, 0
      %v773 = vsel %vm225, %v708, 0
      %v776 = vsel %vm225, %v709, 0
      %v779 = vsel %vm225, %v710, 0
      %v782 = vsel %vm225, %v711, 0
      %v785 = vsel %vm225, %v712, 0
      %v788 = vsel %vm225, %v713, 0
      %v791 = vsel %vm225, %v714, 0
      %v794 = vsel %vm225, %v715, 0
      %v797 = vsel %vm225, %v716, 0
      %v800 = vsel %vm225, %v717, 0
      %v803 = vsel %vm225, %v718, 0
      %v806 = vsel %vm225, %v719, 0
      %v809 = vsel %vm225, %v720, 0
      %v812 = vsel %vm225, %v721, 0
      %v815 = vsel %vm225, %v722, 0
      %v818 = vsel %vm225, %v723, 0
      %v821 = vsel %vm225, %v724, 0
      %823 = vmatprep.subr.mxu0 0.0
      %824 = vmatpush1.msra.mxu0 %v726
      %825 = vmatprep.subr.mxu0 0.0
      %826 = vmatpush1.msra.mxu0 0.0
      %827 = vmatprep.subr.mxu0 0.0
      %828 = vmatpush1.msra.mxu0 0.0
      %829 = vmatprep.subr.mxu0 0.0
      %830 = vmatpush1.msra.mxu0 0.0
      %831 = vmatprep.subr.mxu0 0.0
      %832 = vmatpush1.msra.mxu0 0.0
      %833 = vmatprep.subr.mxu0 0.0
      %834 = vmatpush1.msra.mxu0 0.0
      %835 = vmatprep.subr.mxu0 0.0
      %836 = vmatpush1.msra.mxu0 0.0
      %837 = vmatprep.subr.mxu0 0.0
      %838 = vmatpush1.msra.mxu0 0.0
      %839 = vmatprep.subr.mxu0 0.0
      %840 = vmatpush1.msra.mxu0 0.0
      %841 = vmatprep.subr.mxu0 0.0
      %842 = vmatpush1.msra.mxu0 0.0
      %843 = vmatprep.subr.mxu0 0.0
      %844 = vmatpush1.msra.mxu0 0.0
      %845 = vmatprep.subr.mxu0 0.0
      %846 = vmatpush1.msra.mxu0 0.0
      %847 = vmatprep.subr.mxu0 0.0
      %848 = vmatpush1.msra.mxu0 0.0
      %849 = vmatprep.subr.mxu0 0.0
      %850 = vmatpush1.msra.mxu0 0.0
      %851 = vmatprep.subr.mxu0 0.0
      %852 = vmatpush1.msra.mxu0 0.0
      %853 = vmatprep.subr.mxu0 0.0
      %854 = vmatpush1.msra.mxu0 0.0
      %855 = vmatprep.subr.mxu0 0.0
      %856 = vmatpush1.msra.mxu0 0.0
      %857 = vmatprep.subr.mxu0 0.0
      %858 = vmatpush1.msra.mxu0 0.0
      %859 = vmatprep.subr.mxu0 0.0
      %860 = vmatpush1.msra.mxu0 0.0
      %861 = vmatprep.subr.mxu0 0.0
      %862 = vmatpush1.msra.mxu0 0.0
      %863 = vmatprep.subr.mxu0 0.0
      %864 = vmatpush1.msra.mxu0 0.0
      %865 = vmatprep.subr.mxu0 0.0
      %866 = vmatpush1.msra.mxu0 0.0
      %867 = vmatprep.subr.mxu0 0.0
      %868 = vmatpush1.msra.mxu0 0.0
      %869 = vmatprep.subr.mxu0 0.0
      %870 = vmatpush1.msra.mxu0 0.0
      %871 = vmatprep.subr.mxu0 0.0
      %872 = vmatpush1.msra.mxu0 0.0
      %873 = vmatprep.subr.mxu0 0.0
      %874 = vmatpush1.msra.mxu0 0.0
      %875 = vmatprep.subr.mxu0 0.0
      %876 = vmatpush1.msra.mxu0 0.0
      %877 = vmatprep.subr.mxu0 0.0
      %878 = vmatpush1.msra.mxu0 0.0
      %879 = vmatprep.subr.mxu0 0.0
      %880 = vmatpush1.msra.mxu0 0.0
      %881 = vmatprep.subr.mxu0 0.0
      %882 = vmatpush1.msra.mxu0 0.0
      %883 = vmatprep.subr.mxu0 0.0
      %884 = vmatpush1.msra.mxu0 0.0
      %885 = vmatprep.subr.mxu0 0.0
      %886 = vmatpush1.msra.mxu0 0.0
      %887 = vmatprep.mubr.f32.mxu0 0.0
      %888 = vmatmul.mubr.f32.gmra.mrb[0].mxu0 %v728
      %v889 = vpop.f32.mrb[0].mxu0
      %v890 = vadd.f32 0.0, %v889
      %v891 = vpop.f32.mrb[0].mxu0
      %892 = vmatprep.mubr.f32.mxu0 0.0
      %893 = vmatmul.mubr.f32.gmra.mrb[0].mxu0 %v731
      %v894 = vpop.f32.mrb[0].mxu0
      %v895 = vadd.f32 0.0, %v894
      %v896 = vpop.f32.mrb[0].mxu0
      %897 = vmatprep.mubr.f32.mxu0 0.0
      %898 = vmatmul.mubr.f32.gmra.mrb[0].mxu0 %v734
      %v899 = vpop.f32.mrb[0].mxu0
      %v900 = vadd.f32 0.0, %v899
      %v901 = vpop.f32.mrb[0].mxu0
      %902 = vmatprep.mubr.f32.mxu0 0.0
      %903 = vmatmul.mubr.f32.gmra.mrb[0].mxu0 %v737
      %v904 = vpop.f32.mrb[0].mxu0
      %v905 = vadd.f32 0.0, %v904
      %v906 = vpop.f32.mrb[0].mxu0
      %907 = vmatprep.mubr.f32.mxu0 0.0
      %908 = vmatmul.mubr.f32.gmra.mrb[0].mxu0 %v740
      %v909 = vpop.f32.mrb[0].mxu0
      %v910 = vadd.f32 0.0, %v909
      %v911 = vpop.f32.mrb[0].mxu0
      %912 = vmatprep.mubr.f32.mxu0 0.0
      %913 = vmatmul.mubr.f32.gmra.mrb[0].mxu0 %v743
      %v914 = vpop.f32.mrb[0].mxu0
      %v915 = vadd.f32 0.0, %v914
      %v916 = vpop.f32.mrb[0].mxu0
      %917 = vmatprep.mubr.f32.mxu0 0.0
      %918 = vmatmul.mubr.f32.gmra.mrb[0].mxu0 %v746
      %v919 = vpop.f32.mrb[0].mxu0
      %v920 = vadd.f32 0.0, %v919
      %v921 = vpop.f32.mrb[0].mxu0
      %922 = vmatprep.mubr.f32.mxu0 0.0
      %923 = vmatmul.mubr.f32.gmra.mrb[0].mxu0 %v749
      %v924 = vpop.f32.mrb[0].mxu0
      %v925 = vadd.f32 0.0, %v924
      %v926 = vpop.f32.mrb[0].mxu0
      %927 = vmatprep.mubr.f32.mxu0 0.0
      %928 = vmatmul.mubr.f32.gmra.mrb[0].mxu0 %v752
      %v929 = vpop.f32.mrb[0].mxu0
      %v930 = vadd.f32 0.0, %v929
      %v931 = vpop.f32.mrb[0].mxu0
      %932 = vmatprep.mubr.f32.mxu0 0.0
      %933 = vmatmul.mubr.f32.gmra.mrb[0].mxu0 %v755
      %v934 = vpop.f32.mrb[0].mxu0
      %v935 = vadd.f32 0.0, %v934
      %v936 = vpop.f32.mrb[0].mxu0
      %937 = vmatprep.mubr.f32.mxu0 0.0
      %938 = vmatmul.mubr.f32.gmra.mrb[0].mxu0 %v758
      %v939 = vpop.f32.mrb[0].mxu0
      %v940 = vadd.f32 0.0, %v939
      %v941 = vpop.f32.mrb[0].mxu0
      %942 = vmatprep.mubr.f32.mxu0 0.0
      %943 = vmatmul.mubr.f32.gmra.mrb[0].mxu0 %v761
      %v944 = vpop.f32.mrb[0].mxu0
      %v945 = vadd.f32 0.0, %v944
      %v946 = vpop.f32.mrb[0].mxu0
      %947 = vmatprep.mubr.f32.mxu0 0.0
      %948 = vmatmul.mubr.f32.gmra.mrb[0].mxu0 %v764
      %v949 = vpop.f32.mrb[0].mxu0
      %v950 = vadd.f32 0.0, %v949
      %v951 = vpop.f32.mrb[0].mxu0
      %952 = vmatprep.mubr.f32.mxu0 0.0
      %953 = vmatmul.mubr.f32.gmra.mrb[0].mxu0 %v767
      %v954 = vpop.f32.mrb[0].mxu0
      %v955 = vadd.f32 0.0, %v954
      %v956 = vpop.f32.mrb[0].mxu0
      %957 = vmatprep.mubr.f32.mxu0 0.0
      %958 = vmatmul.mubr.f32.gmra.mrb[0].mxu0 %v770
      %v959 = vpop.f32.mrb[0].mxu0
      %v960 = vadd.f32 0.0, %v959
      %v961 = vpop.f32.mrb[0].mxu0
      %962 = vmatprep.mubr.f32.mxu0 0.0
      %963 = vmatmul.mubr.f32.gmra.mrb[0].mxu0 %v773
      %v964 = vpop.f32.mrb[0].mxu0
      %v965 = vadd.f32 0.0, %v964
      %v966 = vpop.f32.mrb[0].mxu0
      %967 = vmatprep.mubr.f32.mxu0 0.0
      %968 = vmatmul.mubr.f32.gmra.mrb[0].mxu0 %v776
      %v969 = vpop.f32.mrb[0].mxu0
      %v970 = vadd.f32 0.0, %v969
      %v971 = vpop.f32.mrb[0].mxu0
      %972 = vmatprep.mubr.f32.mxu0 0.0
      %973 = vmatmul.mubr.f32.gmra.mrb[0].mxu0 %v779
      %v974 = vpop.f32.mrb[0].mxu0
      %v975 = vadd.f32 0.0, %v974
      %v976 = vpop.f32.mrb[0].mxu0
      %977 = vmatprep.mubr.f32.mxu0 0.0
      %978 = vmatmul.mubr.f32.gmra.mrb[0].mxu0 %v782
      %v979 = vpop.f32.mrb[0].mxu0
      %v980 = vadd.f32 0.0, %v979
      %v981 = vpop.f32.mrb[0].mxu0
      %982 = vmatprep.mubr.f32.mxu0 0.0
      %983 = vmatmul.mubr.f32.gmra.mrb[0].mxu0 %v785
      %v984 = vpop.f32.mrb[0].mxu0
      %v985 = vadd.f32 0.0, %v984
      %v986 = vpop.f32.mrb[0].mxu0
      %987 = vmatprep.mubr.f32.mxu0 0.0
      %988 = vmatmul.mubr.f32.gmra.mrb[0].mxu0 %v788
      %v989 = vpop.f32.mrb[0].mxu0
      %v990 = vadd.f32 0.0, %v989
      %v991 = vpop.f32.mrb[0].mxu0
      %992 = vmatprep.mubr.f32.mxu0 0.0
      %993 = vmatmul.mubr.f32.gmra.mrb[0].mxu0 %v791
      %v994 = vpop.f32.mrb[0].mxu0
      %v995 = vadd.f32 0.0, %v994
      %v996 = vpop.f32.mrb[0].mxu0
      %997 = vmatprep.mubr.f32.mxu0 0.0
      %998 = vmatmul.mubr.f32.gmra.mrb[0].mxu0 %v794
      %v999 = vpop.f32.mrb[0].mxu0
      %v1000 = vadd.f32 0.0, %v999
      %v1001 = vpop.f32.mrb[0].mxu0
      %1002 = vmatprep.mubr.f32.mxu0 0.0
      %1003 = vmatmul.mubr.f32.gmra.mrb[0].mxu0 %v797
      %v1004 = vpop.f32.mrb[0].mxu0
      %v1005 = vadd.f32 0.0, %v1004
      %v1006 = vpop.f32.mrb[0].mxu0
      %1007 = vmatprep.mubr.f32.mxu0 0.0
      %1008 = vmatmul.mubr.f32.gmra.mrb[0].mxu0 %v800
      %v1009 = vpop.f32.mrb[0].mxu0
      %v1010 = vadd.f32 0.0, %v1009
      %v1011 = vpop.f32.mrb[0].mxu0
      %1012 = vmatprep.mubr.f32.mxu0 0.0
      %1013 = vmatmul.mubr.f32.gmra.mrb[0].mxu0 %v803
      %v1014 = vpop.f32.mrb[0].mxu0
      %v1015 = vadd.f32 0.0, %v1014
      %v1016 = vpop.f32.mrb[0].mxu0
      %1017 = vmatprep.mubr.f32.mxu0 0.0
      %1018 = vmatmul.mubr.f32.gmra.mrb[0].mxu0 %v806
      %v1019 = vpop.f32.mrb[0].mxu0
      %v1020 = vadd.f32 0.0, %v1019
      %v1021 = vpop.f32.mrb[0].mxu0
      %1022 = vmatprep.mubr.f32.mxu0 0.0
      %1023 = vmatmul.mubr.f32.gmra.mrb[0].mxu0 %v809
      %v1024 = vpop.f32.mrb[0].mxu0
      %v1025 = vadd.f32 0.0, %v1024
      %v1026 = vpop.f32.mrb[0].mxu0
      %1027 = vmatprep.mubr.f32.mxu0 0.0
      %1028 = vmatmul.mubr.f32.gmra.mrb[0].mxu0 %v812
      %v1029 = vpop.f32.mrb[0].mxu0
      %v1030 = vadd.f32 0.0, %v1029
      %v1031 = vpop.f32.mrb[0].mxu0
      %1032 = vmatprep.mubr.f32.mxu0 0.0
      %1033 = vmatmul.mubr.f32.gmra.mrb[0].mxu0 %v815
      %v1034 = vpop.f32.mrb[0].mxu0
      %v1035 = vadd.f32 0.0, %v1034
      %v1036 = vpop.f32.mrb[0].mxu0
      %1037 = vmatprep.mubr.f32.mxu0 0.0
      %1038 = vmatmul.mubr.f32.gmra.mrb[0].mxu0 %v818
      %v1039 = vpop.f32.mrb[0].mxu0
      %v1040 = vadd.f32 0.0, %v1039
      %v1041 = vpop.f32.mrb[0].mxu0
      %1042 = vmatprep.mubr.f32.mxu0 0.0
      %1043 = vmatmul.mubr.f32.gmra.mrb[0].mxu0 %v821
      %v1044 = vpop.f32.mrb[0].mxu0
      %v1045 = vadd.f32 0.0, %v1044
      %v1046 = vpop.f32.mrb[0].mxu0
      %1047 = vdwg.mxu0
      %v1048 = vadd.f32 %v535, %v890
      %v1049 = vadd.f32 %v540, %v895
      %v1050 = vadd.f32 %v545, %v900
      %v1051 = vadd.f32 %v550, %v905
      %v1052 = vadd.f32 %v555, %v910
      %v1053 = vadd.f32 %v560, %v915
      %v1054 = vadd.f32 %v565, %v920
      %v1055 = vadd.f32 %v570, %v925
      %v1056 = vadd.f32 %v575, %v930
      %v1057 = vadd.f32 %v580, %v935
      %v1058 = vadd.f32 %v585, %v940
      %v1059 = vadd.f32 %v590, %v945
      %v1060 = vadd.f32 %v595, %v950
      %v1061 = vadd.f32 %v600, %v955
      %v1062 = vadd.f32 %v605, %v960
      %v1063 = vadd.f32 %v610, %v965
      %v1064 = vadd.f32 %v615, %v970
      %v1065 = vadd.f32 %v620, %v975
      %v1066 = vadd.f32 %v625, %v980
      %v1067 = vadd.f32 %v630, %v985
      %v1068 = vadd.f32 %v635, %v990
      %v1069 = vadd.f32 %v640, %v995
      %v1070 = vadd.f32 %v645, %v1000
      %v1071 = vadd.f32 %v650, %v1005
      %v1072 = vadd.f32 %v655, %v1010
      %v1073 = vadd.f32 %v660, %v1015
      %v1074 = vadd.f32 %v665, %v1020
      %v1075 = vadd.f32 %v670, %v1025
      %v1076 = vadd.f32 %v675, %v1030
      %v1077 = vadd.f32 %v680, %v1035
      %v1078 = vadd.f32 %v685, %v1040
      %v1079 = vadd.f32 %v690, %v1045
      %v1080 = vld [vmem:[#allocation2 + $0x2] sm:$0xff]
      %v1081 = vld [vmem:[#allocation2 + $0xa] sm:$0xff]
      %v1082 = vld [vmem:[#allocation2 + $0x1a] sm:$0xff]
      %v1083 = vld [vmem:[#allocation2 + $0x22] sm:$0xff]
      %v1084 = vld [vmem:[#allocation2 + $0x32] sm:$0xff]
      %v1085 = vld [vmem:[#allocation2 + $0x3a] sm:$0xff]
      %v1086 = vld [vmem:[#allocation2 + $0x4a] sm:$0xff]
      %v1087 = vld [vmem:[#allocation2 + $0x52] sm:$0xff]
      %v1088 = vld [vmem:[#allocation2 + $0x62] sm:$0xff]
      %v1089 = vld [vmem:[#allocation2 + $0x6a] sm:$0xff]
      %v1090 = vld [vmem:[#allocation2 + $0x7a] sm:$0xff]
      %v1091 = vld [vmem:[#allocation2 + $0x82] sm:$0xff]
      %v1092 = vld [vmem:[#allocation2 + $0x92] sm:$0xff]
      %v1093 = vld [vmem:[#allocation2 + $0x9a] sm:$0xff]
      %v1094 = vld [vmem:[#allocation2 + $0xaa] sm:$0xff]
      %v1095 = vld [vmem:[#allocation2 + $0xb2] sm:$0xff]
      %v1096 = vld [vmem:[#allocation2 + $0xc2] sm:$0xff]
      %v1097 = vld [vmem:[#allocation2 + $0xca] sm:$0xff]
      %v1098 = vld [vmem:[#allocation2 + $0xda] sm:$0xff]
      %v1099 = vld [vmem:[#allocation2 + $0xe2] sm:$0xff]
      %v1100 = vld [vmem:[#allocation2 + $0xf2] sm:$0xff]
      %v1101 = vld [vmem:[#allocation2 + $0xfa] sm:$0xff]
      %v1102 = vld [vmem:[#allocation2 + $0x10a] sm:$0xff]
      %v1103 = vld [vmem:[#allocation2 + $0x112] sm:$0xff]
      %v1104 = vld [vmem:[#allocation2 + $0x122] sm:$0xff]
      %v1105 = vld [vmem:[#allocation2 + $0x12a] sm:$0xff]
      %v1106 = vld [vmem:[#allocation2 + $0x13a] sm:$0xff]
      %v1107 = vld [vmem:[#allocation2 + $0x142] sm:$0xff]
      %v1108 = vld [vmem:[#allocation2 + $0x152] sm:$0xff]
      %v1109 = vld [vmem:[#allocation2 + $0x15a] sm:$0xff]
      %v1110 = vld [vmem:[#allocation2 + $0x16a] sm:$0xff]
      %v1111 = vld [vmem:[#allocation2 + $0x172] sm:$0xff]
      %s1112 = scalar_lea.vmem %s1, 16
      %v1113 = vld [vmem:[%s1112] sm:$0xff]
      %v1115 = vsel %vm225, %v1080, 0
      %v1118 = vsel %vm225, %v1081, 0
      %v1121 = vsel %vm225, %v1082, 0
      %v1124 = vsel %vm225, %v1083, 0
      %v1127 = vsel %vm225, %v1084, 0
      %v1130 = vsel %vm225, %v1085, 0
      %v1133 = vsel %vm225, %v1086, 0
      %v1136 = vsel %vm225, %v1087, 0
      %v1139 = vsel %vm225, %v1088, 0
      %v1142 = vsel %vm225, %v1089, 0
      %v1145 = vsel %vm225, %v1090, 0
      %v1148 = vsel %vm225, %v1091, 0
      %v1151 = vsel %vm225, %v1092, 0
      %v1154 = vsel %vm225, %v1093, 0
      %v1157 = vsel %vm225, %v1094, 0
      %v1160 = vsel %vm225, %v1095, 0
      %v1163 = vsel %vm225, %v1096, 0
      %v1166 = vsel %vm225, %v1097, 0
      %v1169 = vsel %vm225, %v1098, 0
      %v1172 = vsel %vm225, %v1099, 0
      %v1175 = vsel %vm225, %v1100, 0
      %v1178 = vsel %vm225, %v1101, 0
      %v1181 = vsel %vm225, %v1102, 0
      %v1184 = vsel %vm225, %v1103, 0
      %v1187 = vsel %vm225, %v1104, 0
      %v1190 = vsel %vm225, %v1105, 0
      %v1193 = vsel %vm225, %v1106, 0
      %v1196 = vsel %vm225, %v1107, 0
      %v1199 = vsel %vm225, %v1108, 0
      %v1202 = vsel %vm225, %v1109, 0
      %v1205 = vsel %vm225, %v1110, 0
      %v1208 = vsel %vm225, %v1111, 0
      %1210 = vmatprep.subr.mxu0 0.0
      %1211 = vmatpush1.msra.mxu0 %v1113
      %1212 = vmatprep.subr.mxu0 0.0
      %1213 = vmatpush1.msra.mxu0 0.0
      %1214 = vmatprep.subr.mxu0 0.0
      %1215 = vmatpush1.msra.mxu0 0.0
      %1216 = vmatprep.subr.mxu0 0.0
      %1217 = vmatpush1.msra.mxu0 0.0
      %1218 = vmatprep.subr.mxu0 0.0
      %1219 = vmatpush1.msra.mxu0 0.0
      %1220 = vmatprep.subr.mxu0 0.0
      %1221 = vmatpush1.msra.mxu0 0.0
      %1222 = vmatprep.subr.mxu0 0.0
      %1223 = vmatpush1.msra.mxu0 0.0
      %1224 = vmatprep.subr.mxu0 0.0
      %1225 = vmatpush1.msra.mxu0 0.0
      %1226 = vmatprep.subr.mxu0 0.0
      %1227 = vmatpush1.msra.mxu0 0.0
      %1228 = vmatprep.subr.mxu0 0.0
      %1229 = vmatpush1.msra.mxu0 0.0
      %1230 = vmatprep.subr.mxu0 0.0
      %1231 = vmatpush1.msra.mxu0 0.0
      %1232 = vmatprep.subr.mxu0 0.0
      %1233 = vmatpush1.msra.mxu0 0.0
      %1234 = vmatprep.subr.mxu0 0.0
      %1235 = vmatpush1.msra.mxu0 0.0
      %1236 = vmatprep.subr.mxu0 0.0
      %1237 = vmatpush1.msra.mxu0 0.0
      %1238 = vmatprep.subr.mxu0 0.0
      %1239 = vmatpush1.msra.mxu0 0.0
      %1240 = vmatprep.subr.mxu0 0.0
      %1241 = vmatpush1.msra.mxu0 0.0
      %1242 = vmatprep.subr.mxu0 0.0
      %1243 = vmatpush1.msra.mxu0 0.0
      %1244 = vmatprep.subr.mxu0 0.0
      %1245 = vmatpush1.msra.mxu0 0.0
      %1246 = vmatprep.subr.mxu0 0.0
      %1247 = vmatpush1.msra.mxu0 0.0
      %1248 = vmatprep.subr.mxu0 0.0
      %1249 = vmatpush1.msra.mxu0 0.0
      %1250 = vmatprep.subr.mxu0 0.0
      %1251 = vmatpush1.msra.mxu0 0.0
      %1252 = vmatprep.subr.mxu0 0.0
      %1253 = vmatpush1.msra.mxu0 0.0
      %1254 = vmatprep.subr.mxu0 0.0
      %1255 = vmatpush1.msra.mxu0 0.0
      %1256 = vmatprep.subr.mxu0 0.0
      %1257 = vmatpush1.msra.mxu0 0.0
      %1258 = vmatprep.subr.mxu0 0.0
      %1259 = vmatpush1.msra.mxu0 0.0
      %1260 = vmatprep.subr.mxu0 0.0
      %1261 = vmatpush1.msra.mxu0 0.0
      %1262 = vmatprep.subr.mxu0 0.0
      %1263 = vmatpush1.msra.mxu0 0.0
      %1264 = vmatprep.subr.mxu0 0.0
      %1265 = vmatpush1.msra.mxu0 0.0
      %1266 = vmatprep.subr.mxu0 0.0
      %1267 = vmatpush1.msra.mxu0 0.0
      %1268 = vmatprep.subr.mxu0 0.0
      %1269 = vmatpush1.msra.mxu0 0.0
      %1270 = vmatprep.subr.mxu0 0.0
      %1271 = vmatpush1.msra.mxu0 0.0
      %1272 = vmatprep.subr.mxu0 0.0
      %1273 = vmatpush1.msra.mxu0 0.0
      %1274 = vmatprep.mubr.f32.mxu0 0.0
      %1275 = vmatmul.mubr.f32.gmra.mrb[0].mxu0 %v1115
      %v1276 = vpop.f32.mrb[0].mxu0
      %v1277 = vadd.f32 0.0, %v1276
      %v1278 = vpop.f32.mrb[0].mxu0
      %1279 = vmatprep.mubr.f32.mxu0 0.0
      %1280 = vmatmul.mubr.f32.gmra.mrb[0].mxu0 %v1118
      %v1281 = vpop.f32.mrb[0].mxu0
      %v1282 = vadd.f32 0.0, %v1281
      %v1283 = vpop.f32.mrb[0].mxu0
      %1284 = vmatprep.mubr.f32.mxu0 0.0
      %1285 = vmatmul.mubr.f32.gmra.mrb[0].mxu0 %v1121
      %v1286 = vpop.f32.mrb[0].mxu0
      %v1287 = vadd.f32 0.0, %v1286
      %v1288 = vpop.f32.mrb[0].mxu0
      %1289 = vmatprep.mubr.f32.mxu0 0.0
      %1290 = vmatmul.mubr.f32.gmra.mrb[0].mxu0 %v1124
      %v1291 = vpop.f32.mrb[0].mxu0
      %v1292 = vadd.f32 0.0, %v1291
      %v1293 = vpop.f32.mrb[0].mxu0
      %1294 = vmatprep.mubr.f32.mxu0 0.0
      %1295 = vmatmul.mubr.f32.gmra.mrb[0].mxu0 %v1127
      %v1296 = vpop.f32.mrb[0].mxu0
      %v1297 = vadd.f32 0.0, %v1296
      %v1298 = vpop.f32.mrb[0].mxu0
      %1299 = vmatprep.mubr.f32.mxu0 0.0
      %1300 = vmatmul.mubr.f32.gmra.mrb[0].mxu0 %v1130
      %v1301 = vpop.f32.mrb[0].mxu0
      %v1302 = vadd.f32 0.0, %v1301
      %v1303 = vpop.f32.mrb[0].mxu0
      %1304 = vmatprep.mubr.f32.mxu0 0.0
      %1305 = vmatmul.mubr.f32.gmra.mrb[0].mxu0 %v1133
      %v1306 = vpop.f32.mrb[0].mxu0
      %v1307 = vadd.f32 0.0, %v1306
      %v1308 = vpop.f32.mrb[0].mxu0
      %1309 = vmatprep.mubr.f32.mxu0 0.0
      %1310 = vmatmul.mubr.f32.gmra.mrb[0].mxu0 %v1136
      %v1311 = vpop.f32.mrb[0].mxu0
      %v1312 = vadd.f32 0.0, %v1311
      %v1313 = vpop.f32.mrb[0].mxu0
      %1314 = vmatprep.mubr.f32.mxu0 0.0
      %1315 = vmatmul.mubr.f32.gmra.mrb[0].mxu0 %v1139
      %v1316 = vpop.f32.mrb[0].mxu0
      %v1317 = vadd.f32 0.0, %v1316
      %v1318 = vpop.f32.mrb[0].mxu0
      %1319 = vmatprep.mubr.f32.mxu0 0.0
      %1320 = vmatmul.mubr.f32.gmra.mrb[0].mxu0 %v1142
      %v1321 = vpop.f32.mrb[0].mxu0
      %v1322 = vadd.f32 0.0, %v1321
      %v1323 = vpop.f32.mrb[0].mxu0
      %1324 = vmatprep.mubr.f32.mxu0 0.0
      %1325 = vmatmul.mubr.f32.gmra.mrb[0].mxu0 %v1145
      %v1326 = vpop.f32.mrb[0].mxu0
      %v1327 = vadd.f32 0.0, %v1326
      %v1328 = vpop.f32.mrb[0].mxu0
      %1329 = vmatprep.mubr.f32.mxu0 0.0
      %1330 = vmatmul.mubr.f32.gmra.mrb[0].mxu0 %v1148
      %v1331 = vpop.f32.mrb[0].mxu0
      %v1332 = vadd.f32 0.0, %v1331
      %v1333 = vpop.f32.mrb[0].mxu0
      %1334 = vmatprep.mubr.f32.mxu0 0.0
      %1335 = vmatmul.mubr.f32.gmra.mrb[0].mxu0 %v1151
      %v1336 = vpop.f32.mrb[0].mxu0
      %v1337 = vadd.f32 0.0, %v1336
      %v1338 = vpop.f32.mrb[0].mxu0
      %1339 = vmatprep.mubr.f32.mxu0 0.0
      %1340 = vmatmul.mubr.f32.gmra.mrb[0].mxu0 %v1154
      %v1341 = vpop.f32.mrb[0].mxu0
      %v1342 = vadd.f32 0.0, %v1341
      %v1343 = vpop.f32.mrb[0].mxu0
      %1344 = vmatprep.mubr.f32.mxu0 0.0
      %1345 = vmatmul.mubr.f32.gmra.mrb[0].mxu0 %v1157
      %v1346 = vpop.f32.mrb[0].mxu0
      %v1347 = vadd.f32 0.0, %v1346
      %v1348 = vpop.f32.mrb[0].mxu0
      %1349 = vmatprep.mubr.f32.mxu0 0.0
      %1350 = vmatmul.mubr.f32.gmra.mrb[0].mxu0 %v1160
      %v1351 = vpop.f32.mrb[0].mxu0
      %v1352 = vadd.f32 0.0, %v1351
      %v1353 = vpop.f32.mrb[0].mxu0
      %1354 = vmatprep.mubr.f32.mxu0 0.0
      %1355 = vmatmul.mubr.f32.gmra.mrb[0].mxu0 %v1163
      %v1356 = vpop.f32.mrb[0].mxu0
      %v1357 = vadd.f32 0.0, %v1356
      %v1358 = vpop.f32.mrb[0].mxu0
      %1359 = vmatprep.mubr.f32.mxu0 0.0
      %1360 = vmatmul.mubr.f32.gmra.mrb[0].mxu0 %v1166
      %v1361 = vpop.f32.mrb[0].mxu0
      %v1362 = vadd.f32 0.0, %v1361
      %v1363 = vpop.f32.mrb[0].mxu0
      %1364 = vmatprep.mubr.f32.mxu0 0.0
      %1365 = vmatmul.mubr.f32.gmra.mrb[0].mxu0 %v1169
      %v1366 = vpop.f32.mrb[0].mxu0
      %v1367 = vadd.f32 0.0, %v1366
      %v1368 = vpop.f32.mrb[0].mxu0
      %1369 = vmatprep.mubr.f32.mxu0 0.0
      %1370 = vmatmul.mubr.f32.gmra.mrb[0].mxu0 %v1172
      %v1371 = vpop.f32.mrb[0].mxu0
      %v1372 = vadd.f32 0.0, %v1371
      %v1373 = vpop.f32.mrb[0].mxu0
      %1374 = vmatprep.mubr.f32.mxu0 0.0
      %1375 = vmatmul.mubr.f32.gmra.mrb[0].mxu0 %v1175
      %v1376 = vpop.f32.mrb[0].mxu0
      %v1377 = vadd.f32 0.0, %v1376
      %v1378 = vpop.f32.mrb[0].mxu0
      %1379 = vmatprep.mubr.f32.mxu0 0.0
      %1380 = vmatmul.mubr.f32.gmra.mrb[0].mxu0 %v1178
      %v1381 = vpop.f32.mrb[0].mxu0
      %v1382 = vadd.f32 0.0, %v1381
      %v1383 = vpop.f32.mrb[0].mxu0
      %1384 = vmatprep.mubr.f32.mxu0 0.0
      %1385 = vmatmul.mubr.f32.gmra.mrb[0].mxu0 %v1181
      %v1386 = vpop.f32.mrb[0].mxu0
      %v1387 = vadd.f32 0.0, %v1386
      %v1388 = vpop.f32.mrb[0].mxu0
      %1389 = vmatprep.mubr.f32.mxu0 0.0
      %1390 = vmatmul.mubr.f32.gmra.mrb[0].mxu0 %v1184
      %v1391 = vpop.f32.mrb[0].mxu0
      %v1392 = vadd.f32 0.0, %v1391
      %v1393 = vpop.f32.mrb[0].mxu0
      %1394 = vmatprep.mubr.f32.mxu0 0.0
      %1395 = vmatmul.mubr.f32.gmra.mrb[0].mxu0 %v1187
      %v1396 = vpop.f32.mrb[0].mxu0
      %v1397 = vadd.f32 0.0, %v1396
      %v1398 = vpop.f32.mrb[0].mxu0
      %1399 = vmatprep.mubr.f32.mxu0 0.0
      %1400 = vmatmul.mubr.f32.gmra.mrb[0].mxu0 %v1190
      %v1401 = vpop.f32.mrb[0].mxu0
      %v1402 = vadd.f32 0.0, %v1401
      %v1403 = vpop.f32.mrb[0].mxu0
      %1404 = vmatprep.mubr.f32.mxu0 0.0
      %1405 = vmatmul.mubr.f32.gmra.mrb[0].mxu0 %v1193
      %v1406 = vpop.f32.mrb[0].mxu0
      %v1407 = vadd.f32 0.0, %v1406
      %v1408 = vpop.f32.mrb[0].mxu0
      %1409 = vmatprep.mubr.f32.mxu0 0.0
      %1410 = vmatmul.mubr.f32.gmra.mrb[0].mxu0 %v1196
      %v1411 = vpop.f32.mrb[0].mxu0
      %v1412 = vadd.f32 0.0, %v1411
      %v1413 = vpop.f32.mrb[0].mxu0
      %1414 = vmatprep.mubr.f32.mxu0 0.0
      %1415 = vmatmul.mubr.f32.gmra.mrb[0].mxu0 %v1199
      %v1416 = vpop.f32.mrb[0].mxu0
      %v1417 = vadd.f32 0.0, %v1416
      %v1418 = vpop.f32.mrb[0].mxu0
      %1419 = vmatprep.mubr.f32.mxu0 0.0
      %1420 = vmatmul.mubr.f32.gmra.mrb[0].mxu0 %v1202
      %v1421 = vpop.f32.mrb[0].mxu0
      %v1422 = vadd.f32 0.0, %v1421
      %v1423 = vpop.f32.mrb[0].mxu0
      %1424 = vmatprep.mubr.f32.mxu0 0.0
      %1425 = vmatmul.mubr.f32.gmra.mrb[0].mxu0 %v1205
      %v1426 = vpop.f32.mrb[0].mxu0
      %v1427 = vadd.f32 0.0, %v1426
      %v1428 = vpop.f32.mrb[0].mxu0
      %1429 = vmatprep.mubr.f32.mxu0 0.0
      %1430 = vmatmul.mubr.f32.gmra.mrb[0].mxu0 %v1208
      %v1431 = vpop.f32.mrb[0].mxu0
      %v1432 = vadd.f32 0.0, %v1431
      %v1433 = vpop.f32.mrb[0].mxu0
      %1434 = vdwg.mxu0
      %v1435 = vadd.f32 %v1048, %v1277
      %v1436 = vadd.f32 %v1049, %v1282
      %v1437 = vadd.f32 %v1050, %v1287
      %v1438 = vadd.f32 %v1051, %v1292
      %v1439 = vadd.f32 %v1052, %v1297
      %v1440 = vadd.f32 %v1053, %v1302
      %v1441 = vadd.f32 %v1054, %v1307
      %v1442 = vadd.f32 %v1055, %v1312
      %v1443 = vadd.f32 %v1056, %v1317
      %v1444 = vadd.f32 %v1057, %v1322
      %v1445 = vadd.f32 %v1058, %v1327
      %v1446 = vadd.f32 %v1059, %v1332
      %v1447 = vadd.f32 %v1060, %v1337
      %v1448 = vadd.f32 %v1061, %v1342
      %v1449 = vadd.f32 %v1062, %v1347
      %v1450 = vadd.f32 %v1063, %v1352
      %v1451 = vadd.f32 %v1064, %v1357
      %v1452 = vadd.f32 %v1065, %v1362
      %v1453 = vadd.f32 %v1066, %v1367
      %v1454 = vadd.f32 %v1067, %v1372
      %v1455 = vadd.f32 %v1068, %v1377
      %v1456 = vadd.f32 %v1069, %v1382
      %v1457 = vadd.f32 %v1070, %v1387
      %v1458 = vadd.f32 %v1071, %v1392
      %v1459 = vadd.f32 %v1072, %v1397
      %v1460 = vadd.f32 %v1073, %v1402
      %v1461 = vadd.f32 %v1074, %v1407
      %v1462 = vadd.f32 %v1075, %v1412
      %v1463 = vadd.f32 %v1076, %v1417
      %v1464 = vadd.f32 %v1077, %v1422
      %v1465 = vadd.f32 %v1078, %v1427
      %v1466 = vadd.f32 %v1079, %v1432
      %v1467 = vld [vmem:[%s234] sm:$0xff]
      %v1468 = vld [vmem:[%s234 + $0x8] sm:$0xff]
      %v1469 = vld [vmem:[%s234 + $0x18] sm:$0xff]
      %v1470 = vld [vmem:[%s234 + $0x20] sm:$0xff]
      %v1471 = vld [vmem:[%s234 + $0x30] sm:$0xff]
      %v1472 = vld [vmem:[%s234 + $0x38] sm:$0xff]
      %v1473 = vld [vmem:[%s234 + $0x48] sm:$0xff]
      %v1474 = vld [vmem:[%s234 + $0x50] sm:$0xff]
      %v1475 = vld [vmem:[%s234 + $0x60] sm:$0xff]
      %v1476 = vld [vmem:[%s234 + $0x68] sm:$0xff]
      %v1477 = vld [vmem:[%s234 + $0x78] sm:$0xff]
      %v1478 = vld [vmem:[%s234 + $0x80] sm:$0xff]
      %v1479 = vld [vmem:[%s234 + $0x90] sm:$0xff]
      %v1480 = vld [vmem:[%s234 + $0x98] sm:$0xff]
      %v1481 = vld [vmem:[%s234 + $0xa8] sm:$0xff]
      %v1482 = vld [vmem:[%s234 + $0xb0] sm:$0xff]
      %v1483 = vld [vmem:[%s234 + $0xc0] sm:$0xff]
      %v1484 = vld [vmem:[%s234 + $0xc8] sm:$0xff]
      %v1485 = vld [vmem:[%s234 + $0xd8] sm:$0xff]
      %v1486 = vld [vmem:[%s234 + $0xe0] sm:$0xff]
      %v1487 = vld [vmem:[%s234 + $0xf0] sm:$0xff]
      %v1488 = vld [vmem:[%s234 + $0xf8] sm:$0xff]
      %v1489 = vld [vmem:[%s234 + $0x108] sm:$0xff]
      %v1490 = vld [vmem:[%s234 + $0x110] sm:$0xff]
      %v1491 = vld [vmem:[%s234 + $0x120] sm:$0xff]
      %v1492 = vld [vmem:[%s234 + $0x128] sm:$0xff]
      %v1493 = vld [vmem:[%s234 + $0x138] sm:$0xff]
      %v1494 = vld [vmem:[%s234 + $0x140] sm:$0xff]
      %v1495 = vld [vmem:[%s234 + $0x150] sm:$0xff]
      %v1496 = vld [vmem:[%s234 + $0x158] sm:$0xff]
      %v1497 = vld [vmem:[%s234 + $0x168] sm:$0xff]
      %v1498 = vld [vmem:[%s234 + $0x170] sm:$0xff]
      %s1499 = scalar_lea.vmem %s1, 24
      %v1500 = vld [vmem:[%s1499] sm:$0xff]
      %v1502 = vsel %vm225, %v1467, 0
      %v1505 = vsel %vm225, %v1468, 0
      %v1508 = vsel %vm225, %v1469, 0
      %v1511 = vsel %vm225, %v1470, 0
      %v1514 = vsel %vm225, %v1471, 0
      %v1517 = vsel %vm225, %v1472, 0
      %v1520 = vsel %vm225, %v1473, 0
      %v1523 = vsel %vm225, %v1474, 0
      %v1526 = vsel %vm225, %v1475, 0
      %v1529 = vsel %vm225, %v1476, 0
      %v1532 = vsel %vm225, %v1477, 0
      %v1535 = vsel %vm225, %v1478, 0
      %v1538 = vsel %vm225, %v1479, 0
      %v1541 = vsel %vm225, %v1480, 0
      %v1544 = vsel %vm225, %v1481, 0
      %v1547 = vsel %vm225, %v1482, 0
      %v1550 = vsel %vm225, %v1483, 0
      %v1553 = vsel %vm225, %v1484, 0
      %v1556 = vsel %vm225, %v1485, 0
      %v1559 = vsel %vm225, %v1486, 0
      %v1562 = vsel %vm225, %v1487, 0
      %v1565 = vsel %vm225, %v1488, 0
      %v1568 = vsel %vm225, %v1489, 0
      %v1571 = vsel %vm225, %v1490, 0
      %v1574 = vsel %vm225, %v1491, 0
      %v1577 = vsel %vm225, %v1492, 0
      %v1580 = vsel %vm225, %v1493, 0
      %v1583 = vsel %vm225, %v1494, 0
      %v1586 = vsel %vm225, %v1495, 0
      %v1589 = vsel %vm225, %v1496, 0
      %v1592 = vsel %vm225, %v1497, 0
      %v1595 = vsel %vm225, %v1498, 0
      %1597 = vmatprep.subr.mxu0 0.0
      %1598 = vmatpush1.msra.mxu0 %v1500
      %1599 = vmatprep.subr.mxu0 0.0
      %1600 = vmatpush1.msra.mxu0 0.0
      %1601 = vmatprep.subr.mxu0 0.0
      %1602 = vmatpush1.msra.mxu0 0.0
      %1603 = vmatprep.subr.mxu0 0.0
      %1604 = vmatpush1.msra.mxu0 0.0
      %1605 = vmatprep.subr.mxu0 0.0
      %1606 = vmatpush1.msra.mxu0 0.0
      %1607 = vmatprep.subr.mxu0 0.0
      %1608 = vmatpush1.msra.mxu0 0.0
      %1609 = vmatprep.subr.mxu0 0.0
      %1610 = vmatpush1.msra.mxu0 0.0
      %1611 = vmatprep.subr.mxu0 0.0
      %1612 = vmatpush1.msra.mxu0 0.0
      %1613 = vmatprep.subr.mxu0 0.0
      %1614 = vmatpush1.msra.mxu0 0.0
      %1615 = vmatprep.subr.mxu0 0.0
      %1616 = vmatpush1.msra.mxu0 0.0
      %1617 = vmatprep.subr.mxu0 0.0
      %1618 = vmatpush1.msra.mxu0 0.0
      %1619 = vmatprep.subr.mxu0 0.0
      %1620 = vmatpush1.msra.mxu0 0.0
      %1621 = vmatprep.subr.mxu0 0.0
      %1622 = vmatpush1.msra.mxu0 0.0
      %1623 = vmatprep.subr.mxu0 0.0
      %1624 = vmatpush1.msra.mxu0 0.0
      %1625 = vmatprep.subr.mxu0 0.0
      %1626 = vmatpush1.msra.mxu0 0.0
      %1627 = vmatprep.subr.mxu0 0.0
      %1628 = vmatpush1.msra.mxu0 0.0
      %1629 = vmatprep.subr.mxu0 0.0
      %1630 = vmatpush1.msra.mxu0 0.0
      %1631 = vmatprep.subr.mxu0 0.0
      %1632 = vmatpush1.msra.mxu0 0.0
      %1633 = vmatprep.subr.mxu0 0.0
      %1634 = vmatpush1.msra.mxu0 0.0
      %1635 = vmatprep.subr.mxu0 0.0
      %1636 = vmatpush1.msra.mxu0 0.0
      %1637 = vmatprep.subr.mxu0 0.0
      %1638 = vmatpush1.msra.mxu0 0.0
      %1639 = vmatprep.subr.mxu0 0.0
      %1640 = vmatpush1.msra.mxu0 0.0
      %1641 = vmatprep.subr.mxu0 0.0
      %1642 = vmatpush1.msra.mxu0 0.0
      %1643 = vmatprep.subr.mxu0 0.0
      %1644 = vmatpush1.msra.mxu0 0.0
      %1645 = vmatprep.subr.mxu0 0.0
      %1646 = vmatpush1.msra.mxu0 0.0
      %1647 = vmatprep.subr.mxu0 0.0
      %1648 = vmatpush1.msra.mxu0 0.0
      %1649 = vmatprep.subr.mxu0 0.0
      %1650 = vmatpush1.msra.mxu0 0.0
      %1651 = vmatprep.subr.mxu0 0.0
      %1652 = vmatpush1.msra.mxu0 0.0
      %1653 = vmatprep.subr.mxu0 0.0
      %1654 = vmatpush1.msra.mxu0 0.0
      %1655 = vmatprep.subr.mxu0 0.0
      %1656 = vmatpush1.msra.mxu0 0.0
      %1657 = vmatprep.subr.mxu0 0.0
      %1658 = vmatpush1.msra.mxu0 0.0
      %1659 = vmatprep.subr.mxu0 0.0
      %1660 = vmatpush1.msra.mxu0 0.0
      %1661 = vmatprep.mubr.f32.mxu0 0.0
      %1662 = vmatmul.mubr.f32.gmra.mrb[0].mxu0 %v1502
      %v1663 = vpop.f32.mrb[0].mxu0
      %v1664 = vadd.f32 0.0, %v1663
      %v1665 = vpop.f32.mrb[0].mxu0
      %1666 = vmatprep.mubr.f32.mxu0 0.0
      %1667 = vmatmul.mubr.f32.gmra.mrb[0].mxu0 %v1505
      %v1668 = vpop.f32.mrb[0].mxu0
      %v1669 = vadd.f32 0.0, %v1668
      %v1670 = vpop.f32.mrb[0].mxu0
      %1671 = vmatprep.mubr.f32.mxu0 0.0
      %1672 = vmatmul.mubr.f32.gmra.mrb[0].mxu0 %v1508
      %v1673 = vpop.f32.mrb[0].mxu0
      %v1674 = vadd.f32 0.0, %v1673
      %v1675 = vpop.f32.mrb[0].mxu0
      %1676 = vmatprep.mubr.f32.mxu0 0.0
      %1677 = vmatmul.mubr.f32.gmra.mrb[0].mxu0 %v1511
      %v1678 = vpop.f32.mrb[0].mxu0
      %v1679 = vadd.f32 0.0, %v1678
      %v1680 = vpop.f32.mrb[0].mxu0
      %1681 = vmatprep.mubr.f32.mxu0 0.0
      %1682 = vmatmul.mubr.f32.gmra.mrb[0].mxu0 %v1514
      %v1683 = vpop.f32.mrb[0].mxu0
      %v1684 = vadd.f32 0.0, %v1683
      %v1685 = vpop.f32.mrb[0].mxu0
      %1686 = vmatprep.mubr.f32.mxu0 0.0
      %1687 = vmatmul.mubr.f32.gmra.mrb[0].mxu0 %v1517
      %v1688 = vpop.f32.mrb[0].mxu0
      %v1689 = vadd.f32 0.0, %v1688
      %v1690 = vpop.f32.mrb[0].mxu0
      %1691 = vmatprep.mubr.f32.mxu0 0.0
      %1692 = vmatmul.mubr.f32.gmra.mrb[0].mxu0 %v1520
      %v1693 = vpop.f32.mrb[0].mxu0
      %v1694 = vadd.f32 0.0, %v1693
      %v1695 = vpop.f32.mrb[0].mxu0
      %1696 = vmatprep.mubr.f32.mxu0 0.0
      %1697 = vmatmul.mubr.f32.gmra.mrb[0].mxu0 %v1523
      %v1698 = vpop.f32.mrb[0].mxu0
      %v1699 = vadd.f32 0.0, %v1698
      %v1700 = vpop.f32.mrb[0].mxu0
      %1701 = vmatprep.mubr.f32.mxu0 0.0
      %1702 = vmatmul.mubr.f32.gmra.mrb[0].mxu0 %v1526
      %v1703 = vpop.f32.mrb[0].mxu0
      %v1704 = vadd.f32 0.0, %v1703
      %v1705 = vpop.f32.mrb[0].mxu0
      %1706 = vmatprep.mubr.f32.mxu0 0.0
      %1707 = vmatmul.mubr.f32.gmra.mrb[0].mxu0 %v1529
      %v1708 = vpop.f32.mrb[0].mxu0
      %v1709 = vadd.f32 0.0, %v1708
      %v1710 = vpop.f32.mrb[0].mxu0
      %1711 = vmatprep.mubr.f32.mxu0 0.0
      %1712 = vmatmul.mubr.f32.gmra.mrb[0].mxu0 %v1532
      %v1713 = vpop.f32.mrb[0].mxu0
      %v1714 = vadd.f32 0.0, %v1713
      %v1715 = vpop.f32.mrb[0].mxu0
      %1716 = vmatprep.mubr.f32.mxu0 0.0
      %1717 = vmatmul.mubr.f32.gmra.mrb[0].mxu0 %v1535
      %v1718 = vpop.f32.mrb[0].mxu0
      %v1719 = vadd.f32 0.0, %v1718
      %v1720 = vpop.f32.mrb[0].mxu0
      %1721 = vmatprep.mubr.f32.mxu0 0.0
      %1722 = vmatmul.mubr.f32.gmra.mrb[0].mxu0 %v1538
      %v1723 = vpop.f32.mrb[0].mxu0
      %v1724 = vadd.f32 0.0, %v1723
      %v1725 = vpop.f32.mrb[0].mxu0
      %1726 = vmatprep.mubr.f32.mxu0 0.0
      %1727 = vmatmul.mubr.f32.gmra.mrb[0].mxu0 %v1541
      %v1728 = vpop.f32.mrb[0].mxu0
      %v1729 = vadd.f32 0.0, %v1728
      %v1730 = vpop.f32.mrb[0].mxu0
      %1731 = vmatprep.mubr.f32.mxu0 0.0
      %1732 = vmatmul.mubr.f32.gmra.mrb[0].mxu0 %v1544
      %v1733 = vpop.f32.mrb[0].mxu0
      %v1734 = vadd.f32 0.0, %v1733
      %v1735 = vpop.f32.mrb[0].mxu0
      %1736 = vmatprep.mubr.f32.mxu0 0.0
      %1737 = vmatmul.mubr.f32.gmra.mrb[0].mxu0 %v1547
      %v1738 = vpop.f32.mrb[0].mxu0
      %v1739 = vadd.f32 0.0, %v1738
      %v1740 = vpop.f32.mrb[0].mxu0
      %1741 = vmatprep.mubr.f32.mxu0 0.0
      %1742 = vmatmul.mubr.f32.gmra.mrb[0].mxu0 %v1550
      %v1743 = vpop.f32.mrb[0].mxu0
      %v1744 = vadd.f32 0.0, %v1743
      %v1745 = vpop.f32.mrb[0].mxu0
      %1746 = vmatprep.mubr.f32.mxu0 0.0
      %1747 = vmatmul.mubr.f32.gmra.mrb[0].mxu0 %v1553
      %v1748 = vpop.f32.mrb[0].mxu0
      %v1749 = vadd.f32 0.0, %v1748
      %v1750 = vpop.f32.mrb[0].mxu0
      %1751 = vmatprep.mubr.f32.mxu0 0.0
      %1752 = vmatmul.mubr.f32.gmra.mrb[0].mxu0 %v1556
      %v1753 = vpop.f32.mrb[0].mxu0
      %v1754 = vadd.f32 0.0, %v1753
      %v1755 = vpop.f32.mrb[0].mxu0
      %1756 = vmatprep.mubr.f32.mxu0 0.0
      %1757 = vmatmul.mubr.f32.gmra.mrb[0].mxu0 %v1559
      %v1758 = vpop.f32.mrb[0].mxu0
      %v1759 = vadd.f32 0.0, %v1758
      %v1760 = vpop.f32.mrb[0].mxu0
      %1761 = vmatprep.mubr.f32.mxu0 0.0
      %1762 = vmatmul.mubr.f32.gmra.mrb[0].mxu0 %v1562
      %v1763 = vpop.f32.mrb[0].mxu0
      %v1764 = vadd.f32 0.0, %v1763
      %v1765 = vpop.f32.mrb[0].mxu0
      %1766 = vmatprep.mubr.f32.mxu0 0.0
      %1767 = vmatmul.mubr.f32.gmra.mrb[0].mxu0 %v1565
      %v1768 = vpop.f32.mrb[0].mxu0
      %v1769 = vadd.f32 0.0, %v1768
      %v1770 = vpop.f32.mrb[0].mxu0
      %1771 = vmatprep.mubr.f32.mxu0 0.0
      %1772 = vmatmul.mubr.f32.gmra.mrb[0].mxu0 %v1568
      %v1773 = vpop.f32.mrb[0].mxu0
      %v1774 = vadd.f32 0.0, %v1773
      %v1775 = vpop.f32.mrb[0].mxu0
      %1776 = vmatprep.mubr.f32.mxu0 0.0
      %1777 = vmatmul.mubr.f32.gmra.mrb[0].mxu0 %v1571
      %v1778 = vpop.f32.mrb[0].mxu0
      %v1779 = vadd.f32 0.0, %v1778
      %v1780 = vpop.f32.mrb[0].mxu0
      %1781 = vmatprep.mubr.f32.mxu0 0.0
      %1782 = vmatmul.mubr.f32.gmra.mrb[0].mxu0 %v1574
      %v1783 = vpop.f32.mrb[0].mxu0
      %v1784 = vadd.f32 0.0, %v1783
      %v1785 = vpop.f32.mrb[0].mxu0
      %1786 = vmatprep.mubr.f32.mxu0 0.0
      %1787 = vmatmul.mubr.f32.gmra.mrb[0].mxu0 %v1577
      %v1788 = vpop.f32.mrb[0].mxu0
      %v1789 = vadd.f32 0.0, %v1788
      %v1790 = vpop.f32.mrb[0].mxu0
      %1791 = vmatprep.mubr.f32.mxu0 0.0
      %1792 = vmatmul.mubr.f32.gmra.mrb[0].mxu0 %v1580
      %v1793 = vpop.f32.mrb[0].mxu0
      %v1794 = vadd.f32 0.0, %v1793
      %v1795 = vpop.f32.mrb[0].mxu0
      %1796 = vmatprep.mubr.f32.mxu0 0.0
      %1797 = vmatmul.mubr.f32.gmra.mrb[0].mxu0 %v1583
      %v1798 = vpop.f32.mrb[0].mxu0
      %v1799 = vadd.f32 0.0, %v1798
      %v1800 = vpop.f32.mrb[0].mxu0
      %1801 = vmatprep.mubr.f32.mxu0 0.0
      %1802 = vmatmul.mubr.f32.gmra.mrb[0].mxu0 %v1586
      %v1803 = vpop.f32.mrb[0].mxu0
      %v1804 = vadd.f32 0.0, %v1803
      %v1805 = vpop.f32.mrb[0].mxu0
      %1806 = vmatprep.mubr.f32.mxu0 0.0
      %1807 = vmatmul.mubr.f32.gmra.mrb[0].mxu0 %v1589
      %v1808 = vpop.f32.mrb[0].mxu0
      %v1809 = vadd.f32 0.0, %v1808
      %v1810 = vpop.f32.mrb[0].mxu0
      %1811 = vmatprep.mubr.f32.mxu0 0.0
      %1812 = vmatmul.mubr.f32.gmra.mrb[0].mxu0 %v1592
      %v1813 = vpop.f32.mrb[0].mxu0
      %v1814 = vadd.f32 0.0, %v1813
      %v1815 = vpop.f32.mrb[0].mxu0
      %1816 = vmatprep.mubr.f32.mxu0 0.0
      %1817 = vmatmul.mubr.f32.gmra.mrb[0].mxu0 %v1595
      %v1818 = vpop.f32.mrb[0].mxu0
      %v1819 = vadd.f32 0.0, %v1818
      %v1820 = vpop.f32.mrb[0].mxu0
      %1821 = vdwg.mxu0
      %v1822 = vadd.f32 %v1435, %v1664
      %v1823 = vadd.f32 %v1436, %v1669
      %v1824 = vadd.f32 %v1437, %v1674
      %v1825 = vadd.f32 %v1438, %v1679
      %v1826 = vadd.f32 %v1439, %v1684
      %v1827 = vadd.f32 %v1440, %v1689
      %v1828 = vadd.f32 %v1441, %v1694
      %v1829 = vadd.f32 %v1442, %v1699
      %v1830 = vadd.f32 %v1443, %v1704
      %v1831 = vadd.f32 %v1444, %v1709
      %v1832 = vadd.f32 %v1445, %v1714
      %v1833 = vadd.f32 %v1446, %v1719
      %v1834 = vadd.f32 %v1447, %v1724
      %v1835 = vadd.f32 %v1448, %v1729
      %v1836 = vadd.f32 %v1449, %v1734
      %v1837 = vadd.f32 %v1450, %v1739
      %v1838 = vadd.f32 %v1451, %v1744
      %v1839 = vadd.f32 %v1452, %v1749
      %v1840 = vadd.f32 %v1453, %v1754
      %v1841 = vadd.f32 %v1454, %v1759
      %v1842 = vadd.f32 %v1455, %v1764
      %v1843 = vadd.f32 %v1456, %v1769
      %v1844 = vadd.f32 %v1457, %v1774
      %v1845 = vadd.f32 %v1458, %v1779
      %v1846 = vadd.f32 %v1459, %v1784
      %v1847 = vadd.f32 %v1460, %v1789
      %v1848 = vadd.f32 %v1461, %v1794
      %v1849 = vadd.f32 %v1462, %v1799
      %v1850 = vadd.f32 %v1463, %v1804
      %v1851 = vadd.f32 %v1464, %v1809
      %v1852 = vadd.f32 %v1465, %v1814
      %v1853 = vadd.f32 %v1466, %v1819
      %v1854 = vld [vmem:[%s234 + $0x1] sm:$0xff]
      %v1855 = vld [vmem:[%s234 + $0x9] sm:$0xff]
      %v1856 = vld [vmem:[%s234 + $0x19] sm:$0xff]
      %v1857 = vld [vmem:[%s234 + $0x21] sm:$0xff]
      %v1858 = vld [vmem:[%s234 + $0x31] sm:$0xff]
      %v1859 = vld [vmem:[%s234 + $0x39] sm:$0xff]
      %v1860 = vld [vmem:[%s234 + $0x49] sm:$0xff]
      %v1861 = vld [vmem:[%s234 + $0x51] sm:$0xff]
      %v1862 = vld [vmem:[%s234 + $0x61] sm:$0xff]
      %v1863 = vld [vmem:[%s234 + $0x69] sm:$0xff]
      %v1864 = vld [vmem:[%s234 + $0x79] sm:$0xff]
      %v1865 = vld [vmem:[%s234 + $0x81] sm:$0xff]
      %v1866 = vld [vmem:[%s234 + $0x91] sm:$0xff]
      %v1867 = vld [vmem:[%s234 + $0x99] sm:$0xff]
      %v1868 = vld [vmem:[%s234 + $0xa9] sm:$0xff]
      %v1869 = vld [vmem:[%s234 + $0xb1] sm:$0xff]
      %v1870 = vld [vmem:[%s234 + $0xc1] sm:$0xff]
      %v1871 = vld [vmem:[%s234 + $0xc9] sm:$0xff]
      %v1872 = vld [vmem:[%s234 + $0xd9] sm:$0xff]
      %v1873 = vld [vmem:[%s234 + $0xe1] sm:$0xff]
      %v1874 = vld [vmem:[%s234 + $0xf1] sm:$0xff]
      %v1875 = vld [vmem:[%s234 + $0xf9] sm:$0xff]
      %v1876 = vld [vmem:[%s234 + $0x109] sm:$0xff]
      %v1877 = vld [vmem:[%s234 + $0x111] sm:$0xff]
      %v1878 = vld [vmem:[%s234 + $0x121] sm:$0xff]
      %v1879 = vld [vmem:[%s234 + $0x129] sm:$0xff]
      %v1880 = vld [vmem:[%s234 + $0x139] sm:$0xff]
      %v1881 = vld [vmem:[%s234 + $0x141] sm:$0xff]
      %v1882 = vld [vmem:[%s234 + $0x151] sm:$0xff]
      %v1883 = vld [vmem:[%s234 + $0x159] sm:$0xff]
      %v1884 = vld [vmem:[%s234 + $0x169] sm:$0xff]
      %v1885 = vld [vmem:[%s234 + $0x171] sm:$0xff]
      %s1886 = scalar_lea.vmem %s1, 32
      %v1887 = vld [vmem:[%s1886] sm:$0xff]
      %v1889 = vsel %vm225, %v1854, 0
      %v1892 = vsel %vm225, %v1855, 0
      %v1895 = vsel %vm225, %v1856, 0
      %v1898 = vsel %vm225, %v1857, 0
      %v1901 = vsel %vm225, %v1858, 0
      %v1904 = vsel %vm225, %v1859, 0
      %v1907 = vsel %vm225, %v1860, 0
      %v1910 = vsel %vm225, %v1861, 0
      %v1913 = vsel %vm225, %v1862, 0
      %v1916 = vsel %vm225, %v1863, 0
      %v1919 = vsel %vm225, %v1864, 0
      %v1922 = vsel %vm225, %v1865, 0
      %v1925 = vsel %vm225, %v1866, 0
      %v1928 = vsel %vm225, %v1867, 0
      %v1931 = vsel %vm225, %v1868, 0
      %v1934 = vsel %vm225, %v1869, 0
      %v1937 = vsel %vm225, %v1870, 0
      %v1940 = vsel %vm225, %v1871, 0
      %v1943 = vsel %vm225, %v1872, 0
      %v1946 = vsel %vm225, %v1873, 0
      %v1949 = vsel %vm225, %v1874, 0
      %v1952 = vsel %vm225, %v1875, 0
      %v1955 = vsel %vm225, %v1876, 0
      %v1958 = vsel %vm225, %v1877, 0
      %v1961 = vsel %vm225, %v1878, 0
      %v1964 = vsel %vm225, %v1879, 0
      %v1967 = vsel %vm225, %v1880, 0
      %v1970 = vsel %vm225, %v1881, 0
      %v1973 = vsel %vm225, %v1882, 0
      %v1976 = vsel %vm225, %v1883, 0
      %v1979 = vsel %vm225, %v1884, 0
      %v1982 = vsel %vm225, %v1885, 0
      %1984 = vmatprep.subr.mxu0 0.0
      %1985 = vmatpush1.msra.mxu0 %v1887
      %1986 = vmatprep.subr.mxu0 0.0
      %1987 = vmatpush1.msra.mxu0 0.0
      %1988 = vmatprep.subr.mxu0 0.0
      %1989 = vmatpush1.msra.mxu0 0.0
      %1990 = vmatprep.subr.mxu0 0.0
      %1991 = vmatpush1.msra.mxu0 0.0
      %1992 = vmatprep.subr.mxu0 0.0
      %1993 = vmatpush1.msra.mxu0 0.0
      %1994 = vmatprep.subr.mxu0 0.0
      %1995 = vmatpush1.msra.mxu0 0.0
      %1996 = vmatprep.subr.mxu0 0.0
      %1997 = vmatpush1.msra.mxu0 0.0
      %1998 = vmatprep.subr.mxu0 0.0
      %1999 = vmatpush1.msra.mxu0 0.0
      %2000 = vmatprep.subr.mxu0 0.0
      %2001 = vmatpush1.msra.mxu0 0.0
      %2002 = vmatprep.subr.mxu0 0.0
      %2003 = vmatpush1.msra.mxu0 0.0
      %2004 = vmatprep.subr.mxu0 0.0
      %2005 = vmatpush1.msra.mxu0 0.0
      %2006 = vmatprep.subr.mxu0 0.0
      %2007 = vmatpush1.msra.mxu0 0.0
      %2008 = vmatprep.subr.mxu0 0.0
      %2009 = vmatpush1.msra.mxu0 0.0
      %2010 = vmatprep.subr.mxu0 0.0
      %2011 = vmatpush1.msra.mxu0 0.0
      %2012 = vmatprep.subr.mxu0 0.0
      %2013 = vmatpush1.msra.mxu0 0.0
      %2014 = vmatprep.subr.mxu0 0.0
      %2015 = vmatpush1.msra.mxu0 0.0
      %2016 = vmatprep.subr.mxu0 0.0
      %2017 = vmatpush1.msra.mxu0 0.0
      %2018 = vmatprep.subr.mxu0 0.0
      %2019 = vmatpush1.msra.mxu0 0.0
      %2020 = vmatprep.subr.mxu0 0.0
      %2021 = vmatpush1.msra.mxu0 0.0
      %2022 = vmatprep.subr.mxu0 0.0
      %2023 = vmatpush1.msra.mxu0 0.0
      %2024 = vmatprep.subr.mxu0 0.0
      %2025 = vmatpush1.msra.mxu0 0.0
      %2026 = vmatprep.subr.mxu0 0.0
      %2027 = vmatpush1.msra.mxu0 0.0
      %2028 = vmatprep.subr.mxu0 0.0
      %2029 = vmatpush1.msra.mxu0 0.0
      %2030 = vmatprep.subr.mxu0 0.0
      %2031 = vmatpush1.msra.mxu0 0.0
      %2032 = vmatprep.subr.mxu0 0.0
      %2033 = vmatpush1.msra.mxu0 0.0
      %2034 = vmatprep.subr.mxu0 0.0
      %2035 = vmatpush1.msra.mxu0 0.0
      %2036 = vmatprep.subr.mxu0 0.0
      %2037 = vmatpush1.msra.mxu0 0.0
      %2038 = vmatprep.subr.mxu0 0.0
      %2039 = vmatpush1.msra.mxu0 0.0
      %2040 = vmatprep.subr.mxu0 0.0
      %2041 = vmatpush1.msra.mxu0 0.0
      %2042 = vmatprep.subr.mxu0 0.0
      %2043 = vmatpush1.msra.mxu0 0.0
      %2044 = vmatprep.subr.mxu0 0.0
      %2045 = vmatpush1.msra.mxu0 0.0
      %2046 = vmatprep.subr.mxu0 0.0
      %2047 = vmatpush1.msra.mxu0 0.0
      %2048 = vmatprep.mubr.f32.mxu0 0.0
      %2049 = vmatmul.mubr.f32.gmra.mrb[0].mxu0 %v1889
      %v2050 = vpop.f32.mrb[0].mxu0
      %v2051 = vadd.f32 0.0, %v2050
      %v2052 = vpop.f32.mrb[0].mxu0
      %2053 = vmatprep.mubr.f32.mxu0 0.0
      %2054 = vmatmul.mubr.f32.gmra.mrb[0].mxu0 %v1892
      %v2055 = vpop.f32.mrb[0].mxu0
      %v2056 = vadd.f32 0.0, %v2055
      %v2057 = vpop.f32.mrb[0].mxu0
      %2058 = vmatprep.mubr.f32.mxu0 0.0
      %2059 = vmatmul.mubr.f32.gmra.mrb[0].mxu0 %v1895
      %v2060 = vpop.f32.mrb[0].mxu0
      %v2061 = vadd.f32 0.0, %v2060
      %v2062 = vpop.f32.mrb[0].mxu0
      %2063 = vmatprep.mubr.f32.mxu0 0.0
      %2064 = vmatmul.mubr.f32.gmra.mrb[0].mxu0 %v1898
      %v2065 = vpop.f32.mrb[0].mxu0
      %v2066 = vadd.f32 0.0, %v2065
      %v2067 = vpop.f32.mrb[0].mxu0
      %2068 = vmatprep.mubr.f32.mxu0 0.0
      %2069 = vmatmul.mubr.f32.gmra.mrb[0].mxu0 %v1901
      %v2070 = vpop.f32.mrb[0].mxu0
      %v2071 = vadd.f32 0.0, %v2070
      %v2072 = vpop.f32.mrb[0].mxu0
      %2073 = vmatprep.mubr.f32.mxu0 0.0
      %2074 = vmatmul.mubr.f32.gmra.mrb[0].mxu0 %v1904
      %v2075 = vpop.f32.mrb[0].mxu0
      %v2076 = vadd.f32 0.0, %v2075
      %v2077 = vpop.f32.mrb[0].mxu0
      %2078 = vmatprep.mubr.f32.mxu0 0.0
      %2079 = vmatmul.mubr.f32.gmra.mrb[0].mxu0 %v1907
      %v2080 = vpop.f32.mrb[0].mxu0
      %v2081 = vadd.f32 0.0, %v2080
      %v2082 = vpop.f32.mrb[0].mxu0
      %2083 = vmatprep.mubr.f32.mxu0 0.0
      %2084 = vmatmul.mubr.f32.gmra.mrb[0].mxu0 %v1910
      %v2085 = vpop.f32.mrb[0].mxu0
      %v2086 = vadd.f32 0.0, %v2085
      %v2087 = vpop.f32.mrb[0].mxu0
      %2088 = vmatprep.mubr.f32.mxu0 0.0
      %2089 = vmatmul.mubr.f32.gmra.mrb[0].mxu0 %v1913
      %v2090 = vpop.f32.mrb[0].mxu0
      %v2091 = vadd.f32 0.0, %v2090
      %v2092 = vpop.f32.mrb[0].mxu0
      %2093 = vmatprep.mubr.f32.mxu0 0.0
      %2094 = vmatmul.mubr.f32.gmra.mrb[0].mxu0 %v1916
      %v2095 = vpop.f32.mrb[0].mxu0
      %v2096 = vadd.f32 0.0, %v2095
      %v2097 = vpop.f32.mrb[0].mxu0
      %2098 = vmatprep.mubr.f32.mxu0 0.0
      %2099 = vmatmul.mubr.f32.gmra.mrb[0].mxu0 %v1919
      %v2100 = vpop.f32.mrb[0].mxu0
      %v2101 = vadd.f32 0.0, %v2100
      %v2102 = vpop.f32.mrb[0].mxu0
      %2103 = vmatprep.mubr.f32.mxu0 0.0
      %2104 = vmatmul.mubr.f32.gmra.mrb[0].mxu0 %v1922
      %v2105 = vpop.f32.mrb[0].mxu0
      %v2106 = vadd.f32 0.0, %v2105
      %v2107 = vpop.f32.mrb[0].mxu0
      %2108 = vmatprep.mubr.f32.mxu0 0.0
      %2109 = vmatmul.mubr.f32.gmra.mrb[0].mxu0 %v1925
      %v2110 = vpop.f32.mrb[0].mxu0
      %v2111 = vadd.f32 0.0, %v2110
      %v2112 = vpop.f32.mrb[0].mxu0
      %2113 = vmatprep.mubr.f32.mxu0 0.0
      %2114 = vmatmul.mubr.f32.gmra.mrb[0].mxu0 %v1928
      %v2115 = vpop.f32.mrb[0].mxu0
      %v2116 = vadd.f32 0.0, %v2115
      %v2117 = vpop.f32.mrb[0].mxu0
      %2118 = vmatprep.mubr.f32.mxu0 0.0
      %2119 = vmatmul.mubr.f32.gmra.mrb[0].mxu0 %v1931
      %v2120 = vpop.f32.mrb[0].mxu0
      %v2121 = vadd.f32 0.0, %v2120
      %v2122 = vpop.f32.mrb[0].mxu0
      %2123 = vmatprep.mubr.f32.mxu0 0.0
      %2124 = vmatmul.mubr.f32.gmra.mrb[0].mxu0 %v1934
      %v2125 = vpop.f32.mrb[0].mxu0
      %v2126 = vadd.f32 0.0, %v2125
      %v2127 = vpop.f32.mrb[0].mxu0
      %2128 = vmatprep.mubr.f32.mxu0 0.0
      %2129 = vmatmul.mubr.f32.gmra.mrb[0].mxu0 %v1937
      %v2130 = vpop.f32.mrb[0].mxu0
      %v2131 = vadd.f32 0.0, %v2130
      %v2132 = vpop.f32.mrb[0].mxu0
      %2133 = vmatprep.mubr.f32.mxu0 0.0
      %2134 = vmatmul.mubr.f32.gmra.mrb[0].mxu0 %v1940
      %v2135 = vpop.f32.mrb[0].mxu0
      %v2136 = vadd.f32 0.0, %v2135
      %v2137 = vpop.f32.mrb[0].mxu0
      %2138 = vmatprep.mubr.f32.mxu0 0.0
      %2139 = vmatmul.mubr.f32.gmra.mrb[0].mxu0 %v1943
      %v2140 = vpop.f32.mrb[0].mxu0
      %v2141 = vadd.f32 0.0, %v2140
      %v2142 = vpop.f32.mrb[0].mxu0
      %2143 = vmatprep.mubr.f32.mxu0 0.0
      %2144 = vmatmul.mubr.f32.gmra.mrb[0].mxu0 %v1946
      %v2145 = vpop.f32.mrb[0].mxu0
      %v2146 = vadd.f32 0.0, %v2145
      %v2147 = vpop.f32.mrb[0].mxu0
      %2148 = vmatprep.mubr.f32.mxu0 0.0
      %2149 = vmatmul.mubr.f32.gmra.mrb[0].mxu0 %v1949
      %v2150 = vpop.f32.mrb[0].mxu0
      %v2151 = vadd.f32 0.0, %v2150
      %v2152 = vpop.f32.mrb[0].mxu0
      %2153 = vmatprep.mubr.f32.mxu0 0.0
      %2154 = vmatmul.mubr.f32.gmra.mrb[0].mxu0 %v1952
      %v2155 = vpop.f32.mrb[0].mxu0
      %v2156 = vadd.f32 0.0, %v2155
      %v2157 = vpop.f32.mrb[0].mxu0
      %2158 = vmatprep.mubr.f32.mxu0 0.0
      %2159 = vmatmul.mubr.f32.gmra.mrb[0].mxu0 %v1955
      %v2160 = vpop.f32.mrb[0].mxu0
      %v2161 = vadd.f32 0.0, %v2160
      %v2162 = vpop.f32.mrb[0].mxu0
      %2163 = vmatprep.mubr.f32.mxu0 0.0
      %2164 = vmatmul.mubr.f32.gmra.mrb[0].mxu0 %v1958
      %v2165 = vpop.f32.mrb[0].mxu0
      %v2166 = vadd.f32 0.0, %v2165
      %v2167 = vpop.f32.mrb[0].mxu0
      %2168 = vmatprep.mubr.f32.mxu0 0.0
      %2169 = vmatmul.mubr.f32.gmra.mrb[0].mxu0 %v1961
      %v2170 = vpop.f32.mrb[0].mxu0
      %v2171 = vadd.f32 0.0, %v2170
      %v2172 = vpop.f32.mrb[0].mxu0
      %2173 = vmatprep.mubr.f32.mxu0 0.0
      %2174 = vmatmul.mubr.f32.gmra.mrb[0].mxu0 %v1964
      %v2175 = vpop.f32.mrb[0].mxu0
      %v2176 = vadd.f32 0.0, %v2175
      %v2177 = vpop.f32.mrb[0].mxu0
      %2178 = vmatprep.mubr.f32.mxu0 0.0
      %2179 = vmatmul.mubr.f32.gmra.mrb[0].mxu0 %v1967
      %v2180 = vpop.f32.mrb[0].mxu0
      %v2181 = vadd.f32 0.0, %v2180
      %v2182 = vpop.f32.mrb[0].mxu0
      %2183 = vmatprep.mubr.f32.mxu0 0.0
      %2184 = vmatmul.mubr.f32.gmra.mrb[0].mxu0 %v1970
      %v2185 = vpop.f32.mrb[0].mxu0
      %v2186 = vadd.f32 0.0, %v2185
      %v2187 = vpop.f32.mrb[0].mxu0
      %2188 = vmatprep.mubr.f32.mxu0 0.0
      %2189 = vmatmul.mubr.f32.gmra.mrb[0].mxu0 %v1973
      %v2190 = vpop.f32.mrb[0].mxu0
      %v2191 = vadd.f32 0.0, %v2190
      %v2192 = vpop.f32.mrb[0].mxu0
      %2193 = vmatprep.mubr.f32.mxu0 0.0
      %2194 = vmatmul.mubr.f32.gmra.mrb[0].mxu0 %v1976
      %v2195 = vpop.f32.mrb[0].mxu0
      %v2196 = vadd.f32 0.0, %v2195
      %v2197 = vpop.f32.mrb[0].mxu0
      %2198 = vmatprep.mubr.f32.mxu0 0.0
      %2199 = vmatmul.mubr.f32.gmra.mrb[0].mxu0 %v1979
      %v2200 = vpop.f32.mrb[0].mxu0
      %v2201 = vadd.f32 0.0, %v2200
      %v2202 = vpop.f32.mrb[0].mxu0
      %2203 = vmatprep.mubr.f32.mxu0 0.0
      %2204 = vmatmul.mubr.f32.gmra.mrb[0].mxu0 %v1982
      %v2205 = vpop.f32.mrb[0].mxu0
      %v2206 = vadd.f32 0.0, %v2205
      %v2207 = vpop.f32.mrb[0].mxu0
      %2208 = vdwg.mxu0
      %v2209 = vadd.f32 %v1822, %v2051
      %v2210 = vadd.f32 %v1823, %v2056
      %v2211 = vadd.f32 %v1824, %v2061
      %v2212 = vadd.f32 %v1825, %v2066
      %v2213 = vadd.f32 %v1826, %v2071
      %v2214 = vadd.f32 %v1827, %v2076
      %v2215 = vadd.f32 %v1828, %v2081
      %v2216 = vadd.f32 %v1829, %v2086
      %v2217 = vadd.f32 %v1830, %v2091
      %v2218 = vadd.f32 %v1831, %v2096
      %v2219 = vadd.f32 %v1832, %v2101
      %v2220 = vadd.f32 %v1833, %v2106
      %v2221 = vadd.f32 %v1834, %v2111
      %v2222 = vadd.f32 %v1835, %v2116
      %v2223 = vadd.f32 %v1836, %v2121
      %v2224 = vadd.f32 %v1837, %v2126
      %v2225 = vadd.f32 %v1838, %v2131
      %v2226 = vadd.f32 %v1839, %v2136
      %v2227 = vadd.f32 %v1840, %v2141
      %v2228 = vadd.f32 %v1841, %v2146
      %v2229 = vadd.f32 %v1842, %v2151
      %v2230 = vadd.f32 %v1843, %v2156
      %v2231 = vadd.f32 %v1844, %v2161
      %v2232 = vadd.f32 %v1845, %v2166
      %v2233 = vadd.f32 %v1846, %v2171
      %v2234 = vadd.f32 %v1847, %v2176
      %v2235 = vadd.f32 %v1848, %v2181
      %v2236 = vadd.f32 %v1849, %v2186
      %v2237 = vadd.f32 %v1850, %v2191
      %v2238 = vadd.f32 %v1851, %v2196
      %v2239 = vadd.f32 %v1852, %v2201
      %v2240 = vadd.f32 %v1853, %v2206
      %v2241 = vld [vmem:[%s234 + $0x2] sm:$0xff]
      %v2242 = vld [vmem:[%s234 + $0xa] sm:$0xff]
      %v2243 = vld [vmem:[%s234 + $0x1a] sm:$0xff]
      %v2244 = vld [vmem:[%s234 + $0x22] sm:$0xff]
      %v2245 = vld [vmem:[%s234 + $0x32] sm:$0xff]
      %v2246 = vld [vmem:[%s234 + $0x3a] sm:$0xff]
      %v2247 = vld [vmem:[%s234 + $0x4a] sm:$0xff]
      %v2248 = vld [vmem:[%s234 + $0x52] sm:$0xff]
      %v2249 = vld [vmem:[%s234 + $0x62] sm:$0xff]
      %v2250 = vld [vmem:[%s234 + $0x6a] sm:$0xff]
      %v2251 = vld [vmem:[%s234 + $0x7a] sm:$0xff]
      %v2252 = vld [vmem:[%s234 + $0x82] sm:$0xff]
      %v2253 = vld [vmem:[%s234 + $0x92] sm:$0xff]
      %v2254 = vld [vmem:[%s234 + $0x9a] sm:$0xff]
      %v2255 = vld [vmem:[%s234 + $0xaa] sm:$0xff]
      %v2256 = vld [vmem:[%s234 + $0xb2] sm:$0xff]
      %v2257 = vld [vmem:[%s234 + $0xc2] sm:$0xff]
      %v2258 = vld [vmem:[%s234 + $0xca] sm:$0xff]
      %v2259 = vld [vmem:[%s234 + $0xda] sm:$0xff]
      %v2260 = vld [vmem:[%s234 + $0xe2] sm:$0xff]
      %v2261 = vld [vmem:[%s234 + $0xf2] sm:$0xff]
      %v2262 = vld [vmem:[%s234 + $0xfa] sm:$0xff]
      %v2263 = vld [vmem:[%s234 + $0x10a] sm:$0xff]
      %v2264 = vld [vmem:[%s234 + $0x112] sm:$0xff]
      %v2265 = vld [vmem:[%s234 + $0x122] sm:$0xff]
      %v2266 = vld [vmem:[%s234 + $0x12a] sm:$0xff]
      %v2267 = vld [vmem:[%s234 + $0x13a] sm:$0xff]
      %v2268 = vld [vmem:[%s234 + $0x142] sm:$0xff]
      %v2269 = vld [vmem:[%s234 + $0x152] sm:$0xff]
      %v2270 = vld [vmem:[%s234 + $0x15a] sm:$0xff]
      %v2271 = vld [vmem:[%s234 + $0x16a] sm:$0xff]
      %v2272 = vld [vmem:[%s234 + $0x172] sm:$0xff]
      %s2273 = scalar_lea.vmem %s1, 40
      %v2274 = vld [vmem:[%s2273] sm:$0xff]
      %v2276 = vsel %vm225, %v2241, 0
      %v2279 = vsel %vm225, %v2242, 0
      %v2282 = vsel %vm225, %v2243, 0
      %v2285 = vsel %vm225, %v2244, 0
      %v2288 = vsel %vm225, %v2245, 0
      %v2291 = vsel %vm225, %v2246, 0
      %v2294 = vsel %vm225, %v2247, 0
      %v2297 = vsel %vm225, %v2248, 0
      %v2300 = vsel %vm225, %v2249, 0
      %v2303 = vsel %vm225, %v2250, 0
      %v2306 = vsel %vm225, %v2251, 0
      %v2309 = vsel %vm225, %v2252, 0
      %v2312 = vsel %vm225, %v2253, 0
      %v2315 = vsel %vm225, %v2254, 0
      %v2318 = vsel %vm225, %v2255, 0
      %v2321 = vsel %vm225, %v2256, 0
      %v2324 = vsel %vm225, %v2257, 0
      %v2327 = vsel %vm225, %v2258, 0
      %v2330 = vsel %vm225, %v2259, 0
      %v2333 = vsel %vm225, %v2260, 0
      %v2336 = vsel %vm225, %v2261, 0
      %v2339 = vsel %vm225, %v2262, 0
      %v2342 = vsel %vm225, %v2263, 0
      %v2345 = vsel %vm225, %v2264, 0
      %v2348 = vsel %vm225, %v2265, 0
      %v2351 = vsel %vm225, %v2266, 0
      %v2354 = vsel %vm225, %v2267, 0
      %v2357 = vsel %vm225, %v2268, 0
      %v2360 = vsel %vm225, %v2269, 0
      %v2363 = vsel %vm225, %v2270, 0
      %v2366 = vsel %vm225, %v2271, 0
      %v2369 = vsel %vm225, %v2272, 0
      %2371 = vmatprep.subr.mxu0 0.0
      %2372 = vmatpush1.msra.mxu0 %v2274
      %2373 = vmatprep.subr.mxu0 0.0
      %2374 = vmatpush1.msra.mxu0 0.0
      %2375 = vmatprep.subr.mxu0 0.0
      %2376 = vmatpush1.msra.mxu0 0.0
      %2377 = vmatprep.subr.mxu0 0.0
      %2378 = vmatpush1.msra.mxu0 0.0
      %2379 = vmatprep.subr.mxu0 0.0
      %2380 = vmatpush1.msra.mxu0 0.0
      %2381 = vmatprep.subr.mxu0 0.0
      %2382 = vmatpush1.msra.mxu0 0.0
      %2383 = vmatprep.subr.mxu0 0.0
      %2384 = vmatpush1.msra.mxu0 0.0
      %2385 = vmatprep.subr.mxu0 0.0
      %2386 = vmatpush1.msra.mxu0 0.0
      %2387 = vmatprep.subr.mxu0 0.0
      %2388 = vmatpush1.msra.mxu0 0.0
      %2389 = vmatprep.subr.mxu0 0.0
      %2390 = vmatpush1.msra.mxu0 0.0
      %2391 = vmatprep.subr.mxu0 0.0
      %2392 = vmatpush1.msra.mxu0 0.0
      %2393 = vmatprep.subr.mxu0 0.0
      %2394 = vmatpush1.msra.mxu0 0.0
      %2395 = vmatprep.subr.mxu0 0.0
      %2396 = vmatpush1.msra.mxu0 0.0
      %2397 = vmatprep.subr.mxu0 0.0
      %2398 = vmatpush1.msra.mxu0 0.0
      %2399 = vmatprep.subr.mxu0 0.0
      %2400 = vmatpush1.msra.mxu0 0.0
      %2401 = vmatprep.subr.mxu0 0.0
      %2402 = vmatpush1.msra.mxu0 0.0
      %2403 = vmatprep.subr.mxu0 0.0
      %2404 = vmatpush1.msra.mxu0 0.0
      %2405 = vmatprep.subr.mxu0 0.0
      %2406 = vmatpush1.msra.mxu0 0.0
      %2407 = vmatprep.subr.mxu0 0.0
      %2408 = vmatpush1.msra.mxu0 0.0
      %2409 = vmatprep.subr.mxu0 0.0
      %2410 = vmatpush1.msra.mxu0 0.0
      %2411 = vmatprep.subr.mxu0 0.0
      %2412 = vmatpush1.msra.mxu0 0.0
      %2413 = vmatprep.subr.mxu0 0.0
      %2414 = vmatpush1.msra.mxu0 0.0
      %2415 = vmatprep.subr.mxu0 0.0
      %2416 = vmatpush1.msra.mxu0 0.0
      %2417 = vmatprep.subr.mxu0 0.0
      %2418 = vmatpush1.msra.mxu0 0.0
      %2419 = vmatprep.subr.mxu0 0.0
      %2420 = vmatpush1.msra.mxu0 0.0
      %2421 = vmatprep.subr.mxu0 0.0
      %2422 = vmatpush1.msra.mxu0 0.0
      %2423 = vmatprep.subr.mxu0 0.0
      %2424 = vmatpush1.msra.mxu0 0.0
      %2425 = vmatprep.subr.mxu0 0.0
      %2426 = vmatpush1.msra.mxu0 0.0
      %2427 = vmatprep.subr.mxu0 0.0
      %2428 = vmatpush1.msra.mxu0 0.0
      %2429 = vmatprep.subr.mxu0 0.0
      %2430 = vmatpush1.msra.mxu0 0.0
      %2431 = vmatprep.subr.mxu0 0.0
      %2432 = vmatpush1.msra.mxu0 0.0
      %2433 = vmatprep.subr.mxu0 0.0
      %2434 = vmatpush1.msra.mxu0 0.0
      %2435 = vmatprep.mubr.f32.mxu0 0.0
      %2436 = vmatmul.mubr.f32.gmra.mrb[0].mxu0 %v2276
      %v2437 = vpop.f32.mrb[0].mxu0
      %v2438 = vadd.f32 0.0, %v2437
      %v2439 = vpop.f32.mrb[0].mxu0
      %2440 = vmatprep.mubr.f32.mxu0 0.0
      %2441 = vmatmul.mubr.f32.gmra.mrb[0].mxu0 %v2279
      %v2442 = vpop.f32.mrb[0].mxu0
      %v2443 = vadd.f32 0.0, %v2442
      %v2444 = vpop.f32.mrb[0].mxu0
      %2445 = vmatprep.mubr.f32.mxu0 0.0
      %2446 = vmatmul.mubr.f32.gmra.mrb[0].mxu0 %v2282
      %v2447 = vpop.f32.mrb[0].mxu0
      %v2448 = vadd.f32 0.0, %v2447
      %v2449 = vpop.f32.mrb[0].mxu0
      %2450 = vmatprep.mubr.f32.mxu0 0.0
      %2451 = vmatmul.mubr.f32.gmra.mrb[0].mxu0 %v2285
      %v2452 = vpop.f32.mrb[0].mxu0
      %v2453 = vadd.f32 0.0, %v2452
      %v2454 = vpop.f32.mrb[0].mxu0
      %2455 = vmatprep.mubr.f32.mxu0 0.0
      %2456 = vmatmul.mubr.f32.gmra.mrb[0].mxu0 %v2288
      %v2457 = vpop.f32.mrb[0].mxu0
      %v2458 = vadd.f32 0.0, %v2457
      %v2459 = vpop.f32.mrb[0].mxu0
      %2460 = vmatprep.mubr.f32.mxu0 0.0
      %2461 = vmatmul.mubr.f32.gmra.mrb[0].mxu0 %v2291
      %v2462 = vpop.f32.mrb[0].mxu0
      %v2463 = vadd.f32 0.0, %v2462
      %v2464 = vpop.f32.mrb[0].mxu0
      %2465 = vmatprep.mubr.f32.mxu0 0.0
      %2466 = vmatmul.mubr.f32.gmra.mrb[0].mxu0 %v2294
      %v2467 = vpop.f32.mrb[0].mxu0
      %v2468 = vadd.f32 0.0, %v2467
      %v2469 = vpop.f32.mrb[0].mxu0
      %2470 = vmatprep.mubr.f32.mxu0 0.0
      %2471 = vmatmul.mubr.f32.gmra.mrb[0].mxu0 %v2297
      %v2472 = vpop.f32.mrb[0].mxu0
      %v2473 = vadd.f32 0.0, %v2472
      %v2474 = vpop.f32.mrb[0].mxu0
      %2475 = vmatprep.mubr.f32.mxu0 0.0
      %2476 = vmatmul.mubr.f32.gmra.mrb[0].mxu0 %v2300
      %v2477 = vpop.f32.mrb[0].mxu0
      %v2478 = vadd.f32 0.0, %v2477
      %v2479 = vpop.f32.mrb[0].mxu0
      %2480 = vmatprep.mubr.f32.mxu0 0.0
      %2481 = vmatmul.mubr.f32.gmra.mrb[0].mxu0 %v2303
      %v2482 = vpop.f32.mrb[0].mxu0
      %v2483 = vadd.f32 0.0, %v2482
      %v2484 = vpop.f32.mrb[0].mxu0
      %2485 = vmatprep.mubr.f32.mxu0 0.0
      %2486 = vmatmul.mubr.f32.gmra.mrb[0].mxu0 %v2306
      %v2487 = vpop.f32.mrb[0].mxu0
      %v2488 = vadd.f32 0.0, %v2487
      %v2489 = vpop.f32.mrb[0].mxu0
      %2490 = vmatprep.mubr.f32.mxu0 0.0
      %2491 = vmatmul.mubr.f32.gmra.mrb[0].mxu0 %v2309
      %v2492 = vpop.f32.mrb[0].mxu0
      %v2493 = vadd.f32 0.0, %v2492
      %v2494 = vpop.f32.mrb[0].mxu0
      %2495 = vmatprep.mubr.f32.mxu0 0.0
      %2496 = vmatmul.mubr.f32.gmra.mrb[0].mxu0 %v2312
      %v2497 = vpop.f32.mrb[0].mxu0
      %v2498 = vadd.f32 0.0, %v2497
      %v2499 = vpop.f32.mrb[0].mxu0
      %2500 = vmatprep.mubr.f32.mxu0 0.0
      %2501 = vmatmul.mubr.f32.gmra.mrb[0].mxu0 %v2315
      %v2502 = vpop.f32.mrb[0].mxu0
      %v2503 = vadd.f32 0.0, %v2502
      %v2504 = vpop.f32.mrb[0].mxu0
      %2505 = vmatprep.mubr.f32.mxu0 0.0
      %2506 = vmatmul.mubr.f32.gmra.mrb[0].mxu0 %v2318
      %v2507 = vpop.f32.mrb[0].mxu0
      %v2508 = vadd.f32 0.0, %v2507
      %v2509 = vpop.f32.mrb[0].mxu0
      %2510 = vmatprep.mubr.f32.mxu0 0.0
      %2511 = vmatmul.mubr.f32.gmra.mrb[0].mxu0 %v2321
      %v2512 = vpop.f32.mrb[0].mxu0
      %v2513 = vadd.f32 0.0, %v2512
      %v2514 = vpop.f32.mrb[0].mxu0
      %2515 = vmatprep.mubr.f32.mxu0 0.0
      %2516 = vmatmul.mubr.f32.gmra.mrb[0].mxu0 %v2324
      %v2517 = vpop.f32.mrb[0].mxu0
      %v2518 = vadd.f32 0.0, %v2517
      %v2519 = vpop.f32.mrb[0].mxu0
      %2520 = vmatprep.mubr.f32.mxu0 0.0
      %2521 = vmatmul.mubr.f32.gmra.mrb[0].mxu0 %v2327
      %v2522 = vpop.f32.mrb[0].mxu0
      %v2523 = vadd.f32 0.0, %v2522
      %v2524 = vpop.f32.mrb[0].mxu0
      %2525 = vmatprep.mubr.f32.mxu0 0.0
      %2526 = vmatmul.mubr.f32.gmra.mrb[0].mxu0 %v2330
      %v2527 = vpop.f32.mrb[0].mxu0
      %v2528 = vadd.f32 0.0, %v2527
      %v2529 = vpop.f32.mrb[0].mxu0
      %2530 = vmatprep.mubr.f32.mxu0 0.0
      %2531 = vmatmul.mubr.f32.gmra.mrb[0].mxu0 %v2333
      %v2532 = vpop.f32.mrb[0].mxu0
      %v2533 = vadd.f32 0.0, %v2532
      %v2534 = vpop.f32.mrb[0].mxu0
      %2535 = vmatprep.mubr.f32.mxu0 0.0
      %2536 = vmatmul.mubr.f32.gmra.mrb[0].mxu0 %v2336
      %v2537 = vpop.f32.mrb[0].mxu0
      %v2538 = vadd.f32 0.0, %v2537
      %v2539 = vpop.f32.mrb[0].mxu0
      %2540 = vmatprep.mubr.f32.mxu0 0.0
      %2541 = vmatmul.mubr.f32.gmra.mrb[0].mxu0 %v2339
      %v2542 = vpop.f32.mrb[0].mxu0
      %v2543 = vadd.f32 0.0, %v2542
      %v2544 = vpop.f32.mrb[0].mxu0
      %2545 = vmatprep.mubr.f32.mxu0 0.0
      %2546 = vmatmul.mubr.f32.gmra.mrb[0].mxu0 %v2342
      %v2547 = vpop.f32.mrb[0].mxu0
      %v2548 = vadd.f32 0.0, %v2547
      %v2549 = vpop.f32.mrb[0].mxu0
      %2550 = vmatprep.mubr.f32.mxu0 0.0
      %2551 = vmatmul.mubr.f32.gmra.mrb[0].mxu0 %v2345
      %v2552 = vpop.f32.mrb[0].mxu0
      %v2553 = vadd.f32 0.0, %v2552
      %v2554 = vpop.f32.mrb[0].mxu0
      %2555 = vmatprep.mubr.f32.mxu0 0.0
      %2556 = vmatmul.mubr.f32.gmra.mrb[0].mxu0 %v2348
      %v2557 = vpop.f32.mrb[0].mxu0
      %v2558 = vadd.f32 0.0, %v2557
      %v2559 = vpop.f32.mrb[0].mxu0
      %2560 = vmatprep.mubr.f32.mxu0 0.0
      %2561 = vmatmul.mubr.f32.gmra.mrb[0].mxu0 %v2351
      %v2562 = vpop.f32.mrb[0].mxu0
      %v2563 = vadd.f32 0.0, %v2562
      %v2564 = vpop.f32.mrb[0].mxu0
      %2565 = vmatprep.mubr.f32.mxu0 0.0
      %2566 = vmatmul.mubr.f32.gmra.mrb[0].mxu0 %v2354
      %v2567 = vpop.f32.mrb[0].mxu0
      %v2568 = vadd.f32 0.0, %v2567
      %v2569 = vpop.f32.mrb[0].mxu0
      %2570 = vmatprep.mubr.f32.mxu0 0.0
      %2571 = vmatmul.mubr.f32.gmra.mrb[0].mxu0 %v2357
      %v2572 = vpop.f32.mrb[0].mxu0
      %v2573 = vadd.f32 0.0, %v2572
      %v2574 = vpop.f32.mrb[0].mxu0
      %2575 = vmatprep.mubr.f32.mxu0 0.0
      %2576 = vmatmul.mubr.f32.gmra.mrb[0].mxu0 %v2360
      %v2577 = vpop.f32.mrb[0].mxu0
      %v2578 = vadd.f32 0.0, %v2577
      %v2579 = vpop.f32.mrb[0].mxu0
      %2580 = vmatprep.mubr.f32.mxu0 0.0
      %2581 = vmatmul.mubr.f32.gmra.mrb[0].mxu0 %v2363
      %v2582 = vpop.f32.mrb[0].mxu0
      %v2583 = vadd.f32 0.0, %v2582
      %v2584 = vpop.f32.mrb[0].mxu0
      %2585 = vmatprep.mubr.f32.mxu0 0.0
      %2586 = vmatmul.mubr.f32.gmra.mrb[0].mxu0 %v2366
      %v2587 = vpop.f32.mrb[0].mxu0
      %v2588 = vadd.f32 0.0, %v2587
      %v2589 = vpop.f32.mrb[0].mxu0
      %2590 = vmatprep.mubr.f32.mxu0 0.0
      %2591 = vmatmul.mubr.f32.gmra.mrb[0].mxu0 %v2369
      %v2592 = vpop.f32.mrb[0].mxu0
      %v2593 = vadd.f32 0.0, %v2592
      %v2594 = vpop.f32.mrb[0].mxu0
      %2595 = vdwg.mxu0
      %v2596 = vadd.f32 %v2209, %v2438
      %v2597 = vadd.f32 %v2210, %v2443
      %v2598 = vadd.f32 %v2211, %v2448
      %v2599 = vadd.f32 %v2212, %v2453
      %v2600 = vadd.f32 %v2213, %v2458
      %v2601 = vadd.f32 %v2214, %v2463
      %v2602 = vadd.f32 %v2215, %v2468
      %v2603 = vadd.f32 %v2216, %v2473
      %v2604 = vadd.f32 %v2217, %v2478
      %v2605 = vadd.f32 %v2218, %v2483
      %v2606 = vadd.f32 %v2219, %v2488
      %v2607 = vadd.f32 %v2220, %v2493
      %v2608 = vadd.f32 %v2221, %v2498
      %v2609 = vadd.f32 %v2222, %v2503
      %v2610 = vadd.f32 %v2223, %v2508
      %v2611 = vadd.f32 %v2224, %v2513
      %v2612 = vadd.f32 %v2225, %v2518
      %v2613 = vadd.f32 %v2226, %v2523
      %v2614 = vadd.f32 %v2227, %v2528
      %v2615 = vadd.f32 %v2228, %v2533
      %v2616 = vadd.f32 %v2229, %v2538
      %v2617 = vadd.f32 %v2230, %v2543
      %v2618 = vadd.f32 %v2231, %v2548
      %v2619 = vadd.f32 %v2232, %v2553
      %v2620 = vadd.f32 %v2233, %v2558
      %v2621 = vadd.f32 %v2234, %v2563
      %v2622 = vadd.f32 %v2235, %v2568
      %v2623 = vadd.f32 %v2236, %v2573
      %v2624 = vadd.f32 %v2237, %v2578
      %v2625 = vadd.f32 %v2238, %v2583
      %v2626 = vadd.f32 %v2239, %v2588
      %v2627 = vadd.f32 %v2240, %v2593
      %s2628 = scalar_lea.vmem [#allocation2], 48
      %v2629 = vld [vmem:[%s2628] sm:$0xff]
      %v2630 = vld [vmem:[%s2628 + $0x8] sm:$0xff]
      %v2631 = vld [vmem:[%s2628 + $0x18] sm:$0xff]
      %v2632 = vld [vmem:[%s2628 + $0x20] sm:$0xff]
      %v2633 = vld [vmem:[%s2628 + $0x30] sm:$0xff]
      %v2634 = vld [vmem:[%s2628 + $0x38] sm:$0xff]
      %v2635 = vld [vmem:[%s2628 + $0x48] sm:$0xff]
      %v2636 = vld [vmem:[%s2628 + $0x50] sm:$0xff]
      %v2637 = vld [vmem:[%s2628 + $0x60] sm:$0xff]
      %v2638 = vld [vmem:[%s2628 + $0x68] sm:$0xff]
      %v2639 = vld [vmem:[%s2628 + $0x78] sm:$0xff]
      %v2640 = vld [vmem:[%s2628 + $0x80] sm:$0xff]
      %v2641 = vld [vmem:[%s2628 + $0x90] sm:$0xff]
      %v2642 = vld [vmem:[%s2628 + $0x98] sm:$0xff]
      %v2643 = vld [vmem:[%s2628 + $0xa8] sm:$0xff]
      %v2644 = vld [vmem:[%s2628 + $0xb0] sm:$0xff]
      %v2645 = vld [vmem:[%s2628 + $0xc0] sm:$0xff]
      %v2646 = vld [vmem:[%s2628 + $0xc8] sm:$0xff]
      %v2647 = vld [vmem:[%s2628 + $0xd8] sm:$0xff]
      %v2648 = vld [vmem:[%s2628 + $0xe0] sm:$0xff]
      %v2649 = vld [vmem:[%s2628 + $0xf0] sm:$0xff]
      %v2650 = vld [vmem:[%s2628 + $0xf8] sm:$0xff]
      %v2651 = vld [vmem:[%s2628 + $0x108] sm:$0xff]
      %v2652 = vld [vmem:[%s2628 + $0x110] sm:$0xff]
      %v2653 = vld [vmem:[%s2628 + $0x120] sm:$0xff]
      %v2654 = vld [vmem:[%s2628 + $0x128] sm:$0xff]
      %v2655 = vld [vmem:[%s2628 + $0x138] sm:$0xff]
      %v2656 = vld [vmem:[%s2628 + $0x140] sm:$0xff]
      %v2657 = vld [vmem:[%s2628 + $0x150] sm:$0xff]
      %v2658 = vld [vmem:[%s2628 + $0x158] sm:$0xff]
      %v2659 = vld [vmem:[%s2628 + $0x168] sm:$0xff]
      %v2660 = vld [vmem:[%s2628 + $0x170] sm:$0xff]
      %s2661 = scalar_lea.vmem %s1, 48
      %v2662 = vld [vmem:[%s2661] sm:$0xff]
      %v2664 = vsel %vm225, %v2629, 0
      %v2667 = vsel %vm225, %v2630, 0
      %v2670 = vsel %vm225, %v2631, 0
      %v2673 = vsel %vm225, %v2632, 0
      %v2676 = vsel %vm225, %v2633, 0
      %v2679 = vsel %vm225, %v2634, 0
      %v2682 = vsel %vm225, %v2635, 0
      %v2685 = vsel %vm225, %v2636, 0
      %v2688 = vsel %vm225, %v2637, 0
      %v2691 = vsel %vm225, %v2638, 0
      %v2694 = vsel %vm225, %v2639, 0
      %v2697 = vsel %vm225, %v2640, 0
      %v2700 = vsel %vm225, %v2641, 0
      %v2703 = vsel %vm225, %v2642, 0
      %v2706 = vsel %vm225, %v2643, 0
      %v2709 = vsel %vm225, %v2644, 0
      %v2712 = vsel %vm225, %v2645, 0
      %v2715 = vsel %vm225, %v2646, 0
      %v2718 = vsel %vm225, %v2647, 0
      %v2721 = vsel %vm225, %v2648, 0
      %v2724 = vsel %vm225, %v2649, 0
      %v2727 = vsel %vm225, %v2650, 0
      %v2730 = vsel %vm225, %v2651, 0
      %v2733 = vsel %vm225, %v2652, 0
      %v2736 = vsel %vm225, %v2653, 0
      %v2739 = vsel %vm225, %v2654, 0
      %v2742 = vsel %vm225, %v2655, 0
      %v2745 = vsel %vm225, %v2656, 0
      %v2748 = vsel %vm225, %v2657, 0
      %v2751 = vsel %vm225, %v2658, 0
      %v2754 = vsel %vm225, %v2659, 0
      %v2757 = vsel %vm225, %v2660, 0
      %2759 = vmatprep.subr.mxu0 0.0
      %2760 = vmatpush1.msra.mxu0 %v2662
      %2761 = vmatprep.subr.mxu0 0.0
      %2762 = vmatpush1.msra.mxu0 0.0
      %2763 = vmatprep.subr.mxu0 0.0
      %2764 = vmatpush1.msra.mxu0 0.0
      %2765 = vmatprep.subr.mxu0 0.0
      %2766 = vmatpush1.msra.mxu0 0.0
      %2767 = vmatprep.subr.mxu0 0.0
      %2768 = vmatpush1.msra.mxu0 0.0
      %2769 = vmatprep.subr.mxu0 0.0
      %2770 = vmatpush1.msra.mxu0 0.0
      %2771 = vmatprep.subr.mxu0 0.0
      %2772 = vmatpush1.msra.mxu0 0.0
      %2773 = vmatprep.subr.mxu0 0.0
      %2774 = vmatpush1.msra.mxu0 0.0
      %2775 = vmatprep.subr.mxu0 0.0
      %2776 = vmatpush1.msra.mxu0 0.0
      %2777 = vmatprep.subr.mxu0 0.0
      %2778 = vmatpush1.msra.mxu0 0.0
      %2779 = vmatprep.subr.mxu0 0.0
      %2780 = vmatpush1.msra.mxu0 0.0
      %2781 = vmatprep.subr.mxu0 0.0
      %2782 = vmatpush1.msra.mxu0 0.0
      %2783 = vmatprep.subr.mxu0 0.0
      %2784 = vmatpush1.msra.mxu0 0.0
      %2785 = vmatprep.subr.mxu0 0.0
      %2786 = vmatpush1.msra.mxu0 0.0
      %2787 = vmatprep.subr.mxu0 0.0
      %2788 = vmatpush1.msra.mxu0 0.0
      %2789 = vmatprep.subr.mxu0 0.0
      %2790 = vmatpush1.msra.mxu0 0.0
      %2791 = vmatprep.subr.mxu0 0.0
      %2792 = vmatpush1.msra.mxu0 0.0
      %2793 = vmatprep.subr.mxu0 0.0
      %2794 = vmatpush1.msra.mxu0 0.0
      %2795 = vmatprep.subr.mxu0 0.0
      %2796 = vmatpush1.msra.mxu0 0.0
      %2797 = vmatprep.subr.mxu0 0.0
      %2798 = vmatpush1.msra.mxu0 0.0
      %2799 = vmatprep.subr.mxu0 0.0
      %2800 = vmatpush1.msra.mxu0 0.0
      %2801 = vmatprep.subr.mxu0 0.0
      %2802 = vmatpush1.msra.mxu0 0.0
      %2803 = vmatprep.subr.mxu0 0.0
      %2804 = vmatpush1.msra.mxu0 0.0
      %2805 = vmatprep.subr.mxu0 0.0
      %2806 = vmatpush1.msra.mxu0 0.0
      %2807 = vmatprep.subr.mxu0 0.0
      %2808 = vmatpush1.msra.mxu0 0.0
      %2809 = vmatprep.subr.mxu0 0.0
      %2810 = vmatpush1.msra.mxu0 0.0
      %2811 = vmatprep.subr.mxu0 0.0
      %2812 = vmatpush1.msra.mxu0 0.0
      %2813 = vmatprep.subr.mxu0 0.0
      %2814 = vmatpush1.msra.mxu0 0.0
      %2815 = vmatprep.subr.mxu0 0.0
      %2816 = vmatpush1.msra.mxu0 0.0
      %2817 = vmatprep.subr.mxu0 0.0
      %2818 = vmatpush1.msra.mxu0 0.0
      %2819 = vmatprep.subr.mxu0 0.0
      %2820 = vmatpush1.msra.mxu0 0.0
      %2821 = vmatprep.subr.mxu0 0.0
      %2822 = vmatpush1.msra.mxu0 0.0
      %2823 = vmatprep.mubr.f32.mxu0 0.0
      %2824 = vmatmul.mubr.f32.gmra.mrb[0].mxu0 %v2664
      %v2825 = vpop.f32.mrb[0].mxu0
      %v2826 = vadd.f32 0.0, %v2825
      %v2827 = vpop.f32.mrb[0].mxu0
      %2828 = vmatprep.mubr.f32.mxu0 0.0
      %2829 = vmatmul.mubr.f32.gmra.mrb[0].mxu0 %v2667
      %v2830 = vpop.f32.mrb[0].mxu0
      %v2831 = vadd.f32 0.0, %v2830
      %v2832 = vpop.f32.mrb[0].mxu0
      %2833 = vmatprep.mubr.f32.mxu0 0.0
      %2834 = vmatmul.mubr.f32.gmra.mrb[0].mxu0 %v2670
      %v2835 = vpop.f32.mrb[0].mxu0
      %v2836 = vadd.f32 0.0, %v2835
      %v2837 = vpop.f32.mrb[0].mxu0
      %2838 = vmatprep.mubr.f32.mxu0 0.0
      %2839 = vmatmul.mubr.f32.gmra.mrb[0].mxu0 %v2673
      %v2840 = vpop.f32.mrb[0].mxu0
      %v2841 = vadd.f32 0.0, %v2840
      %v2842 = vpop.f32.mrb[0].mxu0
      %2843 = vmatprep.mubr.f32.mxu0 0.0
      %2844 = vmatmul.mubr.f32.gmra.mrb[0].mxu0 %v2676
      %v2845 = vpop.f32.mrb[0].mxu0
      %v2846 = vadd.f32 0.0, %v2845
      %v2847 = vpop.f32.mrb[0].mxu0
      %2848 = vmatprep.mubr.f32.mxu0 0.0
      %2849 = vmatmul.mubr.f32.gmra.mrb[0].mxu0 %v2679
      %v2850 = vpop.f32.mrb[0].mxu0
      %v2851 = vadd.f32 0.0, %v2850
      %v2852 = vpop.f32.mrb[0].mxu0
      %2853 = vmatprep.mubr.f32.mxu0 0.0
      %2854 = vmatmul.mubr.f32.gmra.mrb[0].mxu0 %v2682
      %v2855 = vpop.f32.mrb[0].mxu0
      %v2856 = vadd.f32 0.0, %v2855
      %v2857 = vpop.f32.mrb[0].mxu0
      %2858 = vmatprep.mubr.f32.mxu0 0.0
      %2859 = vmatmul.mubr.f32.gmra.mrb[0].mxu0 %v2685
      %v2860 = vpop.f32.mrb[0].mxu0
      %v2861 = vadd.f32 0.0, %v2860
      %v2862 = vpop.f32.mrb[0].mxu0
      %2863 = vmatprep.mubr.f32.mxu0 0.0
      %2864 = vmatmul.mubr.f32.gmra.mrb[0].mxu0 %v2688
      %v2865 = vpop.f32.mrb[0].mxu0
      %v2866 = vadd.f32 0.0, %v2865
      %v2867 = vpop.f32.mrb[0].mxu0
      %2868 = vmatprep.mubr.f32.mxu0 0.0
      %2869 = vmatmul.mubr.f32.gmra.mrb[0].mxu0 %v2691
      %v2870 = vpop.f32.mrb[0].mxu0
      %v2871 = vadd.f32 0.0, %v2870
      %v2872 = vpop.f32.mrb[0].mxu0
      %2873 = vmatprep.mubr.f32.mxu0 0.0
      %2874 = vmatmul.mubr.f32.gmra.mrb[0].mxu0 %v2694
      %v2875 = vpop.f32.mrb[0].mxu0
      %v2876 = vadd.f32 0.0, %v2875
      %v2877 = vpop.f32.mrb[0].mxu0
      %2878 = vmatprep.mubr.f32.mxu0 0.0
      %2879 = vmatmul.mubr.f32.gmra.mrb[0].mxu0 %v2697
      %v2880 = vpop.f32.mrb[0].mxu0
      %v2881 = vadd.f32 0.0, %v2880
      %v2882 = vpop.f32.mrb[0].mxu0
      %2883 = vmatprep.mubr.f32.mxu0 0.0
      %2884 = vmatmul.mubr.f32.gmra.mrb[0].mxu0 %v2700
      %v2885 = vpop.f32.mrb[0].mxu0
      %v2886 = vadd.f32 0.0, %v2885
      %v2887 = vpop.f32.mrb[0].mxu0
      %2888 = vmatprep.mubr.f32.mxu0 0.0
      %2889 = vmatmul.mubr.f32.gmra.mrb[0].mxu0 %v2703
      %v2890 = vpop.f32.mrb[0].mxu0
      %v2891 = vadd.f32 0.0, %v2890
      %v2892 = vpop.f32.mrb[0].mxu0
      %2893 = vmatprep.mubr.f32.mxu0 0.0
      %2894 = vmatmul.mubr.f32.gmra.mrb[0].mxu0 %v2706
      %v2895 = vpop.f32.mrb[0].mxu0
      %v2896 = vadd.f32 0.0, %v2895
      %v2897 = vpop.f32.mrb[0].mxu0
      %2898 = vmatprep.mubr.f32.mxu0 0.0
      %2899 = vmatmul.mubr.f32.gmra.mrb[0].mxu0 %v2709
      %v2900 = vpop.f32.mrb[0].mxu0
      %v2901 = vadd.f32 0.0, %v2900
      %v2902 = vpop.f32.mrb[0].mxu0
      %2903 = vmatprep.mubr.f32.mxu0 0.0
      %2904 = vmatmul.mubr.f32.gmra.mrb[0].mxu0 %v2712
      %v2905 = vpop.f32.mrb[0].mxu0
      %v2906 = vadd.f32 0.0, %v2905
      %v2907 = vpop.f32.mrb[0].mxu0
      %2908 = vmatprep.mubr.f32.mxu0 0.0
      %2909 = vmatmul.mubr.f32.gmra.mrb[0].mxu0 %v2715
      %v2910 = vpop.f32.mrb[0].mxu0
      %v2911 = vadd.f32 0.0, %v2910
      %v2912 = vpop.f32.mrb[0].mxu0
      %2913 = vmatprep.mubr.f32.mxu0 0.0
      %2914 = vmatmul.mubr.f32.gmra.mrb[0].mxu0 %v2718
      %v2915 = vpop.f32.mrb[0].mxu0
      %v2916 = vadd.f32 0.0, %v2915
      %v2917 = vpop.f32.mrb[0].mxu0
      %2918 = vmatprep.mubr.f32.mxu0 0.0
      %2919 = vmatmul.mubr.f32.gmra.mrb[0].mxu0 %v2721
      %v2920 = vpop.f32.mrb[0].mxu0
      %v2921 = vadd.f32 0.0, %v2920
      %v2922 = vpop.f32.mrb[0].mxu0
      %2923 = vmatprep.mubr.f32.mxu0 0.0
      %2924 = vmatmul.mubr.f32.gmra.mrb[0].mxu0 %v2724
      %v2925 = vpop.f32.mrb[0].mxu0
      %v2926 = vadd.f32 0.0, %v2925
      %v2927 = vpop.f32.mrb[0].mxu0
      %2928 = vmatprep.mubr.f32.mxu0 0.0
      %2929 = vmatmul.mubr.f32.gmra.mrb[0].mxu0 %v2727
      %v2930 = vpop.f32.mrb[0].mxu0
      %v2931 = vadd.f32 0.0, %v2930
      %v2932 = vpop.f32.mrb[0].mxu0
      %2933 = vmatprep.mubr.f32.mxu0 0.0
      %2934 = vmatmul.mubr.f32.gmra.mrb[0].mxu0 %v2730
      %v2935 = vpop.f32.mrb[0].mxu0
      %v2936 = vadd.f32 0.0, %v2935
      %v2937 = vpop.f32.mrb[0].mxu0
      %2938 = vmatprep.mubr.f32.mxu0 0.0
      %2939 = vmatmul.mubr.f32.gmra.mrb[0].mxu0 %v2733
      %v2940 = vpop.f32.mrb[0].mxu0
      %v2941 = vadd.f32 0.0, %v2940
      %v2942 = vpop.f32.mrb[0].mxu0
      %2943 = vmatprep.mubr.f32.mxu0 0.0
      %2944 = vmatmul.mubr.f32.gmra.mrb[0].mxu0 %v2736
      %v2945 = vpop.f32.mrb[0].mxu0
      %v2946 = vadd.f32 0.0, %v2945
      %v2947 = vpop.f32.mrb[0].mxu0
      %2948 = vmatprep.mubr.f32.mxu0 0.0
      %2949 = vmatmul.mubr.f32.gmra.mrb[0].mxu0 %v2739
      %v2950 = vpop.f32.mrb[0].mxu0
      %v2951 = vadd.f32 0.0, %v2950
      %v2952 = vpop.f32.mrb[0].mxu0
      %2953 = vmatprep.mubr.f32.mxu0 0.0
      %2954 = vmatmul.mubr.f32.gmra.mrb[0].mxu0 %v2742
      %v2955 = vpop.f32.mrb[0].mxu0
      %v2956 = vadd.f32 0.0, %v2955
      %v2957 = vpop.f32.mrb[0].mxu0
      %2958 = vmatprep.mubr.f32.mxu0 0.0
      %2959 = vmatmul.mubr.f32.gmra.mrb[0].mxu0 %v2745
      %v2960 = vpop.f32.mrb[0].mxu0
      %v2961 = vadd.f32 0.0, %v2960
      %v2962 = vpop.f32.mrb[0].mxu0
      %2963 = vmatprep.mubr.f32.mxu0 0.0
      %2964 = vmatmul.mubr.f32.gmra.mrb[0].mxu0 %v2748
      %v2965 = vpop.f32.mrb[0].mxu0
      %v2966 = vadd.f32 0.0, %v2965
      %v2967 = vpop.f32.mrb[0].mxu0
      %2968 = vmatprep.mubr.f32.mxu0 0.0
      %2969 = vmatmul.mubr.f32.gmra.mrb[0].mxu0 %v2751
      %v2970 = vpop.f32.mrb[0].mxu0
      %v2971 = vadd.f32 0.0, %v2970
      %v2972 = vpop.f32.mrb[0].mxu0
      %2973 = vmatprep.mubr.f32.mxu0 0.0
      %2974 = vmatmul.mubr.f32.gmra.mrb[0].mxu0 %v2754
      %v2975 = vpop.f32.mrb[0].mxu0
      %v2976 = vadd.f32 0.0, %v2975
      %v2977 = vpop.f32.mrb[0].mxu0
      %2978 = vmatprep.mubr.f32.mxu0 0.0
      %2979 = vmatmul.mubr.f32.gmra.mrb[0].mxu0 %v2757
      %v2980 = vpop.f32.mrb[0].mxu0
      %v2981 = vadd.f32 0.0, %v2980
      %v2982 = vpop.f32.mrb[0].mxu0
      %2983 = vdwg.mxu0
      %v2984 = vadd.f32 %v2596, %v2826
      %v2985 = vadd.f32 %v2597, %v2831
      %v2986 = vadd.f32 %v2598, %v2836
      %v2987 = vadd.f32 %v2599, %v2841
      %v2988 = vadd.f32 %v2600, %v2846
      %v2989 = vadd.f32 %v2601, %v2851
      %v2990 = vadd.f32 %v2602, %v2856
      %v2991 = vadd.f32 %v2603, %v2861
      %v2992 = vadd.f32 %v2604, %v2866
      %v2993 = vadd.f32 %v2605, %v2871
      %v2994 = vadd.f32 %v2606, %v2876
      %v2995 = vadd.f32 %v2607, %v2881
      %v2996 = vadd.f32 %v2608, %v2886
      %v2997 = vadd.f32 %v2609, %v2891
      %v2998 = vadd.f32 %v2610, %v2896
      %v2999 = vadd.f32 %v2611, %v2901
      %v3000 = vadd.f32 %v2612, %v2906
      %v3001 = vadd.f32 %v2613, %v2911
      %v3002 = vadd.f32 %v2614, %v2916
      %v3003 = vadd.f32 %v2615, %v2921
      %v3004 = vadd.f32 %v2616, %v2926
      %v3005 = vadd.f32 %v2617, %v2931
      %v3006 = vadd.f32 %v2618, %v2936
      %v3007 = vadd.f32 %v2619, %v2941
      %v3008 = vadd.f32 %v2620, %v2946
      %v3009 = vadd.f32 %v2621, %v2951
      %v3010 = vadd.f32 %v2622, %v2956
      %v3011 = vadd.f32 %v2623, %v2961
      %v3012 = vadd.f32 %v2624, %v2966
      %v3013 = vadd.f32 %v2625, %v2971
      %v3014 = vadd.f32 %v2626, %v2976
      %v3015 = vadd.f32 %v2627, %v2981
      %v3016 = vld [vmem:[%s2628 + $0x1] sm:$0xff]
      %v3017 = vld [vmem:[%s2628 + $0x9] sm:$0xff]
      %v3018 = vld [vmem:[%s2628 + $0x19] sm:$0xff]
      %v3019 = vld [vmem:[%s2628 + $0x21] sm:$0xff]
      %v3020 = vld [vmem:[%s2628 + $0x31] sm:$0xff]
      %v3021 = vld [vmem:[%s2628 + $0x39] sm:$0xff]
      %v3022 = vld [vmem:[%s2628 + $0x49] sm:$0xff]
      %v3023 = vld [vmem:[%s2628 + $0x51] sm:$0xff]
      %v3024 = vld [vmem:[%s2628 + $0x61] sm:$0xff]
      %v3025 = vld [vmem:[%s2628 + $0x69] sm:$0xff]
      %v3026 = vld [vmem:[%s2628 + $0x79] sm:$0xff]
      %v3027 = vld [vmem:[%s2628 + $0x81] sm:$0xff]
      %v3028 = vld [vmem:[%s2628 + $0x91] sm:$0xff]
      %v3029 = vld [vmem:[%s2628 + $0x99] sm:$0xff]
      %v3030 = vld [vmem:[%s2628 + $0xa9] sm:$0xff]
      %v3031 = vld [vmem:[%s2628 + $0xb1] sm:$0xff]
      %v3032 = vld [vmem:[%s2628 + $0xc1] sm:$0xff]
      %v3033 = vld [vmem:[%s2628 + $0xc9] sm:$0xff]
      %v3034 = vld [vmem:[%s2628 + $0xd9] sm:$0xff]
      %v3035 = vld [vmem:[%s2628 + $0xe1] sm:$0xff]
      %v3036 = vld [vmem:[%s2628 + $0xf1] sm:$0xff]
      %v3037 = vld [vmem:[%s2628 + $0xf9] sm:$0xff]
      %v3038 = vld [vmem:[%s2628 + $0x109] sm:$0xff]
      %v3039 = vld [vmem:[%s2628 + $0x111] sm:$0xff]
      %v3040 = vld [vmem:[%s2628 + $0x121] sm:$0xff]
      %v3041 = vld [vmem:[%s2628 + $0x129] sm:$0xff]
      %v3042 = vld [vmem:[%s2628 + $0x139] sm:$0xff]
      %v3043 = vld [vmem:[%s2628 + $0x141] sm:$0xff]
      %v3044 = vld [vmem:[%s2628 + $0x151] sm:$0xff]
      %v3045 = vld [vmem:[%s2628 + $0x159] sm:$0xff]
      %v3046 = vld [vmem:[%s2628 + $0x169] sm:$0xff]
      %v3047 = vld [vmem:[%s2628 + $0x171] sm:$0xff]
      %s3048 = scalar_lea.vmem %s1, 56
      %v3049 = vld [vmem:[%s3048] sm:$0xff]
      %v3051 = vsel %vm225, %v3016, 0
      %v3054 = vsel %vm225, %v3017, 0
      %v3057 = vsel %vm225, %v3018, 0
      %v3060 = vsel %vm225, %v3019, 0
      %v3063 = vsel %vm225, %v3020, 0
      %v3066 = vsel %vm225, %v3021, 0
      %v3069 = vsel %vm225, %v3022, 0
      %v3072 = vsel %vm225, %v3023, 0
      %v3075 = vsel %vm225, %v3024, 0
      %v3078 = vsel %vm225, %v3025, 0
      %v3081 = vsel %vm225, %v3026, 0
      %v3084 = vsel %vm225, %v3027, 0
      %v3087 = vsel %vm225, %v3028, 0
      %v3090 = vsel %vm225, %v3029, 0
      %v3093 = vsel %vm225, %v3030, 0
      %v3096 = vsel %vm225, %v3031, 0
      %v3099 = vsel %vm225, %v3032, 0
      %v3102 = vsel %vm225, %v3033, 0
      %v3105 = vsel %vm225, %v3034, 0
      %v3108 = vsel %vm225, %v3035, 0
      %v3111 = vsel %vm225, %v3036, 0
      %v3114 = vsel %vm225, %v3037, 0
      %v3117 = vsel %vm225, %v3038, 0
      %v3120 = vsel %vm225, %v3039, 0
      %v3123 = vsel %vm225, %v3040, 0
      %v3126 = vsel %vm225, %v3041, 0
      %v3129 = vsel %vm225, %v3042, 0
      %v3132 = vsel %vm225, %v3043, 0
      %v3135 = vsel %vm225, %v3044, 0
      %v3138 = vsel %vm225, %v3045, 0
      %v3141 = vsel %vm225, %v3046, 0
      %v3144 = vsel %vm225, %v3047, 0
      %3146 = vmatprep.subr.mxu0 0.0
      %3147 = vmatpush1.msra.mxu0 %v3049
      %3148 = vmatprep.subr.mxu0 0.0
      %3149 = vmatpush1.msra.mxu0 0.0
      %3150 = vmatprep.subr.mxu0 0.0
      %3151 = vmatpush1.msra.mxu0 0.0
      %3152 = vmatprep.subr.mxu0 0.0
      %3153 = vmatpush1.msra.mxu0 0.0
      %3154 = vmatprep.subr.mxu0 0.0
      %3155 = vmatpush1.msra.mxu0 0.0
      %3156 = vmatprep.subr.mxu0 0.0
      %3157 = vmatpush1.msra.mxu0 0.0
      %3158 = vmatprep.subr.mxu0 0.0
      %3159 = vmatpush1.msra.mxu0 0.0
      %3160 = vmatprep.subr.mxu0 0.0
      %3161 = vmatpush1.msra.mxu0 0.0
      %3162 = vmatprep.subr.mxu0 0.0
      %3163 = vmatpush1.msra.mxu0 0.0
      %3164 = vmatprep.subr.mxu0 0.0
      %3165 = vmatpush1.msra.mxu0 0.0
      %3166 = vmatprep.subr.mxu0 0.0
      %3167 = vmatpush1.msra.mxu0 0.0
      %3168 = vmatprep.subr.mxu0 0.0
      %3169 = vmatpush1.msra.mxu0 0.0
      %3170 = vmatprep.subr.mxu0 0.0
      %3171 = vmatpush1.msra.mxu0 0.0
      %3172 = vmatprep.subr.mxu0 0.0
      %3173 = vmatpush1.msra.mxu0 0.0
      %3174 = vmatprep.subr.mxu0 0.0
      %3175 = vmatpush1.msra.mxu0 0.0
      %3176 = vmatprep.subr.mxu0 0.0
      %3177 = vmatpush1.msra.mxu0 0.0
      %3178 = vmatprep.subr.mxu0 0.0
      %3179 = vmatpush1.msra.mxu0 0.0
      %3180 = vmatprep.subr.mxu0 0.0
      %3181 = vmatpush1.msra.mxu0 0.0
      %3182 = vmatprep.subr.mxu0 0.0
      %3183 = vmatpush1.msra.mxu0 0.0
      %3184 = vmatprep.subr.mxu0 0.0
      %3185 = vmatpush1.msra.mxu0 0.0
      %3186 = vmatprep.subr.mxu0 0.0
      %3187 = vmatpush1.msra.mxu0 0.0
      %3188 = vmatprep.subr.mxu0 0.0
      %3189 = vmatpush1.msra.mxu0 0.0
      %3190 = vmatprep.subr.mxu0 0.0
      %3191 = vmatpush1.msra.mxu0 0.0
      %3192 = vmatprep.subr.mxu0 0.0
      %3193 = vmatpush1.msra.mxu0 0.0
      %3194 = vmatprep.subr.mxu0 0.0
      %3195 = vmatpush1.msra.mxu0 0.0
      %3196 = vmatprep.subr.mxu0 0.0
      %3197 = vmatpush1.msra.mxu0 0.0
      %3198 = vmatprep.subr.mxu0 0.0
      %3199 = vmatpush1.msra.mxu0 0.0
      %3200 = vmatprep.subr.mxu0 0.0
      %3201 = vmatpush1.msra.mxu0 0.0
      %3202 = vmatprep.subr.mxu0 0.0
      %3203 = vmatpush1.msra.mxu0 0.0
      %3204 = vmatprep.subr.mxu0 0.0
      %3205 = vmatpush1.msra.mxu0 0.0
      %3206 = vmatprep.subr.mxu0 0.0
      %3207 = vmatpush1.msra.mxu0 0.0
      %3208 = vmatprep.subr.mxu0 0.0
      %3209 = vmatpush1.msra.mxu0 0.0
      %3210 = vmatprep.mubr.f32.mxu0 0.0
      %3211 = vmatmul.mubr.f32.gmra.mrb[0].mxu0 %v3051
      %v3212 = vpop.f32.mrb[0].mxu0
      %v3213 = vadd.f32 0.0, %v3212
      %v3214 = vpop.f32.mrb[0].mxu0
      %3215 = vmatprep.mubr.f32.mxu0 0.0
      %3216 = vmatmul.mubr.f32.gmra.mrb[0].mxu0 %v3054
      %v3217 = vpop.f32.mrb[0].mxu0
      %v3218 = vadd.f32 0.0, %v3217
      %v3219 = vpop.f32.mrb[0].mxu0
      %3220 = vmatprep.mubr.f32.mxu0 0.0
      %3221 = vmatmul.mubr.f32.gmra.mrb[0].mxu0 %v3057
      %v3222 = vpop.f32.mrb[0].mxu0
      %v3223 = vadd.f32 0.0, %v3222
      %v3224 = vpop.f32.mrb[0].mxu0
      %3225 = vmatprep.mubr.f32.mxu0 0.0
      %3226 = vmatmul.mubr.f32.gmra.mrb[0].mxu0 %v3060
      %v3227 = vpop.f32.mrb[0].mxu0
      %v3228 = vadd.f32 0.0, %v3227
      %v3229 = vpop.f32.mrb[0].mxu0
      %3230 = vmatprep.mubr.f32.mxu0 0.0
      %3231 = vmatmul.mubr.f32.gmra.mrb[0].mxu0 %v3063
      %v3232 = vpop.f32.mrb[0].mxu0
      %v3233 = vadd.f32 0.0, %v3232
      %v3234 = vpop.f32.mrb[0].mxu0
      %3235 = vmatprep.mubr.f32.mxu0 0.0
      %3236 = vmatmul.mubr.f32.gmra.mrb[0].mxu0 %v3066
      %v3237 = vpop.f32.mrb[0].mxu0
      %v3238 = vadd.f32 0.0, %v3237
      %v3239 = vpop.f32.mrb[0].mxu0
      %3240 = vmatprep.mubr.f32.mxu0 0.0
      %3241 = vmatmul.mubr.f32.gmra.mrb[0].mxu0 %v3069
      %v3242 = vpop.f32.mrb[0].mxu0
      %v3243 = vadd.f32 0.0, %v3242
      %v3244 = vpop.f32.mrb[0].mxu0
      %3245 = vmatprep.mubr.f32.mxu0 0.0
      %3246 = vmatmul.mubr.f32.gmra.mrb[0].mxu0 %v3072
      %v3247 = vpop.f32.mrb[0].mxu0
      %v3248 = vadd.f32 0.0, %v3247
      %v3249 = vpop.f32.mrb[0].mxu0
      %3250 = vmatprep.mubr.f32.mxu0 0.0
      %3251 = vmatmul.mubr.f32.gmra.mrb[0].mxu0 %v3075
      %v3252 = vpop.f32.mrb[0].mxu0
      %v3253 = vadd.f32 0.0, %v3252
      %v3254 = vpop.f32.mrb[0].mxu0
      %3255 = vmatprep.mubr.f32.mxu0 0.0
      %3256 = vmatmul.mubr.f32.gmra.mrb[0].mxu0 %v3078
      %v3257 = vpop.f32.mrb[0].mxu0
      %v3258 = vadd.f32 0.0, %v3257
      %v3259 = vpop.f32.mrb[0].mxu0
      %3260 = vmatprep.mubr.f32.mxu0 0.0
      %3261 = vmatmul.mubr.f32.gmra.mrb[0].mxu0 %v3081
      %v3262 = vpop.f32.mrb[0].mxu0
      %v3263 = vadd.f32 0.0, %v3262
      %v3264 = vpop.f32.mrb[0].mxu0
      %3265 = vmatprep.mubr.f32.mxu0 0.0
      %3266 = vmatmul.mubr.f32.gmra.mrb[0].mxu0 %v3084
      %v3267 = vpop.f32.mrb[0].mxu0
      %v3268 = vadd.f32 0.0, %v3267
      %v3269 = vpop.f32.mrb[0].mxu0
      %3270 = vmatprep.mubr.f32.mxu0 0.0
      %3271 = vmatmul.mubr.f32.gmra.mrb[0].mxu0 %v3087
      %v3272 = vpop.f32.mrb[0].mxu0
      %v3273 = vadd.f32 0.0, %v3272
      %v3274 = vpop.f32.mrb[0].mxu0
      %3275 = vmatprep.mubr.f32.mxu0 0.0
      %3276 = vmatmul.mubr.f32.gmra.mrb[0].mxu0 %v3090
      %v3277 = vpop.f32.mrb[0].mxu0
      %v3278 = vadd.f32 0.0, %v3277
      %v3279 = vpop.f32.mrb[0].mxu0
      %3280 = vmatprep.mubr.f32.mxu0 0.0
      %3281 = vmatmul.mubr.f32.gmra.mrb[0].mxu0 %v3093
      %v3282 = vpop.f32.mrb[0].mxu0
      %v3283 = vadd.f32 0.0, %v3282
      %v3284 = vpop.f32.mrb[0].mxu0
      %3285 = vmatprep.mubr.f32.mxu0 0.0
      %3286 = vmatmul.mubr.f32.gmra.mrb[0].mxu0 %v3096
      %v3287 = vpop.f32.mrb[0].mxu0
      %v3288 = vadd.f32 0.0, %v3287
      %v3289 = vpop.f32.mrb[0].mxu0
      %3290 = vmatprep.mubr.f32.mxu0 0.0
      %3291 = vmatmul.mubr.f32.gmra.mrb[0].mxu0 %v3099
      %v3292 = vpop.f32.mrb[0].mxu0
      %v3293 = vadd.f32 0.0, %v3292
      %v3294 = vpop.f32.mrb[0].mxu0
      %3295 = vmatprep.mubr.f32.mxu0 0.0
      %3296 = vmatmul.mubr.f32.gmra.mrb[0].mxu0 %v3102
      %v3297 = vpop.f32.mrb[0].mxu0
      %v3298 = vadd.f32 0.0, %v3297
      %v3299 = vpop.f32.mrb[0].mxu0
      %3300 = vmatprep.mubr.f32.mxu0 0.0
      %3301 = vmatmul.mubr.f32.gmra.mrb[0].mxu0 %v3105
      %v3302 = vpop.f32.mrb[0].mxu0
      %v3303 = vadd.f32 0.0, %v3302
      %v3304 = vpop.f32.mrb[0].mxu0
      %3305 = vmatprep.mubr.f32.mxu0 0.0
      %3306 = vmatmul.mubr.f32.gmra.mrb[0].mxu0 %v3108
      %v3307 = vpop.f32.mrb[0].mxu0
      %v3308 = vadd.f32 0.0, %v3307
      %v3309 = vpop.f32.mrb[0].mxu0
      %3310 = vmatprep.mubr.f32.mxu0 0.0
      %3311 = vmatmul.mubr.f32.gmra.mrb[0].mxu0 %v3111
      %v3312 = vpop.f32.mrb[0].mxu0
      %v3313 = vadd.f32 0.0, %v3312
      %v3314 = vpop.f32.mrb[0].mxu0
      %3315 = vmatprep.mubr.f32.mxu0 0.0
      %3316 = vmatmul.mubr.f32.gmra.mrb[0].mxu0 %v3114
      %v3317 = vpop.f32.mrb[0].mxu0
      %v3318 = vadd.f32 0.0, %v3317
      %v3319 = vpop.f32.mrb[0].mxu0
      %3320 = vmatprep.mubr.f32.mxu0 0.0
      %3321 = vmatmul.mubr.f32.gmra.mrb[0].mxu0 %v3117
      %v3322 = vpop.f32.mrb[0].mxu0
      %v3323 = vadd.f32 0.0, %v3322
      %v3324 = vpop.f32.mrb[0].mxu0
      %3325 = vmatprep.mubr.f32.mxu0 0.0
      %3326 = vmatmul.mubr.f32.gmra.mrb[0].mxu0 %v3120
      %v3327 = vpop.f32.mrb[0].mxu0
      %v3328 = vadd.f32 0.0, %v3327
      %v3329 = vpop.f32.mrb[0].mxu0
      %3330 = vmatprep.mubr.f32.mxu0 0.0
      %3331 = vmatmul.mubr.f32.gmra.mrb[0].mxu0 %v3123
      %v3332 = vpop.f32.mrb[0].mxu0
      %v3333 = vadd.f32 0.0, %v3332
      %v3334 = vpop.f32.mrb[0].mxu0
      %3335 = vmatprep.mubr.f32.mxu0 0.0
      %3336 = vmatmul.mubr.f32.gmra.mrb[0].mxu0 %v3126
      %v3337 = vpop.f32.mrb[0].mxu0
      %v3338 = vadd.f32 0.0, %v3337
      %v3339 = vpop.f32.mrb[0].mxu0
      %3340 = vmatprep.mubr.f32.mxu0 0.0
      %3341 = vmatmul.mubr.f32.gmra.mrb[0].mxu0 %v3129
      %v3342 = vpop.f32.mrb[0].mxu0
      %v3343 = vadd.f32 0.0, %v3342
      %v3344 = vpop.f32.mrb[0].mxu0
      %3345 = vmatprep.mubr.f32.mxu0 0.0
      %3346 = vmatmul.mubr.f32.gmra.mrb[0].mxu0 %v3132
      %v3347 = vpop.f32.mrb[0].mxu0
      %v3348 = vadd.f32 0.0, %v3347
      %v3349 = vpop.f32.mrb[0].mxu0
      %3350 = vmatprep.mubr.f32.mxu0 0.0
      %3351 = vmatmul.mubr.f32.gmra.mrb[0].mxu0 %v3135
      %v3352 = vpop.f32.mrb[0].mxu0
      %v3353 = vadd.f32 0.0, %v3352
      %v3354 = vpop.f32.mrb[0].mxu0
      %3355 = vmatprep.mubr.f32.mxu0 0.0
      %3356 = vmatmul.mubr.f32.gmra.mrb[0].mxu0 %v3138
      %v3357 = vpop.f32.mrb[0].mxu0
      %v3358 = vadd.f32 0.0, %v3357
      %v3359 = vpop.f32.mrb[0].mxu0
      %3360 = vmatprep.mubr.f32.mxu0 0.0
      %3361 = vmatmul.mubr.f32.gmra.mrb[0].mxu0 %v3141
      %v3362 = vpop.f32.mrb[0].mxu0
      %v3363 = vadd.f32 0.0, %v3362
      %v3364 = vpop.f32.mrb[0].mxu0
      %3365 = vmatprep.mubr.f32.mxu0 0.0
      %3366 = vmatmul.mubr.f32.gmra.mrb[0].mxu0 %v3144
      %v3367 = vpop.f32.mrb[0].mxu0
      %v3368 = vadd.f32 0.0, %v3367
      %v3369 = vpop.f32.mrb[0].mxu0
      %3370 = vdwg.mxu0
      %v3371 = vadd.f32 %v2984, %v3213
      %v3372 = vadd.f32 %v2985, %v3218
      %v3373 = vadd.f32 %v2986, %v3223
      %v3374 = vadd.f32 %v2987, %v3228
      %v3375 = vadd.f32 %v2988, %v3233
      %v3376 = vadd.f32 %v2989, %v3238
      %v3377 = vadd.f32 %v2990, %v3243
      %v3378 = vadd.f32 %v2991, %v3248
      %v3379 = vadd.f32 %v2992, %v3253
      %v3380 = vadd.f32 %v2993, %v3258
      %v3381 = vadd.f32 %v2994, %v3263
      %v3382 = vadd.f32 %v2995, %v3268
      %v3383 = vadd.f32 %v2996, %v3273
      %v3384 = vadd.f32 %v2997, %v3278
      %v3385 = vadd.f32 %v2998, %v3283
      %v3386 = vadd.f32 %v2999, %v3288
      %v3387 = vadd.f32 %v3000, %v3293
      %v3388 = vadd.f32 %v3001, %v3298
      %v3389 = vadd.f32 %v3002, %v3303
      %v3390 = vadd.f32 %v3003, %v3308
      %v3391 = vadd.f32 %v3004, %v3313
      %v3392 = vadd.f32 %v3005, %v3318
      %v3393 = vadd.f32 %v3006, %v3323
      %v3394 = vadd.f32 %v3007, %v3328
      %v3395 = vadd.f32 %v3008, %v3333
      %v3396 = vadd.f32 %v3009, %v3338
      %v3397 = vadd.f32 %v3010, %v3343
      %v3398 = vadd.f32 %v3011, %v3348
      %v3399 = vadd.f32 %v3012, %v3353
      %v3400 = vadd.f32 %v3013, %v3358
      %v3401 = vadd.f32 %v3014, %v3363
      %v3402 = vadd.f32 %v3015, %v3368
      %v3403 = vld [vmem:[%s2628 + $0x2] sm:$0xff]
      %v3404 = vld [vmem:[%s2628 + $0xa] sm:$0xff]
      %v3405 = vld [vmem:[%s2628 + $0x1a] sm:$0xff]
      %v3406 = vld [vmem:[%s2628 + $0x22] sm:$0xff]
      %v3407 = vld [vmem:[%s2628 + $0x32] sm:$0xff]
      %v3408 = vld [vmem:[%s2628 + $0x3a] sm:$0xff]
      %v3409 = vld [vmem:[%s2628 + $0x4a] sm:$0xff]
      %v3410 = vld [vmem:[%s2628 + $0x52] sm:$0xff]
      %v3411 = vld [vmem:[%s2628 + $0x62] sm:$0xff]
      %v3412 = vld [vmem:[%s2628 + $0x6a] sm:$0xff]
      %v3413 = vld [vmem:[%s2628 + $0x7a] sm:$0xff]
      %v3414 = vld [vmem:[%s2628 + $0x82] sm:$0xff]
      %v3415 = vld [vmem:[%s2628 + $0x92] sm:$0xff]
      %v3416 = vld [vmem:[%s2628 + $0x9a] sm:$0xff]
      %v3417 = vld [vmem:[%s2628 + $0xaa] sm:$0xff]
      %v3418 = vld [vmem:[%s2628 + $0xb2] sm:$0xff]
      %v3419 = vld [vmem:[%s2628 + $0xc2] sm:$0xff]
      %v3420 = vld [vmem:[%s2628 + $0xca] sm:$0xff]
      %v3421 = vld [vmem:[%s2628 + $0xda] sm:$0xff]
      %v3422 = vld [vmem:[%s2628 + $0xe2] sm:$0xff]
      %v3423 = vld [vmem:[%s2628 + $0xf2] sm:$0xff]
      %v3424 = vld [vmem:[%s2628 + $0xfa] sm:$0xff]
      %v3425 = vld [vmem:[%s2628 + $0x10a] sm:$0xff]
      %v3426 = vld [vmem:[%s2628 + $0x112] sm:$0xff]
      %v3427 = vld [vmem:[%s2628 + $0x122] sm:$0xff]
      %v3428 = vld [vmem:[%s2628 + $0x12a] sm:$0xff]
      %v3429 = vld [vmem:[%s2628 + $0x13a] sm:$0xff]
      %v3430 = vld [vmem:[%s2628 + $0x142] sm:$0xff]
      %v3431 = vld [vmem:[%s2628 + $0x152] sm:$0xff]
      %v3432 = vld [vmem:[%s2628 + $0x15a] sm:$0xff]
      %v3433 = vld [vmem:[%s2628 + $0x16a] sm:$0xff]
      %v3434 = vld [vmem:[%s2628 + $0x172] sm:$0xff]
      %s3435 = scalar_lea.vmem %s1, 64
      %v3436 = vld [vmem:[%s3435] sm:$0xff]
      %v3438 = vsel %vm225, %v3403, 0
      %v3441 = vsel %vm225, %v3404, 0
      %v3444 = vsel %vm225, %v3405, 0
      %v3447 = vsel %vm225, %v3406, 0
      %v3450 = vsel %vm225, %v3407, 0
      %v3453 = vsel %vm225, %v3408, 0
      %v3456 = vsel %vm225, %v3409, 0
      %v3459 = vsel %vm225, %v3410, 0
      %v3462 = vsel %vm225, %v3411, 0
      %v3465 = vsel %vm225, %v3412, 0
      %v3468 = vsel %vm225, %v3413, 0
      %v3471 = vsel %vm225, %v3414, 0
      %v3474 = vsel %vm225, %v3415, 0
      %v3477 = vsel %vm225, %v3416, 0
      %v3480 = vsel %vm225, %v3417, 0
      %v3483 = vsel %vm225, %v3418, 0
      %v3486 = vsel %vm225, %v3419, 0
      %v3489 = vsel %vm225, %v3420, 0
      %v3492 = vsel %vm225, %v3421, 0
      %v3495 = vsel %vm225, %v3422, 0
      %v3498 = vsel %vm225, %v3423, 0
      %v3501 = vsel %vm225, %v3424, 0
      %v3504 = vsel %vm225, %v3425, 0
      %v3507 = vsel %vm225, %v3426, 0
      %v3510 = vsel %vm225, %v3427, 0
      %v3513 = vsel %vm225, %v3428, 0
      %v3516 = vsel %vm225, %v3429, 0
      %v3519 = vsel %vm225, %v3430, 0
      %v3522 = vsel %vm225, %v3431, 0
      %v3525 = vsel %vm225, %v3432, 0
      %v3528 = vsel %vm225, %v3433, 0
      %v3531 = vsel %vm225, %v3434, 0
      %3533 = vmatprep.subr.mxu0 0.0
      %3534 = vmatpush1.msra.mxu0 %v3436
      %3535 = vmatprep.subr.mxu0 0.0
      %3536 = vmatpush1.msra.mxu0 0.0
      %3537 = vmatprep.subr.mxu0 0.0
      %3538 = vmatpush1.msra.mxu0 0.0
      %3539 = vmatprep.subr.mxu0 0.0
      %3540 = vmatpush1.msra.mxu0 0.0
      %3541 = vmatprep.subr.mxu0 0.0
      %3542 = vmatpush1.msra.mxu0 0.0
      %3543 = vmatprep.subr.mxu0 0.0
      %3544 = vmatpush1.msra.mxu0 0.0
      %3545 = vmatprep.subr.mxu0 0.0
      %3546 = vmatpush1.msra.mxu0 0.0
      %3547 = vmatprep.subr.mxu0 0.0
      %3548 = vmatpush1.msra.mxu0 0.0
      %3549 = vmatprep.subr.mxu0 0.0
      %3550 = vmatpush1.msra.mxu0 0.0
      %3551 = vmatprep.subr.mxu0 0.0
      %3552 = vmatpush1.msra.mxu0 0.0
      %3553 = vmatprep.subr.mxu0 0.0
      %3554 = vmatpush1.msra.mxu0 0.0
      %3555 = vmatprep.subr.mxu0 0.0
      %3556 = vmatpush1.msra.mxu0 0.0
      %3557 = vmatprep.subr.mxu0 0.0
      %3558 = vmatpush1.msra.mxu0 0.0
      %3559 = vmatprep.subr.mxu0 0.0
      %3560 = vmatpush1.msra.mxu0 0.0
      %3561 = vmatprep.subr.mxu0 0.0
      %3562 = vmatpush1.msra.mxu0 0.0
      %3563 = vmatprep.subr.mxu0 0.0
      %3564 = vmatpush1.msra.mxu0 0.0
      %3565 = vmatprep.subr.mxu0 0.0
      %3566 = vmatpush1.msra.mxu0 0.0
      %3567 = vmatprep.subr.mxu0 0.0
      %3568 = vmatpush1.msra.mxu0 0.0
      %3569 = vmatprep.subr.mxu0 0.0
      %3570 = vmatpush1.msra.mxu0 0.0
      %3571 = vmatprep.subr.mxu0 0.0
      %3572 = vmatpush1.msra.mxu0 0.0
      %3573 = vmatprep.subr.mxu0 0.0
      %3574 = vmatpush1.msra.mxu0 0.0
      %3575 = vmatprep.subr.mxu0 0.0
      %3576 = vmatpush1.msra.mxu0 0.0
      %3577 = vmatprep.subr.mxu0 0.0
      %3578 = vmatpush1.msra.mxu0 0.0
      %3579 = vmatprep.subr.mxu0 0.0
      %3580 = vmatpush1.msra.mxu0 0.0
      %3581 = vmatprep.subr.mxu0 0.0
      %3582 = vmatpush1.msra.mxu0 0.0
      %3583 = vmatprep.subr.mxu0 0.0
      %3584 = vmatpush1.msra.mxu0 0.0
      %3585 = vmatprep.subr.mxu0 0.0
      %3586 = vmatpush1.msra.mxu0 0.0
      %3587 = vmatprep.subr.mxu0 0.0
      %3588 = vmatpush1.msra.mxu0 0.0
      %3589 = vmatprep.subr.mxu0 0.0
      %3590 = vmatpush1.msra.mxu0 0.0
      %3591 = vmatprep.subr.mxu0 0.0
      %3592 = vmatpush1.msra.mxu0 0.0
      %3593 = vmatprep.subr.mxu0 0.0
      %3594 = vmatpush1.msra.mxu0 0.0
      %3595 = vmatprep.subr.mxu0 0.0
      %3596 = vmatpush1.msra.mxu0 0.0
      %3597 = vmatprep.mubr.f32.mxu0 0.0
      %3598 = vmatmul.mubr.f32.gmra.mrb[0].mxu0 %v3438
      %v3599 = vpop.f32.mrb[0].mxu0
      %v3600 = vadd.f32 0.0, %v3599
      %v3601 = vpop.f32.mrb[0].mxu0
      %3602 = vmatprep.mubr.f32.mxu0 0.0
      %3603 = vmatmul.mubr.f32.gmra.mrb[0].mxu0 %v3441
      %v3604 = vpop.f32.mrb[0].mxu0
      %v3605 = vadd.f32 0.0, %v3604
      %v3606 = vpop.f32.mrb[0].mxu0
      %3607 = vmatprep.mubr.f32.mxu0 0.0
      %3608 = vmatmul.mubr.f32.gmra.mrb[0].mxu0 %v3444
      %v3609 = vpop.f32.mrb[0].mxu0
      %v3610 = vadd.f32 0.0, %v3609
      %v3611 = vpop.f32.mrb[0].mxu0
      %3612 = vmatprep.mubr.f32.mxu0 0.0
      %3613 = vmatmul.mubr.f32.gmra.mrb[0].mxu0 %v3447
      %v3614 = vpop.f32.mrb[0].mxu0
      %v3615 = vadd.f32 0.0, %v3614
      %v3616 = vpop.f32.mrb[0].mxu0
      %3617 = vmatprep.mubr.f32.mxu0 0.0
      %3618 = vmatmul.mubr.f32.gmra.mrb[0].mxu0 %v3450
      %v3619 = vpop.f32.mrb[0].mxu0
      %v3620 = vadd.f32 0.0, %v3619
      %v3621 = vpop.f32.mrb[0].mxu0
      %3622 = vmatprep.mubr.f32.mxu0 0.0
      %3623 = vmatmul.mubr.f32.gmra.mrb[0].mxu0 %v3453
      %v3624 = vpop.f32.mrb[0].mxu0
      %v3625 = vadd.f32 0.0, %v3624
      %v3626 = vpop.f32.mrb[0].mxu0
      %3627 = vmatprep.mubr.f32.mxu0 0.0
      %3628 = vmatmul.mubr.f32.gmra.mrb[0].mxu0 %v3456
      %v3629 = vpop.f32.mrb[0].mxu0
      %v3630 = vadd.f32 0.0, %v3629
      %v3631 = vpop.f32.mrb[0].mxu0
      %3632 = vmatprep.mubr.f32.mxu0 0.0
      %3633 = vmatmul.mubr.f32.gmra.mrb[0].mxu0 %v3459
      %v3634 = vpop.f32.mrb[0].mxu0
      %v3635 = vadd.f32 0.0, %v3634
      %v3636 = vpop.f32.mrb[0].mxu0
      %3637 = vmatprep.mubr.f32.mxu0 0.0
      %3638 = vmatmul.mubr.f32.gmra.mrb[0].mxu0 %v3462
      %v3639 = vpop.f32.mrb[0].mxu0
      %v3640 = vadd.f32 0.0, %v3639
      %v3641 = vpop.f32.mrb[0].mxu0
      %3642 = vmatprep.mubr.f32.mxu0 0.0
      %3643 = vmatmul.mubr.f32.gmra.mrb[0].mxu0 %v3465
      %v3644 = vpop.f32.mrb[0].mxu0
      %v3645 = vadd.f32 0.0, %v3644
      %v3646 = vpop.f32.mrb[0].mxu0
      %3647 = vmatprep.mubr.f32.mxu0 0.0
      %3648 = vmatmul.mubr.f32.gmra.mrb[0].mxu0 %v3468
      %v3649 = vpop.f32.mrb[0].mxu0
      %v3650 = vadd.f32 0.0, %v3649
      %v3651 = vpop.f32.mrb[0].mxu0
      %3652 = vmatprep.mubr.f32.mxu0 0.0
      %3653 = vmatmul.mubr.f32.gmra.mrb[0].mxu0 %v3471
      %v3654 = vpop.f32.mrb[0].mxu0
      %v3655 = vadd.f32 0.0, %v3654
      %v3656 = vpop.f32.mrb[0].mxu0
      %3657 = vmatprep.mubr.f32.mxu0 0.0
      %3658 = vmatmul.mubr.f32.gmra.mrb[0].mxu0 %v3474
      %v3659 = vpop.f32.mrb[0].mxu0
      %v3660 = vadd.f32 0.0, %v3659
      %v3661 = vpop.f32.mrb[0].mxu0
      %3662 = vmatprep.mubr.f32.mxu0 0.0
      %3663 = vmatmul.mubr.f32.gmra.mrb[0].mxu0 %v3477
      %v3664 = vpop.f32.mrb[0].mxu0
      %v3665 = vadd.f32 0.0, %v3664
      %v3666 = vpop.f32.mrb[0].mxu0
      %3667 = vmatprep.mubr.f32.mxu0 0.0
      %3668 = vmatmul.mubr.f32.gmra.mrb[0].mxu0 %v3480
      %v3669 = vpop.f32.mrb[0].mxu0
      %v3670 = vadd.f32 0.0, %v3669
      %v3671 = vpop.f32.mrb[0].mxu0
      %3672 = vmatprep.mubr.f32.mxu0 0.0
      %3673 = vmatmul.mubr.f32.gmra.mrb[0].mxu0 %v3483
      %v3674 = vpop.f32.mrb[0].mxu0
      %v3675 = vadd.f32 0.0, %v3674
      %v3676 = vpop.f32.mrb[0].mxu0
      %3677 = vmatprep.mubr.f32.mxu0 0.0
      %3678 = vmatmul.mubr.f32.gmra.mrb[0].mxu0 %v3486
      %v3679 = vpop.f32.mrb[0].mxu0
      %v3680 = vadd.f32 0.0, %v3679
      %v3681 = vpop.f32.mrb[0].mxu0
      %3682 = vmatprep.mubr.f32.mxu0 0.0
      %3683 = vmatmul.mubr.f32.gmra.mrb[0].mxu0 %v3489
      %v3684 = vpop.f32.mrb[0].mxu0
      %v3685 = vadd.f32 0.0, %v3684
      %v3686 = vpop.f32.mrb[0].mxu0
      %3687 = vmatprep.mubr.f32.mxu0 0.0
      %3688 = vmatmul.mubr.f32.gmra.mrb[0].mxu0 %v3492
      %v3689 = vpop.f32.mrb[0].mxu0
      %v3690 = vadd.f32 0.0, %v3689
      %v3691 = vpop.f32.mrb[0].mxu0
      %3692 = vmatprep.mubr.f32.mxu0 0.0
      %3693 = vmatmul.mubr.f32.gmra.mrb[0].mxu0 %v3495
      %v3694 = vpop.f32.mrb[0].mxu0
      %v3695 = vadd.f32 0.0, %v3694
      %v3696 = vpop.f32.mrb[0].mxu0
      %3697 = vmatprep.mubr.f32.mxu0 0.0
      %3698 = vmatmul.mubr.f32.gmra.mrb[0].mxu0 %v3498
      %v3699 = vpop.f32.mrb[0].mxu0
      %v3700 = vadd.f32 0.0, %v3699
      %v3701 = vpop.f32.mrb[0].mxu0
      %3702 = vmatprep.mubr.f32.mxu0 0.0
      %3703 = vmatmul.mubr.f32.gmra.mrb[0].mxu0 %v3501
      %v3704 = vpop.f32.mrb[0].mxu0
      %v3705 = vadd.f32 0.0, %v3704
      %v3706 = vpop.f32.mrb[0].mxu0
      %3707 = vmatprep.mubr.f32.mxu0 0.0
      %3708 = vmatmul.mubr.f32.gmra.mrb[0].mxu0 %v3504
      %v3709 = vpop.f32.mrb[0].mxu0
      %v3710 = vadd.f32 0.0, %v3709
      %v3711 = vpop.f32.mrb[0].mxu0
      %3712 = vmatprep.mubr.f32.mxu0 0.0
      %3713 = vmatmul.mubr.f32.gmra.mrb[0].mxu0 %v3507
      %v3714 = vpop.f32.mrb[0].mxu0
      %v3715 = vadd.f32 0.0, %v3714
      %v3716 = vpop.f32.mrb[0].mxu0
      %3717 = vmatprep.mubr.f32.mxu0 0.0
      %3718 = vmatmul.mubr.f32.gmra.mrb[0].mxu0 %v3510
      %v3719 = vpop.f32.mrb[0].mxu0
      %v3720 = vadd.f32 0.0, %v3719
      %v3721 = vpop.f32.mrb[0].mxu0
      %3722 = vmatprep.mubr.f32.mxu0 0.0
      %3723 = vmatmul.mubr.f32.gmra.mrb[0].mxu0 %v3513
      %v3724 = vpop.f32.mrb[0].mxu0
      %v3725 = vadd.f32 0.0, %v3724
      %v3726 = vpop.f32.mrb[0].mxu0
      %3727 = vmatprep.mubr.f32.mxu0 0.0
      %3728 = vmatmul.mubr.f32.gmra.mrb[0].mxu0 %v3516
      %v3729 = vpop.f32.mrb[0].mxu0
      %v3730 = vadd.f32 0.0, %v3729
      %v3731 = vpop.f32.mrb[0].mxu0
      %3732 = vmatprep.mubr.f32.mxu0 0.0
      %3733 = vmatmul.mubr.f32.gmra.mrb[0].mxu0 %v3519
      %v3734 = vpop.f32.mrb[0].mxu0
      %v3735 = vadd.f32 0.0, %v3734
      %v3736 = vpop.f32.mrb[0].mxu0
      %3737 = vmatprep.mubr.f32.mxu0 0.0
      %3738 = vmatmul.mubr.f32.gmra.mrb[0].mxu0 %v3522
      %v3739 = vpop.f32.mrb[0].mxu0
      %v3740 = vadd.f32 0.0, %v3739
      %v3741 = vpop.f32.mrb[0].mxu0
      %3742 = vmatprep.mubr.f32.mxu0 0.0
      %3743 = vmatmul.mubr.f32.gmra.mrb[0].mxu0 %v3525
      %v3744 = vpop.f32.mrb[0].mxu0
      %v3745 = vadd.f32 0.0, %v3744
      %v3746 = vpop.f32.mrb[0].mxu0
      %3747 = vmatprep.mubr.f32.mxu0 0.0
      %3748 = vmatmul.mubr.f32.gmra.mrb[0].mxu0 %v3528
      %v3749 = vpop.f32.mrb[0].mxu0
      %v3750 = vadd.f32 0.0, %v3749
      %v3751 = vpop.f32.mrb[0].mxu0
      %3752 = vmatprep.mubr.f32.mxu0 0.0
      %3753 = vmatmul.mubr.f32.gmra.mrb[0].mxu0 %v3531
      %v3754 = vpop.f32.mrb[0].mxu0
      %v3755 = vadd.f32 0.0, %v3754
      %v3756 = vpop.f32.mrb[0].mxu0
      %3757 = vdwg.mxu0
      %v3758 = vadd.f32 %v3371, %v3600
      %v3759 = vadd.f32 %v3372, %v3605
      %v3760 = vadd.f32 %v3373, %v3610
      %v3761 = vadd.f32 %v3374, %v3615
      %v3762 = vadd.f32 %v3375, %v3620
      %v3763 = vadd.f32 %v3376, %v3625
      %v3764 = vadd.f32 %v3377, %v3630
      %v3765 = vadd.f32 %v3378, %v3635
      %v3766 = vadd.f32 %v3379, %v3640
      %v3767 = vadd.f32 %v3380, %v3645
      %v3768 = vadd.f32 %v3381, %v3650
      %v3769 = vadd.f32 %v3382, %v3655
      %v3770 = vadd.f32 %v3383, %v3660
      %v3771 = vadd.f32 %v3384, %v3665
      %v3772 = vadd.f32 %v3385, %v3670
      %v3773 = vadd.f32 %v3386, %v3675
      %v3774 = vadd.f32 %v3387, %v3680
      %v3775 = vadd.f32 %v3388, %v3685
      %v3776 = vadd.f32 %v3389, %v3690
      %v3777 = vadd.f32 %v3390, %v3695
      %v3778 = vadd.f32 %v3391, %v3700
      %v3779 = vadd.f32 %v3392, %v3705
      %v3780 = vadd.f32 %v3393, %v3710
      %v3781 = vadd.f32 %v3394, %v3715
      %v3782 = vadd.f32 %v3395, %v3720
      %v3783 = vadd.f32 %v3396, %v3725
      %v3784 = vadd.f32 %v3397, %v3730
      %v3785 = vadd.f32 %v3398, %v3735
      %v3786 = vadd.f32 %v3399, %v3740
      %v3787 = vadd.f32 %v3400, %v3745
      %v3788 = vadd.f32 %v3401, %v3750
      %v3789 = vadd.f32 %v3402, %v3755
      %v3790 = vmax.f32 %v3758, 0.0
      %v3791 = vmax.f32 %v3759, 0.0
      %v3792 = vmax.f32 %v3760, 0.0
      %v3793 = vmax.f32 %v3761, 0.0
      %v3794 = vmax.f32 %v3762, 0.0
      %v3795 = vmax.f32 %v3763, 0.0
      %v3796 = vmax.f32 %v3764, 0.0
      %v3797 = vmax.f32 %v3765, 0.0
      %v3798 = vmax.f32 %v3766, 0.0
      %v3799 = vmax.f32 %v3767, 0.0
      %v3800 = vmax.f32 %v3768, 0.0
      %v3801 = vmax.f32 %v3769, 0.0
      %v3802 = vmax.f32 %v3770, 0.0
      %v3803 = vmax.f32 %v3771, 0.0
      %v3804 = vmax.f32 %v3772, 0.0
      %v3805 = vmax.f32 %v3773, 0.0
      %v3806 = vmax.f32 %v3774, 0.0
      %v3807 = vmax.f32 %v3775, 0.0
      %v3808 = vmax.f32 %v3776, 0.0
      %v3809 = vmax.f32 %v3777, 0.0
      %v3810 = vmax.f32 %v3778, 0.0
      %v3811 = vmax.f32 %v3779, 0.0
      %v3812 = vmax.f32 %v3780, 0.0
      %v3813 = vmax.f32 %v3781, 0.0
      %v3814 = vmax.f32 %v3782, 0.0
      %v3815 = vmax.f32 %v3783, 0.0
      %v3816 = vmax.f32 %v3784, 0.0
      %v3817 = vmax.f32 %v3785, 0.0
      %v3818 = vmax.f32 %v3786, 0.0
      %v3819 = vmax.f32 %v3787, 0.0
      %v3820 = vmax.f32 %v3788, 0.0
      %v3821 = vmax.f32 %v3789, 0.0
      %3822 = vst.msk [vmem:[%s234 + $0x1] sm:$0xff] %vm225, %v3790
      %3823 = vst.msk [vmem:[%s234 + $0x9] sm:$0xff] %vm225, %v3791
      %3824 = vst.msk [vmem:[%s234 + $0x19] sm:$0xff] %vm225, %v3792
      %3825 = vst.msk [vmem:[%s234 + $0x21] sm:$0xff] %vm225, %v3793
      %3826 = vst.msk [vmem:[%s234 + $0x31] sm:$0xff] %vm225, %v3794
      %3827 = vst.msk [vmem:[%s234 + $0x39] sm:$0xff] %vm225, %v3795
      %3828 = vst.msk [vmem:[%s234 + $0x49] sm:$0xff] %vm225, %v3796
      %3829 = vst.msk [vmem:[%s234 + $0x51] sm:$0xff] %vm225, %v3797
      %3830 = vst.msk [vmem:[%s234 + $0x61] sm:$0xff] %vm225, %v3798
      %3831 = vst.msk [vmem:[%s234 + $0x69] sm:$0xff] %vm225, %v3799
      %3832 = vst.msk [vmem:[%s234 + $0x79] sm:$0xff] %vm225, %v3800
      %3833 = vst.msk [vmem:[%s234 + $0x81] sm:$0xff] %vm225, %v3801
      %3834 = vst.msk [vmem:[%s234 + $0x91] sm:$0xff] %vm225, %v3802
      %3835 = vst.msk [vmem:[%s234 + $0x99] sm:$0xff] %vm225, %v3803
      %3836 = vst.msk [vmem:[%s234 + $0xa9] sm:$0xff] %vm225, %v3804
      %3837 = vst.msk [vmem:[%s234 + $0xb1] sm:$0xff] %vm225, %v3805
      %3838 = vst.msk [vmem:[%s234 + $0xc1] sm:$0xff] %vm225, %v3806
      %3839 = vst.msk [vmem:[%s234 + $0xc9] sm:$0xff] %vm225, %v3807
      %3840 = vst.msk [vmem:[%s234 + $0xd9] sm:$0xff] %vm225, %v3808
      %3841 = vst.msk [vmem:[%s234 + $0xe1] sm:$0xff] %vm225, %v3809
      %3842 = vst.msk [vmem:[%s234 + $0xf1] sm:$0xff] %vm225, %v3810
      %3843 = vst.msk [vmem:[%s234 + $0xf9] sm:$0xff] %vm225, %v3811
      %3844 = vst.msk [vmem:[%s234 + $0x109] sm:$0xff] %vm225, %v3812
      %3845 = vst.msk [vmem:[%s234 + $0x111] sm:$0xff] %vm225, %v3813
      %3846 = vst.msk [vmem:[%s234 + $0x121] sm:$0xff] %vm225, %v3814
      %3847 = vst.msk [vmem:[%s234 + $0x129] sm:$0xff] %vm225, %v3815
      %3848 = vst.msk [vmem:[%s234 + $0x139] sm:$0xff] %vm225, %v3816
      %3849 = vst.msk [vmem:[%s234 + $0x141] sm:$0xff] %vm225, %v3817
      %3850 = vst.msk [vmem:[%s234 + $0x151] sm:$0xff] %vm225, %v3818
      %3851 = vst.msk [vmem:[%s234 + $0x159] sm:$0xff] %vm225, %v3819
      %3852 = vst.msk [vmem:[%s234 + $0x169] sm:$0xff] %vm225, %v3820
      %3853 = vst.msk [vmem:[%s234 + $0x171] sm:$0xff] %vm225, %v3821
      %v3854 = vld [vmem:[#allocation2] sm:$0xff]
      %v3855 = vld [vmem:[#allocation2 + $0x8] sm:$0xff]
      %v3856 = vld [vmem:[#allocation2 + $0x18] sm:$0xff]
      %v3857 = vld [vmem:[#allocation2 + $0x20] sm:$0xff]
      %v3858 = vld [vmem:[#allocation2 + $0x30] sm:$0xff]
      %v3859 = vld [vmem:[#allocation2 + $0x38] sm:$0xff]
      %v3860 = vld [vmem:[#allocation2 + $0x48] sm:$0xff]
      %v3861 = vld [vmem:[#allocation2 + $0x50] sm:$0xff]
      %v3862 = vld [vmem:[#allocation2 + $0x60] sm:$0xff]
      %v3863 = vld [vmem:[#allocation2 + $0x68] sm:$0xff]
      %v3864 = vld [vmem:[#allocation2 + $0x78] sm:$0xff]
      %v3865 = vld [vmem:[#allocation2 + $0x80] sm:$0xff]
      %v3866 = vld [vmem:[#allocation2 + $0x90] sm:$0xff]
      %v3867 = vld [vmem:[#allocation2 + $0x98] sm:$0xff]
      %v3868 = vld [vmem:[#allocation2 + $0xa8] sm:$0xff]
      %v3869 = vld [vmem:[#allocation2 + $0xb0] sm:$0xff]
      %v3870 = vld [vmem:[#allocation2 + $0xc0] sm:$0xff]
      %v3871 = vld [vmem:[#allocation2 + $0xc8] sm:$0xff]
      %v3872 = vld [vmem:[#allocation2 + $0xd8] sm:$0xff]
      %v3873 = vld [vmem:[#allocation2 + $0xe0] sm:$0xff]
      %v3874 = vld [vmem:[#allocation2 + $0xf0] sm:$0xff]
      %v3875 = vld [vmem:[#allocation2 + $0xf8] sm:$0xff]
      %v3876 = vld [vmem:[#allocation2 + $0x108] sm:$0xff]
      %v3877 = vld [vmem:[#allocation2 + $0x110] sm:$0xff]
      %v3878 = vld [vmem:[#allocation2 + $0x120] sm:$0xff]
      %v3879 = vld [vmem:[#allocation2 + $0x128] sm:$0xff]
      %v3880 = vld [vmem:[#allocation2 + $0x138] sm:$0xff]
      %v3881 = vld [vmem:[#allocation2 + $0x140] sm:$0xff]
      %v3882 = vld [vmem:[#allocation2 + $0x150] sm:$0xff]
      %v3883 = vld [vmem:[#allocation2 + $0x158] sm:$0xff]
      %v3884 = vld [vmem:[#allocation2 + $0x168] sm:$0xff]
      %v3885 = vld [vmem:[#allocation2 + $0x170] sm:$0xff]
      %v3886 = vld [vmem:[%s3] sm:$0xff]
      %v3887 = vld [vmem:[%s4] sm:$0x1]
      %v3889 = vlaneseq
      %v3890 = vshrl.u32 %v3889, 7
      %v3891 = vsub.s32 0, %v3890
      %v3892 = vrot.slane %v3887, %v3891
      %v3895 = vsel %vm225, %v3854, 0
      %v3898 = vsel %vm225, %v3855, 0
      %v3901 = vsel %vm225, %v3856, 0
      %v3904 = vsel %vm225, %v3857, 0
      %v3907 = vsel %vm225, %v3858, 0
      %v3910 = vsel %vm225, %v3859, 0
      %v3913 = vsel %vm225, %v3860, 0
      %v3916 = vsel %vm225, %v3861, 0
      %v3919 = vsel %vm225, %v3862, 0
      %v3922 = vsel %vm225, %v3863, 0
      %v3925 = vsel %vm225, %v3864, 0
      %v3928 = vsel %vm225, %v3865, 0
      %v3931 = vsel %vm225, %v3866, 0
      %v3934 = vsel %vm225, %v3867, 0
      %v3937 = vsel %vm225, %v3868, 0
      %v3940 = vsel %vm225, %v3869, 0
      %v3943 = vsel %vm225, %v3870, 0
      %v3946 = vsel %vm225, %v3871, 0
      %v3949 = vsel %vm225, %v3872, 0
      %v3952 = vsel %vm225, %v3873, 0
      %v3955 = vsel %vm225, %v3874, 0
      %v3958 = vsel %vm225, %v3875, 0
      %v3961 = vsel %vm225, %v3876, 0
      %v3964 = vsel %vm225, %v3877, 0
      %v3967 = vsel %vm225, %v3878, 0
      %v3970 = vsel %vm225, %v3879, 0
      %v3973 = vsel %vm225, %v3880, 0
      %v3976 = vsel %vm225, %v3881, 0
      %v3979 = vsel %vm225, %v3882, 0
      %v3982 = vsel %vm225, %v3883, 0
      %v3985 = vsel %vm225, %v3884, 0
      %v3988 = vsel %vm225, %v3885, 0
      %3990 = vmatprep.subr.mxu0 0.0
      %3991 = vmatpush1.msra.mxu0 %v3886
      %3992 = vmatprep.subr.mxu0 0.0
      %3993 = vmatpush1.msra.mxu0 0.0
      %3994 = vmatprep.subr.mxu0 0.0
      %3995 = vmatpush1.msra.mxu0 0.0
      %3996 = vmatprep.subr.mxu0 0.0
      %3997 = vmatpush1.msra.mxu0 0.0
      %3998 = vmatprep.subr.mxu0 0.0
      %3999 = vmatpush1.msra.mxu0 0.0
      %4000 = vmatprep.subr.mxu0 0.0
      %4001 = vmatpush1.msra.mxu0 0.0
      %4002 = vmatprep.subr.mxu0 0.0
      %4003 = vmatpush1.msra.mxu0 0.0
      %4004 = vmatprep.subr.mxu0 0.0
      %4005 = vmatpush1.msra.mxu0 0.0
      %4006 = vmatprep.subr.mxu0 0.0
      %4007 = vmatpush1.msra.mxu0 0.0
      %4008 = vmatprep.subr.mxu0 0.0
      %4009 = vmatpush1.msra.mxu0 0.0
      %4010 = vmatprep.subr.mxu0 0.0
      %4011 = vmatpush1.msra.mxu0 0.0
      %4012 = vmatprep.subr.mxu0 0.0
      %4013 = vmatpush1.msra.mxu0 0.0
      %4014 = vmatprep.subr.mxu0 0.0
      %4015 = vmatpush1.msra.mxu0 0.0
      %4016 = vmatprep.subr.mxu0 0.0
      %4017 = vmatpush1.msra.mxu0 0.0
      %4018 = vmatprep.subr.mxu0 0.0
      %4019 = vmatpush1.msra.mxu0 0.0
      %4020 = vmatprep.subr.mxu0 0.0
      %4021 = vmatpush1.msra.mxu0 0.0
      %4022 = vmatprep.subr.mxu0 0.0
      %4023 = vmatpush1.msra.mxu0 0.0
      %4024 = vmatprep.subr.mxu0 0.0
      %4025 = vmatpush1.msra.mxu0 0.0
      %4026 = vmatprep.subr.mxu0 0.0
      %4027 = vmatpush1.msra.mxu0 0.0
      %4028 = vmatprep.subr.mxu0 0.0
      %4029 = vmatpush1.msra.mxu0 0.0
      %4030 = vmatprep.subr.mxu0 0.0
      %4031 = vmatpush1.msra.mxu0 0.0
      %4032 = vmatprep.subr.mxu0 0.0
      %4033 = vmatpush1.msra.mxu0 0.0
      %4034 = vmatprep.subr.mxu0 0.0
      %4035 = vmatpush1.msra.mxu0 0.0
      %4036 = vmatprep.subr.mxu0 0.0
      %4037 = vmatpush1.msra.mxu0 0.0
      %4038 = vmatprep.subr.mxu0 0.0
      %4039 = vmatpush1.msra.mxu0 0.0
      %4040 = vmatprep.subr.mxu0 0.0
      %4041 = vmatpush1.msra.mxu0 0.0
      %4042 = vmatprep.subr.mxu0 0.0
      %4043 = vmatpush1.msra.mxu0 0.0
      %4044 = vmatprep.subr.mxu0 0.0
      %4045 = vmatpush1.msra.mxu0 0.0
      %4046 = vmatprep.subr.mxu0 0.0
      %4047 = vmatpush1.msra.mxu0 0.0
      %4048 = vmatprep.subr.mxu0 0.0
      %4049 = vmatpush1.msra.mxu0 0.0
      %4050 = vmatprep.subr.mxu0 0.0
      %4051 = vmatpush1.msra.mxu0 0.0
      %4052 = vmatprep.subr.mxu0 0.0
      %4053 = vmatpush1.msra.mxu0 0.0
      %4054 = vmatprep.mubr.f32.mxu0 0.0
      %4055 = vmatmul.mubr.f32.gmra.mrb[0].mxu0 %v3895
      %v4056 = vpop.f32.mrb[0].mxu0
      %v4057 = vadd.f32 %v3892, %v4056
      %v4058 = vpop.f32.mrb[0].mxu0
      %4059 = vmatprep.mubr.f32.mxu0 0.0
      %4060 = vmatmul.mubr.f32.gmra.mrb[0].mxu0 %v3898
      %v4061 = vpop.f32.mrb[0].mxu0
      %v4062 = vadd.f32 %v3892, %v4061
      %v4063 = vpop.f32.mrb[0].mxu0
      %4064 = vmatprep.mubr.f32.mxu0 0.0
      %4065 = vmatmul.mubr.f32.gmra.mrb[0].mxu0 %v3901
      %v4066 = vpop.f32.mrb[0].mxu0
      %v4067 = vadd.f32 %v3892, %v4066
      %v4068 = vpop.f32.mrb[0].mxu0
      %4069 = vmatprep.mubr.f32.mxu0 0.0
      %4070 = vmatmul.mubr.f32.gmra.mrb[0].mxu0 %v3904
      %v4071 = vpop.f32.mrb[0].mxu0
      %v4072 = vadd.f32 %v3892, %v4071
      %v4073 = vpop.f32.mrb[0].mxu0
      %4074 = vmatprep.mubr.f32.mxu0 0.0
      %4075 = vmatmul.mubr.f32.gmra.mrb[0].mxu0 %v3907
      %v4076 = vpop.f32.mrb[0].mxu0
      %v4077 = vadd.f32 %v3892, %v4076
      %v4078 = vpop.f32.mrb[0].mxu0
      %4079 = vmatprep.mubr.f32.mxu0 0.0
      %4080 = vmatmul.mubr.f32.gmra.mrb[0].mxu0 %v3910
      %v4081 = vpop.f32.mrb[0].mxu0
      %v4082 = vadd.f32 %v3892, %v4081
      %v4083 = vpop.f32.mrb[0].mxu0
      %4084 = vmatprep.mubr.f32.mxu0 0.0
      %4085 = vmatmul.mubr.f32.gmra.mrb[0].mxu0 %v3913
      %v4086 = vpop.f32.mrb[0].mxu0
      %v4087 = vadd.f32 %v3892, %v4086
      %v4088 = vpop.f32.mrb[0].mxu0
      %4089 = vmatprep.mubr.f32.mxu0 0.0
      %4090 = vmatmul.mubr.f32.gmra.mrb[0].mxu0 %v3916
      %v4091 = vpop.f32.mrb[0].mxu0
      %v4092 = vadd.f32 %v3892, %v4091
      %v4093 = vpop.f32.mrb[0].mxu0
      %4094 = vmatprep.mubr.f32.mxu0 0.0
      %4095 = vmatmul.mubr.f32.gmra.mrb[0].mxu0 %v3919
      %v4096 = vpop.f32.mrb[0].mxu0
      %v4097 = vadd.f32 %v3892, %v4096
      %v4098 = vpop.f32.mrb[0].mxu0
      %4099 = vmatprep.mubr.f32.mxu0 0.0
      %4100 = vmatmul.mubr.f32.gmra.mrb[0].mxu0 %v3922
      %v4101 = vpop.f32.mrb[0].mxu0
      %v4102 = vadd.f32 %v3892, %v4101
      %v4103 = vpop.f32.mrb[0].mxu0
      %4104 = vmatprep.mubr.f32.mxu0 0.0
      %4105 = vmatmul.mubr.f32.gmra.mrb[0].mxu0 %v3925
      %v4106 = vpop.f32.mrb[0].mxu0
      %v4107 = vadd.f32 %v3892, %v4106
      %v4108 = vpop.f32.mrb[0].mxu0
      %4109 = vmatprep.mubr.f32.mxu0 0.0
      %4110 = vmatmul.mubr.f32.gmra.mrb[0].mxu0 %v3928
      %v4111 = vpop.f32.mrb[0].mxu0
      %v4112 = vadd.f32 %v3892, %v4111
      %v4113 = vpop.f32.mrb[0].mxu0
      %4114 = vmatprep.mubr.f32.mxu0 0.0
      %4115 = vmatmul.mubr.f32.gmra.mrb[0].mxu0 %v3931
      %v4116 = vpop.f32.mrb[0].mxu0
      %v4117 = vadd.f32 %v3892, %v4116
      %v4118 = vpop.f32.mrb[0].mxu0
      %4119 = vmatprep.mubr.f32.mxu0 0.0
      %4120 = vmatmul.mubr.f32.gmra.mrb[0].mxu0 %v3934
      %v4121 = vpop.f32.mrb[0].mxu0
      %v4122 = vadd.f32 %v3892, %v4121
      %v4123 = vpop.f32.mrb[0].mxu0
      %4124 = vmatprep.mubr.f32.mxu0 0.0
      %4125 = vmatmul.mubr.f32.gmra.mrb[0].mxu0 %v3937
      %v4126 = vpop.f32.mrb[0].mxu0
      %v4127 = vadd.f32 %v3892, %v4126
      %v4128 = vpop.f32.mrb[0].mxu0
      %4129 = vmatprep.mubr.f32.mxu0 0.0
      %4130 = vmatmul.mubr.f32.gmra.mrb[0].mxu0 %v3940
      %v4131 = vpop.f32.mrb[0].mxu0
      %v4132 = vadd.f32 %v3892, %v4131
      %v4133 = vpop.f32.mrb[0].mxu0
      %4134 = vmatprep.mubr.f32.mxu0 0.0
      %4135 = vmatmul.mubr.f32.gmra.mrb[0].mxu0 %v3943
      %v4136 = vpop.f32.mrb[0].mxu0
      %v4137 = vadd.f32 %v3892, %v4136
      %v4138 = vpop.f32.mrb[0].mxu0
      %4139 = vmatprep.mubr.f32.mxu0 0.0
      %4140 = vmatmul.mubr.f32.gmra.mrb[0].mxu0 %v3946
      %v4141 = vpop.f32.mrb[0].mxu0
      %v4142 = vadd.f32 %v3892, %v4141
      %v4143 = vpop.f32.mrb[0].mxu0
      %4144 = vmatprep.mubr.f32.mxu0 0.0
      %4145 = vmatmul.mubr.f32.gmra.mrb[0].mxu0 %v3949
      %v4146 = vpop.f32.mrb[0].mxu0
      %v4147 = vadd.f32 %v3892, %v4146
      %v4148 = vpop.f32.mrb[0].mxu0
      %4149 = vmatprep.mubr.f32.mxu0 0.0
      %4150 = vmatmul.mubr.f32.gmra.mrb[0].mxu0 %v3952
      %v4151 = vpop.f32.mrb[0].mxu0
      %v4152 = vadd.f32 %v3892, %v4151
      %v4153 = vpop.f32.mrb[0].mxu0
      %4154 = vmatprep.mubr.f32.mxu0 0.0
      %4155 = vmatmul.mubr.f32.gmra.mrb[0].mxu0 %v3955
      %v4156 = vpop.f32.mrb[0].mxu0
      %v4157 = vadd.f32 %v3892, %v4156
      %v4158 = vpop.f32.mrb[0].mxu0
      %4159 = vmatprep.mubr.f32.mxu0 0.0
      %4160 = vmatmul.mubr.f32.gmra.mrb[0].mxu0 %v3958
      %v4161 = vpop.f32.mrb[0].mxu0
      %v4162 = vadd.f32 %v3892, %v4161
      %v4163 = vpop.f32.mrb[0].mxu0
      %4164 = vmatprep.mubr.f32.mxu0 0.0
      %4165 = vmatmul.mubr.f32.gmra.mrb[0].mxu0 %v3961
      %v4166 = vpop.f32.mrb[0].mxu0
      %v4167 = vadd.f32 %v3892, %v4166
      %v4168 = vpop.f32.mrb[0].mxu0
      %4169 = vmatprep.mubr.f32.mxu0 0.0
      %4170 = vmatmul.mubr.f32.gmra.mrb[0].mxu0 %v3964
      %v4171 = vpop.f32.mrb[0].mxu0
      %v4172 = vadd.f32 %v3892, %v4171
      %v4173 = vpop.f32.mrb[0].mxu0
      %4174 = vmatprep.mubr.f32.mxu0 0.0
      %4175 = vmatmul.mubr.f32.gmra.mrb[0].mxu0 %v3967
      %v4176 = vpop.f32.mrb[0].mxu0
      %v4177 = vadd.f32 %v3892, %v4176
      %v4178 = vpop.f32.mrb[0].mxu0
      %4179 = vmatprep.mubr.f32.mxu0 0.0
      %4180 = vmatmul.mubr.f32.gmra.mrb[0].mxu0 %v3970
      %v4181 = vpop.f32.mrb[0].mxu0
      %v4182 = vadd.f32 %v3892, %v4181
      %v4183 = vpop.f32.mrb[0].mxu0
      %4184 = vmatprep.mubr.f32.mxu0 0.0
      %4185 = vmatmul.mubr.f32.gmra.mrb[0].mxu0 %v3973
      %v4186 = vpop.f32.mrb[0].mxu0
      %v4187 = vadd.f32 %v3892, %v4186
      %v4188 = vpop.f32.mrb[0].mxu0
      %4189 = vmatprep.mubr.f32.mxu0 0.0
      %4190 = vmatmul.mubr.f32.gmra.mrb[0].mxu0 %v3976
      %v4191 = vpop.f32.mrb[0].mxu0
      %v4192 = vadd.f32 %v3892, %v4191
      %v4193 = vpop.f32.mrb[0].mxu0
      %4194 = vmatprep.mubr.f32.mxu0 0.0
      %4195 = vmatmul.mubr.f32.gmra.mrb[0].mxu0 %v3979
      %v4196 = vpop.f32.mrb[0].mxu0
      %v4197 = vadd.f32 %v3892, %v4196
      %v4198 = vpop.f32.mrb[0].mxu0
      %4199 = vmatprep.mubr.f32.mxu0 0.0
      %4200 = vmatmul.mubr.f32.gmra.mrb[0].mxu0 %v3982
      %v4201 = vpop.f32.mrb[0].mxu0
      %v4202 = vadd.f32 %v3892, %v4201
      %v4203 = vpop.f32.mrb[0].mxu0
      %4204 = vmatprep.mubr.f32.mxu0 0.0
      %4205 = vmatmul.mubr.f32.gmra.mrb[0].mxu0 %v3985
      %v4206 = vpop.f32.mrb[0].mxu0
      %v4207 = vadd.f32 %v3892, %v4206
      %v4208 = vpop.f32.mrb[0].mxu0
      %4209 = vmatprep.mubr.f32.mxu0 0.0
      %4210 = vmatmul.mubr.f32.gmra.mrb[0].mxu0 %v3988
      %v4211 = vpop.f32.mrb[0].mxu0
      %v4212 = vadd.f32 %v3892, %v4211
      %v4213 = vpop.f32.mrb[0].mxu0
      %4214 = vdwg.mxu0
      %v4215 = vld [vmem:[#allocation2 + $0x1] sm:$0xff]
      %v4216 = vld [vmem:[#allocation2 + $0x9] sm:$0xff]
      %v4217 = vld [vmem:[#allocation2 + $0x19] sm:$0xff]
      %v4218 = vld [vmem:[#allocation2 + $0x21] sm:$0xff]
      %v4219 = vld [vmem:[#allocation2 + $0x31] sm:$0xff]
      %v4220 = vld [vmem:[#allocation2 + $0x39] sm:$0xff]
      %v4221 = vld [vmem:[#allocation2 + $0x49] sm:$0xff]
      %v4222 = vld [vmem:[#allocation2 + $0x51] sm:$0xff]
      %v4223 = vld [vmem:[#allocation2 + $0x61] sm:$0xff]
      %v4224 = vld [vmem:[#allocation2 + $0x69] sm:$0xff]
      %v4225 = vld [vmem:[#allocation2 + $0x79] sm:$0xff]
      %v4226 = vld [vmem:[#allocation2 + $0x81] sm:$0xff]
      %v4227 = vld [vmem:[#allocation2 + $0x91] sm:$0xff]
      %v4228 = vld [vmem:[#allocation2 + $0x99] sm:$0xff]
      %v4229 = vld [vmem:[#allocation2 + $0xa9] sm:$0xff]
      %v4230 = vld [vmem:[#allocation2 + $0xb1] sm:$0xff]
      %v4231 = vld [vmem:[#allocation2 + $0xc1] sm:$0xff]
      %v4232 = vld [vmem:[#allocation2 + $0xc9] sm:$0xff]
      %v4233 = vld [vmem:[#allocation2 + $0xd9] sm:$0xff]
      %v4234 = vld [vmem:[#allocation2 + $0xe1] sm:$0xff]
      %v4235 = vld [vmem:[#allocation2 + $0xf1] sm:$0xff]
      %v4236 = vld [vmem:[#allocation2 + $0xf9] sm:$0xff]
      %v4237 = vld [vmem:[#allocation2 + $0x109] sm:$0xff]
      %v4238 = vld [vmem:[#allocation2 + $0x111] sm:$0xff]
      %v4239 = vld [vmem:[#allocation2 + $0x121] sm:$0xff]
      %v4240 = vld [vmem:[#allocation2 + $0x129] sm:$0xff]
      %v4241 = vld [vmem:[#allocation2 + $0x139] sm:$0xff]
      %v4242 = vld [vmem:[#allocation2 + $0x141] sm:$0xff]
      %v4243 = vld [vmem:[#allocation2 + $0x151] sm:$0xff]
      %v4244 = vld [vmem:[#allocation2 + $0x159] sm:$0xff]
      %v4245 = vld [vmem:[#allocation2 + $0x169] sm:$0xff]
      %v4246 = vld [vmem:[#allocation2 + $0x171] sm:$0xff]
      %s4247 = scalar_lea.vmem %s3, 8
      %v4248 = vld [vmem:[%s4247] sm:$0xff]
      %v4250 = vsel %vm225, %v4215, 0
      %v4253 = vsel %vm225, %v4216, 0
      %v4256 = vsel %vm225, %v4217, 0
      %v4259 = vsel %vm225, %v4218, 0
      %v4262 = vsel %vm225, %v4219, 0
      %v4265 = vsel %vm225, %v4220, 0
      %v4268 = vsel %vm225, %v4221, 0
      %v4271 = vsel %vm225, %v4222, 0
      %v4274 = vsel %vm225, %v4223, 0
      %v4277 = vsel %vm225, %v4224, 0
      %v4280 = vsel %vm225, %v4225, 0
      %v4283 = vsel %vm225, %v4226, 0
      %v4286 = vsel %vm225, %v4227, 0
      %v4289 = vsel %vm225, %v4228, 0
      %v4292 = vsel %vm225, %v4229, 0
      %v4295 = vsel %vm225, %v4230, 0
      %v4298 = vsel %vm225, %v4231, 0
      %v4301 = vsel %vm225, %v4232, 0
      %v4304 = vsel %vm225, %v4233, 0
      %v4307 = vsel %vm225, %v4234, 0
      %v4310 = vsel %vm225, %v4235, 0
      %v4313 = vsel %vm225, %v4236, 0
      %v4316 = vsel %vm225, %v4237, 0
      %v4319 = vsel %vm225, %v4238, 0
      %v4322 = vsel %vm225, %v4239, 0
      %v4325 = vsel %vm225, %v4240, 0
      %v4328 = vsel %vm225, %v4241, 0
      %v4331 = vsel %vm225, %v4242, 0
      %v4334 = vsel %vm225, %v4243, 0
      %v4337 = vsel %vm225, %v4244, 0
      %v4340 = vsel %vm225, %v4245, 0
      %v4343 = vsel %vm225, %v4246, 0
      %4345 = vmatprep.subr.mxu0 0.0
      %4346 = vmatpush1.msra.mxu0 %v4248
      %4347 = vmatprep.subr.mxu0 0.0
      %4348 = vmatpush1.msra.mxu0 0.0
      %4349 = vmatprep.subr.mxu0 0.0
      %4350 = vmatpush1.msra.mxu0 0.0
      %4351 = vmatprep.subr.mxu0 0.0
      %4352 = vmatpush1.msra.mxu0 0.0
      %4353 = vmatprep.subr.mxu0 0.0
      %4354 = vmatpush1.msra.mxu0 0.0
      %4355 = vmatprep.subr.mxu0 0.0
      %4356 = vmatpush1.msra.mxu0 0.0
      %4357 = vmatprep.subr.mxu0 0.0
      %4358 = vmatpush1.msra.mxu0 0.0
      %4359 = vmatprep.subr.mxu0 0.0
      %4360 = vmatpush1.msra.mxu0 0.0
      %4361 = vmatprep.subr.mxu0 0.0
      %4362 = vmatpush1.msra.mxu0 0.0
      %4363 = vmatprep.subr.mxu0 0.0
      %4364 = vmatpush1.msra.mxu0 0.0
      %4365 = vmatprep.subr.mxu0 0.0
      %4366 = vmatpush1.msra.mxu0 0.0
      %4367 = vmatprep.subr.mxu0 0.0
      %4368 = vmatpush1.msra.mxu0 0.0
      %4369 = vmatprep.subr.mxu0 0.0
      %4370 = vmatpush1.msra.mxu0 0.0
      %4371 = vmatprep.subr.mxu0 0.0
      %4372 = vmatpush1.msra.mxu0 0.0
      %4373 = vmatprep.subr.mxu0 0.0
      %4374 = vmatpush1.msra.mxu0 0.0
      %4375 = vmatprep.subr.mxu0 0.0
      %4376 = vmatpush1.msra.mxu0 0.0
      %4377 = vmatprep.subr.mxu0 0.0
      %4378 = vmatpush1.msra.mxu0 0.0
      %4379 = vmatprep.subr.mxu0 0.0
      %4380 = vmatpush1.msra.mxu0 0.0
      %4381 = vmatprep.subr.mxu0 0.0
      %4382 = vmatpush1.msra.mxu0 0.0
      %4383 = vmatprep.subr.mxu0 0.0
      %4384 = vmatpush1.msra.mxu0 0.0
      %4385 = vmatprep.subr.mxu0 0.0
      %4386 = vmatpush1.msra.mxu0 0.0
      %4387 = vmatprep.subr.mxu0 0.0
      %4388 = vmatpush1.msra.mxu0 0.0
      %4389 = vmatprep.subr.mxu0 0.0
      %4390 = vmatpush1.msra.mxu0 0.0
      %4391 = vmatprep.subr.mxu0 0.0
      %4392 = vmatpush1.msra.mxu0 0.0
      %4393 = vmatprep.subr.mxu0 0.0
      %4394 = vmatpush1.msra.mxu0 0.0
      %4395 = vmatprep.subr.mxu0 0.0
      %4396 = vmatpush1.msra.mxu0 0.0
      %4397 = vmatprep.subr.mxu0 0.0
      %4398 = vmatpush1.msra.mxu0 0.0
      %4399 = vmatprep.subr.mxu0 0.0
      %4400 = vmatpush1.msra.mxu0 0.0
      %4401 = vmatprep.subr.mxu0 0.0
      %4402 = vmatpush1.msra.mxu0 0.0
      %4403 = vmatprep.subr.mxu0 0.0
      %4404 = vmatpush1.msra.mxu0 0.0
      %4405 = vmatprep.subr.mxu0 0.0
      %4406 = vmatpush1.msra.mxu0 0.0
      %4407 = vmatprep.subr.mxu0 0.0
      %4408 = vmatpush1.msra.mxu0 0.0
      %4409 = vmatprep.mubr.f32.mxu0 0.0
      %4410 = vmatmul.mubr.f32.gmra.mrb[0].mxu0 %v4250
      %v4411 = vpop.f32.mrb[0].mxu0
      %v4412 = vadd.f32 0.0, %v4411
      %v4413 = vpop.f32.mrb[0].mxu0
      %4414 = vmatprep.mubr.f32.mxu0 0.0
      %4415 = vmatmul.mubr.f32.gmra.mrb[0].mxu0 %v4253
      %v4416 = vpop.f32.mrb[0].mxu0
      %v4417 = vadd.f32 0.0, %v4416
      %v4418 = vpop.f32.mrb[0].mxu0
      %4419 = vmatprep.mubr.f32.mxu0 0.0
      %4420 = vmatmul.mubr.f32.gmra.mrb[0].mxu0 %v4256
      %v4421 = vpop.f32.mrb[0].mxu0
      %v4422 = vadd.f32 0.0, %v4421
      %v4423 = vpop.f32.mrb[0].mxu0
      %4424 = vmatprep.mubr.f32.mxu0 0.0
      %4425 = vmatmul.mubr.f32.gmra.mrb[0].mxu0 %v4259
      %v4426 = vpop.f32.mrb[0].mxu0
      %v4427 = vadd.f32 0.0, %v4426
      %v4428 = vpop.f32.mrb[0].mxu0
      %4429 = vmatprep.mubr.f32.mxu0 0.0
      %4430 = vmatmul.mubr.f32.gmra.mrb[0].mxu0 %v4262
      %v4431 = vpop.f32.mrb[0].mxu0
      %v4432 = vadd.f32 0.0, %v4431
      %v4433 = vpop.f32.mrb[0].mxu0
      %4434 = vmatprep.mubr.f32.mxu0 0.0
      %4435 = vmatmul.mubr.f32.gmra.mrb[0].mxu0 %v4265
      %v4436 = vpop.f32.mrb[0].mxu0
      %v4437 = vadd.f32 0.0, %v4436
      %v4438 = vpop.f32.mrb[0].mxu0
      %4439 = vmatprep.mubr.f32.mxu0 0.0
      %4440 = vmatmul.mubr.f32.gmra.mrb[0].mxu0 %v4268
      %v4441 = vpop.f32.mrb[0].mxu0
      %v4442 = vadd.f32 0.0, %v4441
      %v4443 = vpop.f32.mrb[0].mxu0
      %4444 = vmatprep.mubr.f32.mxu0 0.0
      %4445 = vmatmul.mubr.f32.gmra.mrb[0].mxu0 %v4271
      %v4446 = vpop.f32.mrb[0].mxu0
      %v4447 = vadd.f32 0.0, %v4446
      %v4448 = vpop.f32.mrb[0].mxu0
      %4449 = vmatprep.mubr.f32.mxu0 0.0
      %4450 = vmatmul.mubr.f32.gmra.mrb[0].mxu0 %v4274
      %v4451 = vpop.f32.mrb[0].mxu0
      %v4452 = vadd.f32 0.0, %v4451
      %v4453 = vpop.f32.mrb[0].mxu0
      %4454 = vmatprep.mubr.f32.mxu0 0.0
      %4455 = vmatmul.mubr.f32.gmra.mrb[0].mxu0 %v4277
      %v4456 = vpop.f32.mrb[0].mxu0
      %v4457 = vadd.f32 0.0, %v4456
      %v4458 = vpop.f32.mrb[0].mxu0
      %4459 = vmatprep.mubr.f32.mxu0 0.0
      %4460 = vmatmul.mubr.f32.gmra.mrb[0].mxu0 %v4280
      %v4461 = vpop.f32.mrb[0].mxu0
      %v4462 = vadd.f32 0.0, %v4461
      %v4463 = vpop.f32.mrb[0].mxu0
      %4464 = vmatprep.mubr.f32.mxu0 0.0
      %4465 = vmatmul.mubr.f32.gmra.mrb[0].mxu0 %v4283
      %v4466 = vpop.f32.mrb[0].mxu0
      %v4467 = vadd.f32 0.0, %v4466
      %v4468 = vpop.f32.mrb[0].mxu0
      %4469 = vmatprep.mubr.f32.mxu0 0.0
      %4470 = vmatmul.mubr.f32.gmra.mrb[0].mxu0 %v4286
      %v4471 = vpop.f32.mrb[0].mxu0
      %v4472 = vadd.f32 0.0, %v4471
      %v4473 = vpop.f32.mrb[0].mxu0
      %4474 = vmatprep.mubr.f32.mxu0 0.0
      %4475 = vmatmul.mubr.f32.gmra.mrb[0].mxu0 %v4289
      %v4476 = vpop.f32.mrb[0].mxu0
      %v4477 = vadd.f32 0.0, %v4476
      %v4478 = vpop.f32.mrb[0].mxu0
      %4479 = vmatprep.mubr.f32.mxu0 0.0
      %4480 = vmatmul.mubr.f32.gmra.mrb[0].mxu0 %v4292
      %v4481 = vpop.f32.mrb[0].mxu0
      %v4482 = vadd.f32 0.0, %v4481
      %v4483 = vpop.f32.mrb[0].mxu0
      %4484 = vmatprep.mubr.f32.mxu0 0.0
      %4485 = vmatmul.mubr.f32.gmra.mrb[0].mxu0 %v4295
      %v4486 = vpop.f32.mrb[0].mxu0
      %v4487 = vadd.f32 0.0, %v4486
      %v4488 = vpop.f32.mrb[0].mxu0
      %4489 = vmatprep.mubr.f32.mxu0 0.0
      %4490 = vmatmul.mubr.f32.gmra.mrb[0].mxu0 %v4298
      %v4491 = vpop.f32.mrb[0].mxu0
      %v4492 = vadd.f32 0.0, %v4491
      %v4493 = vpop.f32.mrb[0].mxu0
      %4494 = vmatprep.mubr.f32.mxu0 0.0
      %4495 = vmatmul.mubr.f32.gmra.mrb[0].mxu0 %v4301
      %v4496 = vpop.f32.mrb[0].mxu0
      %v4497 = vadd.f32 0.0, %v4496
      %v4498 = vpop.f32.mrb[0].mxu0
      %4499 = vmatprep.mubr.f32.mxu0 0.0
      %4500 = vmatmul.mubr.f32.gmra.mrb[0].mxu0 %v4304
      %v4501 = vpop.f32.mrb[0].mxu0
      %v4502 = vadd.f32 0.0, %v4501
      %v4503 = vpop.f32.mrb[0].mxu0
      %4504 = vmatprep.mubr.f32.mxu0 0.0
      %4505 = vmatmul.mubr.f32.gmra.mrb[0].mxu0 %v4307
      %v4506 = vpop.f32.mrb[0].mxu0
      %v4507 = vadd.f32 0.0, %v4506
      %v4508 = vpop.f32.mrb[0].mxu0
      %4509 = vmatprep.mubr.f32.mxu0 0.0
      %4510 = vmatmul.mubr.f32.gmra.mrb[0].mxu0 %v4310
      %v4511 = vpop.f32.mrb[0].mxu0
      %v4512 = vadd.f32 0.0, %v4511
      %v4513 = vpop.f32.mrb[0].mxu0
      %4514 = vmatprep.mubr.f32.mxu0 0.0
      %4515 = vmatmul.mubr.f32.gmra.mrb[0].mxu0 %v4313
      %v4516 = vpop.f32.mrb[0].mxu0
      %v4517 = vadd.f32 0.0, %v4516
      %v4518 = vpop.f32.mrb[0].mxu0
      %4519 = vmatprep.mubr.f32.mxu0 0.0
      %4520 = vmatmul.mubr.f32.gmra.mrb[0].mxu0 %v4316
      %v4521 = vpop.f32.mrb[0].mxu0
      %v4522 = vadd.f32 0.0, %v4521
      %v4523 = vpop.f32.mrb[0].mxu0
      %4524 = vmatprep.mubr.f32.mxu0 0.0
      %4525 = vmatmul.mubr.f32.gmra.mrb[0].mxu0 %v4319
      %v4526 = vpop.f32.mrb[0].mxu0
      %v4527 = vadd.f32 0.0, %v4526
      %v4528 = vpop.f32.mrb[0].mxu0
      %4529 = vmatprep.mubr.f32.mxu0 0.0
      %4530 = vmatmul.mubr.f32.gmra.mrb[0].mxu0 %v4322
      %v4531 = vpop.f32.mrb[0].mxu0
      %v4532 = vadd.f32 0.0, %v4531
      %v4533 = vpop.f32.mrb[0].mxu0
      %4534 = vmatprep.mubr.f32.mxu0 0.0
      %4535 = vmatmul.mubr.f32.gmra.mrb[0].mxu0 %v4325
      %v4536 = vpop.f32.mrb[0].mxu0
      %v4537 = vadd.f32 0.0, %v4536
      %v4538 = vpop.f32.mrb[0].mxu0
      %4539 = vmatprep.mubr.f32.mxu0 0.0
      %4540 = vmatmul.mubr.f32.gmra.mrb[0].mxu0 %v4328
      %v4541 = vpop.f32.mrb[0].mxu0
      %v4542 = vadd.f32 0.0, %v4541
      %v4543 = vpop.f32.mrb[0].mxu0
      %4544 = vmatprep.mubr.f32.mxu0 0.0
      %4545 = vmatmul.mubr.f32.gmra.mrb[0].mxu0 %v4331
      %v4546 = vpop.f32.mrb[0].mxu0
      %v4547 = vadd.f32 0.0, %v4546
      %v4548 = vpop.f32.mrb[0].mxu0
      %4549 = vmatprep.mubr.f32.mxu0 0.0
      %4550 = vmatmul.mubr.f32.gmra.mrb[0].mxu0 %v4334
      %v4551 = vpop.f32.mrb[0].mxu0
      %v4552 = vadd.f32 0.0, %v4551
      %v4553 = vpop.f32.mrb[0].mxu0
      %4554 = vmatprep.mubr.f32.mxu0 0.0
      %4555 = vmatmul.mubr.f32.gmra.mrb[0].mxu0 %v4337
      %v4556 = vpop.f32.mrb[0].mxu0
      %v4557 = vadd.f32 0.0, %v4556
      %v4558 = vpop.f32.mrb[0].mxu0
      %4559 = vmatprep.mubr.f32.mxu0 0.0
      %4560 = vmatmul.mubr.f32.gmra.mrb[0].mxu0 %v4340
      %v4561 = vpop.f32.mrb[0].mxu0
      %v4562 = vadd.f32 0.0, %v4561
      %v4563 = vpop.f32.mrb[0].mxu0
      %4564 = vmatprep.mubr.f32.mxu0 0.0
      %4565 = vmatmul.mubr.f32.gmra.mrb[0].mxu0 %v4343
      %v4566 = vpop.f32.mrb[0].mxu0
      %v4567 = vadd.f32 0.0, %v4566
      %v4568 = vpop.f32.mrb[0].mxu0
      %4569 = vdwg.mxu0
      %v4570 = vadd.f32 %v4057, %v4412
      %v4571 = vadd.f32 %v4062, %v4417
      %v4572 = vadd.f32 %v4067, %v4422
      %v4573 = vadd.f32 %v4072, %v4427
      %v4574 = vadd.f32 %v4077, %v4432
      %v4575 = vadd.f32 %v4082, %v4437
      %v4576 = vadd.f32 %v4087, %v4442
      %v4577 = vadd.f32 %v4092, %v4447
      %v4578 = vadd.f32 %v4097, %v4452
      %v4579 = vadd.f32 %v4102, %v4457
      %v4580 = vadd.f32 %v4107, %v4462
      %v4581 = vadd.f32 %v4112, %v4467
      %v4582 = vadd.f32 %v4117, %v4472
      %v4583 = vadd.f32 %v4122, %v4477
      %v4584 = vadd.f32 %v4127, %v4482
      %v4585 = vadd.f32 %v4132, %v4487
      %v4586 = vadd.f32 %v4137, %v4492
      %v4587 = vadd.f32 %v4142, %v4497
      %v4588 = vadd.f32 %v4147, %v4502
      %v4589 = vadd.f32 %v4152, %v4507
      %v4590 = vadd.f32 %v4157, %v4512
      %v4591 = vadd.f32 %v4162, %v4517
      %v4592 = vadd.f32 %v4167, %v4522
      %v4593 = vadd.f32 %v4172, %v4527
      %v4594 = vadd.f32 %v4177, %v4532
      %v4595 = vadd.f32 %v4182, %v4537
      %v4596 = vadd.f32 %v4187, %v4542
      %v4597 = vadd.f32 %v4192, %v4547
      %v4598 = vadd.f32 %v4197, %v4552
      %v4599 = vadd.f32 %v4202, %v4557
      %v4600 = vadd.f32 %v4207, %v4562
      %v4601 = vadd.f32 %v4212, %v4567
      %v4602 = vld [vmem:[#allocation2 + $0x2] sm:$0xff]
      %v4603 = vld [vmem:[#allocation2 + $0xa] sm:$0xff]
      %v4604 = vld [vmem:[#allocation2 + $0x1a] sm:$0xff]
      %v4605 = vld [vmem:[#allocation2 + $0x22] sm:$0xff]
      %v4606 = vld [vmem:[#allocation2 + $0x32] sm:$0xff]
      %v4607 = vld [vmem:[#allocation2 + $0x3a] sm:$0xff]
      %v4608 = vld [vmem:[#allocation2 + $0x4a] sm:$0xff]
      %v4609 = vld [vmem:[#allocation2 + $0x52] sm:$0xff]
      %v4610 = vld [vmem:[#allocation2 + $0x62] sm:$0xff]
      %v4611 = vld [vmem:[#allocation2 + $0x6a] sm:$0xff]
      %v4612 = vld [vmem:[#allocation2 + $0x7a] sm:$0xff]
      %v4613 = vld [vmem:[#allocation2 + $0x82] sm:$0xff]
      %v4614 = vld [vmem:[#allocation2 + $0x92] sm:$0xff]
      %v4615 = vld [vmem:[#allocation2 + $0x9a] sm:$0xff]
      %v4616 = vld [vmem:[#allocation2 + $0xaa] sm:$0xff]
      %v4617 = vld [vmem:[#allocation2 + $0xb2] sm:$0xff]
      %v4618 = vld [vmem:[#allocation2 + $0xc2] sm:$0xff]
      %v4619 = vld [vmem:[#allocation2 + $0xca] sm:$0xff]
      %v4620 = vld [vmem:[#allocation2 + $0xda] sm:$0xff]
      %v4621 = vld [vmem:[#allocation2 + $0xe2] sm:$0xff]
      %v4622 = vld [vmem:[#allocation2 + $0xf2] sm:$0xff]
      %v4623 = vld [vmem:[#allocation2 + $0xfa] sm:$0xff]
      %v4624 = vld [vmem:[#allocation2 + $0x10a] sm:$0xff]
      %v4625 = vld [vmem:[#allocation2 + $0x112] sm:$0xff]
      %v4626 = vld [vmem:[#allocation2 + $0x122] sm:$0xff]
      %v4627 = vld [vmem:[#allocation2 + $0x12a] sm:$0xff]
      %v4628 = vld [vmem:[#allocation2 + $0x13a] sm:$0xff]
      %v4629 = vld [vmem:[#allocation2 + $0x142] sm:$0xff]
      %v4630 = vld [vmem:[#allocation2 + $0x152] sm:$0xff]
      %v4631 = vld [vmem:[#allocation2 + $0x15a] sm:$0xff]
      %v4632 = vld [vmem:[#allocation2 + $0x16a] sm:$0xff]
      %v4633 = vld [vmem:[#allocation2 + $0x172] sm:$0xff]
      %s4634 = scalar_lea.vmem %s3, 16
      %v4635 = vld [vmem:[%s4634] sm:$0xff]
      %v4637 = vsel %vm225, %v4602, 0
      %v4640 = vsel %vm225, %v4603, 0
      %v4643 = vsel %vm225, %v4604, 0
      %v4646 = vsel %vm225, %v4605, 0
      %v4649 = vsel %vm225, %v4606, 0
      %v4652 = vsel %vm225, %v4607, 0
      %v4655 = vsel %vm225, %v4608, 0
      %v4658 = vsel %vm225, %v4609, 0
      %v4661 = vsel %vm225, %v4610, 0
      %v4664 = vsel %vm225, %v4611, 0
      %v4667 = vsel %vm225, %v4612, 0
      %v4670 = vsel %vm225, %v4613, 0
      %v4673 = vsel %vm225, %v4614, 0
      %v4676 = vsel %vm225, %v4615, 0
      %v4679 = vsel %vm225, %v4616, 0
      %v4682 = vsel %vm225, %v4617, 0
      %v4685 = vsel %vm225, %v4618, 0
      %v4688 = vsel %vm225, %v4619, 0
      %v4691 = vsel %vm225, %v4620, 0
      %v4694 = vsel %vm225, %v4621, 0
      %v4697 = vsel %vm225, %v4622, 0
      %v4700 = vsel %vm225, %v4623, 0
      %v4703 = vsel %vm225, %v4624, 0
      %v4706 = vsel %vm225, %v4625, 0
      %v4709 = vsel %vm225, %v4626, 0
      %v4712 = vsel %vm225, %v4627, 0
      %v4715 = vsel %vm225, %v4628, 0
      %v4718 = vsel %vm225, %v4629, 0
      %v4721 = vsel %vm225, %v4630, 0
      %v4724 = vsel %vm225, %v4631, 0
      %v4727 = vsel %vm225, %v4632, 0
      %v4730 = vsel %vm225, %v4633, 0
      %4732 = vmatprep.subr.mxu0 0.0
      %4733 = vmatpush1.msra.mxu0 %v4635
      %4734 = vmatprep.subr.mxu0 0.0
      %4735 = vmatpush1.msra.mxu0 0.0
      %4736 = vmatprep.subr.mxu0 0.0
      %4737 = vmatpush1.msra.mxu0 0.0
      %4738 = vmatprep.subr.mxu0 0.0
      %4739 = vmatpush1.msra.mxu0 0.0
      %4740 = vmatprep.subr.mxu0 0.0
      %4741 = vmatpush1.msra.mxu0 0.0
      %4742 = vmatprep.subr.mxu0 0.0
      %4743 = vmatpush1.msra.mxu0 0.0
      %4744 = vmatprep.subr.mxu0 0.0
      %4745 = vmatpush1.msra.mxu0 0.0
      %4746 = vmatprep.subr.mxu0 0.0
      %4747 = vmatpush1.msra.mxu0 0.0
      %4748 = vmatprep.subr.mxu0 0.0
      %4749 = vmatpush1.msra.mxu0 0.0
      %4750 = vmatprep.subr.mxu0 0.0
      %4751 = vmatpush1.msra.mxu0 0.0
      %4752 = vmatprep.subr.mxu0 0.0
      %4753 = vmatpush1.msra.mxu0 0.0
      %4754 = vmatprep.subr.mxu0 0.0
      %4755 = vmatpush1.msra.mxu0 0.0
      %4756 = vmatprep.subr.mxu0 0.0
      %4757 = vmatpush1.msra.mxu0 0.0
      %4758 = vmatprep.subr.mxu0 0.0
      %4759 = vmatpush1.msra.mxu0 0.0
      %4760 = vmatprep.subr.mxu0 0.0
      %4761 = vmatpush1.msra.mxu0 0.0
      %4762 = vmatprep.subr.mxu0 0.0
      %4763 = vmatpush1.msra.mxu0 0.0
      %4764 = vmatprep.subr.mxu0 0.0
      %4765 = vmatpush1.msra.mxu0 0.0
      %4766 = vmatprep.subr.mxu0 0.0
      %4767 = vmatpush1.msra.mxu0 0.0
      %4768 = vmatprep.subr.mxu0 0.0
      %4769 = vmatpush1.msra.mxu0 0.0
      %4770 = vmatprep.subr.mxu0 0.0
      %4771 = vmatpush1.msra.mxu0 0.0
      %4772 = vmatprep.subr.mxu0 0.0
      %4773 = vmatpush1.msra.mxu0 0.0
      %4774 = vmatprep.subr.mxu0 0.0
      %4775 = vmatpush1.msra.mxu0 0.0
      %4776 = vmatprep.subr.mxu0 0.0
      %4777 = vmatpush1.msra.mxu0 0.0
      %4778 = vmatprep.subr.mxu0 0.0
      %4779 = vmatpush1.msra.mxu0 0.0
      %4780 = vmatprep.subr.mxu0 0.0
      %4781 = vmatpush1.msra.mxu0 0.0
      %4782 = vmatprep.subr.mxu0 0.0
      %4783 = vmatpush1.msra.mxu0 0.0
      %4784 = vmatprep.subr.mxu0 0.0
      %4785 = vmatpush1.msra.mxu0 0.0
      %4786 = vmatprep.subr.mxu0 0.0
      %4787 = vmatpush1.msra.mxu0 0.0
      %4788 = vmatprep.subr.mxu0 0.0
      %4789 = vmatpush1.msra.mxu0 0.0
      %4790 = vmatprep.subr.mxu0 0.0
      %4791 = vmatpush1.msra.mxu0 0.0
      %4792 = vmatprep.subr.mxu0 0.0
      %4793 = vmatpush1.msra.mxu0 0.0
      %4794 = vmatprep.subr.mxu0 0.0
      %4795 = vmatpush1.msra.mxu0 0.0
      %4796 = vmatprep.mubr.f32.mxu0 0.0
      %4797 = vmatmul.mubr.f32.gmra.mrb[0].mxu0 %v4637
      %v4798 = vpop.f32.mrb[0].mxu0
      %v4799 = vadd.f32 0.0, %v4798
      %v4800 = vpop.f32.mrb[0].mxu0
      %4801 = vmatprep.mubr.f32.mxu0 0.0
      %4802 = vmatmul.mubr.f32.gmra.mrb[0].mxu0 %v4640
      %v4803 = vpop.f32.mrb[0].mxu0
      %v4804 = vadd.f32 0.0, %v4803
      %v4805 = vpop.f32.mrb[0].mxu0
      %4806 = vmatprep.mubr.f32.mxu0 0.0
      %4807 = vmatmul.mubr.f32.gmra.mrb[0].mxu0 %v4643
      %v4808 = vpop.f32.mrb[0].mxu0
      %v4809 = vadd.f32 0.0, %v4808
      %v4810 = vpop.f32.mrb[0].mxu0
      %4811 = vmatprep.mubr.f32.mxu0 0.0
      %4812 = vmatmul.mubr.f32.gmra.mrb[0].mxu0 %v4646
      %v4813 = vpop.f32.mrb[0].mxu0
      %v4814 = vadd.f32 0.0, %v4813
      %v4815 = vpop.f32.mrb[0].mxu0
      %4816 = vmatprep.mubr.f32.mxu0 0.0
      %4817 = vmatmul.mubr.f32.gmra.mrb[0].mxu0 %v4649
      %v4818 = vpop.f32.mrb[0].mxu0
      %v4819 = vadd.f32 0.0, %v4818
      %v4820 = vpop.f32.mrb[0].mxu0
      %4821 = vmatprep.mubr.f32.mxu0 0.0
      %4822 = vmatmul.mubr.f32.gmra.mrb[0].mxu0 %v4652
      %v4823 = vpop.f32.mrb[0].mxu0
      %v4824 = vadd.f32 0.0, %v4823
      %v4825 = vpop.f32.mrb[0].mxu0
      %4826 = vmatprep.mubr.f32.mxu0 0.0
      %4827 = vmatmul.mubr.f32.gmra.mrb[0].mxu0 %v4655
      %v4828 = vpop.f32.mrb[0].mxu0
      %v4829 = vadd.f32 0.0, %v4828
      %v4830 = vpop.f32.mrb[0].mxu0
      %4831 = vmatprep.mubr.f32.mxu0 0.0
      %4832 = vmatmul.mubr.f32.gmra.mrb[0].mxu0 %v4658
      %v4833 = vpop.f32.mrb[0].mxu0
      %v4834 = vadd.f32 0.0, %v4833
      %v4835 = vpop.f32.mrb[0].mxu0
      %4836 = vmatprep.mubr.f32.mxu0 0.0
      %4837 = vmatmul.mubr.f32.gmra.mrb[0].mxu0 %v4661
      %v4838 = vpop.f32.mrb[0].mxu0
      %v4839 = vadd.f32 0.0, %v4838
      %v4840 = vpop.f32.mrb[0].mxu0
      %4841 = vmatprep.mubr.f32.mxu0 0.0
      %4842 = vmatmul.mubr.f32.gmra.mrb[0].mxu0 %v4664
      %v4843 = vpop.f32.mrb[0].mxu0
      %v4844 = vadd.f32 0.0, %v4843
      %v4845 = vpop.f32.mrb[0].mxu0
      %4846 = vmatprep.mubr.f32.mxu0 0.0
      %4847 = vmatmul.mubr.f32.gmra.mrb[0].mxu0 %v4667
      %v4848 = vpop.f32.mrb[0].mxu0
      %v4849 = vadd.f32 0.0, %v4848
      %v4850 = vpop.f32.mrb[0].mxu0
      %4851 = vmatprep.mubr.f32.mxu0 0.0
      %4852 = vmatmul.mubr.f32.gmra.mrb[0].mxu0 %v4670
      %v4853 = vpop.f32.mrb[0].mxu0
      %v4854 = vadd.f32 0.0, %v4853
      %v4855 = vpop.f32.mrb[0].mxu0
      %4856 = vmatprep.mubr.f32.mxu0 0.0
      %4857 = vmatmul.mubr.f32.gmra.mrb[0].mxu0 %v4673
      %v4858 = vpop.f32.mrb[0].mxu0
      %v4859 = vadd.f32 0.0, %v4858
      %v4860 = vpop.f32.mrb[0].mxu0
      %4861 = vmatprep.mubr.f32.mxu0 0.0
      %4862 = vmatmul.mubr.f32.gmra.mrb[0].mxu0 %v4676
      %v4863 = vpop.f32.mrb[0].mxu0
      %v4864 = vadd.f32 0.0, %v4863
      %v4865 = vpop.f32.mrb[0].mxu0
      %4866 = vmatprep.mubr.f32.mxu0 0.0
      %4867 = vmatmul.mubr.f32.gmra.mrb[0].mxu0 %v4679
      %v4868 = vpop.f32.mrb[0].mxu0
      %v4869 = vadd.f32 0.0, %v4868
      %v4870 = vpop.f32.mrb[0].mxu0
      %4871 = vmatprep.mubr.f32.mxu0 0.0
      %4872 = vmatmul.mubr.f32.gmra.mrb[0].mxu0 %v4682
      %v4873 = vpop.f32.mrb[0].mxu0
      %v4874 = vadd.f32 0.0, %v4873
      %v4875 = vpop.f32.mrb[0].mxu0
      %4876 = vmatprep.mubr.f32.mxu0 0.0
      %4877 = vmatmul.mubr.f32.gmra.mrb[0].mxu0 %v4685
      %v4878 = vpop.f32.mrb[0].mxu0
      %v4879 = vadd.f32 0.0, %v4878
      %v4880 = vpop.f32.mrb[0].mxu0
      %4881 = vmatprep.mubr.f32.mxu0 0.0
      %4882 = vmatmul.mubr.f32.gmra.mrb[0].mxu0 %v4688
      %v4883 = vpop.f32.mrb[0].mxu0
      %v4884 = vadd.f32 0.0, %v4883
      %v4885 = vpop.f32.mrb[0].mxu0
      %4886 = vmatprep.mubr.f32.mxu0 0.0
      %4887 = vmatmul.mubr.f32.gmra.mrb[0].mxu0 %v4691
      %v4888 = vpop.f32.mrb[0].mxu0
      %v4889 = vadd.f32 0.0, %v4888
      %v4890 = vpop.f32.mrb[0].mxu0
      %4891 = vmatprep.mubr.f32.mxu0 0.0
      %4892 = vmatmul.mubr.f32.gmra.mrb[0].mxu0 %v4694
      %v4893 = vpop.f32.mrb[0].mxu0
      %v4894 = vadd.f32 0.0, %v4893
      %v4895 = vpop.f32.mrb[0].mxu0
      %4896 = vmatprep.mubr.f32.mxu0 0.0
      %4897 = vmatmul.mubr.f32.gmra.mrb[0].mxu0 %v4697
      %v4898 = vpop.f32.mrb[0].mxu0
      %v4899 = vadd.f32 0.0, %v4898
      %v4900 = vpop.f32.mrb[0].mxu0
      %4901 = vmatprep.mubr.f32.mxu0 0.0
      %4902 = vmatmul.mubr.f32.gmra.mrb[0].mxu0 %v4700
      %v4903 = vpop.f32.mrb[0].mxu0
      %v4904 = vadd.f32 0.0, %v4903
      %v4905 = vpop.f32.mrb[0].mxu0
      %4906 = vmatprep.mubr.f32.mxu0 0.0
      %4907 = vmatmul.mubr.f32.gmra.mrb[0].mxu0 %v4703
      %v4908 = vpop.f32.mrb[0].mxu0
      %v4909 = vadd.f32 0.0, %v4908
      %v4910 = vpop.f32.mrb[0].mxu0
      %4911 = vmatprep.mubr.f32.mxu0 0.0
      %4912 = vmatmul.mubr.f32.gmra.mrb[0].mxu0 %v4706
      %v4913 = vpop.f32.mrb[0].mxu0
      %v4914 = vadd.f32 0.0, %v4913
      %v4915 = vpop.f32.mrb[0].mxu0
      %4916 = vmatprep.mubr.f32.mxu0 0.0
      %4917 = vmatmul.mubr.f32.gmra.mrb[0].mxu0 %v4709
      %v4918 = vpop.f32.mrb[0].mxu0
      %v4919 = vadd.f32 0.0, %v4918
      %v4920 = vpop.f32.mrb[0].mxu0
      %4921 = vmatprep.mubr.f32.mxu0 0.0
      %4922 = vmatmul.mubr.f32.gmra.mrb[0].mxu0 %v4712
      %v4923 = vpop.f32.mrb[0].mxu0
      %v4924 = vadd.f32 0.0, %v4923
      %v4925 = vpop.f32.mrb[0].mxu0
      %4926 = vmatprep.mubr.f32.mxu0 0.0
      %4927 = vmatmul.mubr.f32.gmra.mrb[0].mxu0 %v4715
      %v4928 = vpop.f32.mrb[0].mxu0
      %v4929 = vadd.f32 0.0, %v4928
      %v4930 = vpop.f32.mrb[0].mxu0
      %4931 = vmatprep.mubr.f32.mxu0 0.0
      %4932 = vmatmul.mubr.f32.gmra.mrb[0].mxu0 %v4718
      %v4933 = vpop.f32.mrb[0].mxu0
      %v4934 = vadd.f32 0.0, %v4933
      %v4935 = vpop.f32.mrb[0].mxu0
      %4936 = vmatprep.mubr.f32.mxu0 0.0
      %4937 = vmatmul.mubr.f32.gmra.mrb[0].mxu0 %v4721
      %v4938 = vpop.f32.mrb[0].mxu0
      %v4939 = vadd.f32 0.0, %v4938
      %v4940 = vpop.f32.mrb[0].mxu0
      %4941 = vmatprep.mubr.f32.mxu0 0.0
      %4942 = vmatmul.mubr.f32.gmra.mrb[0].mxu0 %v4724
      %v4943 = vpop.f32.mrb[0].mxu0
      %v4944 = vadd.f32 0.0, %v4943
      %v4945 = vpop.f32.mrb[0].mxu0
      %4946 = vmatprep.mubr.f32.mxu0 0.0
      %4947 = vmatmul.mubr.f32.gmra.mrb[0].mxu0 %v4727
      %v4948 = vpop.f32.mrb[0].mxu0
      %v4949 = vadd.f32 0.0, %v4948
      %v4950 = vpop.f32.mrb[0].mxu0
      %4951 = vmatprep.mubr.f32.mxu0 0.0
      %4952 = vmatmul.mubr.f32.gmra.mrb[0].mxu0 %v4730
      %v4953 = vpop.f32.mrb[0].mxu0
      %v4954 = vadd.f32 0.0, %v4953
      %v4955 = vpop.f32.mrb[0].mxu0
      %4956 = vdwg.mxu0
      %v4957 = vadd.f32 %v4570, %v4799
      %v4958 = vadd.f32 %v4571, %v4804
      %v4959 = vadd.f32 %v4572, %v4809
      %v4960 = vadd.f32 %v4573, %v4814
      %v4961 = vadd.f32 %v4574, %v4819
      %v4962 = vadd.f32 %v4575, %v4824
      %v4963 = vadd.f32 %v4576, %v4829
      %v4964 = vadd.f32 %v4577, %v4834
      %v4965 = vadd.f32 %v4578, %v4839
      %v4966 = vadd.f32 %v4579, %v4844
      %v4967 = vadd.f32 %v4580, %v4849
      %v4968 = vadd.f32 %v4581, %v4854
      %v4969 = vadd.f32 %v4582, %v4859
      %v4970 = vadd.f32 %v4583, %v4864
      %v4971 = vadd.f32 %v4584, %v4869
      %v4972 = vadd.f32 %v4585, %v4874
      %v4973 = vadd.f32 %v4586, %v4879
      %v4974 = vadd.f32 %v4587, %v4884
      %v4975 = vadd.f32 %v4588, %v4889
      %v4976 = vadd.f32 %v4589, %v4894
      %v4977 = vadd.f32 %v4590, %v4899
      %v4978 = vadd.f32 %v4591, %v4904
      %v4979 = vadd.f32 %v4592, %v4909
      %v4980 = vadd.f32 %v4593, %v4914
      %v4981 = vadd.f32 %v4594, %v4919
      %v4982 = vadd.f32 %v4595, %v4924
      %v4983 = vadd.f32 %v4596, %v4929
      %v4984 = vadd.f32 %v4597, %v4934
      %v4985 = vadd.f32 %v4598, %v4939
      %v4986 = vadd.f32 %v4599, %v4944
      %v4987 = vadd.f32 %v4600, %v4949
      %v4988 = vadd.f32 %v4601, %v4954
      %v4989 = vld [vmem:[%s234] sm:$0xff]
      %v4990 = vld [vmem:[%s234 + $0x8] sm:$0xff]
      %v4991 = vld [vmem:[%s234 + $0x18] sm:$0xff]
      %v4992 = vld [vmem:[%s234 + $0x20] sm:$0xff]
      %v4993 = vld [vmem:[%s234 + $0x30] sm:$0xff]
      %v4994 = vld [vmem:[%s234 + $0x38] sm:$0xff]
      %v4995 = vld [vmem:[%s234 + $0x48] sm:$0xff]
      %v4996 = vld [vmem:[%s234 + $0x50] sm:$0xff]
      %v4997 = vld [vmem:[%s234 + $0x60] sm:$0xff]
      %v4998 = vld [vmem:[%s234 + $0x68] sm:$0xff]
      %v4999 = vld [vmem:[%s234 + $0x78] sm:$0xff]
      %v5000 = vld [vmem:[%s234 + $0x80] sm:$0xff]
      %v5001 = vld [vmem:[%s234 + $0x90] sm:$0xff]
      %v5002 = vld [vmem:[%s234 + $0x98] sm:$0xff]
      %v5003 = vld [vmem:[%s234 + $0xa8] sm:$0xff]
      %v5004 = vld [vmem:[%s234 + $0xb0] sm:$0xff]
      %v5005 = vld [vmem:[%s234 + $0xc0] sm:$0xff]
      %v5006 = vld [vmem:[%s234 + $0xc8] sm:$0xff]
      %v5007 = vld [vmem:[%s234 + $0xd8] sm:$0xff]
      %v5008 = vld [vmem:[%s234 + $0xe0] sm:$0xff]
      %v5009 = vld [vmem:[%s234 + $0xf0] sm:$0xff]
      %v5010 = vld [vmem:[%s234 + $0xf8] sm:$0xff]
      %v5011 = vld [vmem:[%s234 + $0x108] sm:$0xff]
      %v5012 = vld [vmem:[%s234 + $0x110] sm:$0xff]
      %v5013 = vld [vmem:[%s234 + $0x120] sm:$0xff]
      %v5014 = vld [vmem:[%s234 + $0x128] sm:$0xff]
      %v5015 = vld [vmem:[%s234 + $0x138] sm:$0xff]
      %v5016 = vld [vmem:[%s234 + $0x140] sm:$0xff]
      %v5017 = vld [vmem:[%s234 + $0x150] sm:$0xff]
      %v5018 = vld [vmem:[%s234 + $0x158] sm:$0xff]
      %v5019 = vld [vmem:[%s234 + $0x168] sm:$0xff]
      %v5020 = vld [vmem:[%s234 + $0x170] sm:$0xff]
      %s5021 = scalar_lea.vmem %s3, 24
      %v5022 = vld [vmem:[%s5021] sm:$0xff]
      %v5024 = vsel %vm225, %v4989, 0
      %v5027 = vsel %vm225, %v4990, 0
      %v5030 = vsel %vm225, %v4991, 0
      %v5033 = vsel %vm225, %v4992, 0
      %v5036 = vsel %vm225, %v4993, 0
      %v5039 = vsel %vm225, %v4994, 0
      %v5042 = vsel %vm225, %v4995, 0
      %v5045 = vsel %vm225, %v4996, 0
      %v5048 = vsel %vm225, %v4997, 0
      %v5051 = vsel %vm225, %v4998, 0
      %v5054 = vsel %vm225, %v4999, 0
      %v5057 = vsel %vm225, %v5000, 0
      %v5060 = vsel %vm225, %v5001, 0
      %v5063 = vsel %vm225, %v5002, 0
      %v5066 = vsel %vm225, %v5003, 0
      %v5069 = vsel %vm225, %v5004, 0
      %v5072 = vsel %vm225, %v5005, 0
      %v5075 = vsel %vm225, %v5006, 0
      %v5078 = vsel %vm225, %v5007, 0
      %v5081 = vsel %vm225, %v5008, 0
      %v5084 = vsel %vm225, %v5009, 0
      %v5087 = vsel %vm225, %v5010, 0
      %v5090 = vsel %vm225, %v5011, 0
      %v5093 = vsel %vm225, %v5012, 0
      %v5096 = vsel %vm225, %v5013, 0
      %v5099 = vsel %vm225, %v5014, 0
      %v5102 = vsel %vm225, %v5015, 0
      %v5105 = vsel %vm225, %v5016, 0
      %v5108 = vsel %vm225, %v5017, 0
      %v5111 = vsel %vm225, %v5018, 0
      %v5114 = vsel %vm225, %v5019, 0
      %v5117 = vsel %vm225, %v5020, 0
      %5119 = vmatprep.subr.mxu0 0.0
      %5120 = vmatpush1.msra.mxu0 %v5022
      %5121 = vmatprep.subr.mxu0 0.0
      %5122 = vmatpush1.msra.mxu0 0.0
      %5123 = vmatprep.subr.mxu0 0.0
      %5124 = vmatpush1.msra.mxu0 0.0
      %5125 = vmatprep.subr.mxu0 0.0
      %5126 = vmatpush1.msra.mxu0 0.0
      %5127 = vmatprep.subr.mxu0 0.0
      %5128 = vmatpush1.msra.mxu0 0.0
      %5129 = vmatprep.subr.mxu0 0.0
      %5130 = vmatpush1.msra.mxu0 0.0
      %5131 = vmatprep.subr.mxu0 0.0
      %5132 = vmatpush1.msra.mxu0 0.0
      %5133 = vmatprep.subr.mxu0 0.0
      %5134 = vmatpush1.msra.mxu0 0.0
      %5135 = vmatprep.subr.mxu0 0.0
      %5136 = vmatpush1.msra.mxu0 0.0
      %5137 = vmatprep.subr.mxu0 0.0
      %5138 = vmatpush1.msra.mxu0 0.0
      %5139 = vmatprep.subr.mxu0 0.0
      %5140 = vmatpush1.msra.mxu0 0.0
      %5141 = vmatprep.subr.mxu0 0.0
      %5142 = vmatpush1.msra.mxu0 0.0
      %5143 = vmatprep.subr.mxu0 0.0
      %5144 = vmatpush1.msra.mxu0 0.0
      %5145 = vmatprep.subr.mxu0 0.0
      %5146 = vmatpush1.msra.mxu0 0.0
      %5147 = vmatprep.subr.mxu0 0.0
      %5148 = vmatpush1.msra.mxu0 0.0
      %5149 = vmatprep.subr.mxu0 0.0
      %5150 = vmatpush1.msra.mxu0 0.0
      %5151 = vmatprep.subr.mxu0 0.0
      %5152 = vmatpush1.msra.mxu0 0.0
      %5153 = vmatprep.subr.mxu0 0.0
      %5154 = vmatpush1.msra.mxu0 0.0
      %5155 = vmatprep.subr.mxu0 0.0
      %5156 = vmatpush1.msra.mxu0 0.0
      %5157 = vmatprep.subr.mxu0 0.0
      %5158 = vmatpush1.msra.mxu0 0.0
      %5159 = vmatprep.subr.mxu0 0.0
      %5160 = vmatpush1.msra.mxu0 0.0
      %5161 = vmatprep.subr.mxu0 0.0
      %5162 = vmatpush1.msra.mxu0 0.0
      %5163 = vmatprep.subr.mxu0 0.0
      %5164 = vmatpush1.msra.mxu0 0.0
      %5165 = vmatprep.subr.mxu0 0.0
      %5166 = vmatpush1.msra.mxu0 0.0
      %5167 = vmatprep.subr.mxu0 0.0
      %5168 = vmatpush1.msra.mxu0 0.0
      %5169 = vmatprep.subr.mxu0 0.0
      %5170 = vmatpush1.msra.mxu0 0.0
      %5171 = vmatprep.subr.mxu0 0.0
      %5172 = vmatpush1.msra.mxu0 0.0
      %5173 = vmatprep.subr.mxu0 0.0
      %5174 = vmatpush1.msra.mxu0 0.0
      %5175 = vmatprep.subr.mxu0 0.0
      %5176 = vmatpush1.msra.mxu0 0.0
      %5177 = vmatprep.subr.mxu0 0.0
      %5178 = vmatpush1.msra.mxu0 0.0
      %5179 = vmatprep.subr.mxu0 0.0
      %5180 = vmatpush1.msra.mxu0 0.0
      %5181 = vmatprep.subr.mxu0 0.0
      %5182 = vmatpush1.msra.mxu0 0.0
      %5183 = vmatprep.mubr.f32.mxu0 0.0
      %5184 = vmatmul.mubr.f32.gmra.mrb[0].mxu0 %v5024
      %v5185 = vpop.f32.mrb[0].mxu0
      %v5186 = vadd.f32 0.0, %v5185
      %v5187 = vpop.f32.mrb[0].mxu0
      %5188 = vmatprep.mubr.f32.mxu0 0.0
      %5189 = vmatmul.mubr.f32.gmra.mrb[0].mxu0 %v5027
      %v5190 = vpop.f32.mrb[0].mxu0
      %v5191 = vadd.f32 0.0, %v5190
      %v5192 = vpop.f32.mrb[0].mxu0
      %5193 = vmatprep.mubr.f32.mxu0 0.0
      %5194 = vmatmul.mubr.f32.gmra.mrb[0].mxu0 %v5030
      %v5195 = vpop.f32.mrb[0].mxu0
      %v5196 = vadd.f32 0.0, %v5195
      %v5197 = vpop.f32.mrb[0].mxu0
      %5198 = vmatprep.mubr.f32.mxu0 0.0
      %5199 = vmatmul.mubr.f32.gmra.mrb[0].mxu0 %v5033
      %v5200 = vpop.f32.mrb[0].mxu0
      %v5201 = vadd.f32 0.0, %v5200
      %v5202 = vpop.f32.mrb[0].mxu0
      %5203 = vmatprep.mubr.f32.mxu0 0.0
      %5204 = vmatmul.mubr.f32.gmra.mrb[0].mxu0 %v5036
      %v5205 = vpop.f32.mrb[0].mxu0
      %v5206 = vadd.f32 0.0, %v5205
      %v5207 = vpop.f32.mrb[0].mxu0
      %5208 = vmatprep.mubr.f32.mxu0 0.0
      %5209 = vmatmul.mubr.f32.gmra.mrb[0].mxu0 %v5039
      %v5210 = vpop.f32.mrb[0].mxu0
      %v5211 = vadd.f32 0.0, %v5210
      %v5212 = vpop.f32.mrb[0].mxu0
      %5213 = vmatprep.mubr.f32.mxu0 0.0
      %5214 = vmatmul.mubr.f32.gmra.mrb[0].mxu0 %v5042
      %v5215 = vpop.f32.mrb[0].mxu0
      %v5216 = vadd.f32 0.0, %v5215
      %v5217 = vpop.f32.mrb[0].mxu0
      %5218 = vmatprep.mubr.f32.mxu0 0.0
      %5219 = vmatmul.mubr.f32.gmra.mrb[0].mxu0 %v5045
      %v5220 = vpop.f32.mrb[0].mxu0
      %v5221 = vadd.f32 0.0, %v5220
      %v5222 = vpop.f32.mrb[0].mxu0
      %5223 = vmatprep.mubr.f32.mxu0 0.0
      %5224 = vmatmul.mubr.f32.gmra.mrb[0].mxu0 %v5048
      %v5225 = vpop.f32.mrb[0].mxu0
      %v5226 = vadd.f32 0.0, %v5225
      %v5227 = vpop.f32.mrb[0].mxu0
      %5228 = vmatprep.mubr.f32.mxu0 0.0
      %5229 = vmatmul.mubr.f32.gmra.mrb[0].mxu0 %v5051
      %v5230 = vpop.f32.mrb[0].mxu0
      %v5231 = vadd.f32 0.0, %v5230
      %v5232 = vpop.f32.mrb[0].mxu0
      %5233 = vmatprep.mubr.f32.mxu0 0.0
      %5234 = vmatmul.mubr.f32.gmra.mrb[0].mxu0 %v5054
      %v5235 = vpop.f32.mrb[0].mxu0
      %v5236 = vadd.f32 0.0, %v5235
      %v5237 = vpop.f32.mrb[0].mxu0
      %5238 = vmatprep.mubr.f32.mxu0 0.0
      %5239 = vmatmul.mubr.f32.gmra.mrb[0].mxu0 %v5057
      %v5240 = vpop.f32.mrb[0].mxu0
      %v5241 = vadd.f32 0.0, %v5240
      %v5242 = vpop.f32.mrb[0].mxu0
      %5243 = vmatprep.mubr.f32.mxu0 0.0
      %5244 = vmatmul.mubr.f32.gmra.mrb[0].mxu0 %v5060
      %v5245 = vpop.f32.mrb[0].mxu0
      %v5246 = vadd.f32 0.0, %v5245
      %v5247 = vpop.f32.mrb[0].mxu0
      %5248 = vmatprep.mubr.f32.mxu0 0.0
      %5249 = vmatmul.mubr.f32.gmra.mrb[0].mxu0 %v5063
      %v5250 = vpop.f32.mrb[0].mxu0
      %v5251 = vadd.f32 0.0, %v5250
      %v5252 = vpop.f32.mrb[0].mxu0
      %5253 = vmatprep.mubr.f32.mxu0 0.0
      %5254 = vmatmul.mubr.f32.gmra.mrb[0].mxu0 %v5066
      %v5255 = vpop.f32.mrb[0].mxu0
      %v5256 = vadd.f32 0.0, %v5255
      %v5257 = vpop.f32.mrb[0].mxu0
      %5258 = vmatprep.mubr.f32.mxu0 0.0
      %5259 = vmatmul.mubr.f32.gmra.mrb[0].mxu0 %v5069
      %v5260 = vpop.f32.mrb[0].mxu0
      %v5261 = vadd.f32 0.0, %v5260
      %v5262 = vpop.f32.mrb[0].mxu0
      %5263 = vmatprep.mubr.f32.mxu0 0.0
      %5264 = vmatmul.mubr.f32.gmra.mrb[0].mxu0 %v5072
      %v5265 = vpop.f32.mrb[0].mxu0
      %v5266 = vadd.f32 0.0, %v5265
      %v5267 = vpop.f32.mrb[0].mxu0
      %5268 = vmatprep.mubr.f32.mxu0 0.0
      %5269 = vmatmul.mubr.f32.gmra.mrb[0].mxu0 %v5075
      %v5270 = vpop.f32.mrb[0].mxu0
      %v5271 = vadd.f32 0.0, %v5270
      %v5272 = vpop.f32.mrb[0].mxu0
      %5273 = vmatprep.mubr.f32.mxu0 0.0
      %5274 = vmatmul.mubr.f32.gmra.mrb[0].mxu0 %v5078
      %v5275 = vpop.f32.mrb[0].mxu0
      %v5276 = vadd.f32 0.0, %v5275
      %v5277 = vpop.f32.mrb[0].mxu0
      %5278 = vmatprep.mubr.f32.mxu0 0.0
      %5279 = vmatmul.mubr.f32.gmra.mrb[0].mxu0 %v5081
      %v5280 = vpop.f32.mrb[0].mxu0
      %v5281 = vadd.f32 0.0, %v5280
      %v5282 = vpop.f32.mrb[0].mxu0
      %5283 = vmatprep.mubr.f32.mxu0 0.0
      %5284 = vmatmul.mubr.f32.gmra.mrb[0].mxu0 %v5084
      %v5285 = vpop.f32.mrb[0].mxu0
      %v5286 = vadd.f32 0.0, %v5285
      %v5287 = vpop.f32.mrb[0].mxu0
      %5288 = vmatprep.mubr.f32.mxu0 0.0
      %5289 = vmatmul.mubr.f32.gmra.mrb[0].mxu0 %v5087
      %v5290 = vpop.f32.mrb[0].mxu0
      %v5291 = vadd.f32 0.0, %v5290
      %v5292 = vpop.f32.mrb[0].mxu0
      %5293 = vmatprep.mubr.f32.mxu0 0.0
      %5294 = vmatmul.mubr.f32.gmra.mrb[0].mxu0 %v5090
      %v5295 = vpop.f32.mrb[0].mxu0
      %v5296 = vadd.f32 0.0, %v5295
      %v5297 = vpop.f32.mrb[0].mxu0
      %5298 = vmatprep.mubr.f32.mxu0 0.0
      %5299 = vmatmul.mubr.f32.gmra.mrb[0].mxu0 %v5093
      %v5300 = vpop.f32.mrb[0].mxu0
      %v5301 = vadd.f32 0.0, %v5300
      %v5302 = vpop.f32.mrb[0].mxu0
      %5303 = vmatprep.mubr.f32.mxu0 0.0
      %5304 = vmatmul.mubr.f32.gmra.mrb[0].mxu0 %v5096
      %v5305 = vpop.f32.mrb[0].mxu0
      %v5306 = vadd.f32 0.0, %v5305
      %v5307 = vpop.f32.mrb[0].mxu0
      %5308 = vmatprep.mubr.f32.mxu0 0.0
      %5309 = vmatmul.mubr.f32.gmra.mrb[0].mxu0 %v5099
      %v5310 = vpop.f32.mrb[0].mxu0
      %v5311 = vadd.f32 0.0, %v5310
      %v5312 = vpop.f32.mrb[0].mxu0
      %5313 = vmatprep.mubr.f32.mxu0 0.0
      %5314 = vmatmul.mubr.f32.gmra.mrb[0].mxu0 %v5102
      %v5315 = vpop.f32.mrb[0].mxu0
      %v5316 = vadd.f32 0.0, %v5315
      %v5317 = vpop.f32.mrb[0].mxu0
      %5318 = vmatprep.mubr.f32.mxu0 0.0
      %5319 = vmatmul.mubr.f32.gmra.mrb[0].mxu0 %v5105
      %v5320 = vpop.f32.mrb[0].mxu0
      %v5321 = vadd.f32 0.0, %v5320
      %v5322 = vpop.f32.mrb[0].mxu0
      %5323 = vmatprep.mubr.f32.mxu0 0.0
      %5324 = vmatmul.mubr.f32.gmra.mrb[0].mxu0 %v5108
      %v5325 = vpop.f32.mrb[0].mxu0
      %v5326 = vadd.f32 0.0, %v5325
      %v5327 = vpop.f32.mrb[0].mxu0
      %5328 = vmatprep.mubr.f32.mxu0 0.0
      %5329 = vmatmul.mubr.f32.gmra.mrb[0].mxu0 %v5111
      %v5330 = vpop.f32.mrb[0].mxu0
      %v5331 = vadd.f32 0.0, %v5330
      %v5332 = vpop.f32.mrb[0].mxu0
      %5333 = vmatprep.mubr.f32.mxu0 0.0
      %5334 = vmatmul.mubr.f32.gmra.mrb[0].mxu0 %v5114
      %v5335 = vpop.f32.mrb[0].mxu0
      %v5336 = vadd.f32 0.0, %v5335
      %v5337 = vpop.f32.mrb[0].mxu0
      %5338 = vmatprep.mubr.f32.mxu0 0.0
      %5339 = vmatmul.mubr.f32.gmra.mrb[0].mxu0 %v5117
      %v5340 = vpop.f32.mrb[0].mxu0
      %v5341 = vadd.f32 0.0, %v5340
      %v5342 = vpop.f32.mrb[0].mxu0
      %5343 = vdwg.mxu0
      %v5344 = vadd.f32 %v4957, %v5186
      %v5345 = vadd.f32 %v4958, %v5191
      %v5346 = vadd.f32 %v4959, %v5196
      %v5347 = vadd.f32 %v4960, %v5201
      %v5348 = vadd.f32 %v4961, %v5206
      %v5349 = vadd.f32 %v4962, %v5211
      %v5350 = vadd.f32 %v4963, %v5216
      %v5351 = vadd.f32 %v4964, %v5221
      %v5352 = vadd.f32 %v4965, %v5226
      %v5353 = vadd.f32 %v4966, %v5231
      %v5354 = vadd.f32 %v4967, %v5236
      %v5355 = vadd.f32 %v4968, %v5241
      %v5356 = vadd.f32 %v4969, %v5246
      %v5357 = vadd.f32 %v4970, %v5251
      %v5358 = vadd.f32 %v4971, %v5256
      %v5359 = vadd.f32 %v4972, %v5261
      %v5360 = vadd.f32 %v4973, %v5266
      %v5361 = vadd.f32 %v4974, %v5271
      %v5362 = vadd.f32 %v4975, %v5276
      %v5363 = vadd.f32 %v4976, %v5281
      %v5364 = vadd.f32 %v4977, %v5286
      %v5365 = vadd.f32 %v4978, %v5291
      %v5366 = vadd.f32 %v4979, %v5296
      %v5367 = vadd.f32 %v4980, %v5301
      %v5368 = vadd.f32 %v4981, %v5306
      %v5369 = vadd.f32 %v4982, %v5311
      %v5370 = vadd.f32 %v4983, %v5316
      %v5371 = vadd.f32 %v4984, %v5321
      %v5372 = vadd.f32 %v4985, %v5326
      %v5373 = vadd.f32 %v4986, %v5331
      %v5374 = vadd.f32 %v4987, %v5336
      %v5375 = vadd.f32 %v4988, %v5341
      %v5376 = vld [vmem:[%s234 + $0x1] sm:$0xff]
      %v5377 = vld [vmem:[%s234 + $0x9] sm:$0xff]
      %v5378 = vld [vmem:[%s234 + $0x19] sm:$0xff]
      %v5379 = vld [vmem:[%s234 + $0x21] sm:$0xff]
      %v5380 = vld [vmem:[%s234 + $0x31] sm:$0xff]
      %v5381 = vld [vmem:[%s234 + $0x39] sm:$0xff]
      %v5382 = vld [vmem:[%s234 + $0x49] sm:$0xff]
      %v5383 = vld [vmem:[%s234 + $0x51] sm:$0xff]
      %v5384 = vld [vmem:[%s234 + $0x61] sm:$0xff]
      %v5385 = vld [vmem:[%s234 + $0x69] sm:$0xff]
      %v5386 = vld [vmem:[%s234 + $0x79] sm:$0xff]
      %v5387 = vld [vmem:[%s234 + $0x81] sm:$0xff]
      %v5388 = vld [vmem:[%s234 + $0x91] sm:$0xff]
      %v5389 = vld [vmem:[%s234 + $0x99] sm:$0xff]
      %v5390 = vld [vmem:[%s234 + $0xa9] sm:$0xff]
      %v5391 = vld [vmem:[%s234 + $0xb1] sm:$0xff]
      %v5392 = vld [vmem:[%s234 + $0xc1] sm:$0xff]
      %v5393 = vld [vmem:[%s234 + $0xc9] sm:$0xff]
      %v5394 = vld [vmem:[%s234 + $0xd9] sm:$0xff]
      %v5395 = vld [vmem:[%s234 + $0xe1] sm:$0xff]
      %v5396 = vld [vmem:[%s234 + $0xf1] sm:$0xff]
      %v5397 = vld [vmem:[%s234 + $0xf9] sm:$0xff]
      %v5398 = vld [vmem:[%s234 + $0x109] sm:$0xff]
      %v5399 = vld [vmem:[%s234 + $0x111] sm:$0xff]
      %v5400 = vld [vmem:[%s234 + $0x121] sm:$0xff]
      %v5401 = vld [vmem:[%s234 + $0x129] sm:$0xff]
      %v5402 = vld [vmem:[%s234 + $0x139] sm:$0xff]
      %v5403 = vld [vmem:[%s234 + $0x141] sm:$0xff]
      %v5404 = vld [vmem:[%s234 + $0x151] sm:$0xff]
      %v5405 = vld [vmem:[%s234 + $0x159] sm:$0xff]
      %v5406 = vld [vmem:[%s234 + $0x169] sm:$0xff]
      %v5407 = vld [vmem:[%s234 + $0x171] sm:$0xff]
      %s5408 = scalar_lea.vmem %s3, 32
      %v5409 = vld [vmem:[%s5408] sm:$0xff]
      %v5411 = vsel %vm225, %v5376, 0
      %v5414 = vsel %vm225, %v5377, 0
      %v5417 = vsel %vm225, %v5378, 0
      %v5420 = vsel %vm225, %v5379, 0
      %v5423 = vsel %vm225, %v5380, 0
      %v5426 = vsel %vm225, %v5381, 0
      %v5429 = vsel %vm225, %v5382, 0
      %v5432 = vsel %vm225, %v5383, 0
      %v5435 = vsel %vm225, %v5384, 0
      %v5438 = vsel %vm225, %v5385, 0
      %v5441 = vsel %vm225, %v5386, 0
      %v5444 = vsel %vm225, %v5387, 0
      %v5447 = vsel %vm225, %v5388, 0
      %v5450 = vsel %vm225, %v5389, 0
      %v5453 = vsel %vm225, %v5390, 0
      %v5456 = vsel %vm225, %v5391, 0
      %v5459 = vsel %vm225, %v5392, 0
      %v5462 = vsel %vm225, %v5393, 0
      %v5465 = vsel %vm225, %v5394, 0
      %v5468 = vsel %vm225, %v5395, 0
      %v5471 = vsel %vm225, %v5396, 0
      %v5474 = vsel %vm225, %v5397, 0
      %v5477 = vsel %vm225, %v5398, 0
      %v5480 = vsel %vm225, %v5399, 0
      %v5483 = vsel %vm225, %v5400, 0
      %v5486 = vsel %vm225, %v5401, 0
      %v5489 = vsel %vm225, %v5402, 0
      %v5492 = vsel %vm225, %v5403, 0
      %v5495 = vsel %vm225, %v5404, 0
      %v5498 = vsel %vm225, %v5405, 0
      %v5501 = vsel %vm225, %v5406, 0
      %v5504 = vsel %vm225, %v5407, 0
      %5506 = vmatprep.subr.mxu0 0.0
      %5507 = vmatpush1.msra.mxu0 %v5409
      %5508 = vmatprep.subr.mxu0 0.0
      %5509 = vmatpush1.msra.mxu0 0.0
      %5510 = vmatprep.subr.mxu0 0.0
      %5511 = vmatpush1.msra.mxu0 0.0
      %5512 = vmatprep.subr.mxu0 0.0
      %5513 = vmatpush1.msra.mxu0 0.0
      %5514 = vmatprep.subr.mxu0 0.0
      %5515 = vmatpush1.msra.mxu0 0.0
      %5516 = vmatprep.subr.mxu0 0.0
      %5517 = vmatpush1.msra.mxu0 0.0
      %5518 = vmatprep.subr.mxu0 0.0
      %5519 = vmatpush1.msra.mxu0 0.0
      %5520 = vmatprep.subr.mxu0 0.0
      %5521 = vmatpush1.msra.mxu0 0.0
      %5522 = vmatprep.subr.mxu0 0.0
      %5523 = vmatpush1.msra.mxu0 0.0
      %5524 = vmatprep.subr.mxu0 0.0
      %5525 = vmatpush1.msra.mxu0 0.0
      %5526 = vmatprep.subr.mxu0 0.0
      %5527 = vmatpush1.msra.mxu0 0.0
      %5528 = vmatprep.subr.mxu0 0.0
      %5529 = vmatpush1.msra.mxu0 0.0
      %5530 = vmatprep.subr.mxu0 0.0
      %5531 = vmatpush1.msra.mxu0 0.0
      %5532 = vmatprep.subr.mxu0 0.0
      %5533 = vmatpush1.msra.mxu0 0.0
      %5534 = vmatprep.subr.mxu0 0.0
      %5535 = vmatpush1.msra.mxu0 0.0
      %5536 = vmatprep.subr.mxu0 0.0
      %5537 = vmatpush1.msra.mxu0 0.0
      %5538 = vmatprep.subr.mxu0 0.0
      %5539 = vmatpush1.msra.mxu0 0.0
      %5540 = vmatprep.subr.mxu0 0.0
      %5541 = vmatpush1.msra.mxu0 0.0
      %5542 = vmatprep.subr.mxu0 0.0
      %5543 = vmatpush1.msra.mxu0 0.0
      %5544 = vmatprep.subr.mxu0 0.0
      %5545 = vmatpush1.msra.mxu0 0.0
      %5546 = vmatprep.subr.mxu0 0.0
      %5547 = vmatpush1.msra.mxu0 0.0
      %5548 = vmatprep.subr.mxu0 0.0
      %5549 = vmatpush1.msra.mxu0 0.0
      %5550 = vmatprep.subr.mxu0 0.0
      %5551 = vmatpush1.msra.mxu0 0.0
      %5552 = vmatprep.subr.mxu0 0.0
      %5553 = vmatpush1.msra.mxu0 0.0
      %5554 = vmatprep.subr.mxu0 0.0
      %5555 = vmatpush1.msra.mxu0 0.0
      %5556 = vmatprep.subr.mxu0 0.0
      %5557 = vmatpush1.msra.mxu0 0.0
      %5558 = vmatprep.subr.mxu0 0.0
      %5559 = vmatpush1.msra.mxu0 0.0
      %5560 = vmatprep.subr.mxu0 0.0
      %5561 = vmatpush1.msra.mxu0 0.0
      %5562 = vmatprep.subr.mxu0 0.0
      %5563 = vmatpush1.msra.mxu0 0.0
      %5564 = vmatprep.subr.mxu0 0.0
      %5565 = vmatpush1.msra.mxu0 0.0
      %5566 = vmatprep.subr.mxu0 0.0
      %5567 = vmatpush1.msra.mxu0 0.0
      %5568 = vmatprep.subr.mxu0 0.0
      %5569 = vmatpush1.msra.mxu0 0.0
      %5570 = vmatprep.mubr.f32.mxu0 0.0
      %5571 = vmatmul.mubr.f32.gmra.mrb[0].mxu0 %v5411
      %v5572 = vpop.f32.mrb[0].mxu0
      %v5573 = vadd.f32 0.0, %v5572
      %v5574 = vpop.f32.mrb[0].mxu0
      %5575 = vmatprep.mubr.f32.mxu0 0.0
      %5576 = vmatmul.mubr.f32.gmra.mrb[0].mxu0 %v5414
      %v5577 = vpop.f32.mrb[0].mxu0
      %v5578 = vadd.f32 0.0, %v5577
      %v5579 = vpop.f32.mrb[0].mxu0
      %5580 = vmatprep.mubr.f32.mxu0 0.0
      %5581 = vmatmul.mubr.f32.gmra.mrb[0].mxu0 %v5417
      %v5582 = vpop.f32.mrb[0].mxu0
      %v5583 = vadd.f32 0.0, %v5582
      %v5584 = vpop.f32.mrb[0].mxu0
      %5585 = vmatprep.mubr.f32.mxu0 0.0
      %5586 = vmatmul.mubr.f32.gmra.mrb[0].mxu0 %v5420
      %v5587 = vpop.f32.mrb[0].mxu0
      %v5588 = vadd.f32 0.0, %v5587
      %v5589 = vpop.f32.mrb[0].mxu0
      %5590 = vmatprep.mubr.f32.mxu0 0.0
      %5591 = vmatmul.mubr.f32.gmra.mrb[0].mxu0 %v5423
      %v5592 = vpop.f32.mrb[0].mxu0
      %v5593 = vadd.f32 0.0, %v5592
      %v5594 = vpop.f32.mrb[0].mxu0
      %5595 = vmatprep.mubr.f32.mxu0 0.0
      %5596 = vmatmul.mubr.f32.gmra.mrb[0].mxu0 %v5426
      %v5597 = vpop.f32.mrb[0].mxu0
      %v5598 = vadd.f32 0.0, %v5597
      %v5599 = vpop.f32.mrb[0].mxu0
      %5600 = vmatprep.mubr.f32.mxu0 0.0
      %5601 = vmatmul.mubr.f32.gmra.mrb[0].mxu0 %v5429
      %v5602 = vpop.f32.mrb[0].mxu0
      %v5603 = vadd.f32 0.0, %v5602
      %v5604 = vpop.f32.mrb[0].mxu0
      %5605 = vmatprep.mubr.f32.mxu0 0.0
      %5606 = vmatmul.mubr.f32.gmra.mrb[0].mxu0 %v5432
      %v5607 = vpop.f32.mrb[0].mxu0
      %v5608 = vadd.f32 0.0, %v5607
      %v5609 = vpop.f32.mrb[0].mxu0
      %5610 = vmatprep.mubr.f32.mxu0 0.0
      %5611 = vmatmul.mubr.f32.gmra.mrb[0].mxu0 %v5435
      %v5612 = vpop.f32.mrb[0].mxu0
      %v5613 = vadd.f32 0.0, %v5612
      %v5614 = vpop.f32.mrb[0].mxu0
      %5615 = vmatprep.mubr.f32.mxu0 0.0
      %5616 = vmatmul.mubr.f32.gmra.mrb[0].mxu0 %v5438
      %v5617 = vpop.f32.mrb[0].mxu0
      %v5618 = vadd.f32 0.0, %v5617
      %v5619 = vpop.f32.mrb[0].mxu0
      %5620 = vmatprep.mubr.f32.mxu0 0.0
      %5621 = vmatmul.mubr.f32.gmra.mrb[0].mxu0 %v5441
      %v5622 = vpop.f32.mrb[0].mxu0
      %v5623 = vadd.f32 0.0, %v5622
      %v5624 = vpop.f32.mrb[0].mxu0
      %5625 = vmatprep.mubr.f32.mxu0 0.0
      %5626 = vmatmul.mubr.f32.gmra.mrb[0].mxu0 %v5444
      %v5627 = vpop.f32.mrb[0].mxu0
      %v5628 = vadd.f32 0.0, %v5627
      %v5629 = vpop.f32.mrb[0].mxu0
      %5630 = vmatprep.mubr.f32.mxu0 0.0
      %5631 = vmatmul.mubr.f32.gmra.mrb[0].mxu0 %v5447
      %v5632 = vpop.f32.mrb[0].mxu0
      %v5633 = vadd.f32 0.0, %v5632
      %v5634 = vpop.f32.mrb[0].mxu0
      %5635 = vmatprep.mubr.f32.mxu0 0.0
      %5636 = vmatmul.mubr.f32.gmra.mrb[0].mxu0 %v5450
      %v5637 = vpop.f32.mrb[0].mxu0
      %v5638 = vadd.f32 0.0, %v5637
      %v5639 = vpop.f32.mrb[0].mxu0
      %5640 = vmatprep.mubr.f32.mxu0 0.0
      %5641 = vmatmul.mubr.f32.gmra.mrb[0].mxu0 %v5453
      %v5642 = vpop.f32.mrb[0].mxu0
      %v5643 = vadd.f32 0.0, %v5642
      %v5644 = vpop.f32.mrb[0].mxu0
      %5645 = vmatprep.mubr.f32.mxu0 0.0
      %5646 = vmatmul.mubr.f32.gmra.mrb[0].mxu0 %v5456
      %v5647 = vpop.f32.mrb[0].mxu0
      %v5648 = vadd.f32 0.0, %v5647
      %v5649 = vpop.f32.mrb[0].mxu0
      %5650 = vmatprep.mubr.f32.mxu0 0.0
      %5651 = vmatmul.mubr.f32.gmra.mrb[0].mxu0 %v5459
      %v5652 = vpop.f32.mrb[0].mxu0
      %v5653 = vadd.f32 0.0, %v5652
      %v5654 = vpop.f32.mrb[0].mxu0
      %5655 = vmatprep.mubr.f32.mxu0 0.0
      %5656 = vmatmul.mubr.f32.gmra.mrb[0].mxu0 %v5462
      %v5657 = vpop.f32.mrb[0].mxu0
      %v5658 = vadd.f32 0.0, %v5657
      %v5659 = vpop.f32.mrb[0].mxu0
      %5660 = vmatprep.mubr.f32.mxu0 0.0
      %5661 = vmatmul.mubr.f32.gmra.mrb[0].mxu0 %v5465
      %v5662 = vpop.f32.mrb[0].mxu0
      %v5663 = vadd.f32 0.0, %v5662
      %v5664 = vpop.f32.mrb[0].mxu0
      %5665 = vmatprep.mubr.f32.mxu0 0.0
      %5666 = vmatmul.mubr.f32.gmra.mrb[0].mxu0 %v5468
      %v5667 = vpop.f32.mrb[0].mxu0
      %v5668 = vadd.f32 0.0, %v5667
      %v5669 = vpop.f32.mrb[0].mxu0
      %5670 = vmatprep.mubr.f32.mxu0 0.0
      %5671 = vmatmul.mubr.f32.gmra.mrb[0].mxu0 %v5471
      %v5672 = vpop.f32.mrb[0].mxu0
      %v5673 = vadd.f32 0.0, %v5672
      %v5674 = vpop.f32.mrb[0].mxu0
      %5675 = vmatprep.mubr.f32.mxu0 0.0
      %5676 = vmatmul.mubr.f32.gmra.mrb[0].mxu0 %v5474
      %v5677 = vpop.f32.mrb[0].mxu0
      %v5678 = vadd.f32 0.0, %v5677
      %v5679 = vpop.f32.mrb[0].mxu0
      %5680 = vmatprep.mubr.f32.mxu0 0.0
      %5681 = vmatmul.mubr.f32.gmra.mrb[0].mxu0 %v5477
      %v5682 = vpop.f32.mrb[0].mxu0
      %v5683 = vadd.f32 0.0, %v5682
      %v5684 = vpop.f32.mrb[0].mxu0
      %5685 = vmatprep.mubr.f32.mxu0 0.0
      %5686 = vmatmul.mubr.f32.gmra.mrb[0].mxu0 %v5480
      %v5687 = vpop.f32.mrb[0].mxu0
      %v5688 = vadd.f32 0.0, %v5687
      %v5689 = vpop.f32.mrb[0].mxu0
      %5690 = vmatprep.mubr.f32.mxu0 0.0
      %5691 = vmatmul.mubr.f32.gmra.mrb[0].mxu0 %v5483
      %v5692 = vpop.f32.mrb[0].mxu0
      %v5693 = vadd.f32 0.0, %v5692
      %v5694 = vpop.f32.mrb[0].mxu0
      %5695 = vmatprep.mubr.f32.mxu0 0.0
      %5696 = vmatmul.mubr.f32.gmra.mrb[0].mxu0 %v5486
      %v5697 = vpop.f32.mrb[0].mxu0
      %v5698 = vadd.f32 0.0, %v5697
      %v5699 = vpop.f32.mrb[0].mxu0
      %5700 = vmatprep.mubr.f32.mxu0 0.0
      %5701 = vmatmul.mubr.f32.gmra.mrb[0].mxu0 %v5489
      %v5702 = vpop.f32.mrb[0].mxu0
      %v5703 = vadd.f32 0.0, %v5702
      %v5704 = vpop.f32.mrb[0].mxu0
      %5705 = vmatprep.mubr.f32.mxu0 0.0
      %5706 = vmatmul.mubr.f32.gmra.mrb[0].mxu0 %v5492
      %v5707 = vpop.f32.mrb[0].mxu0
      %v5708 = vadd.f32 0.0, %v5707
      %v5709 = vpop.f32.mrb[0].mxu0
      %5710 = vmatprep.mubr.f32.mxu0 0.0
      %5711 = vmatmul.mubr.f32.gmra.mrb[0].mxu0 %v5495
      %v5712 = vpop.f32.mrb[0].mxu0
      %v5713 = vadd.f32 0.0, %v5712
      %v5714 = vpop.f32.mrb[0].mxu0
      %5715 = vmatprep.mubr.f32.mxu0 0.0
      %5716 = vmatmul.mubr.f32.gmra.mrb[0].mxu0 %v5498
      %v5717 = vpop.f32.mrb[0].mxu0
      %v5718 = vadd.f32 0.0, %v5717
      %v5719 = vpop.f32.mrb[0].mxu0
      %5720 = vmatprep.mubr.f32.mxu0 0.0
      %5721 = vmatmul.mubr.f32.gmra.mrb[0].mxu0 %v5501
      %v5722 = vpop.f32.mrb[0].mxu0
      %v5723 = vadd.f32 0.0, %v5722
      %v5724 = vpop.f32.mrb[0].mxu0
      %5725 = vmatprep.mubr.f32.mxu0 0.0
      %5726 = vmatmul.mubr.f32.gmra.mrb[0].mxu0 %v5504
      %v5727 = vpop.f32.mrb[0].mxu0
      %v5728 = vadd.f32 0.0, %v5727
      %v5729 = vpop.f32.mrb[0].mxu0
      %5730 = vdwg.mxu0
      %v5731 = vadd.f32 %v5344, %v5573
      %v5732 = vadd.f32 %v5345, %v5578
      %v5733 = vadd.f32 %v5346, %v5583
      %v5734 = vadd.f32 %v5347, %v5588
      %v5735 = vadd.f32 %v5348, %v5593
      %v5736 = vadd.f32 %v5349, %v5598
      %v5737 = vadd.f32 %v5350, %v5603
      %v5738 = vadd.f32 %v5351, %v5608
      %v5739 = vadd.f32 %v5352, %v5613
      %v5740 = vadd.f32 %v5353, %v5618
      %v5741 = vadd.f32 %v5354, %v5623
      %v5742 = vadd.f32 %v5355, %v5628
      %v5743 = vadd.f32 %v5356, %v5633
      %v5744 = vadd.f32 %v5357, %v5638
      %v5745 = vadd.f32 %v5358, %v5643
      %v5746 = vadd.f32 %v5359, %v5648
      %v5747 = vadd.f32 %v5360, %v5653
      %v5748 = vadd.f32 %v5361, %v5658
      %v5749 = vadd.f32 %v5362, %v5663
      %v5750 = vadd.f32 %v5363, %v5668
      %v5751 = vadd.f32 %v5364, %v5673
      %v5752 = vadd.f32 %v5365, %v5678
      %v5753 = vadd.f32 %v5366, %v5683
      %v5754 = vadd.f32 %v5367, %v5688
      %v5755 = vadd.f32 %v5368, %v5693
      %v5756 = vadd.f32 %v5369, %v5698
      %v5757 = vadd.f32 %v5370, %v5703
      %v5758 = vadd.f32 %v5371, %v5708
      %v5759 = vadd.f32 %v5372, %v5713
      %v5760 = vadd.f32 %v5373, %v5718
      %v5761 = vadd.f32 %v5374, %v5723
      %v5762 = vadd.f32 %v5375, %v5728
      %v5763 = vld [vmem:[%s234 + $0x2] sm:$0xff]
      %v5764 = vld [vmem:[%s234 + $0xa] sm:$0xff]
      %v5765 = vld [vmem:[%s234 + $0x1a] sm:$0xff]
      %v5766 = vld [vmem:[%s234 + $0x22] sm:$0xff]
      %v5767 = vld [vmem:[%s234 + $0x32] sm:$0xff]
      %v5768 = vld [vmem:[%s234 + $0x3a] sm:$0xff]
      %v5769 = vld [vmem:[%s234 + $0x4a] sm:$0xff]
      %v5770 = vld [vmem:[%s234 + $0x52] sm:$0xff]
      %v5771 = vld [vmem:[%s234 + $0x62] sm:$0xff]
      %v5772 = vld [vmem:[%s234 + $0x6a] sm:$0xff]
      %v5773 = vld [vmem:[%s234 + $0x7a] sm:$0xff]
      %v5774 = vld [vmem:[%s234 + $0x82] sm:$0xff]
      %v5775 = vld [vmem:[%s234 + $0x92] sm:$0xff]
      %v5776 = vld [vmem:[%s234 + $0x9a] sm:$0xff]
      %v5777 = vld [vmem:[%s234 + $0xaa] sm:$0xff]
      %v5778 = vld [vmem:[%s234 + $0xb2] sm:$0xff]
      %v5779 = vld [vmem:[%s234 + $0xc2] sm:$0xff]
      %v5780 = vld [vmem:[%s234 + $0xca] sm:$0xff]
      %v5781 = vld [vmem:[%s234 + $0xda] sm:$0xff]
      %v5782 = vld [vmem:[%s234 + $0xe2] sm:$0xff]
      %v5783 = vld [vmem:[%s234 + $0xf2] sm:$0xff]
      %v5784 = vld [vmem:[%s234 + $0xfa] sm:$0xff]
      %v5785 = vld [vmem:[%s234 + $0x10a] sm:$0xff]
      %v5786 = vld [vmem:[%s234 + $0x112] sm:$0xff]
      %v5787 = vld [vmem:[%s234 + $0x122] sm:$0xff]
      %v5788 = vld [vmem:[%s234 + $0x12a] sm:$0xff]
      %v5789 = vld [vmem:[%s234 + $0x13a] sm:$0xff]
      %v5790 = vld [vmem:[%s234 + $0x142] sm:$0xff]
      %v5791 = vld [vmem:[%s234 + $0x152] sm:$0xff]
      %v5792 = vld [vmem:[%s234 + $0x15a] sm:$0xff]
      %v5793 = vld [vmem:[%s234 + $0x16a] sm:$0xff]
      %v5794 = vld [vmem:[%s234 + $0x172] sm:$0xff]
      %s5795 = scalar_lea.vmem %s3, 40
      %v5796 = vld [vmem:[%s5795] sm:$0xff]
      %v5798 = vsel %vm225, %v5763, 0
      %v5801 = vsel %vm225, %v5764, 0
      %v5804 = vsel %vm225, %v5765, 0
      %v5807 = vsel %vm225, %v5766, 0
      %v5810 = vsel %vm225, %v5767, 0
      %v5813 = vsel %vm225, %v5768, 0
      %v5816 = vsel %vm225, %v5769, 0
      %v5819 = vsel %vm225, %v5770, 0
      %v5822 = vsel %vm225, %v5771, 0
      %v5825 = vsel %vm225, %v5772, 0
      %v5828 = vsel %vm225, %v5773, 0
      %v5831 = vsel %vm225, %v5774, 0
      %v5834 = vsel %vm225, %v5775, 0
      %v5837 = vsel %vm225, %v5776, 0
      %v5840 = vsel %vm225, %v5777, 0
      %v5843 = vsel %vm225, %v5778, 0
      %v5846 = vsel %vm225, %v5779, 0
      %v5849 = vsel %vm225, %v5780, 0
      %v5852 = vsel %vm225, %v5781, 0
      %v5855 = vsel %vm225, %v5782, 0
      %v5858 = vsel %vm225, %v5783, 0
      %v5861 = vsel %vm225, %v5784, 0
      %v5864 = vsel %vm225, %v5785, 0
      %v5867 = vsel %vm225, %v5786, 0
      %v5870 = vsel %vm225, %v5787, 0
      %v5873 = vsel %vm225, %v5788, 0
      %v5876 = vsel %vm225, %v5789, 0
      %v5879 = vsel %vm225, %v5790, 0
      %v5882 = vsel %vm225, %v5791, 0
      %v5885 = vsel %vm225, %v5792, 0
      %v5888 = vsel %vm225, %v5793, 0
      %v5891 = vsel %vm225, %v5794, 0
      %5893 = vmatprep.subr.mxu0 0.0
      %5894 = vmatpush1.msra.mxu0 %v5796
      %5895 = vmatprep.subr.mxu0 0.0
      %5896 = vmatpush1.msra.mxu0 0.0
      %5897 = vmatprep.subr.mxu0 0.0
      %5898 = vmatpush1.msra.mxu0 0.0
      %5899 = vmatprep.subr.mxu0 0.0
      %5900 = vmatpush1.msra.mxu0 0.0
      %5901 = vmatprep.subr.mxu0 0.0
      %5902 = vmatpush1.msra.mxu0 0.0
      %5903 = vmatprep.subr.mxu0 0.0
      %5904 = vmatpush1.msra.mxu0 0.0
      %5905 = vmatprep.subr.mxu0 0.0
      %5906 = vmatpush1.msra.mxu0 0.0
      %5907 = vmatprep.subr.mxu0 0.0
      %5908 = vmatpush1.msra.mxu0 0.0
      %5909 = vmatprep.subr.mxu0 0.0
      %5910 = vmatpush1.msra.mxu0 0.0
      %5911 = vmatprep.subr.mxu0 0.0
      %5912 = vmatpush1.msra.mxu0 0.0
      %5913 = vmatprep.subr.mxu0 0.0
      %5914 = vmatpush1.msra.mxu0 0.0
      %5915 = vmatprep.subr.mxu0 0.0
      %5916 = vmatpush1.msra.mxu0 0.0
      %5917 = vmatprep.subr.mxu0 0.0
      %5918 = vmatpush1.msra.mxu0 0.0
      %5919 = vmatprep.subr.mxu0 0.0
      %5920 = vmatpush1.msra.mxu0 0.0
      %5921 = vmatprep.subr.mxu0 0.0
      %5922 = vmatpush1.msra.mxu0 0.0
      %5923 = vmatprep.subr.mxu0 0.0
      %5924 = vmatpush1.msra.mxu0 0.0
      %5925 = vmatprep.subr.mxu0 0.0
      %5926 = vmatpush1.msra.mxu0 0.0
      %5927 = vmatprep.subr.mxu0 0.0
      %5928 = vmatpush1.msra.mxu0 0.0
      %5929 = vmatprep.subr.mxu0 0.0
      %5930 = vmatpush1.msra.mxu0 0.0
      %5931 = vmatprep.subr.mxu0 0.0
      %5932 = vmatpush1.msra.mxu0 0.0
      %5933 = vmatprep.subr.mxu0 0.0
      %5934 = vmatpush1.msra.mxu0 0.0
      %5935 = vmatprep.subr.mxu0 0.0
      %5936 = vmatpush1.msra.mxu0 0.0
      %5937 = vmatprep.subr.mxu0 0.0
      %5938 = vmatpush1.msra.mxu0 0.0
      %5939 = vmatprep.subr.mxu0 0.0
      %5940 = vmatpush1.msra.mxu0 0.0
      %5941 = vmatprep.subr.mxu0 0.0
      %5942 = vmatpush1.msra.mxu0 0.0
      %5943 = vmatprep.subr.mxu0 0.0
      %5944 = vmatpush1.msra.mxu0 0.0
      %5945 = vmatprep.subr.mxu0 0.0
      %5946 = vmatpush1.msra.mxu0 0.0
      %5947 = vmatprep.subr.mxu0 0.0
      %5948 = vmatpush1.msra.mxu0 0.0
      %5949 = vmatprep.subr.mxu0 0.0
      %5950 = vmatpush1.msra.mxu0 0.0
      %5951 = vmatprep.subr.mxu0 0.0
      %5952 = vmatpush1.msra.mxu0 0.0
      %5953 = vmatprep.subr.mxu0 0.0
      %5954 = vmatpush1.msra.mxu0 0.0
      %5955 = vmatprep.subr.mxu0 0.0
      %5956 = vmatpush1.msra.mxu0 0.0
      %5957 = vmatprep.mubr.f32.mxu0 0.0
      %5958 = vmatmul.mubr.f32.gmra.mrb[0].mxu0 %v5798
      %v5959 = vpop.f32.mrb[0].mxu0
      %v5960 = vadd.f32 0.0, %v5959
      %v5961 = vpop.f32.mrb[0].mxu0
      %5962 = vmatprep.mubr.f32.mxu0 0.0
      %5963 = vmatmul.mubr.f32.gmra.mrb[0].mxu0 %v5801
      %v5964 = vpop.f32.mrb[0].mxu0
      %v5965 = vadd.f32 0.0, %v5964
      %v5966 = vpop.f32.mrb[0].mxu0
      %5967 = vmatprep.mubr.f32.mxu0 0.0
      %5968 = vmatmul.mubr.f32.gmra.mrb[0].mxu0 %v5804
      %v5969 = vpop.f32.mrb[0].mxu0
      %v5970 = vadd.f32 0.0, %v5969
      %v5971 = vpop.f32.mrb[0].mxu0
      %5972 = vmatprep.mubr.f32.mxu0 0.0
      %5973 = vmatmul.mubr.f32.gmra.mrb[0].mxu0 %v5807
      %v5974 = vpop.f32.mrb[0].mxu0
      %v5975 = vadd.f32 0.0, %v5974
      %v5976 = vpop.f32.mrb[0].mxu0
      %5977 = vmatprep.mubr.f32.mxu0 0.0
      %5978 = vmatmul.mubr.f32.gmra.mrb[0].mxu0 %v5810
      %v5979 = vpop.f32.mrb[0].mxu0
      %v5980 = vadd.f32 0.0, %v5979
      %v5981 = vpop.f32.mrb[0].mxu0
      %5982 = vmatprep.mubr.f32.mxu0 0.0
      %5983 = vmatmul.mubr.f32.gmra.mrb[0].mxu0 %v5813
      %v5984 = vpop.f32.mrb[0].mxu0
      %v5985 = vadd.f32 0.0, %v5984
      %v5986 = vpop.f32.mrb[0].mxu0
      %5987 = vmatprep.mubr.f32.mxu0 0.0
      %5988 = vmatmul.mubr.f32.gmra.mrb[0].mxu0 %v5816
      %v5989 = vpop.f32.mrb[0].mxu0
      %v5990 = vadd.f32 0.0, %v5989
      %v5991 = vpop.f32.mrb[0].mxu0
      %5992 = vmatprep.mubr.f32.mxu0 0.0
      %5993 = vmatmul.mubr.f32.gmra.mrb[0].mxu0 %v5819
      %v5994 = vpop.f32.mrb[0].mxu0
      %v5995 = vadd.f32 0.0, %v5994
      %v5996 = vpop.f32.mrb[0].mxu0
      %5997 = vmatprep.mubr.f32.mxu0 0.0
      %5998 = vmatmul.mubr.f32.gmra.mrb[0].mxu0 %v5822
      %v5999 = vpop.f32.mrb[0].mxu0
      %v6000 = vadd.f32 0.0, %v5999
      %v6001 = vpop.f32.mrb[0].mxu0
      %6002 = vmatprep.mubr.f32.mxu0 0.0
      %6003 = vmatmul.mubr.f32.gmra.mrb[0].mxu0 %v5825
      %v6004 = vpop.f32.mrb[0].mxu0
      %v6005 = vadd.f32 0.0, %v6004
      %v6006 = vpop.f32.mrb[0].mxu0
      %6007 = vmatprep.mubr.f32.mxu0 0.0
      %6008 = vmatmul.mubr.f32.gmra.mrb[0].mxu0 %v5828
      %v6009 = vpop.f32.mrb[0].mxu0
      %v6010 = vadd.f32 0.0, %v6009
      %v6011 = vpop.f32.mrb[0].mxu0
      %6012 = vmatprep.mubr.f32.mxu0 0.0
      %6013 = vmatmul.mubr.f32.gmra.mrb[0].mxu0 %v5831
      %v6014 = vpop.f32.mrb[0].mxu0
      %v6015 = vadd.f32 0.0, %v6014
      %v6016 = vpop.f32.mrb[0].mxu0
      %6017 = vmatprep.mubr.f32.mxu0 0.0
      %6018 = vmatmul.mubr.f32.gmra.mrb[0].mxu0 %v5834
      %v6019 = vpop.f32.mrb[0].mxu0
      %v6020 = vadd.f32 0.0, %v6019
      %v6021 = vpop.f32.mrb[0].mxu0
      %6022 = vmatprep.mubr.f32.mxu0 0.0
      %6023 = vmatmul.mubr.f32.gmra.mrb[0].mxu0 %v5837
      %v6024 = vpop.f32.mrb[0].mxu0
      %v6025 = vadd.f32 0.0, %v6024
      %v6026 = vpop.f32.mrb[0].mxu0
      %6027 = vmatprep.mubr.f32.mxu0 0.0
      %6028 = vmatmul.mubr.f32.gmra.mrb[0].mxu0 %v5840
      %v6029 = vpop.f32.mrb[0].mxu0
      %v6030 = vadd.f32 0.0, %v6029
      %v6031 = vpop.f32.mrb[0].mxu0
      %6032 = vmatprep.mubr.f32.mxu0 0.0
      %6033 = vmatmul.mubr.f32.gmra.mrb[0].mxu0 %v5843
      %v6034 = vpop.f32.mrb[0].mxu0
      %v6035 = vadd.f32 0.0, %v6034
      %v6036 = vpop.f32.mrb[0].mxu0
      %6037 = vmatprep.mubr.f32.mxu0 0.0
      %6038 = vmatmul.mubr.f32.gmra.mrb[0].mxu0 %v5846
      %v6039 = vpop.f32.mrb[0].mxu0
      %v6040 = vadd.f32 0.0, %v6039
      %v6041 = vpop.f32.mrb[0].mxu0
      %6042 = vmatprep.mubr.f32.mxu0 0.0
      %6043 = vmatmul.mubr.f32.gmra.mrb[0].mxu0 %v5849
      %v6044 = vpop.f32.mrb[0].mxu0
      %v6045 = vadd.f32 0.0, %v6044
      %v6046 = vpop.f32.mrb[0].mxu0
      %6047 = vmatprep.mubr.f32.mxu0 0.0
      %6048 = vmatmul.mubr.f32.gmra.mrb[0].mxu0 %v5852
      %v6049 = vpop.f32.mrb[0].mxu0
      %v6050 = vadd.f32 0.0, %v6049
      %v6051 = vpop.f32.mrb[0].mxu0
      %6052 = vmatprep.mubr.f32.mxu0 0.0
      %6053 = vmatmul.mubr.f32.gmra.mrb[0].mxu0 %v5855
      %v6054 = vpop.f32.mrb[0].mxu0
      %v6055 = vadd.f32 0.0, %v6054
      %v6056 = vpop.f32.mrb[0].mxu0
      %6057 = vmatprep.mubr.f32.mxu0 0.0
      %6058 = vmatmul.mubr.f32.gmra.mrb[0].mxu0 %v5858
      %v6059 = vpop.f32.mrb[0].mxu0
      %v6060 = vadd.f32 0.0, %v6059
      %v6061 = vpop.f32.mrb[0].mxu0
      %6062 = vmatprep.mubr.f32.mxu0 0.0
      %6063 = vmatmul.mubr.f32.gmra.mrb[0].mxu0 %v5861
      %v6064 = vpop.f32.mrb[0].mxu0
      %v6065 = vadd.f32 0.0, %v6064
      %v6066 = vpop.f32.mrb[0].mxu0
      %6067 = vmatprep.mubr.f32.mxu0 0.0
      %6068 = vmatmul.mubr.f32.gmra.mrb[0].mxu0 %v5864
      %v6069 = vpop.f32.mrb[0].mxu0
      %v6070 = vadd.f32 0.0, %v6069
      %v6071 = vpop.f32.mrb[0].mxu0
      %6072 = vmatprep.mubr.f32.mxu0 0.0
      %6073 = vmatmul.mubr.f32.gmra.mrb[0].mxu0 %v5867
      %v6074 = vpop.f32.mrb[0].mxu0
      %v6075 = vadd.f32 0.0, %v6074
      %v6076 = vpop.f32.mrb[0].mxu0
      %6077 = vmatprep.mubr.f32.mxu0 0.0
      %6078 = vmatmul.mubr.f32.gmra.mrb[0].mxu0 %v5870
      %v6079 = vpop.f32.mrb[0].mxu0
      %v6080 = vadd.f32 0.0, %v6079
      %v6081 = vpop.f32.mrb[0].mxu0
      %6082 = vmatprep.mubr.f32.mxu0 0.0
      %6083 = vmatmul.mubr.f32.gmra.mrb[0].mxu0 %v5873
      %v6084 = vpop.f32.mrb[0].mxu0
      %v6085 = vadd.f32 0.0, %v6084
      %v6086 = vpop.f32.mrb[0].mxu0
      %6087 = vmatprep.mubr.f32.mxu0 0.0
      %6088 = vmatmul.mubr.f32.gmra.mrb[0].mxu0 %v5876
      %v6089 = vpop.f32.mrb[0].mxu0
      %v6090 = vadd.f32 0.0, %v6089
      %v6091 = vpop.f32.mrb[0].mxu0
      %6092 = vmatprep.mubr.f32.mxu0 0.0
      %6093 = vmatmul.mubr.f32.gmra.mrb[0].mxu0 %v5879
      %v6094 = vpop.f32.mrb[0].mxu0
      %v6095 = vadd.f32 0.0, %v6094
      %v6096 = vpop.f32.mrb[0].mxu0
      %6097 = vmatprep.mubr.f32.mxu0 0.0
      %6098 = vmatmul.mubr.f32.gmra.mrb[0].mxu0 %v5882
      %v6099 = vpop.f32.mrb[0].mxu0
      %v6100 = vadd.f32 0.0, %v6099
      %v6101 = vpop.f32.mrb[0].mxu0
      %6102 = vmatprep.mubr.f32.mxu0 0.0
      %6103 = vmatmul.mubr.f32.gmra.mrb[0].mxu0 %v5885
      %v6104 = vpop.f32.mrb[0].mxu0
      %v6105 = vadd.f32 0.0, %v6104
      %v6106 = vpop.f32.mrb[0].mxu0
      %6107 = vmatprep.mubr.f32.mxu0 0.0
      %6108 = vmatmul.mubr.f32.gmra.mrb[0].mxu0 %v5888
      %v6109 = vpop.f32.mrb[0].mxu0
      %v6110 = vadd.f32 0.0, %v6109
      %v6111 = vpop.f32.mrb[0].mxu0
      %6112 = vmatprep.mubr.f32.mxu0 0.0
      %6113 = vmatmul.mubr.f32.gmra.mrb[0].mxu0 %v5891
      %v6114 = vpop.f32.mrb[0].mxu0
      %v6115 = vadd.f32 0.0, %v6114
      %v6116 = vpop.f32.mrb[0].mxu0
      %6117 = vdwg.mxu0
      %v6118 = vadd.f32 %v5731, %v5960
      %v6119 = vadd.f32 %v5732, %v5965
      %v6120 = vadd.f32 %v5733, %v5970
      %v6121 = vadd.f32 %v5734, %v5975
      %v6122 = vadd.f32 %v5735, %v5980
      %v6123 = vadd.f32 %v5736, %v5985
      %v6124 = vadd.f32 %v5737, %v5990
      %v6125 = vadd.f32 %v5738, %v5995
      %v6126 = vadd.f32 %v5739, %v6000
      %v6127 = vadd.f32 %v5740, %v6005
      %v6128 = vadd.f32 %v5741, %v6010
      %v6129 = vadd.f32 %v5742, %v6015
      %v6130 = vadd.f32 %v5743, %v6020
      %v6131 = vadd.f32 %v5744, %v6025
      %v6132 = vadd.f32 %v5745, %v6030
      %v6133 = vadd.f32 %v5746, %v6035
      %v6134 = vadd.f32 %v5747, %v6040
      %v6135 = vadd.f32 %v5748, %v6045
      %v6136 = vadd.f32 %v5749, %v6050
      %v6137 = vadd.f32 %v5750, %v6055
      %v6138 = vadd.f32 %v5751, %v6060
      %v6139 = vadd.f32 %v5752, %v6065
      %v6140 = vadd.f32 %v5753, %v6070
      %v6141 = vadd.f32 %v5754, %v6075
      %v6142 = vadd.f32 %v5755, %v6080
      %v6143 = vadd.f32 %v5756, %v6085
      %v6144 = vadd.f32 %v5757, %v6090
      %v6145 = vadd.f32 %v5758, %v6095
      %v6146 = vadd.f32 %v5759, %v6100
      %v6147 = vadd.f32 %v5760, %v6105
      %v6148 = vadd.f32 %v5761, %v6110
      %v6149 = vadd.f32 %v5762, %v6115
      %v6150 = vld [vmem:[%s2628] sm:$0xff]
      %v6151 = vld [vmem:[%s2628 + $0x8] sm:$0xff]
      %v6152 = vld [vmem:[%s2628 + $0x18] sm:$0xff]
      %v6153 = vld [vmem:[%s2628 + $0x20] sm:$0xff]
      %v6154 = vld [vmem:[%s2628 + $0x30] sm:$0xff]
      %v6155 = vld [vmem:[%s2628 + $0x38] sm:$0xff]
      %v6156 = vld [vmem:[%s2628 + $0x48] sm:$0xff]
      %v6157 = vld [vmem:[%s2628 + $0x50] sm:$0xff]
      %v6158 = vld [vmem:[%s2628 + $0x60] sm:$0xff]
      %v6159 = vld [vmem:[%s2628 + $0x68] sm:$0xff]
      %v6160 = vld [vmem:[%s2628 + $0x78] sm:$0xff]
      %v6161 = vld [vmem:[%s2628 + $0x80] sm:$0xff]
      %v6162 = vld [vmem:[%s2628 + $0x90] sm:$0xff]
      %v6163 = vld [vmem:[%s2628 + $0x98] sm:$0xff]
      %v6164 = vld [vmem:[%s2628 + $0xa8] sm:$0xff]
      %v6165 = vld [vmem:[%s2628 + $0xb0] sm:$0xff]
      %v6166 = vld [vmem:[%s2628 + $0xc0] sm:$0xff]
      %v6167 = vld [vmem:[%s2628 + $0xc8] sm:$0xff]
      %v6168 = vld [vmem:[%s2628 + $0xd8] sm:$0xff]
      %v6169 = vld [vmem:[%s2628 + $0xe0] sm:$0xff]
      %v6170 = vld [vmem:[%s2628 + $0xf0] sm:$0xff]
      %v6171 = vld [vmem:[%s2628 + $0xf8] sm:$0xff]
      %v6172 = vld [vmem:[%s2628 + $0x108] sm:$0xff]
      %v6173 = vld [vmem:[%s2628 + $0x110] sm:$0xff]
      %v6174 = vld [vmem:[%s2628 + $0x120] sm:$0xff]
      %v6175 = vld [vmem:[%s2628 + $0x128] sm:$0xff]
      %v6176 = vld [vmem:[%s2628 + $0x138] sm:$0xff]
      %v6177 = vld [vmem:[%s2628 + $0x140] sm:$0xff]
      %v6178 = vld [vmem:[%s2628 + $0x150] sm:$0xff]
      %v6179 = vld [vmem:[%s2628 + $0x158] sm:$0xff]
      %v6180 = vld [vmem:[%s2628 + $0x168] sm:$0xff]
      %v6181 = vld [vmem:[%s2628 + $0x170] sm:$0xff]
      %s6182 = scalar_lea.vmem %s3, 48
      %v6183 = vld [vmem:[%s6182] sm:$0xff]
      %v6185 = vsel %vm225, %v6150, 0
      %v6188 = vsel %vm225, %v6151, 0
      %v6191 = vsel %vm225, %v6152, 0
      %v6194 = vsel %vm225, %v6153, 0
      %v6197 = vsel %vm225, %v6154, 0
      %v6200 = vsel %vm225, %v6155, 0
      %v6203 = vsel %vm225, %v6156, 0
      %v6206 = vsel %vm225, %v6157, 0
      %v6209 = vsel %vm225, %v6158, 0
      %v6212 = vsel %vm225, %v6159, 0
      %v6215 = vsel %vm225, %v6160, 0
      %v6218 = vsel %vm225, %v6161, 0
      %v6221 = vsel %vm225, %v6162, 0
      %v6224 = vsel %vm225, %v6163, 0
      %v6227 = vsel %vm225, %v6164, 0
      %v6230 = vsel %vm225, %v6165, 0
      %v6233 = vsel %vm225, %v6166, 0
      %v6236 = vsel %vm225, %v6167, 0
      %v6239 = vsel %vm225, %v6168, 0
      %v6242 = vsel %vm225, %v6169, 0
      %v6245 = vsel %vm225, %v6170, 0
      %v6248 = vsel %vm225, %v6171, 0
      %v6251 = vsel %vm225, %v6172, 0
      %v6254 = vsel %vm225, %v6173, 0
      %v6257 = vsel %vm225, %v6174, 0
      %v6260 = vsel %vm225, %v6175, 0
      %v6263 = vsel %vm225, %v6176, 0
      %v6266 = vsel %vm225, %v6177, 0
      %v6269 = vsel %vm225, %v6178, 0
      %v6272 = vsel %vm225, %v6179, 0
      %v6275 = vsel %vm225, %v6180, 0
      %v6278 = vsel %vm225, %v6181, 0
      %6280 = vmatprep.subr.mxu0 0.0
      %6281 = vmatpush1.msra.mxu0 %v6183
      %6282 = vmatprep.subr.mxu0 0.0
      %6283 = vmatpush1.msra.mxu0 0.0
      %6284 = vmatprep.subr.mxu0 0.0
      %6285 = vmatpush1.msra.mxu0 0.0
      %6286 = vmatprep.subr.mxu0 0.0
      %6287 = vmatpush1.msra.mxu0 0.0
      %6288 = vmatprep.subr.mxu0 0.0
      %6289 = vmatpush1.msra.mxu0 0.0
      %6290 = vmatprep.subr.mxu0 0.0
      %6291 = vmatpush1.msra.mxu0 0.0
      %6292 = vmatprep.subr.mxu0 0.0
      %6293 = vmatpush1.msra.mxu0 0.0
      %6294 = vmatprep.subr.mxu0 0.0
      %6295 = vmatpush1.msra.mxu0 0.0
      %6296 = vmatprep.subr.mxu0 0.0
      %6297 = vmatpush1.msra.mxu0 0.0
      %6298 = vmatprep.subr.mxu0 0.0
      %6299 = vmatpush1.msra.mxu0 0.0
      %6300 = vmatprep.subr.mxu0 0.0
      %6301 = vmatpush1.msra.mxu0 0.0
      %6302 = vmatprep.subr.mxu0 0.0
      %6303 = vmatpush1.msra.mxu0 0.0
      %6304 = vmatprep.subr.mxu0 0.0
      %6305 = vmatpush1.msra.mxu0 0.0
      %6306 = vmatprep.subr.mxu0 0.0
      %6307 = vmatpush1.msra.mxu0 0.0
      %6308 = vmatprep.subr.mxu0 0.0
      %6309 = vmatpush1.msra.mxu0 0.0
      %6310 = vmatprep.subr.mxu0 0.0
      %6311 = vmatpush1.msra.mxu0 0.0
      %6312 = vmatprep.subr.mxu0 0.0
      %6313 = vmatpush1.msra.mxu0 0.0
      %6314 = vmatprep.subr.mxu0 0.0
      %6315 = vmatpush1.msra.mxu0 0.0
      %6316 = vmatprep.subr.mxu0 0.0
      %6317 = vmatpush1.msra.mxu0 0.0
      %6318 = vmatprep.subr.mxu0 0.0
      %6319 = vmatpush1.msra.mxu0 0.0
      %6320 = vmatprep.subr.mxu0 0.0
      %6321 = vmatpush1.msra.mxu0 0.0
      %6322 = vmatprep.subr.mxu0 0.0
      %6323 = vmatpush1.msra.mxu0 0.0
      %6324 = vmatprep.subr.mxu0 0.0
      %6325 = vmatpush1.msra.mxu0 0.0
      %6326 = vmatprep.subr.mxu0 0.0
      %6327 = vmatpush1.msra.mxu0 0.0
      %6328 = vmatprep.subr.mxu0 0.0
      %6329 = vmatpush1.msra.mxu0 0.0
      %6330 = vmatprep.subr.mxu0 0.0
      %6331 = vmatpush1.msra.mxu0 0.0
      %6332 = vmatprep.subr.mxu0 0.0
      %6333 = vmatpush1.msra.mxu0 0.0
      %6334 = vmatprep.subr.mxu0 0.0
      %6335 = vmatpush1.msra.mxu0 0.0
      %6336 = vmatprep.subr.mxu0 0.0
      %6337 = vmatpush1.msra.mxu0 0.0
      %6338 = vmatprep.subr.mxu0 0.0
      %6339 = vmatpush1.msra.mxu0 0.0
      %6340 = vmatprep.subr.mxu0 0.0
      %6341 = vmatpush1.msra.mxu0 0.0
      %6342 = vmatprep.subr.mxu0 0.0
      %6343 = vmatpush1.msra.mxu0 0.0
      %6344 = vmatprep.mubr.f32.mxu0 0.0
      %6345 = vmatmul.mubr.f32.gmra.mrb[0].mxu0 %v6185
      %v6346 = vpop.f32.mrb[0].mxu0
      %v6347 = vadd.f32 0.0, %v6346
      %v6348 = vpop.f32.mrb[0].mxu0
      %6349 = vmatprep.mubr.f32.mxu0 0.0
      %6350 = vmatmul.mubr.f32.gmra.mrb[0].mxu0 %v6188
      %v6351 = vpop.f32.mrb[0].mxu0
      %v6352 = vadd.f32 0.0, %v6351
      %v6353 = vpop.f32.mrb[0].mxu0
      %6354 = vmatprep.mubr.f32.mxu0 0.0
      %6355 = vmatmul.mubr.f32.gmra.mrb[0].mxu0 %v6191
      %v6356 = vpop.f32.mrb[0].mxu0
      %v6357 = vadd.f32 0.0, %v6356
      %v6358 = vpop.f32.mrb[0].mxu0
      %6359 = vmatprep.mubr.f32.mxu0 0.0
      %6360 = vmatmul.mubr.f32.gmra.mrb[0].mxu0 %v6194
      %v6361 = vpop.f32.mrb[0].mxu0
      %v6362 = vadd.f32 0.0, %v6361
      %v6363 = vpop.f32.mrb[0].mxu0
      %6364 = vmatprep.mubr.f32.mxu0 0.0
      %6365 = vmatmul.mubr.f32.gmra.mrb[0].mxu0 %v6197
      %v6366 = vpop.f32.mrb[0].mxu0
      %v6367 = vadd.f32 0.0, %v6366
      %v6368 = vpop.f32.mrb[0].mxu0
      %6369 = vmatprep.mubr.f32.mxu0 0.0
      %6370 = vmatmul.mubr.f32.gmra.mrb[0].mxu0 %v6200
      %v6371 = vpop.f32.mrb[0].mxu0
      %v6372 = vadd.f32 0.0, %v6371
      %v6373 = vpop.f32.mrb[0].mxu0
      %6374 = vmatprep.mubr.f32.mxu0 0.0
      %6375 = vmatmul.mubr.f32.gmra.mrb[0].mxu0 %v6203
      %v6376 = vpop.f32.mrb[0].mxu0
      %v6377 = vadd.f32 0.0, %v6376
      %v6378 = vpop.f32.mrb[0].mxu0
      %6379 = vmatprep.mubr.f32.mxu0 0.0
      %6380 = vmatmul.mubr.f32.gmra.mrb[0].mxu0 %v6206
      %v6381 = vpop.f32.mrb[0].mxu0
      %v6382 = vadd.f32 0.0, %v6381
      %v6383 = vpop.f32.mrb[0].mxu0
      %6384 = vmatprep.mubr.f32.mxu0 0.0
      %6385 = vmatmul.mubr.f32.gmra.mrb[0].mxu0 %v6209
      %v6386 = vpop.f32.mrb[0].mxu0
      %v6387 = vadd.f32 0.0, %v6386
      %v6388 = vpop.f32.mrb[0].mxu0
      %6389 = vmatprep.mubr.f32.mxu0 0.0
      %6390 = vmatmul.mubr.f32.gmra.mrb[0].mxu0 %v6212
      %v6391 = vpop.f32.mrb[0].mxu0
      %v6392 = vadd.f32 0.0, %v6391
      %v6393 = vpop.f32.mrb[0].mxu0
      %6394 = vmatprep.mubr.f32.mxu0 0.0
      %6395 = vmatmul.mubr.f32.gmra.mrb[0].mxu0 %v6215
      %v6396 = vpop.f32.mrb[0].mxu0
      %v6397 = vadd.f32 0.0, %v6396
      %v6398 = vpop.f32.mrb[0].mxu0
      %6399 = vmatprep.mubr.f32.mxu0 0.0
      %6400 = vmatmul.mubr.f32.gmra.mrb[0].mxu0 %v6218
      %v6401 = vpop.f32.mrb[0].mxu0
      %v6402 = vadd.f32 0.0, %v6401
      %v6403 = vpop.f32.mrb[0].mxu0
      %6404 = vmatprep.mubr.f32.mxu0 0.0
      %6405 = vmatmul.mubr.f32.gmra.mrb[0].mxu0 %v6221
      %v6406 = vpop.f32.mrb[0].mxu0
      %v6407 = vadd.f32 0.0, %v6406
      %v6408 = vpop.f32.mrb[0].mxu0
      %6409 = vmatprep.mubr.f32.mxu0 0.0
      %6410 = vmatmul.mubr.f32.gmra.mrb[0].mxu0 %v6224
      %v6411 = vpop.f32.mrb[0].mxu0
      %v6412 = vadd.f32 0.0, %v6411
      %v6413 = vpop.f32.mrb[0].mxu0
      %6414 = vmatprep.mubr.f32.mxu0 0.0
      %6415 = vmatmul.mubr.f32.gmra.mrb[0].mxu0 %v6227
      %v6416 = vpop.f32.mrb[0].mxu0
      %v6417 = vadd.f32 0.0, %v6416
      %v6418 = vpop.f32.mrb[0].mxu0
      %6419 = vmatprep.mubr.f32.mxu0 0.0
      %6420 = vmatmul.mubr.f32.gmra.mrb[0].mxu0 %v6230
      %v6421 = vpop.f32.mrb[0].mxu0
      %v6422 = vadd.f32 0.0, %v6421
      %v6423 = vpop.f32.mrb[0].mxu0
      %6424 = vmatprep.mubr.f32.mxu0 0.0
      %6425 = vmatmul.mubr.f32.gmra.mrb[0].mxu0 %v6233
      %v6426 = vpop.f32.mrb[0].mxu0
      %v6427 = vadd.f32 0.0, %v6426
      %v6428 = vpop.f32.mrb[0].mxu0
      %6429 = vmatprep.mubr.f32.mxu0 0.0
      %6430 = vmatmul.mubr.f32.gmra.mrb[0].mxu0 %v6236
      %v6431 = vpop.f32.mrb[0].mxu0
      %v6432 = vadd.f32 0.0, %v6431
      %v6433 = vpop.f32.mrb[0].mxu0
      %6434 = vmatprep.mubr.f32.mxu0 0.0
      %6435 = vmatmul.mubr.f32.gmra.mrb[0].mxu0 %v6239
      %v6436 = vpop.f32.mrb[0].mxu0
      %v6437 = vadd.f32 0.0, %v6436
      %v6438 = vpop.f32.mrb[0].mxu0
      %6439 = vmatprep.mubr.f32.mxu0 0.0
      %6440 = vmatmul.mubr.f32.gmra.mrb[0].mxu0 %v6242
      %v6441 = vpop.f32.mrb[0].mxu0
      %v6442 = vadd.f32 0.0, %v6441
      %v6443 = vpop.f32.mrb[0].mxu0
      %6444 = vmatprep.mubr.f32.mxu0 0.0
      %6445 = vmatmul.mubr.f32.gmra.mrb[0].mxu0 %v6245
      %v6446 = vpop.f32.mrb[0].mxu0
      %v6447 = vadd.f32 0.0, %v6446
      %v6448 = vpop.f32.mrb[0].mxu0
      %6449 = vmatprep.mubr.f32.mxu0 0.0
      %6450 = vmatmul.mubr.f32.gmra.mrb[0].mxu0 %v6248
      %v6451 = vpop.f32.mrb[0].mxu0
      %v6452 = vadd.f32 0.0, %v6451
      %v6453 = vpop.f32.mrb[0].mxu0
      %6454 = vmatprep.mubr.f32.mxu0 0.0
      %6455 = vmatmul.mubr.f32.gmra.mrb[0].mxu0 %v6251
      %v6456 = vpop.f32.mrb[0].mxu0
      %v6457 = vadd.f32 0.0, %v6456
      %v6458 = vpop.f32.mrb[0].mxu0
      %6459 = vmatprep.mubr.f32.mxu0 0.0
      %6460 = vmatmul.mubr.f32.gmra.mrb[0].mxu0 %v6254
      %v6461 = vpop.f32.mrb[0].mxu0
      %v6462 = vadd.f32 0.0, %v6461
      %v6463 = vpop.f32.mrb[0].mxu0
      %6464 = vmatprep.mubr.f32.mxu0 0.0
      %6465 = vmatmul.mubr.f32.gmra.mrb[0].mxu0 %v6257
      %v6466 = vpop.f32.mrb[0].mxu0
      %v6467 = vadd.f32 0.0, %v6466
      %v6468 = vpop.f32.mrb[0].mxu0
      %6469 = vmatprep.mubr.f32.mxu0 0.0
      %6470 = vmatmul.mubr.f32.gmra.mrb[0].mxu0 %v6260
      %v6471 = vpop.f32.mrb[0].mxu0
      %v6472 = vadd.f32 0.0, %v6471
      %v6473 = vpop.f32.mrb[0].mxu0
      %6474 = vmatprep.mubr.f32.mxu0 0.0
      %6475 = vmatmul.mubr.f32.gmra.mrb[0].mxu0 %v6263
      %v6476 = vpop.f32.mrb[0].mxu0
      %v6477 = vadd.f32 0.0, %v6476
      %v6478 = vpop.f32.mrb[0].mxu0
      %6479 = vmatprep.mubr.f32.mxu0 0.0
      %6480 = vmatmul.mubr.f32.gmra.mrb[0].mxu0 %v6266
      %v6481 = vpop.f32.mrb[0].mxu0
      %v6482 = vadd.f32 0.0, %v6481
      %v6483 = vpop.f32.mrb[0].mxu0
      %6484 = vmatprep.mubr.f32.mxu0 0.0
      %6485 = vmatmul.mubr.f32.gmra.mrb[0].mxu0 %v6269
      %v6486 = vpop.f32.mrb[0].mxu0
      %v6487 = vadd.f32 0.0, %v6486
      %v6488 = vpop.f32.mrb[0].mxu0
      %6489 = vmatprep.mubr.f32.mxu0 0.0
      %6490 = vmatmul.mubr.f32.gmra.mrb[0].mxu0 %v6272
      %v6491 = vpop.f32.mrb[0].mxu0
      %v6492 = vadd.f32 0.0, %v6491
      %v6493 = vpop.f32.mrb[0].mxu0
      %6494 = vmatprep.mubr.f32.mxu0 0.0
      %6495 = vmatmul.mubr.f32.gmra.mrb[0].mxu0 %v6275
      %v6496 = vpop.f32.mrb[0].mxu0
      %v6497 = vadd.f32 0.0, %v6496
      %v6498 = vpop.f32.mrb[0].mxu0
      %6499 = vmatprep.mubr.f32.mxu0 0.0
      %6500 = vmatmul.mubr.f32.gmra.mrb[0].mxu0 %v6278
      %v6501 = vpop.f32.mrb[0].mxu0
      %v6502 = vadd.f32 0.0, %v6501
      %v6503 = vpop.f32.mrb[0].mxu0
      %6504 = vdwg.mxu0
      %v6505 = vadd.f32 %v6118, %v6347
      %v6506 = vadd.f32 %v6119, %v6352
      %v6507 = vadd.f32 %v6120, %v6357
      %v6508 = vadd.f32 %v6121, %v6362
      %v6509 = vadd.f32 %v6122, %v6367
      %v6510 = vadd.f32 %v6123, %v6372
      %v6511 = vadd.f32 %v6124, %v6377
      %v6512 = vadd.f32 %v6125, %v6382
      %v6513 = vadd.f32 %v6126, %v6387
      %v6514 = vadd.f32 %v6127, %v6392
      %v6515 = vadd.f32 %v6128, %v6397
      %v6516 = vadd.f32 %v6129, %v6402
      %v6517 = vadd.f32 %v6130, %v6407
      %v6518 = vadd.f32 %v6131, %v6412
      %v6519 = vadd.f32 %v6132, %v6417
      %v6520 = vadd.f32 %v6133, %v6422
      %v6521 = vadd.f32 %v6134, %v6427
      %v6522 = vadd.f32 %v6135, %v6432
      %v6523 = vadd.f32 %v6136, %v6437
      %v6524 = vadd.f32 %v6137, %v6442
      %v6525 = vadd.f32 %v6138, %v6447
      %v6526 = vadd.f32 %v6139, %v6452
      %v6527 = vadd.f32 %v6140, %v6457
      %v6528 = vadd.f32 %v6141, %v6462
      %v6529 = vadd.f32 %v6142, %v6467
      %v6530 = vadd.f32 %v6143, %v6472
      %v6531 = vadd.f32 %v6144, %v6477
      %v6532 = vadd.f32 %v6145, %v6482
      %v6533 = vadd.f32 %v6146, %v6487
      %v6534 = vadd.f32 %v6147, %v6492
      %v6535 = vadd.f32 %v6148, %v6497
      %v6536 = vadd.f32 %v6149, %v6502
      %v6537 = vld [vmem:[%s2628 + $0x1] sm:$0xff]
      %v6538 = vld [vmem:[%s2628 + $0x9] sm:$0xff]
      %v6539 = vld [vmem:[%s2628 + $0x19] sm:$0xff]
      %v6540 = vld [vmem:[%s2628 + $0x21] sm:$0xff]
      %v6541 = vld [vmem:[%s2628 + $0x31] sm:$0xff]
      %v6542 = vld [vmem:[%s2628 + $0x39] sm:$0xff]
      %v6543 = vld [vmem:[%s2628 + $0x49] sm:$0xff]
      %v6544 = vld [vmem:[%s2628 + $0x51] sm:$0xff]
      %v6545 = vld [vmem:[%s2628 + $0x61] sm:$0xff]
      %v6546 = vld [vmem:[%s2628 + $0x69] sm:$0xff]
      %v6547 = vld [vmem:[%s2628 + $0x79] sm:$0xff]
      %v6548 = vld [vmem:[%s2628 + $0x81] sm:$0xff]
      %v6549 = vld [vmem:[%s2628 + $0x91] sm:$0xff]
      %v6550 = vld [vmem:[%s2628 + $0x99] sm:$0xff]
      %v6551 = vld [vmem:[%s2628 + $0xa9] sm:$0xff]
      %v6552 = vld [vmem:[%s2628 + $0xb1] sm:$0xff]
      %v6553 = vld [vmem:[%s2628 + $0xc1] sm:$0xff]
      %v6554 = vld [vmem:[%s2628 + $0xc9] sm:$0xff]
      %v6555 = vld [vmem:[%s2628 + $0xd9] sm:$0xff]
      %v6556 = vld [vmem:[%s2628 + $0xe1] sm:$0xff]
      %v6557 = vld [vmem:[%s2628 + $0xf1] sm:$0xff]
      %v6558 = vld [vmem:[%s2628 + $0xf9] sm:$0xff]
      %v6559 = vld [vmem:[%s2628 + $0x109] sm:$0xff]
      %v6560 = vld [vmem:[%s2628 + $0x111] sm:$0xff]
      %v6561 = vld [vmem:[%s2628 + $0x121] sm:$0xff]
      %v6562 = vld [vmem:[%s2628 + $0x129] sm:$0xff]
      %v6563 = vld [vmem:[%s2628 + $0x139] sm:$0xff]
      %v6564 = vld [vmem:[%s2628 + $0x141] sm:$0xff]
      %v6565 = vld [vmem:[%s2628 + $0x151] sm:$0xff]
      %v6566 = vld [vmem:[%s2628 + $0x159] sm:$0xff]
      %v6567 = vld [vmem:[%s2628 + $0x169] sm:$0xff]
      %v6568 = vld [vmem:[%s2628 + $0x171] sm:$0xff]
      %s6569 = scalar_lea.vmem %s3, 56
      %v6570 = vld [vmem:[%s6569] sm:$0xff]
      %v6572 = vsel %vm225, %v6537, 0
      %v6575 = vsel %vm225, %v6538, 0
      %v6578 = vsel %vm225, %v6539, 0
      %v6581 = vsel %vm225, %v6540, 0
      %v6584 = vsel %vm225, %v6541, 0
      %v6587 = vsel %vm225, %v6542, 0
      %v6590 = vsel %vm225, %v6543, 0
      %v6593 = vsel %vm225, %v6544, 0
      %v6596 = vsel %vm225, %v6545, 0
      %v6599 = vsel %vm225, %v6546, 0
      %v6602 = vsel %vm225, %v6547, 0
      %v6605 = vsel %vm225, %v6548, 0
      %v6608 = vsel %vm225, %v6549, 0
      %v6611 = vsel %vm225, %v6550, 0
      %v6614 = vsel %vm225, %v6551, 0
      %v6617 = vsel %vm225, %v6552, 0
      %v6620 = vsel %vm225, %v6553, 0
      %v6623 = vsel %vm225, %v6554, 0
      %v6626 = vsel %vm225, %v6555, 0
      %v6629 = vsel %vm225, %v6556, 0
      %v6632 = vsel %vm225, %v6557, 0
      %v6635 = vsel %vm225, %v6558, 0
      %v6638 = vsel %vm225, %v6559, 0
      %v6641 = vsel %vm225, %v6560, 0
      %v6644 = vsel %vm225, %v6561, 0
      %v6647 = vsel %vm225, %v6562, 0
      %v6650 = vsel %vm225, %v6563, 0
      %v6653 = vsel %vm225, %v6564, 0
      %v6656 = vsel %vm225, %v6565, 0
      %v6659 = vsel %vm225, %v6566, 0
      %v6662 = vsel %vm225, %v6567, 0
      %v6665 = vsel %vm225, %v6568, 0
      %6667 = vmatprep.subr.mxu0 0.0
      %6668 = vmatpush1.msra.mxu0 %v6570
      %6669 = vmatprep.subr.mxu0 0.0
      %6670 = vmatpush1.msra.mxu0 0.0
      %6671 = vmatprep.subr.mxu0 0.0
      %6672 = vmatpush1.msra.mxu0 0.0
      %6673 = vmatprep.subr.mxu0 0.0
      %6674 = vmatpush1.msra.mxu0 0.0
      %6675 = vmatprep.subr.mxu0 0.0
      %6676 = vmatpush1.msra.mxu0 0.0
      %6677 = vmatprep.subr.mxu0 0.0
      %6678 = vmatpush1.msra.mxu0 0.0
      %6679 = vmatprep.subr.mxu0 0.0
      %6680 = vmatpush1.msra.mxu0 0.0
      %6681 = vmatprep.subr.mxu0 0.0
      %6682 = vmatpush1.msra.mxu0 0.0
      %6683 = vmatprep.subr.mxu0 0.0
      %6684 = vmatpush1.msra.mxu0 0.0
      %6685 = vmatprep.subr.mxu0 0.0
      %6686 = vmatpush1.msra.mxu0 0.0
      %6687 = vmatprep.subr.mxu0 0.0
      %6688 = vmatpush1.msra.mxu0 0.0
      %6689 = vmatprep.subr.mxu0 0.0
      %6690 = vmatpush1.msra.mxu0 0.0
      %6691 = vmatprep.subr.mxu0 0.0
      %6692 = vmatpush1.msra.mxu0 0.0
      %6693 = vmatprep.subr.mxu0 0.0
      %6694 = vmatpush1.msra.mxu0 0.0
      %6695 = vmatprep.subr.mxu0 0.0
      %6696 = vmatpush1.msra.mxu0 0.0
      %6697 = vmatprep.subr.mxu0 0.0
      %6698 = vmatpush1.msra.mxu0 0.0
      %6699 = vmatprep.subr.mxu0 0.0
      %6700 = vmatpush1.msra.mxu0 0.0
      %6701 = vmatprep.subr.mxu0 0.0
      %6702 = vmatpush1.msra.mxu0 0.0
      %6703 = vmatprep.subr.mxu0 0.0
      %6704 = vmatpush1.msra.mxu0 0.0
      %6705 = vmatprep.subr.mxu0 0.0
      %6706 = vmatpush1.msra.mxu0 0.0
      %6707 = vmatprep.subr.mxu0 0.0
      %6708 = vmatpush1.msra.mxu0 0.0
      %6709 = vmatprep.subr.mxu0 0.0
      %6710 = vmatpush1.msra.mxu0 0.0
      %6711 = vmatprep.subr.mxu0 0.0
      %6712 = vmatpush1.msra.mxu0 0.0
      %6713 = vmatprep.subr.mxu0 0.0
      %6714 = vmatpush1.msra.mxu0 0.0
      %6715 = vmatprep.subr.mxu0 0.0
      %6716 = vmatpush1.msra.mxu0 0.0
      %6717 = vmatprep.subr.mxu0 0.0
      %6718 = vmatpush1.msra.mxu0 0.0
      %6719 = vmatprep.subr.mxu0 0.0
      %6720 = vmatpush1.msra.mxu0 0.0
      %6721 = vmatprep.subr.mxu0 0.0
      %6722 = vmatpush1.msra.mxu0 0.0
      %6723 = vmatprep.subr.mxu0 0.0
      %6724 = vmatpush1.msra.mxu0 0.0
      %6725 = vmatprep.subr.mxu0 0.0
      %6726 = vmatpush1.msra.mxu0 0.0
      %6727 = vmatprep.subr.mxu0 0.0
      %6728 = vmatpush1.msra.mxu0 0.0
      %6729 = vmatprep.subr.mxu0 0.0
      %6730 = vmatpush1.msra.mxu0 0.0
      %6731 = vmatprep.mubr.f32.mxu0 0.0
      %6732 = vmatmul.mubr.f32.gmra.mrb[0].mxu0 %v6572
      %v6733 = vpop.f32.mrb[0].mxu0
      %v6734 = vadd.f32 0.0, %v6733
      %v6735 = vpop.f32.mrb[0].mxu0
      %6736 = vmatprep.mubr.f32.mxu0 0.0
      %6737 = vmatmul.mubr.f32.gmra.mrb[0].mxu0 %v6575
      %v6738 = vpop.f32.mrb[0].mxu0
      %v6739 = vadd.f32 0.0, %v6738
      %v6740 = vpop.f32.mrb[0].mxu0
      %6741 = vmatprep.mubr.f32.mxu0 0.0
      %6742 = vmatmul.mubr.f32.gmra.mrb[0].mxu0 %v6578
      %v6743 = vpop.f32.mrb[0].mxu0
      %v6744 = vadd.f32 0.0, %v6743
      %v6745 = vpop.f32.mrb[0].mxu0
      %6746 = vmatprep.mubr.f32.mxu0 0.0
      %6747 = vmatmul.mubr.f32.gmra.mrb[0].mxu0 %v6581
      %v6748 = vpop.f32.mrb[0].mxu0
      %v6749 = vadd.f32 0.0, %v6748
      %v6750 = vpop.f32.mrb[0].mxu0
      %6751 = vmatprep.mubr.f32.mxu0 0.0
      %6752 = vmatmul.mubr.f32.gmra.mrb[0].mxu0 %v6584
      %v6753 = vpop.f32.mrb[0].mxu0
      %v6754 = vadd.f32 0.0, %v6753
      %v6755 = vpop.f32.mrb[0].mxu0
      %6756 = vmatprep.mubr.f32.mxu0 0.0
      %6757 = vmatmul.mubr.f32.gmra.mrb[0].mxu0 %v6587
      %v6758 = vpop.f32.mrb[0].mxu0
      %v6759 = vadd.f32 0.0, %v6758
      %v6760 = vpop.f32.mrb[0].mxu0
      %6761 = vmatprep.mubr.f32.mxu0 0.0
      %6762 = vmatmul.mubr.f32.gmra.mrb[0].mxu0 %v6590
      %v6763 = vpop.f32.mrb[0].mxu0
      %v6764 = vadd.f32 0.0, %v6763
      %v6765 = vpop.f32.mrb[0].mxu0
      %6766 = vmatprep.mubr.f32.mxu0 0.0
      %6767 = vmatmul.mubr.f32.gmra.mrb[0].mxu0 %v6593
      %v6768 = vpop.f32.mrb[0].mxu0
      %v6769 = vadd.f32 0.0, %v6768
      %v6770 = vpop.f32.mrb[0].mxu0
      %6771 = vmatprep.mubr.f32.mxu0 0.0
      %6772 = vmatmul.mubr.f32.gmra.mrb[0].mxu0 %v6596
      %v6773 = vpop.f32.mrb[0].mxu0
      %v6774 = vadd.f32 0.0, %v6773
      %v6775 = vpop.f32.mrb[0].mxu0
      %6776 = vmatprep.mubr.f32.mxu0 0.0
      %6777 = vmatmul.mubr.f32.gmra.mrb[0].mxu0 %v6599
      %v6778 = vpop.f32.mrb[0].mxu0
      %v6779 = vadd.f32 0.0, %v6778
      %v6780 = vpop.f32.mrb[0].mxu0
      %6781 = vmatprep.mubr.f32.mxu0 0.0
      %6782 = vmatmul.mubr.f32.gmra.mrb[0].mxu0 %v6602
      %v6783 = vpop.f32.mrb[0].mxu0
      %v6784 = vadd.f32 0.0, %v6783
      %v6785 = vpop.f32.mrb[0].mxu0
      %6786 = vmatprep.mubr.f32.mxu0 0.0
      %6787 = vmatmul.mubr.f32.gmra.mrb[0].mxu0 %v6605
      %v6788 = vpop.f32.mrb[0].mxu0
      %v6789 = vadd.f32 0.0, %v6788
      %v6790 = vpop.f32.mrb[0].mxu0
      %6791 = vmatprep.mubr.f32.mxu0 0.0
      %6792 = vmatmul.mubr.f32.gmra.mrb[0].mxu0 %v6608
      %v6793 = vpop.f32.mrb[0].mxu0
      %v6794 = vadd.f32 0.0, %v6793
      %v6795 = vpop.f32.mrb[0].mxu0
      %6796 = vmatprep.mubr.f32.mxu0 0.0
      %6797 = vmatmul.mubr.f32.gmra.mrb[0].mxu0 %v6611
      %v6798 = vpop.f32.mrb[0].mxu0
      %v6799 = vadd.f32 0.0, %v6798
      %v6800 = vpop.f32.mrb[0].mxu0
      %6801 = vmatprep.mubr.f32.mxu0 0.0
      %6802 = vmatmul.mubr.f32.gmra.mrb[0].mxu0 %v6614
      %v6803 = vpop.f32.mrb[0].mxu0
      %v6804 = vadd.f32 0.0, %v6803
      %v6805 = vpop.f32.mrb[0].mxu0
      %6806 = vmatprep.mubr.f32.mxu0 0.0
      %6807 = vmatmul.mubr.f32.gmra.mrb[0].mxu0 %v6617
      %v6808 = vpop.f32.mrb[0].mxu0
      %v6809 = vadd.f32 0.0, %v6808
      %v6810 = vpop.f32.mrb[0].mxu0
      %6811 = vmatprep.mubr.f32.mxu0 0.0
      %6812 = vmatmul.mubr.f32.gmra.mrb[0].mxu0 %v6620
      %v6813 = vpop.f32.mrb[0].mxu0
      %v6814 = vadd.f32 0.0, %v6813
      %v6815 = vpop.f32.mrb[0].mxu0
      %6816 = vmatprep.mubr.f32.mxu0 0.0
      %6817 = vmatmul.mubr.f32.gmra.mrb[0].mxu0 %v6623
      %v6818 = vpop.f32.mrb[0].mxu0
      %v6819 = vadd.f32 0.0, %v6818
      %v6820 = vpop.f32.mrb[0].mxu0
      %6821 = vmatprep.mubr.f32.mxu0 0.0
      %6822 = vmatmul.mubr.f32.gmra.mrb[0].mxu0 %v6626
      %v6823 = vpop.f32.mrb[0].mxu0
      %v6824 = vadd.f32 0.0, %v6823
      %v6825 = vpop.f32.mrb[0].mxu0
      %6826 = vmatprep.mubr.f32.mxu0 0.0
      %6827 = vmatmul.mubr.f32.gmra.mrb[0].mxu0 %v6629
      %v6828 = vpop.f32.mrb[0].mxu0
      %v6829 = vadd.f32 0.0, %v6828
      %v6830 = vpop.f32.mrb[0].mxu0
      %6831 = vmatprep.mubr.f32.mxu0 0.0
      %6832 = vmatmul.mubr.f32.gmra.mrb[0].mxu0 %v6632
      %v6833 = vpop.f32.mrb[0].mxu0
      %v6834 = vadd.f32 0.0, %v6833
      %v6835 = vpop.f32.mrb[0].mxu0
      %6836 = vmatprep.mubr.f32.mxu0 0.0
      %6837 = vmatmul.mubr.f32.gmra.mrb[0].mxu0 %v6635
      %v6838 = vpop.f32.mrb[0].mxu0
      %v6839 = vadd.f32 0.0, %v6838
      %v6840 = vpop.f32.mrb[0].mxu0
      %6841 = vmatprep.mubr.f32.mxu0 0.0
      %6842 = vmatmul.mubr.f32.gmra.mrb[0].mxu0 %v6638
      %v6843 = vpop.f32.mrb[0].mxu0
      %v6844 = vadd.f32 0.0, %v6843
      %v6845 = vpop.f32.mrb[0].mxu0
      %6846 = vmatprep.mubr.f32.mxu0 0.0
      %6847 = vmatmul.mubr.f32.gmra.mrb[0].mxu0 %v6641
      %v6848 = vpop.f32.mrb[0].mxu0
      %v6849 = vadd.f32 0.0, %v6848
      %v6850 = vpop.f32.mrb[0].mxu0
      %6851 = vmatprep.mubr.f32.mxu0 0.0
      %6852 = vmatmul.mubr.f32.gmra.mrb[0].mxu0 %v6644
      %v6853 = vpop.f32.mrb[0].mxu0
      %v6854 = vadd.f32 0.0, %v6853
      %v6855 = vpop.f32.mrb[0].mxu0
      %6856 = vmatprep.mubr.f32.mxu0 0.0
      %6857 = vmatmul.mubr.f32.gmra.mrb[0].mxu0 %v6647
      %v6858 = vpop.f32.mrb[0].mxu0
      %v6859 = vadd.f32 0.0, %v6858
      %v6860 = vpop.f32.mrb[0].mxu0
      %6861 = vmatprep.mubr.f32.mxu0 0.0
      %6862 = vmatmul.mubr.f32.gmra.mrb[0].mxu0 %v6650
      %v6863 = vpop.f32.mrb[0].mxu0
      %v6864 = vadd.f32 0.0, %v6863
      %v6865 = vpop.f32.mrb[0].mxu0
      %6866 = vmatprep.mubr.f32.mxu0 0.0
      %6867 = vmatmul.mubr.f32.gmra.mrb[0].mxu0 %v6653
      %v6868 = vpop.f32.mrb[0].mxu0
      %v6869 = vadd.f32 0.0, %v6868
      %v6870 = vpop.f32.mrb[0].mxu0
      %6871 = vmatprep.mubr.f32.mxu0 0.0
      %6872 = vmatmul.mubr.f32.gmra.mrb[0].mxu0 %v6656
      %v6873 = vpop.f32.mrb[0].mxu0
      %v6874 = vadd.f32 0.0, %v6873
      %v6875 = vpop.f32.mrb[0].mxu0
      %6876 = vmatprep.mubr.f32.mxu0 0.0
      %6877 = vmatmul.mubr.f32.gmra.mrb[0].mxu0 %v6659
      %v6878 = vpop.f32.mrb[0].mxu0
      %v6879 = vadd.f32 0.0, %v6878
      %v6880 = vpop.f32.mrb[0].mxu0
      %6881 = vmatprep.mubr.f32.mxu0 0.0
      %6882 = vmatmul.mubr.f32.gmra.mrb[0].mxu0 %v6662
      %v6883 = vpop.f32.mrb[0].mxu0
      %v6884 = vadd.f32 0.0, %v6883
      %v6885 = vpop.f32.mrb[0].mxu0
      %6886 = vmatprep.mubr.f32.mxu0 0.0
      %6887 = vmatmul.mubr.f32.gmra.mrb[0].mxu0 %v6665
      %v6888 = vpop.f32.mrb[0].mxu0
      %v6889 = vadd.f32 0.0, %v6888
      %v6890 = vpop.f32.mrb[0].mxu0
      %6891 = vdwg.mxu0
      %v6892 = vadd.f32 %v6505, %v6734
      %v6893 = vadd.f32 %v6506, %v6739
      %v6894 = vadd.f32 %v6507, %v6744
      %v6895 = vadd.f32 %v6508, %v6749
      %v6896 = vadd.f32 %v6509, %v6754
      %v6897 = vadd.f32 %v6510, %v6759
      %v6898 = vadd.f32 %v6511, %v6764
      %v6899 = vadd.f32 %v6512, %v6769
      %v6900 = vadd.f32 %v6513, %v6774
      %v6901 = vadd.f32 %v6514, %v6779
      %v6902 = vadd.f32 %v6515, %v6784
      %v6903 = vadd.f32 %v6516, %v6789
      %v6904 = vadd.f32 %v6517, %v6794
      %v6905 = vadd.f32 %v6518, %v6799
      %v6906 = vadd.f32 %v6519, %v6804
      %v6907 = vadd.f32 %v6520, %v6809
      %v6908 = vadd.f32 %v6521, %v6814
      %v6909 = vadd.f32 %v6522, %v6819
      %v6910 = vadd.f32 %v6523, %v6824
      %v6911 = vadd.f32 %v6524, %v6829
      %v6912 = vadd.f32 %v6525, %v6834
      %v6913 = vadd.f32 %v6526, %v6839
      %v6914 = vadd.f32 %v6527, %v6844
      %v6915 = vadd.f32 %v6528, %v6849
      %v6916 = vadd.f32 %v6529, %v6854
      %v6917 = vadd.f32 %v6530, %v6859
      %v6918 = vadd.f32 %v6531, %v6864
      %v6919 = vadd.f32 %v6532, %v6869
      %v6920 = vadd.f32 %v6533, %v6874
      %v6921 = vadd.f32 %v6534, %v6879
      %v6922 = vadd.f32 %v6535, %v6884
      %v6923 = vadd.f32 %v6536, %v6889
      %v6924 = vld [vmem:[%s2628 + $0x2] sm:$0xff]
      %v6925 = vld [vmem:[%s2628 + $0xa] sm:$0xff]
      %v6926 = vld [vmem:[%s2628 + $0x1a] sm:$0xff]
      %v6927 = vld [vmem:[%s2628 + $0x22] sm:$0xff]
      %v6928 = vld [vmem:[%s2628 + $0x32] sm:$0xff]
      %v6929 = vld [vmem:[%s2628 + $0x3a] sm:$0xff]
      %v6930 = vld [vmem:[%s2628 + $0x4a] sm:$0xff]
      %v6931 = vld [vmem:[%s2628 + $0x52] sm:$0xff]
      %v6932 = vld [vmem:[%s2628 + $0x62] sm:$0xff]
      %v6933 = vld [vmem:[%s2628 + $0x6a] sm:$0xff]
      %v6934 = vld [vmem:[%s2628 + $0x7a] sm:$0xff]
      %v6935 = vld [vmem:[%s2628 + $0x82] sm:$0xff]
      %v6936 = vld [vmem:[%s2628 + $0x92] sm:$0xff]
      %v6937 = vld [vmem:[%s2628 + $0x9a] sm:$0xff]
      %v6938 = vld [vmem:[%s2628 + $0xaa] sm:$0xff]
      %v6939 = vld [vmem:[%s2628 + $0xb2] sm:$0xff]
      %v6940 = vld [vmem:[%s2628 + $0xc2] sm:$0xff]
      %v6941 = vld [vmem:[%s2628 + $0xca] sm:$0xff]
      %v6942 = vld [vmem:[%s2628 + $0xda] sm:$0xff]
      %v6943 = vld [vmem:[%s2628 + $0xe2] sm:$0xff]
      %v6944 = vld [vmem:[%s2628 + $0xf2] sm:$0xff]
      %v6945 = vld [vmem:[%s2628 + $0xfa] sm:$0xff]
      %v6946 = vld [vmem:[%s2628 + $0x10a] sm:$0xff]
      %v6947 = vld [vmem:[%s2628 + $0x112] sm:$0xff]
      %v6948 = vld [vmem:[%s2628 + $0x122] sm:$0xff]
      %v6949 = vld [vmem:[%s2628 + $0x12a] sm:$0xff]
      %v6950 = vld [vmem:[%s2628 + $0x13a] sm:$0xff]
      %v6951 = vld [vmem:[%s2628 + $0x142] sm:$0xff]
      %v6952 = vld [vmem:[%s2628 + $0x152] sm:$0xff]
      %v6953 = vld [vmem:[%s2628 + $0x15a] sm:$0xff]
      %v6954 = vld [vmem:[%s2628 + $0x16a] sm:$0xff]
      %v6955 = vld [vmem:[%s2628 + $0x172] sm:$0xff]
      %s6956 = scalar_lea.vmem %s3, 64
      %v6957 = vld [vmem:[%s6956] sm:$0xff]
      %v6959 = vsel %vm225, %v6924, 0
      %v6962 = vsel %vm225, %v6925, 0
      %v6965 = vsel %vm225, %v6926, 0
      %v6968 = vsel %vm225, %v6927, 0
      %v6971 = vsel %vm225, %v6928, 0
      %v6974 = vsel %vm225, %v6929, 0
      %v6977 = vsel %vm225, %v6930, 0
      %v6980 = vsel %vm225, %v6931, 0
      %v6983 = vsel %vm225, %v6932, 0
      %v6986 = vsel %vm225, %v6933, 0
      %v6989 = vsel %vm225, %v6934, 0
      %v6992 = vsel %vm225, %v6935, 0
      %v6995 = vsel %vm225, %v6936, 0
      %v6998 = vsel %vm225, %v6937, 0
      %v7001 = vsel %vm225, %v6938, 0
      %v7004 = vsel %vm225, %v6939, 0
      %v7007 = vsel %vm225, %v6940, 0
      %v7010 = vsel %vm225, %v6941, 0
      %v7013 = vsel %vm225, %v6942, 0
      %v7016 = vsel %vm225, %v6943, 0
      %v7019 = vsel %vm225, %v6944, 0
      %v7022 = vsel %vm225, %v6945, 0
      %v7025 = vsel %vm225, %v6946, 0
      %v7028 = vsel %vm225, %v6947, 0
      %v7031 = vsel %vm225, %v6948, 0
      %v7034 = vsel %vm225, %v6949, 0
      %v7037 = vsel %vm225, %v6950, 0
      %v7040 = vsel %vm225, %v6951, 0
      %v7043 = vsel %vm225, %v6952, 0
      %v7046 = vsel %vm225, %v6953, 0
      %v7049 = vsel %vm225, %v6954, 0
      %v7052 = vsel %vm225, %v6955, 0
      %7054 = vmatprep.subr.mxu0 0.0
      %7055 = vmatpush1.msra.mxu0 %v6957
      %7056 = vmatprep.subr.mxu0 0.0
      %7057 = vmatpush1.msra.mxu0 0.0
      %7058 = vmatprep.subr.mxu0 0.0
      %7059 = vmatpush1.msra.mxu0 0.0
      %7060 = vmatprep.subr.mxu0 0.0
      %7061 = vmatpush1.msra.mxu0 0.0
      %7062 = vmatprep.subr.mxu0 0.0
      %7063 = vmatpush1.msra.mxu0 0.0
      %7064 = vmatprep.subr.mxu0 0.0
      %7065 = vmatpush1.msra.mxu0 0.0
      %7066 = vmatprep.subr.mxu0 0.0
      %7067 = vmatpush1.msra.mxu0 0.0
      %7068 = vmatprep.subr.mxu0 0.0
      %7069 = vmatpush1.msra.mxu0 0.0
      %7070 = vmatprep.subr.mxu0 0.0
      %7071 = vmatpush1.msra.mxu0 0.0
      %7072 = vmatprep.subr.mxu0 0.0
      %7073 = vmatpush1.msra.mxu0 0.0
      %7074 = vmatprep.subr.mxu0 0.0
      %7075 = vmatpush1.msra.mxu0 0.0
      %7076 = vmatprep.subr.mxu0 0.0
      %7077 = vmatpush1.msra.mxu0 0.0
      %7078 = vmatprep.subr.mxu0 0.0
      %7079 = vmatpush1.msra.mxu0 0.0
      %7080 = vmatprep.subr.mxu0 0.0
      %7081 = vmatpush1.msra.mxu0 0.0
      %7082 = vmatprep.subr.mxu0 0.0
      %7083 = vmatpush1.msra.mxu0 0.0
      %7084 = vmatprep.subr.mxu0 0.0
      %7085 = vmatpush1.msra.mxu0 0.0
      %7086 = vmatprep.subr.mxu0 0.0
      %7087 = vmatpush1.msra.mxu0 0.0
      %7088 = vmatprep.subr.mxu0 0.0
      %7089 = vmatpush1.msra.mxu0 0.0
      %7090 = vmatprep.subr.mxu0 0.0
      %7091 = vmatpush1.msra.mxu0 0.0
      %7092 = vmatprep.subr.mxu0 0.0
      %7093 = vmatpush1.msra.mxu0 0.0
      %7094 = vmatprep.subr.mxu0 0.0
      %7095 = vmatpush1.msra.mxu0 0.0
      %7096 = vmatprep.subr.mxu0 0.0
      %7097 = vmatpush1.msra.mxu0 0.0
      %7098 = vmatprep.subr.mxu0 0.0
      %7099 = vmatpush1.msra.mxu0 0.0
      %7100 = vmatprep.subr.mxu0 0.0
      %7101 = vmatpush1.msra.mxu0 0.0
      %7102 = vmatprep.subr.mxu0 0.0
      %7103 = vmatpush1.msra.mxu0 0.0
      %7104 = vmatprep.subr.mxu0 0.0
      %7105 = vmatpush1.msra.mxu0 0.0
      %7106 = vmatprep.subr.mxu0 0.0
      %7107 = vmatpush1.msra.mxu0 0.0
      %7108 = vmatprep.subr.mxu0 0.0
      %7109 = vmatpush1.msra.mxu0 0.0
      %7110 = vmatprep.subr.mxu0 0.0
      %7111 = vmatpush1.msra.mxu0 0.0
      %7112 = vmatprep.subr.mxu0 0.0
      %7113 = vmatpush1.msra.mxu0 0.0
      %7114 = vmatprep.subr.mxu0 0.0
      %7115 = vmatpush1.msra.mxu0 0.0
      %7116 = vmatprep.subr.mxu0 0.0
      %7117 = vmatpush1.msra.mxu0 0.0
      %7118 = vmatprep.mubr.f32.mxu0 0.0
      %7119 = vmatmul.mubr.f32.gmra.mrb[0].mxu0 %v6959
      %v7120 = vpop.f32.mrb[0].mxu0
      %v7121 = vadd.f32 0.0, %v7120
      %v7122 = vpop.f32.mrb[0].mxu0
      %7123 = vmatprep.mubr.f32.mxu0 0.0
      %7124 = vmatmul.mubr.f32.gmra.mrb[0].mxu0 %v6962
      %v7125 = vpop.f32.mrb[0].mxu0
      %v7126 = vadd.f32 0.0, %v7125
      %v7127 = vpop.f32.mrb[0].mxu0
      %7128 = vmatprep.mubr.f32.mxu0 0.0
      %7129 = vmatmul.mubr.f32.gmra.mrb[0].mxu0 %v6965
      %v7130 = vpop.f32.mrb[0].mxu0
      %v7131 = vadd.f32 0.0, %v7130
      %v7132 = vpop.f32.mrb[0].mxu0
      %7133 = vmatprep.mubr.f32.mxu0 0.0
      %7134 = vmatmul.mubr.f32.gmra.mrb[0].mxu0 %v6968
      %v7135 = vpop.f32.mrb[0].mxu0
      %v7136 = vadd.f32 0.0, %v7135
      %v7137 = vpop.f32.mrb[0].mxu0
      %7138 = vmatprep.mubr.f32.mxu0 0.0
      %7139 = vmatmul.mubr.f32.gmra.mrb[0].mxu0 %v6971
      %v7140 = vpop.f32.mrb[0].mxu0
      %v7141 = vadd.f32 0.0, %v7140
      %v7142 = vpop.f32.mrb[0].mxu0
      %7143 = vmatprep.mubr.f32.mxu0 0.0
      %7144 = vmatmul.mubr.f32.gmra.mrb[0].mxu0 %v6974
      %v7145 = vpop.f32.mrb[0].mxu0
      %v7146 = vadd.f32 0.0, %v7145
      %v7147 = vpop.f32.mrb[0].mxu0
      %7148 = vmatprep.mubr.f32.mxu0 0.0
      %7149 = vmatmul.mubr.f32.gmra.mrb[0].mxu0 %v6977
      %v7150 = vpop.f32.mrb[0].mxu0
      %v7151 = vadd.f32 0.0, %v7150
      %v7152 = vpop.f32.mrb[0].mxu0
      %7153 = vmatprep.mubr.f32.mxu0 0.0
      %7154 = vmatmul.mubr.f32.gmra.mrb[0].mxu0 %v6980
      %v7155 = vpop.f32.mrb[0].mxu0
      %v7156 = vadd.f32 0.0, %v7155
      %v7157 = vpop.f32.mrb[0].mxu0
      %7158 = vmatprep.mubr.f32.mxu0 0.0
      %7159 = vmatmul.mubr.f32.gmra.mrb[0].mxu0 %v6983
      %v7160 = vpop.f32.mrb[0].mxu0
      %v7161 = vadd.f32 0.0, %v7160
      %v7162 = vpop.f32.mrb[0].mxu0
      %7163 = vmatprep.mubr.f32.mxu0 0.0
      %7164 = vmatmul.mubr.f32.gmra.mrb[0].mxu0 %v6986
      %v7165 = vpop.f32.mrb[0].mxu0
      %v7166 = vadd.f32 0.0, %v7165
      %v7167 = vpop.f32.mrb[0].mxu0
      %7168 = vmatprep.mubr.f32.mxu0 0.0
      %7169 = vmatmul.mubr.f32.gmra.mrb[0].mxu0 %v6989
      %v7170 = vpop.f32.mrb[0].mxu0
      %v7171 = vadd.f32 0.0, %v7170
      %v7172 = vpop.f32.mrb[0].mxu0
      %7173 = vmatprep.mubr.f32.mxu0 0.0
      %7174 = vmatmul.mubr.f32.gmra.mrb[0].mxu0 %v6992
      %v7175 = vpop.f32.mrb[0].mxu0
      %v7176 = vadd.f32 0.0, %v7175
      %v7177 = vpop.f32.mrb[0].mxu0
      %7178 = vmatprep.mubr.f32.mxu0 0.0
      %7179 = vmatmul.mubr.f32.gmra.mrb[0].mxu0 %v6995
      %v7180 = vpop.f32.mrb[0].mxu0
      %v7181 = vadd.f32 0.0, %v7180
      %v7182 = vpop.f32.mrb[0].mxu0
      %7183 = vmatprep.mubr.f32.mxu0 0.0
      %7184 = vmatmul.mubr.f32.gmra.mrb[0].mxu0 %v6998
      %v7185 = vpop.f32.mrb[0].mxu0
      %v7186 = vadd.f32 0.0, %v7185
      %v7187 = vpop.f32.mrb[0].mxu0
      %7188 = vmatprep.mubr.f32.mxu0 0.0
      %7189 = vmatmul.mubr.f32.gmra.mrb[0].mxu0 %v7001
      %v7190 = vpop.f32.mrb[0].mxu0
      %v7191 = vadd.f32 0.0, %v7190
      %v7192 = vpop.f32.mrb[0].mxu0
      %7193 = vmatprep.mubr.f32.mxu0 0.0
      %7194 = vmatmul.mubr.f32.gmra.mrb[0].mxu0 %v7004
      %v7195 = vpop.f32.mrb[0].mxu0
      %v7196 = vadd.f32 0.0, %v7195
      %v7197 = vpop.f32.mrb[0].mxu0
      %7198 = vmatprep.mubr.f32.mxu0 0.0
      %7199 = vmatmul.mubr.f32.gmra.mrb[0].mxu0 %v7007
      %v7200 = vpop.f32.mrb[0].mxu0
      %v7201 = vadd.f32 0.0, %v7200
      %v7202 = vpop.f32.mrb[0].mxu0
      %7203 = vmatprep.mubr.f32.mxu0 0.0
      %7204 = vmatmul.mubr.f32.gmra.mrb[0].mxu0 %v7010
      %v7205 = vpop.f32.mrb[0].mxu0
      %v7206 = vadd.f32 0.0, %v7205
      %v7207 = vpop.f32.mrb[0].mxu0
      %7208 = vmatprep.mubr.f32.mxu0 0.0
      %7209 = vmatmul.mubr.f32.gmra.mrb[0].mxu0 %v7013
      %v7210 = vpop.f32.mrb[0].mxu0
      %v7211 = vadd.f32 0.0, %v7210
      %v7212 = vpop.f32.mrb[0].mxu0
      %7213 = vmatprep.mubr.f32.mxu0 0.0
      %7214 = vmatmul.mubr.f32.gmra.mrb[0].mxu0 %v7016
      %v7215 = vpop.f32.mrb[0].mxu0
      %v7216 = vadd.f32 0.0, %v7215
      %v7217 = vpop.f32.mrb[0].mxu0
      %7218 = vmatprep.mubr.f32.mxu0 0.0
      %7219 = vmatmul.mubr.f32.gmra.mrb[0].mxu0 %v7019
      %v7220 = vpop.f32.mrb[0].mxu0
      %v7221 = vadd.f32 0.0, %v7220
      %v7222 = vpop.f32.mrb[0].mxu0
      %7223 = vmatprep.mubr.f32.mxu0 0.0
      %7224 = vmatmul.mubr.f32.gmra.mrb[0].mxu0 %v7022
      %v7225 = vpop.f32.mrb[0].mxu0
      %v7226 = vadd.f32 0.0, %v7225
      %v7227 = vpop.f32.mrb[0].mxu0
      %7228 = vmatprep.mubr.f32.mxu0 0.0
      %7229 = vmatmul.mubr.f32.gmra.mrb[0].mxu0 %v7025
      %v7230 = vpop.f32.mrb[0].mxu0
      %v7231 = vadd.f32 0.0, %v7230
      %v7232 = vpop.f32.mrb[0].mxu0
      %7233 = vmatprep.mubr.f32.mxu0 0.0
      %7234 = vmatmul.mubr.f32.gmra.mrb[0].mxu0 %v7028
      %v7235 = vpop.f32.mrb[0].mxu0
      %v7236 = vadd.f32 0.0, %v7235
      %v7237 = vpop.f32.mrb[0].mxu0
      %7238 = vmatprep.mubr.f32.mxu0 0.0
      %7239 = vmatmul.mubr.f32.gmra.mrb[0].mxu0 %v7031
      %v7240 = vpop.f32.mrb[0].mxu0
      %v7241 = vadd.f32 0.0, %v7240
      %v7242 = vpop.f32.mrb[0].mxu0
      %7243 = vmatprep.mubr.f32.mxu0 0.0
      %7244 = vmatmul.mubr.f32.gmra.mrb[0].mxu0 %v7034
      %v7245 = vpop.f32.mrb[0].mxu0
      %v7246 = vadd.f32 0.0, %v7245
      %v7247 = vpop.f32.mrb[0].mxu0
      %7248 = vmatprep.mubr.f32.mxu0 0.0
      %7249 = vmatmul.mubr.f32.gmra.mrb[0].mxu0 %v7037
      %v7250 = vpop.f32.mrb[0].mxu0
      %v7251 = vadd.f32 0.0, %v7250
      %v7252 = vpop.f32.mrb[0].mxu0
      %7253 = vmatprep.mubr.f32.mxu0 0.0
      %7254 = vmatmul.mubr.f32.gmra.mrb[0].mxu0 %v7040
      %v7255 = vpop.f32.mrb[0].mxu0
      %v7256 = vadd.f32 0.0, %v7255
      %v7257 = vpop.f32.mrb[0].mxu0
      %7258 = vmatprep.mubr.f32.mxu0 0.0
      %7259 = vmatmul.mubr.f32.gmra.mrb[0].mxu0 %v7043
      %v7260 = vpop.f32.mrb[0].mxu0
      %v7261 = vadd.f32 0.0, %v7260
      %v7262 = vpop.f32.mrb[0].mxu0
      %7263 = vmatprep.mubr.f32.mxu0 0.0
      %7264 = vmatmul.mubr.f32.gmra.mrb[0].mxu0 %v7046
      %v7265 = vpop.f32.mrb[0].mxu0
      %v7266 = vadd.f32 0.0, %v7265
      %v7267 = vpop.f32.mrb[0].mxu0
      %7268 = vmatprep.mubr.f32.mxu0 0.0
      %7269 = vmatmul.mubr.f32.gmra.mrb[0].mxu0 %v7049
      %v7270 = vpop.f32.mrb[0].mxu0
      %v7271 = vadd.f32 0.0, %v7270
      %v7272 = vpop.f32.mrb[0].mxu0
      %7273 = vmatprep.mubr.f32.mxu0 0.0
      %7274 = vmatmul.mubr.f32.gmra.mrb[0].mxu0 %v7052
      %v7275 = vpop.f32.mrb[0].mxu0
      %v7276 = vadd.f32 0.0, %v7275
      %v7277 = vpop.f32.mrb[0].mxu0
      %7278 = vdwg.mxu0
      %v7279 = vadd.f32 %v6892, %v7121
      %v7280 = vadd.f32 %v6893, %v7126
      %v7281 = vadd.f32 %v6894, %v7131
      %v7282 = vadd.f32 %v6895, %v7136
      %v7283 = vadd.f32 %v6896, %v7141
      %v7284 = vadd.f32 %v6897, %v7146
      %v7285 = vadd.f32 %v6898, %v7151
      %v7286 = vadd.f32 %v6899, %v7156
      %v7287 = vadd.f32 %v6900, %v7161
      %v7288 = vadd.f32 %v6901, %v7166
      %v7289 = vadd.f32 %v6902, %v7171
      %v7290 = vadd.f32 %v6903, %v7176
      %v7291 = vadd.f32 %v6904, %v7181
      %v7292 = vadd.f32 %v6905, %v7186
      %v7293 = vadd.f32 %v6906, %v7191
      %v7294 = vadd.f32 %v6907, %v7196
      %v7295 = vadd.f32 %v6908, %v7201
      %v7296 = vadd.f32 %v6909, %v7206
      %v7297 = vadd.f32 %v6910, %v7211
      %v7298 = vadd.f32 %v6911, %v7216
      %v7299 = vadd.f32 %v6912, %v7221
      %v7300 = vadd.f32 %v6913, %v7226
      %v7301 = vadd.f32 %v6914, %v7231
      %v7302 = vadd.f32 %v6915, %v7236
      %v7303 = vadd.f32 %v6916, %v7241
      %v7304 = vadd.f32 %v6917, %v7246
      %v7305 = vadd.f32 %v6918, %v7251
      %v7306 = vadd.f32 %v6919, %v7256
      %v7307 = vadd.f32 %v6920, %v7261
      %v7308 = vadd.f32 %v6921, %v7266
      %v7309 = vadd.f32 %v6922, %v7271
      %v7310 = vadd.f32 %v6923, %v7276
      %v7311 = vld [vmem:[%s219] sm:$0xff]
      %v7312 = vld [vmem:[%s219 + $0x8] sm:$0xff]
      %v7313 = vld [vmem:[%s219 + $0x10] sm:$0xff]
      %v7314 = vld [vmem:[%s219 + $0x18] sm:$0xff]
      %v7315 = vld [vmem:[%s219 + $0x20] sm:$0xff]
      %v7316 = vld [vmem:[%s219 + $0x28] sm:$0xff]
      %v7317 = vld [vmem:[%s219 + $0x30] sm:$0xff]
      %v7318 = vld [vmem:[%s219 + $0x38] sm:$0xff]
      %v7319 = vld [vmem:[%s219 + $0x40] sm:$0xff]
      %v7320 = vld [vmem:[%s219 + $0x48] sm:$0xff]
      %v7321 = vld [vmem:[%s219 + $0x50] sm:$0xff]
      %v7322 = vld [vmem:[%s219 + $0x58] sm:$0xff]
      %v7323 = vld [vmem:[%s219 + $0x60] sm:$0xff]
      %v7324 = vld [vmem:[%s219 + $0x68] sm:$0xff]
      %v7325 = vld [vmem:[%s219 + $0x70] sm:$0xff]
      %v7326 = vld [vmem:[%s219 + $0x78] sm:$0xff]
      %v7327 = vld [vmem:[%s219 + $0x80] sm:$0xff]
      %v7328 = vld [vmem:[%s219 + $0x88] sm:$0xff]
      %v7329 = vld [vmem:[%s219 + $0x90] sm:$0xff]
      %v7330 = vld [vmem:[%s219 + $0x98] sm:$0xff]
      %v7331 = vld [vmem:[%s219 + $0xa0] sm:$0xff]
      %v7332 = vld [vmem:[%s219 + $0xa8] sm:$0xff]
      %v7333 = vld [vmem:[%s219 + $0xb0] sm:$0xff]
      %v7334 = vld [vmem:[%s219 + $0xb8] sm:$0xff]
      %v7335 = vld [vmem:[%s219 + $0xc0] sm:$0xff]
      %v7336 = vld [vmem:[%s219 + $0xc8] sm:$0xff]
      %v7337 = vld [vmem:[%s219 + $0xd0] sm:$0xff]
      %v7338 = vld [vmem:[%s219 + $0xd8] sm:$0xff]
      %v7339 = vld [vmem:[%s219 + $0xe0] sm:$0xff]
      %v7340 = vld [vmem:[%s219 + $0xe8] sm:$0xff]
      %v7341 = vld [vmem:[%s219 + $0xf0] sm:$0xff]
      %v7342 = vld [vmem:[%s219 + $0xf8] sm:$0xff]
      %v7343 = vadd.f32 %v7279, %v7311
      %v7344 = vadd.f32 %v7280, %v7312
      %v7345 = vadd.f32 %v7281, %v7313
      %v7346 = vadd.f32 %v7282, %v7314
      %v7347 = vadd.f32 %v7283, %v7315
      %v7348 = vadd.f32 %v7284, %v7316
      %v7349 = vadd.f32 %v7285, %v7317
      %v7350 = vadd.f32 %v7286, %v7318
      %v7351 = vadd.f32 %v7287, %v7319
      %v7352 = vadd.f32 %v7288, %v7320
      %v7353 = vadd.f32 %v7289, %v7321
      %v7354 = vadd.f32 %v7290, %v7322
      %v7355 = vadd.f32 %v7291, %v7323
      %v7356 = vadd.f32 %v7292, %v7324
      %v7357 = vadd.f32 %v7293, %v7325
      %v7358 = vadd.f32 %v7294, %v7326
      %v7359 = vadd.f32 %v7295, %v7327
      %v7360 = vadd.f32 %v7296, %v7328
      %v7361 = vadd.f32 %v7297, %v7329
      %v7362 = vadd.f32 %v7298, %v7330
      %v7363 = vadd.f32 %v7299, %v7331
      %v7364 = vadd.f32 %v7300, %v7332
      %v7365 = vadd.f32 %v7301, %v7333
      %v7366 = vadd.f32 %v7302, %v7334
      %v7367 = vadd.f32 %v7303, %v7335
      %v7368 = vadd.f32 %v7304, %v7336
      %v7369 = vadd.f32 %v7305, %v7337
      %v7370 = vadd.f32 %v7306, %v7338
      %v7371 = vadd.f32 %v7307, %v7339
      %v7372 = vadd.f32 %v7308, %v7340
      %v7373 = vadd.f32 %v7309, %v7341
      %v7374 = vadd.f32 %v7310, %v7342
      %v7375 = vmax.f32 %v7343, 0.0
      %v7376 = vmax.f32 %v7344, 0.0
      %v7377 = vmax.f32 %v7345, 0.0
      %v7378 = vmax.f32 %v7346, 0.0
      %v7379 = vmax.f32 %v7347, 0.0
      %v7380 = vmax.f32 %v7348, 0.0
      %v7381 = vmax.f32 %v7349, 0.0
      %v7382 = vmax.f32 %v7350, 0.0
      %v7383 = vmax.f32 %v7351, 0.0
      %v7384 = vmax.f32 %v7352, 0.0
      %v7385 = vmax.f32 %v7353, 0.0
      %v7386 = vmax.f32 %v7354, 0.0
      %v7387 = vmax.f32 %v7355, 0.0
      %v7388 = vmax.f32 %v7356, 0.0
      %v7389 = vmax.f32 %v7357, 0.0
      %v7390 = vmax.f32 %v7358, 0.0
      %v7391 = vmax.f32 %v7359, 0.0
      %v7392 = vmax.f32 %v7360, 0.0
      %v7393 = vmax.f32 %v7361, 0.0
      %v7394 = vmax.f32 %v7362, 0.0
      %v7395 = vmax.f32 %v7363, 0.0
      %v7396 = vmax.f32 %v7364, 0.0
      %v7397 = vmax.f32 %v7365, 0.0
      %v7398 = vmax.f32 %v7366, 0.0
      %v7399 = vmax.f32 %v7367, 0.0
      %v7400 = vmax.f32 %v7368, 0.0
      %v7401 = vmax.f32 %v7369, 0.0
      %v7402 = vmax.f32 %v7370, 0.0
      %v7403 = vmax.f32 %v7371, 0.0
      %v7404 = vmax.f32 %v7372, 0.0
      %v7405 = vmax.f32 %v7373, 0.0
      %v7406 = vmax.f32 %v7374, 0.0
      %7407 = vst.msk [vmem:[%s224] sm:$0xff] %vm225, %v7375
      %7408 = vst.msk [vmem:[%s224 + $0x8] sm:$0xff] %vm225, %v7376
      %7409 = vst.msk [vmem:[%s224 + $0x10] sm:$0xff] %vm225, %v7377
      %7410 = vst.msk [vmem:[%s224 + $0x18] sm:$0xff] %vm225, %v7378
      %7411 = vst.msk [vmem:[%s224 + $0x20] sm:$0xff] %vm225, %v7379
      %7412 = vst.msk [vmem:[%s224 + $0x28] sm:$0xff] %vm225, %v7380
      %7413 = vst.msk [vmem:[%s224 + $0x30] sm:$0xff] %vm225, %v7381
      %7414 = vst.msk [vmem:[%s224 + $0x38] sm:$0xff] %vm225, %v7382
      %7415 = vst.msk [vmem:[%s224 + $0x40] sm:$0xff] %vm225, %v7383
      %7416 = vst.msk [vmem:[%s224 + $0x48] sm:$0xff] %vm225, %v7384
      %7417 = vst.msk [vmem:[%s224 + $0x50] sm:$0xff] %vm225, %v7385
      %7418 = vst.msk [vmem:[%s224 + $0x58] sm:$0xff] %vm225, %v7386
      %7419 = vst.msk [vmem:[%s224 + $0x60] sm:$0xff] %vm225, %v7387
      %7420 = vst.msk [vmem:[%s224 + $0x68] sm:$0xff] %vm225, %v7388
      %7421 = vst.msk [vmem:[%s224 + $0x70] sm:$0xff] %vm225, %v7389
      %7422 = vst.msk [vmem:[%s224 + $0x78] sm:$0xff] %vm225, %v7390
      %7423 = vst.msk [vmem:[%s224 + $0x80] sm:$0xff] %vm225, %v7391
      %7424 = vst.msk [vmem:[%s224 + $0x88] sm:$0xff] %vm225, %v7392
      %7425 = vst.msk [vmem:[%s224 + $0x90] sm:$0xff] %vm225, %v7393
      %7426 = vst.msk [vmem:[%s224 + $0x98] sm:$0xff] %vm225, %v7394
      %7427 = vst.msk [vmem:[%s224 + $0xa0] sm:$0xff] %vm225, %v7395
      %7428 = vst.msk [vmem:[%s224 + $0xa8] sm:$0xff] %vm225, %v7396
      %7429 = vst.msk [vmem:[%s224 + $0xb0] sm:$0xff] %vm225, %v7397
      %7430 = vst.msk [vmem:[%s224 + $0xb8] sm:$0xff] %vm225, %v7398
      %7431 = vst.msk [vmem:[%s224 + $0xc0] sm:$0xff] %vm225, %v7399
      %7432 = vst.msk [vmem:[%s224 + $0xc8] sm:$0xff] %vm225, %v7400
      %7433 = vst.msk [vmem:[%s224 + $0xd0] sm:$0xff] %vm225, %v7401
      %7434 = vst.msk [vmem:[%s224 + $0xd8] sm:$0xff] %vm225, %v7402
      %7435 = vst.msk [vmem:[%s224 + $0xe0] sm:$0xff] %vm225, %v7403
      %7436 = vst.msk [vmem:[%s224 + $0xe8] sm:$0xff] %vm225, %v7404
      %7437 = vst.msk [vmem:[%s224 + $0xf0] sm:$0xff] %vm225, %v7405
      %7438 = vst.msk [vmem:[%s224 + $0xf8] sm:$0xff] %vm225, %v7406
      %p7439 = scmp.lt.s32.totalorder %s16, 1
      %s7440 = scalar_select %p7439, %s16, 1
      %s7441 = smul.addr %s7440, 32
      %s7442 = smul.addr %s7441, 8
      %s7443 = scalar_lea.vmem %s5, %s7442
      // Predicated region
      $region41: #{tpu_custom_call.1} parent=39 // pred_check
        %p7444 = pneg %p144
      $region42: #{tpu_custom_call.1} parent=39 // pred_check_branch
        %7446 = sbr.rel (%p7444) target = $region44
      $region43: #{tpu_custom_call.1} parent=39 // pred_region
        _
      $region44: #{tpu_custom_call.1} parent=39 // pred_fallthru
        _
    $region40: #{tpu_custom_call.1} parent=5 // pred_fallthru
      _
    %p7447 = scmp.le.s32.totalorder 2, %s11
    // Predicated region
    $region45: #{tpu_custom_call.1} parent=5 // pred_check
      %p7448 = pneg %p7447
    $region46: #{tpu_custom_call.1} parent=5 // pred_check_branch
      %7450 = sbr.rel (%p7448) target = $region48
    $region47: #{tpu_custom_call.1} parent=5 // pred_region
      %s7451 = ssub.s32 %s11, 2
      // Predicated region
      $region49: #{tpu_custom_call.1} parent=47 // pred_check
        %p7452 = pneg %p150
      $region50: #{tpu_custom_call.1} parent=47 // pred_check_branch
        %7454 = sbr.rel (%p7452) target = $region52
      $region51: #{tpu_custom_call.1} parent=47 // pred_region
        %p7455 = scmp.lt.s32.totalorder %s17, 1
        %s7456 = scalar_select %p7455, %s17, 1
        %s7457 = smul.addr %s7456, 32
        %s7458 = smul.addr %s7457, 8
        %s7459 = scalar_lea.vmem %s5, %s7458
      $region52: #{tpu_custom_call.1} parent=47 // pred_fallthru
        _
    $region48: #{tpu_custom_call.1} parent=5 // pred_fallthru
      _
  $region6: #{tpu_custom_call.1} parent=0 // loop_footer
    %s15 = sadd.s32 1, %s11
  $region7: #{tpu_custom_call.1} parent=0 // loop_footer_branch
    %10 = sbr.rel target = $region3
  $region8: #{tpu_custom_call.1} parent=0 // loop_exit
    _

</llo_original>
